<compile_context>
chip_gen: v5e
topology: v5e:2x2
jax: 0.10.0
libtpu: 0.0.40
codegen_flags: <defaults>
</compile_context>

<pallas_src>
import functools

import jax
import jax.numpy as jnp
from jax.experimental import pallas as pl
from jax.experimental.pallas import tpu as pltpu


def _round_up(x, m):
    return ((x + m - 1) // m) * m


# compiler-params class name differs across jax versions
_CompilerParams = getattr(pltpu, "CompilerParams", None) or getattr(pltpu, "TPUCompilerParams")


def _apply_act(x, act, slope):
    if act == "leaky":
        return jnp.where(x >= 0, x, slope * x)
    if act == "tanh":
        return jnp.tanh(x)
    return x


# ---------------------------------------------------------------------------
# Pallas kernel: tiled  (A @ W) + bias [+ residual] + activation
# ---------------------------------------------------------------------------
def _mm_kernel(*refs, act, slope, tk, nk, has_res):
    if has_res:
        a_ref, w_ref, b_ref, r_ref, o_ref, acc_ref = refs
    else:
        a_ref, w_ref, b_ref, o_ref, acc_ref = refs
        r_ref = None
    k = pl.program_id(2)

    @pl.when(k == 0)
    def _init():
        acc_ref[...] = jnp.zeros_like(acc_ref)

    if nk == 1:
        w_tile = w_ref[...]                                   # whole (resident) weight block
    else:
        w_tile = w_ref[pl.ds(pl.multiple_of(k * tk, 128), tk), :]
    acc_ref[...] += jnp.dot(a_ref[...], w_tile, preferred_element_type=jnp.float32)

    @pl.when(k == nk - 1)
    def _finalize():
        y = acc_ref[...] + b_ref[...]
        if has_res:
            y = y + r_ref[...]
        o_ref[...] = _apply_act(y, act, slope).astype(o_ref.dtype)


def matmul_bias_act(A, Wm, bias, *, residual=None, act="none", slope=0.02):
    """A:(M,K) @ Wm:(K,Cout) + bias (+residual) -> activation (tiled Pallas matmul).

    MXU operands in bf16; accumulate / bias / residual / activation in f32.
    Cout is zero-padded to a multiple of 128 for lane-dense output stores.
    """
    M, K = A.shape
    Kw, Cout = Wm.shape
    assert K == Kw
    has_res = residual is not None

    # --- tile sizes (sized to stay well under v7x's 64 MiB VMEM; 256-wide N/K
    #     tiles when possible to feed the 256x256 MXU of v6e/v7x) ---
    N_pad = _round_up(Cout, 128)
    tn = 256 if N_pad % 256 == 0 else 128
    K_pad = _round_up(K, 128)
    if K_pad <= 1024:
        tk = K_pad                      # single K step: weights fully resident
    else:
        tk = 512
        K_pad = _round_up(K_pad, tk)
    tm = min(512, _round_up(M, 8))
    M_pad = _round_up(M, tm)
    nm, nn, nk = M_pad // tm, N_pad // tn, K_pad // tk

    # --- operand packing / padding (glue) ---
    A_p = jnp.pad(A.astype(jnp.bfloat16), ((0, M_pad - M), (0, K_pad - K)))
    W_p = jnp.pad(Wm.astype(jnp.bfloat16), ((0, K_pad - K), (0, N_pad - Cout)))
    b_p = jnp.pad(bias.reshape(1, Cout).astype(jnp.float32),
                  ((0, 0), (0, N_pad - Cout)))

    in_specs = [
        pl.BlockSpec((tm, tk), lambda i, j, k: (i, k)),      # stream A tiles
        pl.BlockSpec((K_pad, tn), lambda i, j, k: (0, j)),   # weights resident across i, k
        pl.BlockSpec((1, tn), lambda i, j, k: (0, j)),       # bias
    ]
    args = [A_p, W_p, b_p]
    if has_res:
        r_p = jnp.pad(residual.astype(jnp.float32),
                      ((0, M_pad - M), (0, N_pad - Cout)))
        in_specs.append(pl.BlockSpec((tm, tn), lambda i, j, k: (i, j)))
        args.append(r_p)

    # scoped-VMEM sizing: double-buffered tiles + accumulator, 2x margin.
    est = 2 * (tm * tk * 2 + K_pad * tn * 2 + 8 * tn * 4 + tm * tn * 4
               + (tm * tn * 4 if has_res else 0)) + tm * tn * 4
    vmem_limit = int(min(64 << 20, max(2 * est + (4 << 20), 16 << 20)))

    kern = functools.partial(_mm_kernel, act=act, slope=slope,
                             tk=tk, nk=nk, has_res=has_res)
    out = pl.pallas_call(
        kern,
        out_shape=jax.ShapeDtypeStruct((M_pad, N_pad), jnp.float32),
        grid=(nm, nn, nk),
        in_specs=in_specs,
        out_specs=pl.BlockSpec((tm, tn), lambda i, j, k: (i, j)),
        scratch_shapes=[pltpu.VMEM((tm, tn), jnp.float32)],
        compiler_params=_CompilerParams(
            dimension_semantics=("parallel", "parallel", "arbitrary"),
            vmem_limit_bytes=vmem_limit),
    )(*args)
    return out[:M, :Cout]


# ---------------------------------------------------------------------------
# Conv / ConvTranspose wrappers (im2col + padding are glue; matmul is Pallas)
# ---------------------------------------------------------------------------
def conv2d(x, w, b, *, stride=1, padding=0, act="none", slope=0.02, residual=None):
    """x: (N,H,W,Cin) NHWC; w: (KH,KW,Cin,Cout); b: (Cout,)."""
    N, H, W_, Cin = x.shape
    KH, KW, _, Cout = w.shape
    if isinstance(padding, int):
        pad_h = pad_w = (padding, padding)
    else:
        pad_h, pad_w = padding
    xp = jnp.pad(x, ((0, 0), pad_h, pad_w, (0, 0)))
    Hp = H + pad_h[0] + pad_h[1]
    Wp = W_ + pad_w[0] + pad_w[1]
    Ho = (Hp - KH) // stride + 1
    Wo = (Wp - KW) // stride + 1
    cols = []
    for kh in range(KH):
        for kw in range(KW):
            cols.append(
                xp[:, kh:kh + stride * (Ho - 1) + 1:stride,
                      kw:kw + stride * (Wo - 1) + 1:stride, :])
    A = jnp.concatenate(cols, axis=-1).reshape(N * Ho * Wo, KH * KW * Cin)
    Wm = w.reshape(KH * KW * Cin, Cout)
    res_flat = None if residual is None else residual.reshape(N * Ho * Wo, Cout)
    y = matmul_bias_act(A, Wm, b, residual=res_flat, act=act, slope=slope)
    return y.reshape(N, Ho, Wo, Cout)


def conv_transpose2d(x, w_t, b, *, stride=2, padding=1, output_padding=1,
                     act="none", slope=0.02):
    """ConvTranspose2d(k=3, s=2, p=1, out_p=1) via 4-phase sub-pixel decomposition.

    w_t uses PyTorch layout (Cin, Cout, KH, KW).  Output pixel (2m+a, 2n+b)
    only receives contributions from a fixed subset of kernel taps, so the
    transpose conv is 4 small stride-1 convs on the un-dilated input; their
    outputs interleave into the 2x-upsampled result (no zero-FLOP waste).
    """
    assert stride == 2 and padding == 1 and output_padding == 1
    Cin, Cout, KH, KW = w_t.shape
    assert KH == 3 and KW == 3
    N, H, W_, _ = x.shape

    # Phase kernels in HWIO layout (tap offset (dh,dw) multiplies x[m+dh, n+dw]).
    w00 = w_t[:, :, 1, 1][None, None]                                       # (1,1,Cin,Cout)
    w01 = jnp.stack([w_t[:, :, 1, 2], w_t[:, :, 1, 0]], axis=0)[None]       # (1,2,Cin,Cout)
    w10 = jnp.stack([w_t[:, :, 2, 1], w_t[:, :, 0, 1]], axis=0)[:, None]    # (2,1,Cin,Cout)
    w11 = jnp.stack([jnp.stack([w_t[:, :, 2, 2], w_t[:, :, 2, 0]], axis=0),
                     jnp.stack([w_t[:, :, 0, 2], w_t[:, :, 0, 0]], axis=0)],
                    axis=0)                                                  # (2,2,Cin,Cout)

    p00 = conv2d(x, w00, b, stride=1, padding=((0, 0), (0, 0)), act=act, slope=slope)
    p01 = conv2d(x, w01, b, stride=1, padding=((0, 0), (0, 1)), act=act, slope=slope)
    p10 = conv2d(x, w10, b, stride=1, padding=((0, 1), (0, 0)), act=act, slope=slope)
    p11 = conv2d(x, w11, b, stride=1, padding=((0, 1), (0, 1)), act=act, slope=slope)

    even = jnp.stack([p00, p01], axis=3).reshape(N, H, 2 * W_, Cout)   # rows 2m
    odd = jnp.stack([p10, p11], axis=3).reshape(N, H, 2 * W_, Cout)    # rows 2m+1
    return jnp.stack([even, odd], axis=2).reshape(N, 2 * H, 2 * W_, Cout)


# ---------------------------------------------------------------------------
# Parameter construction (deterministic, synthetic)
# ---------------------------------------------------------------------------
def _conv_params(key, kh, kw, cin, cout):
    kw_, kb_ = jax.random.split(key)
    scale = 1.0 / jnp.sqrt(jnp.float32(kh * kw * cin))
    w = jax.random.normal(kw_, (kh, kw, cin, cout), jnp.float32) * scale
    b = jax.random.normal(kb_, (cout,), jnp.float32) * 0.01
    return w, b


def _convT_params(key, cin, cout, kh, kw):
    kw_, kb_ = jax.random.split(key)
    scale = 1.0 / jnp.sqrt(jnp.float32(kh * kw * cin))
    w = jax.random.normal(kw_, (cin, cout, kh, kw), jnp.float32) * scale
    b = jax.random.normal(kb_, (cout,), jnp.float32) * 0.01
    return w, b


def init_params(key, *, img_channels=3, n=8, resnet_blocks=4):
    keys = jax.random.split(key, 8 + 2 * resnet_blocks)
    it = iter(keys)
    p = {}
    p["enc0"] = _conv_params(next(it), 7, 7, img_channels, n)
    p["enc1"] = _conv_params(next(it), 3, 3, n, n * 2)
    p["enc2"] = _conv_params(next(it), 3, 3, n * 2, n * 4)
    p["enc3"] = _conv_params(next(it), 3, 3, n * 4, n * 8)
    p["res_blocks"] = []
    for _ in range(resnet_blocks):
        w1, b1 = _conv_params(next(it), 3, 3, n * 8, n * 8)
        w2, b2 = _conv_params(next(it), 3, 3, n * 8, n * 8)
        p["res_blocks"].append({"w1": w1, "b1": b1, "w2": w2, "b2": b2})
    p["dec0"] = _convT_params(next(it), n * 8, n * 4, 3, 3)
    p["dec1"] = _convT_params(next(it), n * 4, n * 2, 3, 3)
    p["dec2"] = _convT_params(next(it), n * 2, n, 3, 3)
    p["dec3"] = _conv_params(next(it), 7, 7, n, img_channels)
    return p


# ---------------------------------------------------------------------------
# Forward pass (mirrors ResnetGenerator.forward)
# ---------------------------------------------------------------------------
def resnet_generator_forward(params, x_nchw, *, slope=0.02):
    x = jnp.transpose(x_nchw, (0, 2, 3, 1)).astype(jnp.float32)  # NCHW -> NHWC

    # encoder
    x = conv2d(x, *params["enc0"], stride=1, padding=3, act="leaky", slope=slope)
    x = conv2d(x, *params["enc1"], stride=2, padding=1, act="leaky", slope=slope)
    x = conv2d(x, *params["enc2"], stride=2, padding=1, act="leaky", slope=slope)
    x = conv2d(x, *params["enc3"], stride=2, padding=1, act="leaky", slope=slope)

    # transformer (resnet blocks): out = x + conv2(leaky(conv1(x))); skip fused in kernel
    for blk in params["res_blocks"]:
        h = conv2d(x, blk["w1"], blk["b1"], stride=1, padding=1,
                   act="leaky", slope=slope)
        x = conv2d(h, blk["w2"], blk["b2"], stride=1, padding=1,
                   act="none", residual=x)

    # decoder
    x = conv_transpose2d(x, *params["dec0"], act="leaky", slope=slope)
    x = conv_transpose2d(x, *params["dec1"], act="leaky", slope=slope)
    x = conv_transpose2d(x, *params["dec2"], act="leaky", slope=slope)
    x = conv2d(x, *params["dec3"], stride=1, padding=3, act="tanh")

    return jnp.transpose(x, (0, 3, 1, 2))  # NHWC -> NCHW


# ---------------------------------------------------------------------------
# Pure-JAX reference (XLA convs) for correctness checking
# ---------------------------------------------------------------------------
def _ref_conv2d(x, w, b, *, stride=1, padding=0, act="none", slope=0.02, residual=None):
    if isinstance(padding, int):
        pad = ((padding, padding), (padding, padding))
    else:
        pad = (tuple(padding[0]), tuple(padding[1]))
    y = jax.lax.conv_general_dilated(
        x.astype(jnp.bfloat16), w.astype(jnp.bfloat16),
        window_strides=(stride, stride), padding=pad,
        dimension_numbers=("NHWC", "HWIO", "NHWC"),
        preferred_element_type=jnp.float32)
    y = y + b.reshape(1, 1, 1, -1).astype(jnp.float32)
    if residual is not None:
        y = y + residual
    return _apply_act(y, act, slope)


def _ref_conv_transpose2d(x, w_t, b, *, stride=2, padding=1, output_padding=1,
                          act="none", slope=0.02):
    Cin, Cout, KH, KW = w_t.shape
    w_eq = jnp.flip(w_t, axis=(2, 3)).transpose(2, 3, 0, 1)  # (KH,KW,Cin,Cout)
    lo = KH - 1 - padding
    hi = KH - 1 - padding + output_padding
    y = jax.lax.conv_general_dilated(
        x.astype(jnp.bfloat16), w_eq.astype(jnp.bfloat16),
        window_strides=(1, 1), padding=((lo, hi), (lo, hi)),
        lhs_dilation=(stride, stride),
        dimension_numbers=("NHWC", "HWIO", "NHWC"),
        preferred_element_type=jnp.float32)
    y = y + b.reshape(1, 1, 1, -1).astype(jnp.float32)
    return _apply_act(y, act, slope)


def _ref_forward(params, x_nchw, *, slope=0.02):
    x = jnp.transpose(x_nchw, (0, 2, 3, 1)).astype(jnp.float32)
    x = _ref_conv2d(x, *params["enc0"], stride=1, padding=3, act="leaky", slope=slope)
    x = _ref_conv2d(x, *params["enc1"], stride=2, padding=1, act="leaky", slope=slope)
    x = _ref_conv2d(x, *params["enc2"], stride=2, padding=1, act="leaky", slope=slope)
    x = _ref_conv2d(x, *params["enc3"], stride=2, padding=1, act="leaky", slope=slope)
    for blk in params["res_blocks"]:
        h = _ref_conv2d(x, blk["w1"], blk["b1"], stride=1, padding=1,
                        act="leaky", slope=slope)
        x = _ref_conv2d(h, blk["w2"], blk["b2"], stride=1, padding=1,
                        act="none", residual=x)
    x = _ref_conv_transpose2d(x, *params["dec0"], act="leaky", slope=slope)
    x = _ref_conv_transpose2d(x, *params["dec1"], act="leaky", slope=slope)
    x = _ref_conv_transpose2d(x, *params["dec2"], act="leaky", slope=slope)
    x = _ref_conv2d(x, *params["dec3"], stride=1, padding=3, act="tanh")
    return jnp.transpose(x, (0, 3, 1, 2))


# ---------------------------------------------------------------------------
if __name__ == "__main__":
    # Small, module-consistent shapes (module fixes img_channels=3; n and the
    # image size are scaled down from 64/256 to keep the synthetic run small).
    # NOTE: at this toy size the network is dispatch-bound; the tiling choices
    # above are made for production resolutions (256x256, n=64).
    BATCH, IMG_C, IMG_HW = 2, 3, 16
    N_FEAT, RES_BLOCKS, SLOPE = 8, 4, 0.02

    key = jax.random.PRNGKey(0)
    k_params, k_x = jax.random.split(key)
    params = init_params(k_params, img_channels=IMG_C, n=N_FEAT,
                         resnet_blocks=RES_BLOCKS)
    x = jax.random.normal(k_x, (BATCH, IMG_C, IMG_HW, IMG_HW), jnp.float32)

    fwd = jax.jit(functools.partial(resnet_generator_forward, slope=SLOPE))
    y = fwd(params, x)
    jax.block_until_ready(y)

    assert y.shape == (BATCH, IMG_C, IMG_HW, IMG_HW), y.shape
    assert bool(jnp.all(jnp.isfinite(y)))
    assert bool(jnp.all(jnp.abs(y) <= 1.0 + 1e-6))  # tanh output range

    # Cross-check against a pure-JAX (XLA conv) reference with matching bf16 operands.
    y_ref = jax.jit(functools.partial(_ref_forward, slope=SLOPE))(params, x)
    jax.block_until_ready(y_ref)
    max_err = float(jnp.max(jnp.abs(y - y_ref)))
    assert max_err < 2e-2, f"mismatch vs reference: {max_err}"

    print("KERNEL_OK")
</pallas_src>

<mosaic_0001>
module attributes {stable_mosaic.version = 11 : i64} {
  func.func @_mm_kernel(%arg0: i32, %arg1: i32, %arg2: i32, %arg3: memref<512x256xbf16, #tpu.memory_space<vmem>>, %arg4: memref<256x128xbf16, #tpu.memory_space<vmem>>, %arg5: memref<1x128xf32, #tpu.memory_space<vmem>>, %arg6: memref<512x128xf32, #tpu.memory_space<vmem>>, %arg7: memref<512x128xf32, #tpu.memory_space<vmem>>) attributes {dimension_semantics = [#tpu.dimension_semantics<parallel>, #tpu.dimension_semantics<parallel>, #tpu.dimension_semantics<arbitrary>], iteration_bounds = array<i64: 1, 1, 1>, scalar_prefetch = 0 : i64, scratch_operands = 1 : i64, tpu.core_type = #tpu.core_type<tc>, window_params = [{transform_indices = @transform_0, window_bounds = array<i64: 512, 256>}, {transform_indices = @transform_1, window_bounds = array<i64: 256, 128>}, {transform_indices = @transform_2, window_bounds = array<i64: 1, 128>}, {transform_indices = @transform_3, window_bounds = array<i64: 512, 128>}]} {
    %c0_i32 = arith.constant 0 : i32
    %0 = arith.cmpi eq, %arg2, %c0_i32 : i32
    %1 = arith.extui %0 : i1 to i32
    %c0_i32_0 = arith.constant 0 : i32
    %2 = arith.cmpi ne, %1, %c0_i32_0 : i32
    scf.if %2 {
      %cst_10 = arith.constant 0.000000e+00 : f32
      %12 = vector.broadcast %cst_10 : f32 to vector<512x128xf32>
      %c0_11 = arith.constant 0 : index
      %c0_12 = arith.constant 0 : index
      %13 = vector.load %arg7[%c0_11, %c0_12] : memref<512x128xf32, #tpu.memory_space<vmem>>, vector<512x128xf32>
      tpu.vector_store %arg7[%c0_11, %c0_12], %12 {strides = array<i32>} : memref<512x128xf32, #tpu.memory_space<vmem>>, vector<512x128xf32>,
    } else {
    }
    %c0 = arith.constant 0 : index
    %c0_1 = arith.constant 0 : index
    %3 = vector.load %arg4[%c0, %c0_1] : memref<256x128xbf16, #tpu.memory_space<vmem>>, vector<256x128xbf16>
    %c0_2 = arith.constant 0 : index
    %c0_3 = arith.constant 0 : index
    %4 = vector.load %arg7[%c0_2, %c0_3] : memref<512x128xf32, #tpu.memory_space<vmem>>, vector<512x128xf32>
    %c0_4 = arith.constant 0 : index
    %c0_5 = arith.constant 0 : index
    %5 = vector.load %arg3[%c0_4, %c0_5] : memref<512x256xbf16, #tpu.memory_space<vmem>>, vector<512x256xbf16>
    %cst = arith.constant dense<0.000000e+00> : vector<512x128xf32>
    %6 = tpu.matmul %5, %3, %cst {dimension_numbers = #tpu.dot_dimension_numbers<[1], [0], [0], [1], [0, 0, 1, 1], [], []>} : vector<512x256xbf16>, vector<256x128xbf16>, vector<512x128xf32> -> vector<512x128xf32>
    %7 = arith.addf %4, %6 : vector<512x128xf32>
    %c0_6 = arith.constant 0 : index
    %c0_7 = arith.constant 0 : index
    %8 = vector.load %arg7[%c0_6, %c0_7] : memref<512x128xf32, #tpu.memory_space<vmem>>, vector<512x128xf32>
    tpu.vector_store %arg7[%c0_6, %c0_7], %7 {strides = array<i32>} : memref<512x128xf32, #tpu.memory_space<vmem>>, vector<512x128xf32>,
    %c0_i32_8 = arith.constant 0 : i32
    %9 = arith.cmpi eq, %arg2, %c0_i32_8 : i32
    %10 = arith.extui %9 : i1 to i32
    %c0_i32_9 = arith.constant 0 : i32
    %11 = arith.cmpi ne, %10, %c0_i32_9 : i32
    scf.if %11 {
      %c0_10 = arith.constant 0 : index
      %c0_11 = arith.constant 0 : index
      %12 = vector.load %arg7[%c0_10, %c0_11] : memref<512x128xf32, #tpu.memory_space<vmem>>, vector<512x128xf32>
      %c0_12 = arith.constant 0 : index
      %c0_13 = arith.constant 0 : index
      %13 = vector.load %arg5[%c0_12, %c0_13] : memref<1x128xf32, #tpu.memory_space<vmem>>, vector<1x128xf32>
      %14 = vector.broadcast %13 : vector<1x128xf32> to vector<512x128xf32>
      %15 = arith.addf %12, %14 : vector<512x128xf32>
      %cst_14 = arith.constant 0.000000e+00 : f32
      %16 = vector.broadcast %cst_14 : f32 to vector<512x128xf32>
      %17 = arith.cmpf oge, %15, %16 : vector<512x128xf32>
      %cst_15 = arith.constant 2.000000e-02 : f32
      %18 = vector.broadcast %cst_15 : f32 to vector<512x128xf32>
      %19 = arith.mulf %18, %15 : vector<512x128xf32>
      %20 = arith.select %17, %15, %19 : vector<512x128xi1>, vector<512x128xf32>
      %c0_16 = arith.constant 0 : index
      %c0_17 = arith.constant 0 : index
      %21 = vector.load %arg6[%c0_16, %c0_17] : memref<512x128xf32, #tpu.memory_space<vmem>>, vector<512x128xf32>
      tpu.vector_store %arg6[%c0_16, %c0_17], %20 {strides = array<i32>} : memref<512x128xf32, #tpu.memory_space<vmem>>, vector<512x128xf32>,
    } else {
    }
    return
  }
  func.func @transform_0(%arg0: i32, %arg1: i32, %arg2: i32) -> (i32, i32) {
    %c0_i32 = arith.constant 0 : i32
    return %arg0, %arg2 : i32, i32
  }
  func.func @transform_1(%arg0: i32, %arg1: i32, %arg2: i32) -> (i32, i32) {
    %c0_i32 = arith.constant 0 : i32
    %c0_i32_0 = arith.constant 0 : i32
    return %c0_i32, %arg1 : i32, i32
  }
  func.func @transform_2(%arg0: i32, %arg1: i32, %arg2: i32) -> (i32, i32) {
    %c0_i32 = arith.constant 0 : i32
    %c0_i32_0 = arith.constant 0 : i32
    return %c0_i32, %arg1 : i32, i32
  }
  func.func @transform_3(%arg0: i32, %arg1: i32, %arg2: i32) -> (i32, i32) {
    %c0_i32 = arith.constant 0 : i32
    return %arg0, %arg1 : i32, i32
  }
}

module attributes {stable_mosaic.version = 11 : i64} {
  func.func @_mm_kernel(%arg0: i32, %arg1: i32, %arg2: i32, %arg3: memref<128x128xbf16, #tpu.memory_space<vmem>>, %arg4: memref<128x128xbf16, #tpu.memory_space<vmem>>, %arg5: memref<1x128xf32, #tpu.memory_space<vmem>>, %arg6: memref<128x128xf32, #tpu.memory_space<vmem>>, %arg7: memref<128x128xf32, #tpu.memory_space<vmem>>) attributes {dimension_semantics = [#tpu.dimension_semantics<parallel>, #tpu.dimension_semantics<parallel>, #tpu.dimension_semantics<arbitrary>], iteration_bounds = array<i64: 1, 1, 1>, scalar_prefetch = 0 : i64, scratch_operands = 1 : i64, tpu.core_type = #tpu.core_type<tc>, window_params = [{transform_indices = @transform_0, window_bounds = array<i64: 128, 128>}, {transform_indices = @transform_1, window_bounds = array<i64: 128, 128>}, {transform_indices = @transform_2, window_bounds = array<i64: 1, 128>}, {transform_indices = @transform_3, window_bounds = array<i64: 128, 128>}]} {
    %c0_i32 = arith.constant 0 : i32
    %0 = arith.cmpi eq, %arg2, %c0_i32 : i32
    %1 = arith.extui %0 : i1 to i32
    %c0_i32_0 = arith.constant 0 : i32
    %2 = arith.cmpi ne, %1, %c0_i32_0 : i32
    scf.if %2 {
      %cst_10 = arith.constant 0.000000e+00 : f32
      %12 = vector.broadcast %cst_10 : f32 to vector<128x128xf32>
      %c0_11 = arith.constant 0 : index
      %c0_12 = arith.constant 0 : index
      %13 = vector.load %arg7[%c0_11, %c0_12] : memref<128x128xf32, #tpu.memory_space<vmem>>, vector<128x128xf32>
      tpu.vector_store %arg7[%c0_11, %c0_12], %12 {strides = array<i32>} : memref<128x128xf32, #tpu.memory_space<vmem>>, vector<128x128xf32>,
    } else {
    }
    %c0 = arith.constant 0 : index
    %c0_1 = arith.constant 0 : index
    %3 = vector.load %arg4[%c0, %c0_1] : memref<128x128xbf16, #tpu.memory_space<vmem>>, vector<128x128xbf16>
    %c0_2 = arith.constant 0 : index
    %c0_3 = arith.constant 0 : index
    %4 = vector.load %arg7[%c0_2, %c0_3] : memref<128x128xf32, #tpu.memory_space<vmem>>, vector<128x128xf32>
    %c0_4 = arith.constant 0 : index
    %c0_5 = arith.constant 0 : index
    %5 = vector.load %arg3[%c0_4, %c0_5] : memref<128x128xbf16, #tpu.memory_space<vmem>>, vector<128x128xbf16>
    %cst = arith.constant dense<0.000000e+00> : vector<128x128xf32>
    %6 = tpu.matmul %5, %3, %cst {dimension_numbers = #tpu.dot_dimension_numbers<[1], [0], [0], [1], [0, 0, 1, 1], [], []>} : vector<128x128xbf16>, vector<128x128xbf16>, vector<128x128xf32> -> vector<128x128xf32>
    %7 = arith.addf %4, %6 : vector<128x128xf32>
    %c0_6 = arith.constant 0 : index
    %c0_7 = arith.constant 0 : index
    %8 = vector.load %arg7[%c0_6, %c0_7] : memref<128x128xf32, #tpu.memory_space<vmem>>, vector<128x128xf32>
    tpu.vector_store %arg7[%c0_6, %c0_7], %7 {strides = array<i32>} : memref<128x128xf32, #tpu.memory_space<vmem>>, vector<128x128xf32>,
    %c0_i32_8 = arith.constant 0 : i32
    %9 = arith.cmpi eq, %arg2, %c0_i32_8 : i32
    %10 = arith.extui %9 : i1 to i32
    %c0_i32_9 = arith.constant 0 : i32
    %11 = arith.cmpi ne, %10, %c0_i32_9 : i32
    scf.if %11 {
      %c0_10 = arith.constant 0 : index
      %c0_11 = arith.constant 0 : index
      %12 = vector.load %arg7[%c0_10, %c0_11] : memref<128x128xf32, #tpu.memory_space<vmem>>, vector<128x128xf32>
      %c0_12 = arith.constant 0 : index
      %c0_13 = arith.constant 0 : index
      %13 = vector.load %arg5[%c0_12, %c0_13] : memref<1x128xf32, #tpu.memory_space<vmem>>, vector<1x128xf32>
      %14 = vector.broadcast %13 : vector<1x128xf32> to vector<128x128xf32>
      %15 = arith.addf %12, %14 : vector<128x128xf32>
      %cst_14 = arith.constant 0.000000e+00 : f32
      %16 = vector.broadcast %cst_14 : f32 to vector<128x128xf32>
      %17 = arith.cmpf oge, %15, %16 : vector<128x128xf32>
      %cst_15 = arith.constant 2.000000e-02 : f32
      %18 = vector.broadcast %cst_15 : f32 to vector<128x128xf32>
      %19 = arith.mulf %18, %15 : vector<128x128xf32>
      %20 = arith.select %17, %15, %19 : vector<128x128xi1>, vector<128x128xf32>
      %c0_16 = arith.constant 0 : index
      %c0_17 = arith.constant 0 : index
      %21 = vector.load %arg6[%c0_16, %c0_17] : memref<128x128xf32, #tpu.memory_space<vmem>>, vector<128x128xf32>
      tpu.vector_store %arg6[%c0_16, %c0_17], %20 {strides = array<i32>} : memref<128x128xf32, #tpu.memory_space<vmem>>, vector<128x128xf32>,
    } else {
    }
    return
  }
  func.func @transform_0(%arg0: i32, %arg1: i32, %arg2: i32) -> (i32, i32) {
    %c0_i32 = arith.constant 0 : i32
    return %arg0, %arg2 : i32, i32
  }
  func.func @transform_1(%arg0: i32, %arg1: i32, %arg2: i32) -> (i32, i32) {
    %c0_i32 = arith.constant 0 : i32
    %c0_i32_0 = arith.constant 0 : i32
    return %c0_i32, %arg1 : i32, i32
  }
  func.func @transform_2(%arg0: i32, %arg1: i32, %arg2: i32) -> (i32, i32) {
    %c0_i32 = arith.constant 0 : i32
    %c0_i32_0 = arith.constant 0 : i32
    return %c0_i32, %arg1 : i32, i32
  }
  func.func @transform_3(%arg0: i32, %arg1: i32, %arg2: i32) -> (i32, i32) {
    %c0_i32 = arith.constant 0 : i32
    return %arg0, %arg1 : i32, i32
  }
}

module attributes {stable_mosaic.version = 11 : i64} {
  func.func @_mm_kernel(%arg0: i32, %arg1: i32, %arg2: i32, %arg3: memref<32x256xbf16, #tpu.memory_space<vmem>>, %arg4: memref<256x128xbf16, #tpu.memory_space<vmem>>, %arg5: memref<1x128xf32, #tpu.memory_space<vmem>>, %arg6: memref<32x128xf32, #tpu.memory_space<vmem>>, %arg7: memref<32x128xf32, #tpu.memory_space<vmem>>) attributes {dimension_semantics = [#tpu.dimension_semantics<parallel>, #tpu.dimension_semantics<parallel>, #tpu.dimension_semantics<arbitrary>], iteration_bounds = array<i64: 1, 1, 1>, scalar_prefetch = 0 : i64, scratch_operands = 1 : i64, tpu.core_type = #tpu.core_type<tc>, window_params = [{transform_indices = @transform_0, window_bounds = array<i64: 32, 256>}, {transform_indices = @transform_1, window_bounds = array<i64: 256, 128>}, {transform_indices = @transform_2, window_bounds = array<i64: 1, 128>}, {transform_indices = @transform_3, window_bounds = array<i64: 32, 128>}]} {
    %c0_i32 = arith.constant 0 : i32
    %0 = arith.cmpi eq, %arg2, %c0_i32 : i32
    %1 = arith.extui %0 : i1 to i32
    %c0_i32_0 = arith.constant 0 : i32
    %2 = arith.cmpi ne, %1, %c0_i32_0 : i32
    scf.if %2 {
      %cst_10 = arith.constant 0.000000e+00 : f32
      %12 = vector.broadcast %cst_10 : f32 to vector<32x128xf32>
      %c0_11 = arith.constant 0 : index
      %c0_12 = arith.constant 0 : index
      %13 = vector.load %arg7[%c0_11, %c0_12] : memref<32x128xf32, #tpu.memory_space<vmem>>, vector<32x128xf32>
      tpu.vector_store %arg7[%c0_11, %c0_12], %12 {strides = array<i32>} : memref<32x128xf32, #tpu.memory_space<vmem>>, vector<32x128xf32>,
    } else {
    }
    %c0 = arith.constant 0 : index
    %c0_1 = arith.constant 0 : index
    %3 = vector.load %arg4[%c0, %c0_1] : memref<256x128xbf16, #tpu.memory_space<vmem>>, vector<256x128xbf16>
    %c0_2 = arith.constant 0 : index
    %c0_3 = arith.constant 0 : index
    %4 = vector.load %arg7[%c0_2, %c0_3] : memref<32x128xf32, #tpu.memory_space<vmem>>, vector<32x128xf32>
    %c0_4 = arith.constant 0 : index
    %c0_5 = arith.constant 0 : index
    %5 = vector.load %arg3[%c0_4, %c0_5] : memref<32x256xbf16, #tpu.memory_space<vmem>>, vector<32x256xbf16>
    %cst = arith.constant dense<0.000000e+00> : vector<32x128xf32>
    %6 = tpu.matmul %5, %3, %cst {dimension_numbers = #tpu.dot_dimension_numbers<[1], [0], [0], [1], [0, 0, 1, 1], [], []>} : vector<32x256xbf16>, vector<256x128xbf16>, vector<32x128xf32> -> vector<32x128xf32>
    %7 = arith.addf %4, %6 : vector<32x128xf32>
    %c0_6 = arith.constant 0 : index
    %c0_7 = arith.constant 0 : index
    %8 = vector.load %arg7[%c0_6, %c0_7] : memref<32x128xf32, #tpu.memory_space<vmem>>, vector<32x128xf32>
    tpu.vector_store %arg7[%c0_6, %c0_7], %7 {strides = array<i32>} : memref<32x128xf32, #tpu.memory_space<vmem>>, vector<32x128xf32>,
    %c0_i32_8 = arith.constant 0 : i32
    %9 = arith.cmpi eq, %arg2, %c0_i32_8 : i32
    %10 = arith.extui %9 : i1 to i32
    %c0_i32_9 = arith.constant 0 : i32
    %11 = arith.cmpi ne, %10, %c0_i32_9 : i32
    scf.if %11 {
      %c0_10 = arith.constant 0 : index
      %c0_11 = arith.constant 0 : index
      %12 = vector.load %arg7[%c0_10, %c0_11] : memref<32x128xf32, #tpu.memory_space<vmem>>, vector<32x128xf32>
      %c0_12 = arith.constant 0 : index
      %c0_13 = arith.constant 0 : index
      %13 = vector.load %arg5[%c0_12, %c0_13] : memref<1x128xf32, #tpu.memory_space<vmem>>, vector<1x128xf32>
      %14 = vector.broadcast %13 : vector<1x128xf32> to vector<32x128xf32>
      %15 = arith.addf %12, %14 : vector<32x128xf32>
      %cst_14 = arith.constant 0.000000e+00 : f32
      %16 = vector.broadcast %cst_14 : f32 to vector<32x128xf32>
      %17 = arith.cmpf oge, %15, %16 : vector<32x128xf32>
      %cst_15 = arith.constant 2.000000e-02 : f32
      %18 = vector.broadcast %cst_15 : f32 to vector<32x128xf32>
      %19 = arith.mulf %18, %15 : vector<32x128xf32>
      %20 = arith.select %17, %15, %19 : vector<32x128xi1>, vector<32x128xf32>
      %c0_16 = arith.constant 0 : index
      %c0_17 = arith.constant 0 : index
      %21 = vector.load %arg6[%c0_16, %c0_17] : memref<32x128xf32, #tpu.memory_space<vmem>>, vector<32x128xf32>
      tpu.vector_store %arg6[%c0_16, %c0_17], %20 {strides = array<i32>} : memref<32x128xf32, #tpu.memory_space<vmem>>, vector<32x128xf32>,
    } else {
    }
    return
  }
  func.func @transform_0(%arg0: i32, %arg1: i32, %arg2: i32) -> (i32, i32) {
    %c0_i32 = arith.constant 0 : i32
    return %arg0, %arg2 : i32, i32
  }
  func.func @transform_1(%arg0: i32, %arg1: i32, %arg2: i32) -> (i32, i32) {
    %c0_i32 = arith.constant 0 : i32
    %c0_i32_0 = arith.constant 0 : i32
    return %c0_i32, %arg1 : i32, i32
  }
  func.func @transform_2(%arg0: i32, %arg1: i32, %arg2: i32) -> (i32, i32) {
    %c0_i32 = arith.constant 0 : i32
    %c0_i32_0 = arith.constant 0 : i32
    return %c0_i32, %arg1 : i32, i32
  }
  func.func @transform_3(%arg0: i32, %arg1: i32, %arg2: i32) -> (i32, i32) {
    %c0_i32 = arith.constant 0 : i32
    return %arg0, %arg1 : i32, i32
  }
}

module attributes {stable_mosaic.version = 11 : i64} {
  func.func @_mm_kernel(%arg0: i32, %arg1: i32, %arg2: i32, %arg3: memref<8x384xbf16, #tpu.memory_space<vmem>>, %arg4: memref<384x128xbf16, #tpu.memory_space<vmem>>, %arg5: memref<1x128xf32, #tpu.memory_space<vmem>>, %arg6: memref<8x128xf32, #tpu.memory_space<vmem>>, %arg7: memref<8x128xf32, #tpu.memory_space<vmem>>) attributes {dimension_semantics = [#tpu.dimension_semantics<parallel>, #tpu.dimension_semantics<parallel>, #tpu.dimension_semantics<arbitrary>], iteration_bounds = array<i64: 1, 1, 1>, scalar_prefetch = 0 : i64, scratch_operands = 1 : i64, tpu.core_type = #tpu.core_type<tc>, window_params = [{transform_indices = @transform_0, window_bounds = array<i64: 8, 384>}, {transform_indices = @transform_1, window_bounds = array<i64: 384, 128>}, {transform_indices = @transform_2, window_bounds = array<i64: 1, 128>}, {transform_indices = @transform_3, window_bounds = array<i64: 8, 128>}]} {
    %c0_i32 = arith.constant 0 : i32
    %0 = arith.cmpi eq, %arg2, %c0_i32 : i32
    %1 = arith.extui %0 : i1 to i32
    %c0_i32_0 = arith.constant 0 : i32
    %2 = arith.cmpi ne, %1, %c0_i32_0 : i32
    scf.if %2 {
      %cst_10 = arith.constant 0.000000e+00 : f32
      %12 = vector.broadcast %cst_10 : f32 to vector<8x128xf32>
      %c0_11 = arith.constant 0 : index
      %c0_12 = arith.constant 0 : index
      %13 = vector.load %arg7[%c0_11, %c0_12] : memref<8x128xf32, #tpu.memory_space<vmem>>, vector<8x128xf32>
      tpu.vector_store %arg7[%c0_11, %c0_12], %12 {strides = array<i32>} : memref<8x128xf32, #tpu.memory_space<vmem>>, vector<8x128xf32>,
    } else {
    }
    %c0 = arith.constant 0 : index
    %c0_1 = arith.constant 0 : index
    %3 = vector.load %arg4[%c0, %c0_1] : memref<384x128xbf16, #tpu.memory_space<vmem>>, vector<384x128xbf16>
    %c0_2 = arith.constant 0 : index
    %c0_3 = arith.constant 0 : index
    %4 = vector.load %arg7[%c0_2, %c0_3] : memref<8x128xf32, #tpu.memory_space<vmem>>, vector<8x128xf32>
    %c0_4 = arith.constant 0 : index
    %c0_5 = arith.constant 0 : index
    %5 = vector.load %arg3[%c0_4, %c0_5] : memref<8x384xbf16, #tpu.memory_space<vmem>>, vector<8x384xbf16>
    %cst = arith.constant dense<0.000000e+00> : vector<8x128xf32>
    %6 = tpu.matmul %5, %3, %cst {dimension_numbers = #tpu.dot_dimension_numbers<[1], [0], [0], [1], [0, 0, 1, 1], [], []>} : vector<8x384xbf16>, vector<384x128xbf16>, vector<8x128xf32> -> vector<8x128xf32>
    %7 = arith.addf %4, %6 : vector<8x128xf32>
    %c0_6 = arith.constant 0 : index
    %c0_7 = arith.constant 0 : index
    %8 = vector.load %arg7[%c0_6, %c0_7] : memref<8x128xf32, #tpu.memory_space<vmem>>, vector<8x128xf32>
    tpu.vector_store %arg7[%c0_6, %c0_7], %7 {strides = array<i32>} : memref<8x128xf32, #tpu.memory_space<vmem>>, vector<8x128xf32>,
    %c0_i32_8 = arith.constant 0 : i32
    %9 = arith.cmpi eq, %arg2, %c0_i32_8 : i32
    %10 = arith.extui %9 : i1 to i32
    %c0_i32_9 = arith.constant 0 : i32
    %11 = arith.cmpi ne, %10, %c0_i32_9 : i32
    scf.if %11 {
      %c0_10 = arith.constant 0 : index
      %c0_11 = arith.constant 0 : index
      %12 = vector.load %arg7[%c0_10, %c0_11] : memref<8x128xf32, #tpu.memory_space<vmem>>, vector<8x128xf32>
      %c0_12 = arith.constant 0 : index
      %c0_13 = arith.constant 0 : index
      %13 = vector.load %arg5[%c0_12, %c0_13] : memref<1x128xf32, #tpu.memory_space<vmem>>, vector<1x128xf32>
      %14 = vector.broadcast %13 : vector<1x128xf32> to vector<8x128xf32>
      %15 = arith.addf %12, %14 : vector<8x128xf32>
      %cst_14 = arith.constant 0.000000e+00 : f32
      %16 = vector.broadcast %cst_14 : f32 to vector<8x128xf32>
      %17 = arith.cmpf oge, %15, %16 : vector<8x128xf32>
      %cst_15 = arith.constant 2.000000e-02 : f32
      %18 = vector.broadcast %cst_15 : f32 to vector<8x128xf32>
      %19 = arith.mulf %18, %15 : vector<8x128xf32>
      %20 = arith.select %17, %15, %19 : vector<8x128xi1>, vector<8x128xf32>
      %c0_16 = arith.constant 0 : index
      %c0_17 = arith.constant 0 : index
      %21 = vector.load %arg6[%c0_16, %c0_17] : memref<8x128xf32, #tpu.memory_space<vmem>>, vector<8x128xf32>
      tpu.vector_store %arg6[%c0_16, %c0_17], %20 {strides = array<i32>} : memref<8x128xf32, #tpu.memory_space<vmem>>, vector<8x128xf32>,
    } else {
    }
    return
  }
  func.func @transform_0(%arg0: i32, %arg1: i32, %arg2: i32) -> (i32, i32) {
    %c0_i32 = arith.constant 0 : i32
    return %arg0, %arg2 : i32, i32
  }
  func.func @transform_1(%arg0: i32, %arg1: i32, %arg2: i32) -> (i32, i32) {
    %c0_i32 = arith.constant 0 : i32
    %c0_i32_0 = arith.constant 0 : i32
    return %c0_i32, %arg1 : i32, i32
  }
  func.func @transform_2(%arg0: i32, %arg1: i32, %arg2: i32) -> (i32, i32) {
    %c0_i32 = arith.constant 0 : i32
    %c0_i32_0 = arith.constant 0 : i32
    return %c0_i32, %arg1 : i32, i32
  }
  func.func @transform_3(%arg0: i32, %arg1: i32, %arg2: i32) -> (i32, i32) {
    %c0_i32 = arith.constant 0 : i32
    return %arg0, %arg1 : i32, i32
  }
}

module attributes {stable_mosaic.version = 11 : i64} {
  func.func @_mm_kernel(%arg0: i32, %arg1: i32, %arg2: i32, %arg3: memref<8x640xbf16, #tpu.memory_space<vmem>>, %arg4: memref<640x128xbf16, #tpu.memory_space<vmem>>, %arg5: memref<1x128xf32, #tpu.memory_space<vmem>>, %arg6: memref<8x128xf32, #tpu.memory_space<vmem>>, %arg7: memref<8x128xf32, #tpu.memory_space<vmem>>) attributes {dimension_semantics = [#tpu.dimension_semantics<parallel>, #tpu.dimension_semantics<parallel>, #tpu.dimension_semantics<arbitrary>], iteration_bounds = array<i64: 1, 1, 1>, scalar_prefetch = 0 : i64, scratch_operands = 1 : i64, tpu.core_type = #tpu.core_type<tc>, window_params = [{transform_indices = @transform_0, window_bounds = array<i64: 8, 640>}, {transform_indices = @transform_1, window_bounds = array<i64: 640, 128>}, {transform_indices = @transform_2, window_bounds = array<i64: 1, 128>}, {transform_indices = @transform_3, window_bounds = array<i64: 8, 128>}]} {
    %c0_i32 = arith.constant 0 : i32
    %0 = arith.cmpi eq, %arg2, %c0_i32 : i32
    %1 = arith.extui %0 : i1 to i32
    %c0_i32_0 = arith.constant 0 : i32
    %2 = arith.cmpi ne, %1, %c0_i32_0 : i32
    scf.if %2 {
      %cst_10 = arith.constant 0.000000e+00 : f32
      %12 = vector.broadcast %cst_10 : f32 to vector<8x128xf32>
      %c0_11 = arith.constant 0 : index
      %c0_12 = arith.constant 0 : index
      %13 = vector.load %arg7[%c0_11, %c0_12] : memref<8x128xf32, #tpu.memory_space<vmem>>, vector<8x128xf32>
      tpu.vector_store %arg7[%c0_11, %c0_12], %12 {strides = array<i32>} : memref<8x128xf32, #tpu.memory_space<vmem>>, vector<8x128xf32>,
    } else {
    }
    %c0 = arith.constant 0 : index
    %c0_1 = arith.constant 0 : index
    %3 = vector.load %arg4[%c0, %c0_1] : memref<640x128xbf16, #tpu.memory_space<vmem>>, vector<640x128xbf16>
    %c0_2 = arith.constant 0 : index
    %c0_3 = arith.constant 0 : index
    %4 = vector.load %arg7[%c0_2, %c0_3] : memref<8x128xf32, #tpu.memory_space<vmem>>, vector<8x128xf32>
    %c0_4 = arith.constant 0 : index
    %c0_5 = arith.constant 0 : index
    %5 = vector.load %arg3[%c0_4, %c0_5] : memref<8x640xbf16, #tpu.memory_space<vmem>>, vector<8x640xbf16>
    %cst = arith.constant dense<0.000000e+00> : vector<8x128xf32>
    %6 = tpu.matmul %5, %3, %cst {dimension_numbers = #tpu.dot_dimension_numbers<[1], [0], [0], [1], [0, 0, 1, 1], [], []>} : vector<8x640xbf16>, vector<640x128xbf16>, vector<8x128xf32> -> vector<8x128xf32>
    %7 = arith.addf %4, %6 : vector<8x128xf32>
    %c0_6 = arith.constant 0 : index
    %c0_7 = arith.constant 0 : index
    %8 = vector.load %arg7[%c0_6, %c0_7] : memref<8x128xf32, #tpu.memory_space<vmem>>, vector<8x128xf32>
    tpu.vector_store %arg7[%c0_6, %c0_7], %7 {strides = array<i32>} : memref<8x128xf32, #tpu.memory_space<vmem>>, vector<8x128xf32>,
    %c0_i32_8 = arith.constant 0 : i32
    %9 = arith.cmpi eq, %arg2, %c0_i32_8 : i32
    %10 = arith.extui %9 : i1 to i32
    %c0_i32_9 = arith.constant 0 : i32
    %11 = arith.cmpi ne, %10, %c0_i32_9 : i32
    scf.if %11 {
      %c0_10 = arith.constant 0 : index
      %c0_11 = arith.constant 0 : index
      %12 = vector.load %arg7[%c0_10, %c0_11] : memref<8x128xf32, #tpu.memory_space<vmem>>, vector<8x128xf32>
      %c0_12 = arith.constant 0 : index
      %c0_13 = arith.constant 0 : index
      %13 = vector.load %arg5[%c0_12, %c0_13] : memref<1x128xf32, #tpu.memory_space<vmem>>, vector<1x128xf32>
      %14 = vector.broadcast %13 : vector<1x128xf32> to vector<8x128xf32>
      %15 = arith.addf %12, %14 : vector<8x128xf32>
      %cst_14 = arith.constant 0.000000e+00 : f32
      %16 = vector.broadcast %cst_14 : f32 to vector<8x128xf32>
      %17 = arith.cmpf oge, %15, %16 : vector<8x128xf32>
      %cst_15 = arith.constant 2.000000e-02 : f32
      %18 = vector.broadcast %cst_15 : f32 to vector<8x128xf32>
      %19 = arith.mulf %18, %15 : vector<8x128xf32>
      %20 = arith.select %17, %15, %19 : vector<8x128xi1>, vector<8x128xf32>
      %c0_16 = arith.constant 0 : index
      %c0_17 = arith.constant 0 : index
      %21 = vector.load %arg6[%c0_16, %c0_17] : memref<8x128xf32, #tpu.memory_space<vmem>>, vector<8x128xf32>
      tpu.vector_store %arg6[%c0_16, %c0_17], %20 {strides = array<i32>} : memref<8x128xf32, #tpu.memory_space<vmem>>, vector<8x128xf32>,
    } else {
    }
    return
  }
  func.func @transform_0(%arg0: i32, %arg1: i32, %arg2: i32) -> (i32, i32) {
    %c0_i32 = arith.constant 0 : i32
    return %arg0, %arg2 : i32, i32
  }
  func.func @transform_1(%arg0: i32, %arg1: i32, %arg2: i32) -> (i32, i32) {
    %c0_i32 = arith.constant 0 : i32
    %c0_i32_0 = arith.constant 0 : i32
    return %c0_i32, %arg1 : i32, i32
  }
  func.func @transform_2(%arg0: i32, %arg1: i32, %arg2: i32) -> (i32, i32) {
    %c0_i32 = arith.constant 0 : i32
    %c0_i32_0 = arith.constant 0 : i32
    return %c0_i32, %arg1 : i32, i32
  }
  func.func @transform_3(%arg0: i32, %arg1: i32, %arg2: i32) -> (i32, i32) {
    %c0_i32 = arith.constant 0 : i32
    return %arg0, %arg1 : i32, i32
  }
}

module attributes {stable_mosaic.version = 11 : i64} {
  func.func @_mm_kernel(%arg0: i32, %arg1: i32, %arg2: i32, %arg3: memref<8x640xbf16, #tpu.memory_space<vmem>>, %arg4: memref<640x128xbf16, #tpu.memory_space<vmem>>, %arg5: memref<1x128xf32, #tpu.memory_space<vmem>>, %arg6: memref<8x128xf32, #tpu.memory_space<vmem>>, %arg7: memref<8x128xf32, #tpu.memory_space<vmem>>, %arg8: memref<8x128xf32, #tpu.memory_space<vmem>>) attributes {dimension_semantics = [#tpu.dimension_semantics<parallel>, #tpu.dimension_semantics<parallel>, #tpu.dimension_semantics<arbitrary>], iteration_bounds = array<i64: 1, 1, 1>, scalar_prefetch = 0 : i64, scratch_operands = 1 : i64, tpu.core_type = #tpu.core_type<tc>, window_params = [{transform_indices = @transform_0, window_bounds = array<i64: 8, 640>}, {transform_indices = @transform_1, window_bounds = array<i64: 640, 128>}, {transform_indices = @transform_2, window_bounds = array<i64: 1, 128>}, {transform_indices = @transform_3, window_bounds = array<i64: 8, 128>}, {transform_indices = @transform_4, window_bounds = array<i64: 8, 128>}]} {
    %c0_i32 = arith.constant 0 : i32
    %0 = arith.cmpi eq, %arg2, %c0_i32 : i32
    %1 = arith.extui %0 : i1 to i32
    %c0_i32_0 = arith.constant 0 : i32
    %2 = arith.cmpi ne, %1, %c0_i32_0 : i32
    scf.if %2 {
      %cst_10 = arith.constant 0.000000e+00 : f32
      %12 = vector.broadcast %cst_10 : f32 to vector<8x128xf32>
      %c0_11 = arith.constant 0 : index
      %c0_12 = arith.constant 0 : index
      %13 = vector.load %arg8[%c0_11, %c0_12] : memref<8x128xf32, #tpu.memory_space<vmem>>, vector<8x128xf32>
      tpu.vector_store %arg8[%c0_11, %c0_12], %12 {strides = array<i32>} : memref<8x128xf32, #tpu.memory_space<vmem>>, vector<8x128xf32>,
    } else {
    }
    %c0 = arith.constant 0 : index
    %c0_1 = arith.constant 0 : index
    %3 = vector.load %arg4[%c0, %c0_1] : memref<640x128xbf16, #tpu.memory_space<vmem>>, vector<640x128xbf16>
    %c0_2 = arith.constant 0 : index
    %c0_3 = arith.constant 0 : index
    %4 = vector.load %arg8[%c0_2, %c0_3] : memref<8x128xf32, #tpu.memory_space<vmem>>, vector<8x128xf32>
    %c0_4 = arith.constant 0 : index
    %c0_5 = arith.constant 0 : index
    %5 = vector.load %arg3[%c0_4, %c0_5] : memref<8x640xbf16, #tpu.memory_space<vmem>>, vector<8x640xbf16>
    %cst = arith.constant dense<0.000000e+00> : vector<8x128xf32>
    %6 = tpu.matmul %5, %3, %cst {dimension_numbers = #tpu.dot_dimension_numbers<[1], [0], [0], [1], [0, 0, 1, 1], [], []>} : vector<8x640xbf16>, vector<640x128xbf16>, vector<8x128xf32> -> vector<8x128xf32>
    %7 = arith.addf %4, %6 : vector<8x128xf32>
    %c0_6 = arith.constant 0 : index
    %c0_7 = arith.constant 0 : index
    %8 = vector.load %arg8[%c0_6, %c0_7] : memref<8x128xf32, #tpu.memory_space<vmem>>, vector<8x128xf32>
    tpu.vector_store %arg8[%c0_6, %c0_7], %7 {strides = array<i32>} : memref<8x128xf32, #tpu.memory_space<vmem>>, vector<8x128xf32>,
    %c0_i32_8 = arith.constant 0 : i32
    %9 = arith.cmpi eq, %arg2, %c0_i32_8 : i32
    %10 = arith.extui %9 : i1 to i32
    %c0_i32_9 = arith.constant 0 : i32
    %11 = arith.cmpi ne, %10, %c0_i32_9 : i32
    scf.if %11 {
      %c0_10 = arith.constant 0 : index
      %c0_11 = arith.constant 0 : index
      %12 = vector.load %arg8[%c0_10, %c0_11] : memref<8x128xf32, #tpu.memory_space<vmem>>, vector<8x128xf32>
      %c0_12 = arith.constant 0 : index
      %c0_13 = arith.constant 0 : index
      %13 = vector.load %arg5[%c0_12, %c0_13] : memref<1x128xf32, #tpu.memory_space<vmem>>, vector<1x128xf32>
      %14 = vector.broadcast %13 : vector<1x128xf32> to vector<8x128xf32>
      %15 = arith.addf %12, %14 : vector<8x128xf32>
      %c0_14 = arith.constant 0 : index
      %c0_15 = arith.constant 0 : index
      %16 = vector.load %arg6[%c0_14, %c0_15] : memref<8x128xf32, #tpu.memory_space<vmem>>, vector<8x128xf32>
      %17 = arith.addf %15, %16 : vector<8x128xf32>
      %c0_16 = arith.constant 0 : index
      %c0_17 = arith.constant 0 : index
      %18 = vector.load %arg7[%c0_16, %c0_17] : memref<8x128xf32, #tpu.memory_space<vmem>>, vector<8x128xf32>
      tpu.vector_store %arg7[%c0_16, %c0_17], %17 {strides = array<i32>} : memref<8x128xf32, #tpu.memory_space<vmem>>, vector<8x128xf32>,
    } else {
    }
    return
  }
  func.func @transform_0(%arg0: i32, %arg1: i32, %arg2: i32) -> (i32, i32) {
    %c0_i32 = arith.constant 0 : i32
    return %arg0, %arg2 : i32, i32
  }
  func.func @transform_1(%arg0: i32, %arg1: i32, %arg2: i32) -> (i32, i32) {
    %c0_i32 = arith.constant 0 : i32
    %c0_i32_0 = arith.constant 0 : i32
    return %c0_i32, %arg1 : i32, i32
  }
  func.func @transform_2(%arg0: i32, %arg1: i32, %arg2: i32) -> (i32, i32) {
    %c0_i32 = arith.constant 0 : i32
    %c0_i32_0 = arith.constant 0 : i32
    return %c0_i32, %arg1 : i32, i32
  }
  func.func @transform_3(%arg0: i32, %arg1: i32, %arg2: i32) -> (i32, i32) {
    %c0_i32 = arith.constant 0 : i32
    return %arg0, %arg1 : i32, i32
  }
  func.func @transform_4(%arg0: i32, %arg1: i32, %arg2: i32) -> (i32, i32) {
    %c0_i32 = arith.constant 0 : i32
    return %arg0, %arg1 : i32, i32
  }
}

module attributes {stable_mosaic.version = 11 : i64} {
  func.func @_mm_kernel(%arg0: i32, %arg1: i32, %arg2: i32, %arg3: memref<8x128xbf16, #tpu.memory_space<vmem>>, %arg4: memref<128x128xbf16, #tpu.memory_space<vmem>>, %arg5: memref<1x128xf32, #tpu.memory_space<vmem>>, %arg6: memref<8x128xf32, #tpu.memory_space<vmem>>, %arg7: memref<8x128xf32, #tpu.memory_space<vmem>>) attributes {dimension_semantics = [#tpu.dimension_semantics<parallel>, #tpu.dimension_semantics<parallel>, #tpu.dimension_semantics<arbitrary>], iteration_bounds = array<i64: 1, 1, 1>, scalar_prefetch = 0 : i64, scratch_operands = 1 : i64, tpu.core_type = #tpu.core_type<tc>, window_params = [{transform_indices = @transform_0, window_bounds = array<i64: 8, 128>}, {transform_indices = @transform_1, window_bounds = array<i64: 128, 128>}, {transform_indices = @transform_2, window_bounds = array<i64: 1, 128>}, {transform_indices = @transform_3, window_bounds = array<i64: 8, 128>}]} {
    %c0_i32 = arith.constant 0 : i32
    %0 = arith.cmpi eq, %arg2, %c0_i32 : i32
    %1 = arith.extui %0 : i1 to i32
    %c0_i32_0 = arith.constant 0 : i32
    %2 = arith.cmpi ne, %1, %c0_i32_0 : i32
    scf.if %2 {
      %cst_10 = arith.constant 0.000000e+00 : f32
      %12 = vector.broadcast %cst_10 : f32 to vector<8x128xf32>
      %c0_11 = arith.constant 0 : index
      %c0_12 = arith.constant 0 : index
      %13 = vector.load %arg7[%c0_11, %c0_12] : memref<8x128xf32, #tpu.memory_space<vmem>>, vector<8x128xf32>
      tpu.vector_store %arg7[%c0_11, %c0_12], %12 {strides = array<i32>} : memref<8x128xf32, #tpu.memory_space<vmem>>, vector<8x128xf32>,
    } else {
    }
    %c0 = arith.constant 0 : index
    %c0_1 = arith.constant 0 : index
    %3 = vector.load %arg4[%c0, %c0_1] : memref<128x128xbf16, #tpu.memory_space<vmem>>, vector<128x128xbf16>
    %c0_2 = arith.constant 0 : index
    %c0_3 = arith.constant 0 : index
    %4 = vector.load %arg7[%c0_2, %c0_3] : memref<8x128xf32, #tpu.memory_space<vmem>>, vector<8x128xf32>
    %c0_4 = arith.constant 0 : index
    %c0_5 = arith.constant 0 : index
    %5 = vector.load %arg3[%c0_4, %c0_5] : memref<8x128xbf16, #tpu.memory_space<vmem>>, vector<8x128xbf16>
    %cst = arith.constant dense<0.000000e+00> : vector<8x128xf32>
    %6 = tpu.matmul %5, %3, %cst {dimension_numbers = #tpu.dot_dimension_numbers<[1], [0], [0], [1], [0, 0, 1, 1], [], []>} : vector<8x128xbf16>, vector<128x128xbf16>, vector<8x128xf32> -> vector<8x128xf32>
    %7 = arith.addf %4, %6 : vector<8x128xf32>
    %c0_6 = arith.constant 0 : index
    %c0_7 = arith.constant 0 : index
    %8 = vector.load %arg7[%c0_6, %c0_7] : memref<8x128xf32, #tpu.memory_space<vmem>>, vector<8x128xf32>
    tpu.vector_store %arg7[%c0_6, %c0_7], %7 {strides = array<i32>} : memref<8x128xf32, #tpu.memory_space<vmem>>, vector<8x128xf32>,
    %c0_i32_8 = arith.constant 0 : i32
    %9 = arith.cmpi eq, %arg2, %c0_i32_8 : i32
    %10 = arith.extui %9 : i1 to i32
    %c0_i32_9 = arith.constant 0 : i32
    %11 = arith.cmpi ne, %10, %c0_i32_9 : i32
    scf.if %11 {
      %c0_10 = arith.constant 0 : index
      %c0_11 = arith.constant 0 : index
      %12 = vector.load %arg7[%c0_10, %c0_11] : memref<8x128xf32, #tpu.memory_space<vmem>>, vector<8x128xf32>
      %c0_12 = arith.constant 0 : index
      %c0_13 = arith.constant 0 : index
      %13 = vector.load %arg5[%c0_12, %c0_13] : memref<1x128xf32, #tpu.memory_space<vmem>>, vector<1x128xf32>
      %14 = vector.broadcast %13 : vector<1x128xf32> to vector<8x128xf32>
      %15 = arith.addf %12, %14 : vector<8x128xf32>
      %cst_14 = arith.constant 0.000000e+00 : f32
      %16 = vector.broadcast %cst_14 : f32 to vector<8x128xf32>
      %17 = arith.cmpf oge, %15, %16 : vector<8x128xf32>
      %cst_15 = arith.constant 2.000000e-02 : f32
      %18 = vector.broadcast %cst_15 : f32 to vector<8x128xf32>
      %19 = arith.mulf %18, %15 : vector<8x128xf32>
      %20 = arith.select %17, %15, %19 : vector<8x128xi1>, vector<8x128xf32>
      %c0_16 = arith.constant 0 : index
      %c0_17 = arith.constant 0 : index
      %21 = vector.load %arg6[%c0_16, %c0_17] : memref<8x128xf32, #tpu.memory_space<vmem>>, vector<8x128xf32>
      tpu.vector_store %arg6[%c0_16, %c0_17], %20 {strides = array<i32>} : memref<8x128xf32, #tpu.memory_space<vmem>>, vector<8x128xf32>,
    } else {
    }
    return
  }
  func.func @transform_0(%arg0: i32, %arg1: i32, %arg2: i32) -> (i32, i32) {
    %c0_i32 = arith.constant 0 : i32
    return %arg0, %arg2 : i32, i32
  }
  func.func @transform_1(%arg0: i32, %arg1: i32, %arg2: i32) -> (i32, i32) {
    %c0_i32 = arith.constant 0 : i32
    %c0_i32_0 = arith.constant 0 : i32
    return %c0_i32, %arg1 : i32, i32
  }
  func.func @transform_2(%arg0: i32, %arg1: i32, %arg2: i32) -> (i32, i32) {
    %c0_i32 = arith.constant 0 : i32
    %c0_i32_0 = arith.constant 0 : i32
    return %c0_i32, %arg1 : i32, i32
  }
  func.func @transform_3(%arg0: i32, %arg1: i32, %arg2: i32) -> (i32, i32) {
    %c0_i32 = arith.constant 0 : i32
    return %arg0, %arg1 : i32, i32
  }
}

module attributes {stable_mosaic.version = 11 : i64} {
  func.func @_mm_kernel(%arg0: i32, %arg1: i32, %arg2: i32, %arg3: memref<8x256xbf16, #tpu.memory_space<vmem>>, %arg4: memref<256x128xbf16, #tpu.memory_space<vmem>>, %arg5: memref<1x128xf32, #tpu.memory_space<vmem>>, %arg6: memref<8x128xf32, #tpu.memory_space<vmem>>, %arg7: memref<8x128xf32, #tpu.memory_space<vmem>>) attributes {dimension_semantics = [#tpu.dimension_semantics<parallel>, #tpu.dimension_semantics<parallel>, #tpu.dimension_semantics<arbitrary>], iteration_bounds = array<i64: 1, 1, 1>, scalar_prefetch = 0 : i64, scratch_operands = 1 : i64, tpu.core_type = #tpu.core_type<tc>, window_params = [{transform_indices = @transform_0, window_bounds = array<i64: 8, 256>}, {transform_indices = @transform_1, window_bounds = array<i64: 256, 128>}, {transform_indices = @transform_2, window_bounds = array<i64: 1, 128>}, {transform_indices = @transform_3, window_bounds = array<i64: 8, 128>}]} {
    %c0_i32 = arith.constant 0 : i32
    %0 = arith.cmpi eq, %arg2, %c0_i32 : i32
    %1 = arith.extui %0 : i1 to i32
    %c0_i32_0 = arith.constant 0 : i32
    %2 = arith.cmpi ne, %1, %c0_i32_0 : i32
    scf.if %2 {
      %cst_10 = arith.constant 0.000000e+00 : f32
      %12 = vector.broadcast %cst_10 : f32 to vector<8x128xf32>
      %c0_11 = arith.constant 0 : index
      %c0_12 = arith.constant 0 : index
      %13 = vector.load %arg7[%c0_11, %c0_12] : memref<8x128xf32, #tpu.memory_space<vmem>>, vector<8x128xf32>
      tpu.vector_store %arg7[%c0_11, %c0_12], %12 {strides = array<i32>} : memref<8x128xf32, #tpu.memory_space<vmem>>, vector<8x128xf32>,
    } else {
    }
    %c0 = arith.constant 0 : index
    %c0_1 = arith.constant 0 : index
    %3 = vector.load %arg4[%c0, %c0_1] : memref<256x128xbf16, #tpu.memory_space<vmem>>, vector<256x128xbf16>
    %c0_2 = arith.constant 0 : index
    %c0_3 = arith.constant 0 : index
    %4 = vector.load %arg7[%c0_2, %c0_3] : memref<8x128xf32, #tpu.memory_space<vmem>>, vector<8x128xf32>
    %c0_4 = arith.constant 0 : index
    %c0_5 = arith.constant 0 : index
    %5 = vector.load %arg3[%c0_4, %c0_5] : memref<8x256xbf16, #tpu.memory_space<vmem>>, vector<8x256xbf16>
    %cst = arith.constant dense<0.000000e+00> : vector<8x128xf32>
    %6 = tpu.matmul %5, %3, %cst {dimension_numbers = #tpu.dot_dimension_numbers<[1], [0], [0], [1], [0, 0, 1, 1], [], []>} : vector<8x256xbf16>, vector<256x128xbf16>, vector<8x128xf32> -> vector<8x128xf32>
    %7 = arith.addf %4, %6 : vector<8x128xf32>
    %c0_6 = arith.constant 0 : index
    %c0_7 = arith.constant 0 : index
    %8 = vector.load %arg7[%c0_6, %c0_7] : memref<8x128xf32, #tpu.memory_space<vmem>>, vector<8x128xf32>
    tpu.vector_store %arg7[%c0_6, %c0_7], %7 {strides = array<i32>} : memref<8x128xf32, #tpu.memory_space<vmem>>, vector<8x128xf32>,
    %c0_i32_8 = arith.constant 0 : i32
    %9 = arith.cmpi eq, %arg2, %c0_i32_8 : i32
    %10 = arith.extui %9 : i1 to i32
    %c0_i32_9 = arith.constant 0 : i32
    %11 = arith.cmpi ne, %10, %c0_i32_9 : i32
    scf.if %11 {
      %c0_10 = arith.constant 0 : index
      %c0_11 = arith.constant 0 : index
      %12 = vector.load %arg7[%c0_10, %c0_11] : memref<8x128xf32, #tpu.memory_space<vmem>>, vector<8x128xf32>
      %c0_12 = arith.constant 0 : index
      %c0_13 = arith.constant 0 : index
      %13 = vector.load %arg5[%c0_12, %c0_13] : memref<1x128xf32, #tpu.memory_space<vmem>>, vector<1x128xf32>
      %14 = vector.broadcast %13 : vector<1x128xf32> to vector<8x128xf32>
      %15 = arith.addf %12, %14 : vector<8x128xf32>
      %cst_14 = arith.constant 0.000000e+00 : f32
      %16 = vector.broadcast %cst_14 : f32 to vector<8x128xf32>
      %17 = arith.cmpf oge, %15, %16 : vector<8x128xf32>
      %cst_15 = arith.constant 2.000000e-02 : f32
      %18 = vector.broadcast %cst_15 : f32 to vector<8x128xf32>
      %19 = arith.mulf %18, %15 : vector<8x128xf32>
      %20 = arith.select %17, %15, %19 : vector<8x128xi1>, vector<8x128xf32>
      %c0_16 = arith.constant 0 : index
      %c0_17 = arith.constant 0 : index
      %21 = vector.load %arg6[%c0_16, %c0_17] : memref<8x128xf32, #tpu.memory_space<vmem>>, vector<8x128xf32>
      tpu.vector_store %arg6[%c0_16, %c0_17], %20 {strides = array<i32>} : memref<8x128xf32, #tpu.memory_space<vmem>>, vector<8x128xf32>,
    } else {
    }
    return
  }
  func.func @transform_0(%arg0: i32, %arg1: i32, %arg2: i32) -> (i32, i32) {
    %c0_i32 = arith.constant 0 : i32
    return %arg0, %arg2 : i32, i32
  }
  func.func @transform_1(%arg0: i32, %arg1: i32, %arg2: i32) -> (i32, i32) {
    %c0_i32 = arith.constant 0 : i32
    %c0_i32_0 = arith.constant 0 : i32
    return %c0_i32, %arg1 : i32, i32
  }
  func.func @transform_2(%arg0: i32, %arg1: i32, %arg2: i32) -> (i32, i32) {
    %c0_i32 = arith.constant 0 : i32
    %c0_i32_0 = arith.constant 0 : i32
    return %c0_i32, %arg1 : i32, i32
  }
  func.func @transform_3(%arg0: i32, %arg1: i32, %arg2: i32) -> (i32, i32) {
    %c0_i32 = arith.constant 0 : i32
    return %arg0, %arg1 : i32, i32
  }
}

module attributes {stable_mosaic.version = 11 : i64} {
  func.func @_mm_kernel(%arg0: i32, %arg1: i32, %arg2: i32, %arg3: memref<32x128xbf16, #tpu.memory_space<vmem>>, %arg4: memref<128x128xbf16, #tpu.memory_space<vmem>>, %arg5: memref<1x128xf32, #tpu.memory_space<vmem>>, %arg6: memref<32x128xf32, #tpu.memory_space<vmem>>, %arg7: memref<32x128xf32, #tpu.memory_space<vmem>>) attributes {dimension_semantics = [#tpu.dimension_semantics<parallel>, #tpu.dimension_semantics<parallel>, #tpu.dimension_semantics<arbitrary>], iteration_bounds = array<i64: 1, 1, 1>, scalar_prefetch = 0 : i64, scratch_operands = 1 : i64, tpu.core_type = #tpu.core_type<tc>, window_params = [{transform_indices = @transform_0, window_bounds = array<i64: 32, 128>}, {transform_indices = @transform_1, window_bounds = array<i64: 128, 128>}, {transform_indices = @transform_2, window_bounds = array<i64: 1, 128>}, {transform_indices = @transform_3, window_bounds = array<i64: 32, 128>}]} {
    %c0_i32 = arith.constant 0 : i32
    %0 = arith.cmpi eq, %arg2, %c0_i32 : i32
    %1 = arith.extui %0 : i1 to i32
    %c0_i32_0 = arith.constant 0 : i32
    %2 = arith.cmpi ne, %1, %c0_i32_0 : i32
    scf.if %2 {
      %cst_10 = arith.constant 0.000000e+00 : f32
      %12 = vector.broadcast %cst_10 : f32 to vector<32x128xf32>
      %c0_11 = arith.constant 0 : index
      %c0_12 = arith.constant 0 : index
      %13 = vector.load %arg7[%c0_11, %c0_12] : memref<32x128xf32, #tpu.memory_space<vmem>>, vector<32x128xf32>
      tpu.vector_store %arg7[%c0_11, %c0_12], %12 {strides = array<i32>} : memref<32x128xf32, #tpu.memory_space<vmem>>, vector<32x128xf32>,
    } else {
    }
    %c0 = arith.constant 0 : index
    %c0_1 = arith.constant 0 : index
    %3 = vector.load %arg4[%c0, %c0_1] : memref<128x128xbf16, #tpu.memory_space<vmem>>, vector<128x128xbf16>
    %c0_2 = arith.constant 0 : index
    %c0_3 = arith.constant 0 : index
    %4 = vector.load %arg7[%c0_2, %c0_3] : memref<32x128xf32, #tpu.memory_space<vmem>>, vector<32x128xf32>
    %c0_4 = arith.constant 0 : index
    %c0_5 = arith.constant 0 : index
    %5 = vector.load %arg3[%c0_4, %c0_5] : memref<32x128xbf16, #tpu.memory_space<vmem>>, vector<32x128xbf16>
    %cst = arith.constant dense<0.000000e+00> : vector<32x128xf32>
    %6 = tpu.matmul %5, %3, %cst {dimension_numbers = #tpu.dot_dimension_numbers<[1], [0], [0], [1], [0, 0, 1, 1], [], []>} : vector<32x128xbf16>, vector<128x128xbf16>, vector<32x128xf32> -> vector<32x128xf32>
    %7 = arith.addf %4, %6 : vector<32x128xf32>
    %c0_6 = arith.constant 0 : index
    %c0_7 = arith.constant 0 : index
    %8 = vector.load %arg7[%c0_6, %c0_7] : memref<32x128xf32, #tpu.memory_space<vmem>>, vector<32x128xf32>
    tpu.vector_store %arg7[%c0_6, %c0_7], %7 {strides = array<i32>} : memref<32x128xf32, #tpu.memory_space<vmem>>, vector<32x128xf32>,
    %c0_i32_8 = arith.constant 0 : i32
    %9 = arith.cmpi eq, %arg2, %c0_i32_8 : i32
    %10 = arith.extui %9 : i1 to i32
    %c0_i32_9 = arith.constant 0 : i32
    %11 = arith.cmpi ne, %10, %c0_i32_9 : i32
    scf.if %11 {
      %c0_10 = arith.constant 0 : index
      %c0_11 = arith.constant 0 : index
      %12 = vector.load %arg7[%c0_10, %c0_11] : memref<32x128xf32, #tpu.memory_space<vmem>>, vector<32x128xf32>
      %c0_12 = arith.constant 0 : index
      %c0_13 = arith.constant 0 : index
      %13 = vector.load %arg5[%c0_12, %c0_13] : memref<1x128xf32, #tpu.memory_space<vmem>>, vector<1x128xf32>
      %14 = vector.broadcast %13 : vector<1x128xf32> to vector<32x128xf32>
      %15 = arith.addf %12, %14 : vector<32x128xf32>
      %cst_14 = arith.constant 0.000000e+00 : f32
      %16 = vector.broadcast %cst_14 : f32 to vector<32x128xf32>
      %17 = arith.cmpf oge, %15, %16 : vector<32x128xf32>
      %cst_15 = arith.constant 2.000000e-02 : f32
      %18 = vector.broadcast %cst_15 : f32 to vector<32x128xf32>
      %19 = arith.mulf %18, %15 : vector<32x128xf32>
      %20 = arith.select %17, %15, %19 : vector<32x128xi1>, vector<32x128xf32>
      %c0_16 = arith.constant 0 : index
      %c0_17 = arith.constant 0 : index
      %21 = vector.load %arg6[%c0_16, %c0_17] : memref<32x128xf32, #tpu.memory_space<vmem>>, vector<32x128xf32>
      tpu.vector_store %arg6[%c0_16, %c0_17], %20 {strides = array<i32>} : memref<32x128xf32, #tpu.memory_space<vmem>>, vector<32x128xf32>,
    } else {
    }
    return
  }
  func.func @transform_0(%arg0: i32, %arg1: i32, %arg2: i32) -> (i32, i32) {
    %c0_i32 = arith.constant 0 : i32
    return %arg0, %arg2 : i32, i32
  }
  func.func @transform_1(%arg0: i32, %arg1: i32, %arg2: i32) -> (i32, i32) {
    %c0_i32 = arith.constant 0 : i32
    %c0_i32_0 = arith.constant 0 : i32
    return %c0_i32, %arg1 : i32, i32
  }
  func.func @transform_2(%arg0: i32, %arg1: i32, %arg2: i32) -> (i32, i32) {
    %c0_i32 = arith.constant 0 : i32
    %c0_i32_0 = arith.constant 0 : i32
    return %c0_i32, %arg1 : i32, i32
  }
  func.func @transform_3(%arg0: i32, %arg1: i32, %arg2: i32) -> (i32, i32) {
    %c0_i32 = arith.constant 0 : i32
    return %arg0, %arg1 : i32, i32
  }
}

module attributes {stable_mosaic.version = 11 : i64} {
  func.func @_mm_kernel(%arg0: i32, %arg1: i32, %arg2: i32, %arg3: memref<512x512xbf16, #tpu.memory_space<vmem>>, %arg4: memref<512x128xbf16, #tpu.memory_space<vmem>>, %arg5: memref<1x128xf32, #tpu.memory_space<vmem>>, %arg6: memref<512x128xf32, #tpu.memory_space<vmem>>, %arg7: memref<512x128xf32, #tpu.memory_space<vmem>>) attributes {dimension_semantics = [#tpu.dimension_semantics<parallel>, #tpu.dimension_semantics<parallel>, #tpu.dimension_semantics<arbitrary>], iteration_bounds = array<i64: 1, 1, 1>, scalar_prefetch = 0 : i64, scratch_operands = 1 : i64, tpu.core_type = #tpu.core_type<tc>, window_params = [{transform_indices = @transform_0, window_bounds = array<i64: 512, 512>}, {transform_indices = @transform_1, window_bounds = array<i64: 512, 128>}, {transform_indices = @transform_2, window_bounds = array<i64: 1, 128>}, {transform_indices = @transform_3, window_bounds = array<i64: 512, 128>}]} {
    %c0_i32 = arith.constant 0 : i32
    %0 = arith.cmpi eq, %arg2, %c0_i32 : i32
    %1 = arith.extui %0 : i1 to i32
    %c0_i32_0 = arith.constant 0 : i32
    %2 = arith.cmpi ne, %1, %c0_i32_0 : i32
    scf.if %2 {
      %cst_10 = arith.constant 0.000000e+00 : f32
      %12 = vector.broadcast %cst_10 : f32 to vector<512x128xf32>
      %c0_11 = arith.constant 0 : index
      %c0_12 = arith.constant 0 : index
      %13 = vector.load %arg7[%c0_11, %c0_12] : memref<512x128xf32, #tpu.memory_space<vmem>>, vector<512x128xf32>
      tpu.vector_store %arg7[%c0_11, %c0_12], %12 {strides = array<i32>} : memref<512x128xf32, #tpu.memory_space<vmem>>, vector<512x128xf32>,
    } else {
    }
    %c0 = arith.constant 0 : index
    %c0_1 = arith.constant 0 : index
    %3 = vector.load %arg4[%c0, %c0_1] : memref<512x128xbf16, #tpu.memory_space<vmem>>, vector<512x128xbf16>
    %c0_2 = arith.constant 0 : index
    %c0_3 = arith.constant 0 : index
    %4 = vector.load %arg7[%c0_2, %c0_3] : memref<512x128xf32, #tpu.memory_space<vmem>>, vector<512x128xf32>
    %c0_4 = arith.constant 0 : index
    %c0_5 = arith.constant 0 : index
    %5 = vector.load %arg3[%c0_4, %c0_5] : memref<512x512xbf16, #tpu.memory_space<vmem>>, vector<512x512xbf16>
    %cst = arith.constant dense<0.000000e+00> : vector<512x128xf32>
    %6 = tpu.matmul %5, %3, %cst {dimension_numbers = #tpu.dot_dimension_numbers<[1], [0], [0], [1], [0, 0, 1, 1], [], []>} : vector<512x512xbf16>, vector<512x128xbf16>, vector<512x128xf32> -> vector<512x128xf32>
    %7 = arith.addf %4, %6 : vector<512x128xf32>
    %c0_6 = arith.constant 0 : index
    %c0_7 = arith.constant 0 : index
    %8 = vector.load %arg7[%c0_6, %c0_7] : memref<512x128xf32, #tpu.memory_space<vmem>>, vector<512x128xf32>
    tpu.vector_store %arg7[%c0_6, %c0_7], %7 {strides = array<i32>} : memref<512x128xf32, #tpu.memory_space<vmem>>, vector<512x128xf32>,
    %c0_i32_8 = arith.constant 0 : i32
    %9 = arith.cmpi eq, %arg2, %c0_i32_8 : i32
    %10 = arith.extui %9 : i1 to i32
    %c0_i32_9 = arith.constant 0 : i32
    %11 = arith.cmpi ne, %10, %c0_i32_9 : i32
    scf.if %11 {
      %c0_10 = arith.constant 0 : index
      %c0_11 = arith.constant 0 : index
      %12 = vector.load %arg7[%c0_10, %c0_11] : memref<512x128xf32, #tpu.memory_space<vmem>>, vector<512x128xf32>
      %c0_12 = arith.constant 0 : index
      %c0_13 = arith.constant 0 : index
      %13 = vector.load %arg5[%c0_12, %c0_13] : memref<1x128xf32, #tpu.memory_space<vmem>>, vector<1x128xf32>
      %14 = vector.broadcast %13 : vector<1x128xf32> to vector<512x128xf32>
      %15 = arith.addf %12, %14 : vector<512x128xf32>
      %16 = math.tanh %15 : vector<512x128xf32>
      %c0_14 = arith.constant 0 : index
      %c0_15 = arith.constant 0 : index
      %17 = vector.load %arg6[%c0_14, %c0_15] : memref<512x128xf32, #tpu.memory_space<vmem>>, vector<512x128xf32>
      tpu.vector_store %arg6[%c0_14, %c0_15], %16 {strides = array<i32>} : memref<512x128xf32, #tpu.memory_space<vmem>>, vector<512x128xf32>,
    } else {
    }
    return
  }
  func.func @transform_0(%arg0: i32, %arg1: i32, %arg2: i32) -> (i32, i32) {
    %c0_i32 = arith.constant 0 : i32
    return %arg0, %arg2 : i32, i32
  }
  func.func @transform_1(%arg0: i32, %arg1: i32, %arg2: i32) -> (i32, i32) {
    %c0_i32 = arith.constant 0 : i32
    %c0_i32_0 = arith.constant 0 : i32
    return %c0_i32, %arg1 : i32, i32
  }
  func.func @transform_2(%arg0: i32, %arg1: i32, %arg2: i32) -> (i32, i32) {
    %c0_i32 = arith.constant 0 : i32
    %c0_i32_0 = arith.constant 0 : i32
    return %c0_i32, %arg1 : i32, i32
  }
  func.func @transform_3(%arg0: i32, %arg1: i32, %arg2: i32) -> (i32, i32) {
    %c0_i32 = arith.constant 0 : i32
    return %arg0, %arg1 : i32, i32
  }
}

</mosaic_0001>

<llo_original>
// kernel: resnet_generator_forward.26
$region0: #{resnet_generator_forward.26}
  #allocation0 [shape = 'u32[]', space=smem, size = 0x4, offset = 0x4, fixed_abs, tag = 'smem constant byte address 0x4 - core index']
  #allocation1 [shape = 'u32[72,128]{1,0:T(1,128)}', space=vmem, size = 0x9000, scoped, tag = 'internal scratch']
  #allocation2 [shape = 'f32[128,128]{1,0:T(8,128)}', space=vmem, size = 0x10000, scoped, tag = 'scratch operand']
  %s0 = inlined_call_operand.vmem [shape: bf16[128,128], index: 0, kind: input, shape index: {}]
  %s1 = inlined_call_operand.vmem [shape: bf16[128,128], index: 1, kind: input, shape index: {}]
  %s2 = inlined_call_operand.vmem [shape: f32[1,128], index: 2, kind: input, shape index: {}]
  %s3 = inlined_call_operand.vmem [shape: f32[128,128], index: 3, kind: output, shape index: {}]
  %s4 = sld [smem:[#allocation0]]
  $region30: #{resnet_generator_forward.26} parent=0
    _
  %s6 = ssub.s32 1, %s4
  %s7 = scalar_select 0, %s6, %s4
  // Predicated region
  $region2: #{resnet_generator_forward.26} parent=0 // pred_check
    _
  $region3: #{resnet_generator_forward.26} parent=0 // pred_check_branch
    %9 = sbr.rel (0) target = $region5
  $region4: #{resnet_generator_forward.26} parent=0 // pred_region
    _
  $region5: #{resnet_generator_forward.26} parent=0 // pred_fallthru
    _
  // Predicated region
  $region6: #{resnet_generator_forward.26} parent=0 // pred_check
    _
  $region7: #{resnet_generator_forward.26} parent=0 // pred_check_branch
    %11 = sbr.rel (0) target = $region9
  $region8: #{resnet_generator_forward.26} parent=0 // pred_region
    _
  $region9: #{resnet_generator_forward.26} parent=0 // pred_fallthru
    _
  // Predicated region
  $region10: #{resnet_generator_forward.26} parent=0 // pred_check
    _
  $region11: #{resnet_generator_forward.26} parent=0 // pred_check_branch
    %13 = sbr.rel (0) target = $region13
  $region12: #{resnet_generator_forward.26} parent=0 // pred_region
    _
  $region13: #{resnet_generator_forward.26} parent=0 // pred_fallthru
    _
  %p14 = scmp.eq.s32.totalorder 0, 0
  // Predicated region
  $region14: #{resnet_generator_forward.26} parent=0 // pred_check
    %p15 = pneg %p14
  $region15: #{resnet_generator_forward.26} parent=0 // pred_check_branch
    %17 = sbr.rel (%p15) target = $region17
  $region16: #{resnet_generator_forward.26} parent=0 // pred_region
    %18 = vst [vmem:[#allocation2] sm:$0xff] 0.0
    %19 = vst [vmem:[#allocation2 + $0x8] sm:$0xff] 0.0
    %20 = vst [vmem:[#allocation2 + $0x10] sm:$0xff] 0.0
    %21 = vst [vmem:[#allocation2 + $0x18] sm:$0xff] 0.0
    %22 = vst [vmem:[#allocation2 + $0x20] sm:$0xff] 0.0
    %23 = vst [vmem:[#allocation2 + $0x28] sm:$0xff] 0.0
    %24 = vst [vmem:[#allocation2 + $0x30] sm:$0xff] 0.0
    %25 = vst [vmem:[#allocation2 + $0x38] sm:$0xff] 0.0
    %26 = vst [vmem:[#allocation2 + $0x40] sm:$0xff] 0.0
    %27 = vst [vmem:[#allocation2 + $0x48] sm:$0xff] 0.0
    %28 = vst [vmem:[#allocation2 + $0x50] sm:$0xff] 0.0
    %29 = vst [vmem:[#allocation2 + $0x58] sm:$0xff] 0.0
    %30 = vst [vmem:[#allocation2 + $0x60] sm:$0xff] 0.0
    %31 = vst [vmem:[#allocation2 + $0x68] sm:$0xff] 0.0
    %32 = vst [vmem:[#allocation2 + $0x70] sm:$0xff] 0.0
    %33 = vst [vmem:[#allocation2 + $0x78] sm:$0xff] 0.0
  $region17: #{resnet_generator_forward.26} parent=0 // pred_fallthru
    _
  %v34 = vld [vmem:[%s1] sm:$0xf]
  %v35 = vld [vmem:[%s1 + $0x4] sm:$0xf]
  %v36 = vld [vmem:[%s1 + $0x8] sm:$0xf]
  %v37 = vld [vmem:[%s1 + $0xc] sm:$0xf]
  %v38 = vld [vmem:[%s1 + $0x10] sm:$0xf]
  %v39 = vld [vmem:[%s1 + $0x14] sm:$0xf]
  %v40 = vld [vmem:[%s1 + $0x18] sm:$0xf]
  %v41 = vld [vmem:[%s1 + $0x1c] sm:$0xf]
  %v42 = vld [vmem:[%s1 + $0x20] sm:$0xf]
  %v43 = vld [vmem:[%s1 + $0x24] sm:$0xf]
  %v44 = vld [vmem:[%s1 + $0x28] sm:$0xf]
  %v45 = vld [vmem:[%s1 + $0x2c] sm:$0xf]
  %v46 = vld [vmem:[%s1 + $0x30] sm:$0xf]
  %v47 = vld [vmem:[%s1 + $0x34] sm:$0xf]
  %v48 = vld [vmem:[%s1 + $0x38] sm:$0xf]
  %v49 = vld [vmem:[%s1 + $0x3c] sm:$0xf]
  %v50 = vld [vmem:[#allocation2] sm:$0xff]
  %v51 = vld [vmem:[#allocation2 + $0x8] sm:$0xff]
  %v52 = vld [vmem:[#allocation2 + $0x10] sm:$0xff]
  %v53 = vld [vmem:[#allocation2 + $0x18] sm:$0xff]
  %v54 = vld [vmem:[#allocation2 + $0x20] sm:$0xff]
  %v55 = vld [vmem:[#allocation2 + $0x28] sm:$0xff]
  %v56 = vld [vmem:[#allocation2 + $0x30] sm:$0xff]
  %v57 = vld [vmem:[#allocation2 + $0x38] sm:$0xff]
  %v58 = vld [vmem:[#allocation2 + $0x40] sm:$0xff]
  %v59 = vld [vmem:[#allocation2 + $0x48] sm:$0xff]
  %v60 = vld [vmem:[#allocation2 + $0x50] sm:$0xff]
  %v61 = vld [vmem:[#allocation2 + $0x58] sm:$0xff]
  %v62 = vld [vmem:[#allocation2 + $0x60] sm:$0xff]
  %v63 = vld [vmem:[#allocation2 + $0x68] sm:$0xff]
  %v64 = vld [vmem:[#allocation2 + $0x70] sm:$0xff]
  %v65 = vld [vmem:[#allocation2 + $0x78] sm:$0xff]
  %v66 = vld [vmem:[%s0] sm:$0xf]
  %v67 = vld [vmem:[%s0 + $0x4] sm:$0xf]
  %v68 = vld [vmem:[%s0 + $0x8] sm:$0xf]
  %v69 = vld [vmem:[%s0 + $0xc] sm:$0xf]
  %v70 = vld [vmem:[%s0 + $0x10] sm:$0xf]
  %v71 = vld [vmem:[%s0 + $0x14] sm:$0xf]
  %v72 = vld [vmem:[%s0 + $0x18] sm:$0xf]
  %v73 = vld [vmem:[%s0 + $0x1c] sm:$0xf]
  %v74 = vld [vmem:[%s0 + $0x20] sm:$0xf]
  %v75 = vld [vmem:[%s0 + $0x24] sm:$0xf]
  %v76 = vld [vmem:[%s0 + $0x28] sm:$0xf]
  %v77 = vld [vmem:[%s0 + $0x2c] sm:$0xf]
  %v78 = vld [vmem:[%s0 + $0x30] sm:$0xf]
  %v79 = vld [vmem:[%s0 + $0x34] sm:$0xf]
  %v80 = vld [vmem:[%s0 + $0x38] sm:$0xf]
  %v81 = vld [vmem:[%s0 + $0x3c] sm:$0xf]
  %v98 = vunpack.c.l.b16 %v66
  %v99 = vunpack.c.l.b16 %v67
  %v100 = vunpack.c.l.b16 %v68
  %v101 = vunpack.c.l.b16 %v69
  %v102 = vunpack.c.l.b16 %v70
  %v103 = vunpack.c.l.b16 %v71
  %v104 = vunpack.c.l.b16 %v72
  %v105 = vunpack.c.l.b16 %v73
  %v106 = vunpack.c.l.b16 %v74
  %v107 = vunpack.c.l.b16 %v75
  %v108 = vunpack.c.l.b16 %v76
  %v109 = vunpack.c.l.b16 %v77
  %v110 = vunpack.c.l.b16 %v78
  %v111 = vunpack.c.l.b16 %v79
  %v112 = vunpack.c.l.b16 %v80
  %v113 = vunpack.c.l.b16 %v81
  %v114 = vpack.c.b16 %v99, %v98
  %v115 = vpack.c.b16 %v101, %v100
  %v116 = vpack.c.b16 %v103, %v102
  %v117 = vpack.c.b16 %v105, %v104
  %v118 = vpack.c.b16 %v107, %v106
  %v119 = vpack.c.b16 %v109, %v108
  %v120 = vpack.c.b16 %v111, %v110
  %v121 = vpack.c.b16 %v113, %v112
  %v146 = vunpack.c.l.b16 %v34
  %v147 = vunpack.c.l.b16 %v35
  %v148 = vunpack.c.l.b16 %v36
  %v149 = vunpack.c.l.b16 %v37
  %v150 = vunpack.c.l.b16 %v38
  %v151 = vunpack.c.l.b16 %v39
  %v152 = vunpack.c.l.b16 %v40
  %v153 = vunpack.c.l.b16 %v41
  %v154 = vunpack.c.l.b16 %v42
  %v155 = vunpack.c.l.b16 %v43
  %v156 = vunpack.c.l.b16 %v44
  %v157 = vunpack.c.l.b16 %v45
  %v158 = vunpack.c.l.b16 %v46
  %v159 = vunpack.c.l.b16 %v47
  %v160 = vunpack.c.l.b16 %v48
  %v161 = vunpack.c.l.b16 %v49
  %v162 = vpack.c.b16 %v147, %v146
  %v163 = vpack.c.b16 %v149, %v148
  %v164 = vpack.c.b16 %v151, %v150
  %v165 = vpack.c.b16 %v153, %v152
  %v166 = vpack.c.b16 %v155, %v154
  %v167 = vpack.c.b16 %v157, %v156
  %v168 = vpack.c.b16 %v159, %v158
  %v169 = vpack.c.b16 %v161, %v160
  %178 = vmatpush.bf16.msra.mxu0 %v169
  %179 = vmatpush.bf16.msra.mxu0 %v168
  %180 = vmatpush.bf16.msra.mxu0 %v167
  %181 = vmatpush.bf16.msra.mxu0 %v166
  %182 = vmatpush.bf16.msra.mxu0 %v165
  %183 = vmatpush.bf16.msra.mxu0 %v164
  %184 = vmatpush.bf16.msra.mxu0 %v163
  %185 = vmatpush.bf16.msra.mxu0 %v162
  %186 = vmatmul.bf16.gmra.mxu0 %v114
  %v187 = vpop.f32.mrf.mxu0
  %v188 = vadd.f32 0.0, %v187
  %v189 = vpop.f32.mrf.mxu0
  %v190 = vadd.f32 0.0, %v189
  %191 = vmatmul.bf16.gmra.mxu0 %v115
  %v192 = vpop.f32.mrf.mxu0
  %v193 = vadd.f32 0.0, %v192
  %v194 = vpop.f32.mrf.mxu0
  %v195 = vadd.f32 0.0, %v194
  %196 = vmatmul.bf16.gmra.mxu0 %v116
  %v197 = vpop.f32.mrf.mxu0
  %v198 = vadd.f32 0.0, %v197
  %v199 = vpop.f32.mrf.mxu0
  %v200 = vadd.f32 0.0, %v199
  %201 = vmatmul.bf16.gmra.mxu0 %v117
  %v202 = vpop.f32.mrf.mxu0
  %v203 = vadd.f32 0.0, %v202
  %v204 = vpop.f32.mrf.mxu0
  %v205 = vadd.f32 0.0, %v204
  %206 = vmatmul.bf16.gmra.mxu0 %v118
  %v207 = vpop.f32.mrf.mxu0
  %v208 = vadd.f32 0.0, %v207
  %v209 = vpop.f32.mrf.mxu0
  %v210 = vadd.f32 0.0, %v209
  %211 = vmatmul.bf16.gmra.mxu0 %v119
  %v212 = vpop.f32.mrf.mxu0
  %v213 = vadd.f32 0.0, %v212
  %v214 = vpop.f32.mrf.mxu0
  %v215 = vadd.f32 0.0, %v214
  %216 = vmatmul.bf16.gmra.mxu0 %v120
  %v217 = vpop.f32.mrf.mxu0
  %v218 = vadd.f32 0.0, %v217
  %v219 = vpop.f32.mrf.mxu0
  %v220 = vadd.f32 0.0, %v219
  %221 = vmatmul.bf16.gmra.mxu0 %v121
  %v222 = vpop.f32.mrf.mxu0
  %v223 = vadd.f32 0.0, %v222
  %v224 = vpop.f32.mrf.mxu0
  %v225 = vadd.f32 0.0, %v224
  %226 = vdwg.mxu0
  %v227 = vadd.f32 %v50, %v188
  %v228 = vadd.f32 %v51, %v190
  %v229 = vadd.f32 %v52, %v193
  %v230 = vadd.f32 %v53, %v195
  %v231 = vadd.f32 %v54, %v198
  %v232 = vadd.f32 %v55, %v200
  %v233 = vadd.f32 %v56, %v203
  %v234 = vadd.f32 %v57, %v205
  %v235 = vadd.f32 %v58, %v208
  %v236 = vadd.f32 %v59, %v210
  %v237 = vadd.f32 %v60, %v213
  %v238 = vadd.f32 %v61, %v215
  %v239 = vadd.f32 %v62, %v218
  %v240 = vadd.f32 %v63, %v220
  %v241 = vadd.f32 %v64, %v223
  %v242 = vadd.f32 %v65, %v225
  %243 = vst [vmem:[#allocation2] sm:$0xff] %v227
  %244 = vst [vmem:[#allocation2 + $0x8] sm:$0xff] %v228
  %245 = vst [vmem:[#allocation2 + $0x10] sm:$0xff] %v229
  %246 = vst [vmem:[#allocation2 + $0x18] sm:$0xff] %v230
  %247 = vst [vmem:[#allocation2 + $0x20] sm:$0xff] %v231
  %248 = vst [vmem:[#allocation2 + $0x28] sm:$0xff] %v232
  %249 = vst [vmem:[#allocation2 + $0x30] sm:$0xff] %v233
  %250 = vst [vmem:[#allocation2 + $0x38] sm:$0xff] %v234
  %251 = vst [vmem:[#allocation2 + $0x40] sm:$0xff] %v235
  %252 = vst [vmem:[#allocation2 + $0x48] sm:$0xff] %v236
  %253 = vst [vmem:[#allocation2 + $0x50] sm:$0xff] %v237
  %254 = vst [vmem:[#allocation2 + $0x58] sm:$0xff] %v238
  %255 = vst [vmem:[#allocation2 + $0x60] sm:$0xff] %v239
  %256 = vst [vmem:[#allocation2 + $0x68] sm:$0xff] %v240
  %257 = vst [vmem:[#allocation2 + $0x70] sm:$0xff] %v241
  %258 = vst [vmem:[#allocation2 + $0x78] sm:$0xff] %v242
  // Predicated region
  $region18: #{resnet_generator_forward.26} parent=0 // pred_check
    %p259 = pneg %p14
  $region19: #{resnet_generator_forward.26} parent=0 // pred_check_branch
    %261 = sbr.rel (%p259) target = $region21
  $region20: #{resnet_generator_forward.26} parent=0 // pred_region
    %v262 = vld [vmem:[#allocation2] sm:$0xff]
    %v263 = vld [vmem:[#allocation2 + $0x8] sm:$0xff]
    %v264 = vld [vmem:[#allocation2 + $0x10] sm:$0xff]
    %v265 = vld [vmem:[#allocation2 + $0x18] sm:$0xff]
    %v266 = vld [vmem:[#allocation2 + $0x20] sm:$0xff]
    %v267 = vld [vmem:[#allocation2 + $0x28] sm:$0xff]
    %v268 = vld [vmem:[#allocation2 + $0x30] sm:$0xff]
    %v269 = vld [vmem:[#allocation2 + $0x38] sm:$0xff]
    %v270 = vld [vmem:[#allocation2 + $0x40] sm:$0xff]
    %v271 = vld [vmem:[#allocation2 + $0x48] sm:$0xff]
    %v272 = vld [vmem:[#allocation2 + $0x50] sm:$0xff]
    %v273 = vld [vmem:[#allocation2 + $0x58] sm:$0xff]
    %v274 = vld [vmem:[#allocation2 + $0x60] sm:$0xff]
    %v275 = vld [vmem:[#allocation2 + $0x68] sm:$0xff]
    %v276 = vld [vmem:[#allocation2 + $0x70] sm:$0xff]
    %v277 = vld [vmem:[#allocation2 + $0x78] sm:$0xff]
    %v278 = vld [vmem:[%s2] sm:$0x1]
    %v280 = vperm.slane %v278, 0
    %v282 = vadd.f32 %v262, %v280
    %v283 = vadd.f32 %v263, %v280
    %v284 = vadd.f32 %v264, %v280
    %v285 = vadd.f32 %v265, %v280
    %v286 = vadd.f32 %v266, %v280
    %v287 = vadd.f32 %v267, %v280
    %v288 = vadd.f32 %v268, %v280
    %v289 = vadd.f32 %v269, %v280
    %v290 = vadd.f32 %v270, %v280
    %v291 = vadd.f32 %v271, %v280
    %v292 = vadd.f32 %v272, %v280
    %v293 = vadd.f32 %v273, %v280
    %v294 = vadd.f32 %v274, %v280
    %v295 = vadd.f32 %v275, %v280
    %v296 = vadd.f32 %v276, %v280
    %v297 = vadd.f32 %v277, %v280
    %vm298 = vcmp.ge.f32.partialorder %v282, 0.0
    %vm299 = vcmp.ge.f32.partialorder %v283, 0.0
    %vm300 = vcmp.ge.f32.partialorder %v284, 0.0
    %vm301 = vcmp.ge.f32.partialorder %v285, 0.0
    %vm302 = vcmp.ge.f32.partialorder %v286, 0.0
    %vm303 = vcmp.ge.f32.partialorder %v287, 0.0
    %vm304 = vcmp.ge.f32.partialorder %v288, 0.0
    %vm305 = vcmp.ge.f32.partialorder %v289, 0.0
    %vm306 = vcmp.ge.f32.partialorder %v290, 0.0
    %vm307 = vcmp.ge.f32.partialorder %v291, 0.0
    %vm308 = vcmp.ge.f32.partialorder %v292, 0.0
    %vm309 = vcmp.ge.f32.partialorder %v293, 0.0
    %vm310 = vcmp.ge.f32.partialorder %v294, 0.0
    %vm311 = vcmp.ge.f32.partialorder %v295, 0.0
    %vm312 = vcmp.ge.f32.partialorder %v296, 0.0
    %vm313 = vcmp.ge.f32.partialorder %v297, 0.0
    %v314 = vmul.f32 %v282, 0.02
    %v315 = vmul.f32 %v283, 0.02
    %v316 = vmul.f32 %v284, 0.02
    %v317 = vmul.f32 %v285, 0.02
    %v318 = vmul.f32 %v286, 0.02
    %v319 = vmul.f32 %v287, 0.02
    %v320 = vmul.f32 %v288, 0.02
    %v321 = vmul.f32 %v289, 0.02
    %v322 = vmul.f32 %v290, 0.02
    %v323 = vmul.f32 %v291, 0.02
    %v324 = vmul.f32 %v292, 0.02
    %v325 = vmul.f32 %v293, 0.02
    %v326 = vmul.f32 %v294, 0.02
    %v327 = vmul.f32 %v295, 0.02
    %v328 = vmul.f32 %v296, 0.02
    %v329 = vmul.f32 %v297, 0.02
    %v330 = vsel %vm298, %v282, %v314
    %v331 = vsel %vm299, %v283, %v315
    %v332 = vsel %vm300, %v284, %v316
    %v333 = vsel %vm301, %v285, %v317
    %v334 = vsel %vm302, %v286, %v318
    %v335 = vsel %vm303, %v287, %v319
    %v336 = vsel %vm304, %v288, %v320
    %v337 = vsel %vm305, %v289, %v321
    %v338 = vsel %vm306, %v290, %v322
    %v339 = vsel %vm307, %v291, %v323
    %v340 = vsel %vm308, %v292, %v324
    %v341 = vsel %vm309, %v293, %v325
    %v342 = vsel %vm310, %v294, %v326
    %v343 = vsel %vm311, %v295, %v327
    %v344 = vsel %vm312, %v296, %v328
    %v345 = vsel %vm313, %v297, %v329
    %346 = vst [vmem:[%s3] sm:$0xff] %v330
    %347 = vst [vmem:[%s3 + $0x8] sm:$0xff] %v331
    %348 = vst [vmem:[%s3 + $0x10] sm:$0xff] %v332
    %349 = vst [vmem:[%s3 + $0x18] sm:$0xff] %v333
    %350 = vst [vmem:[%s3 + $0x20] sm:$0xff] %v334
    %351 = vst [vmem:[%s3 + $0x28] sm:$0xff] %v335
    %352 = vst [vmem:[%s3 + $0x30] sm:$0xff] %v336
    %353 = vst [vmem:[%s3 + $0x38] sm:$0xff] %v337
    %354 = vst [vmem:[%s3 + $0x40] sm:$0xff] %v338
    %355 = vst [vmem:[%s3 + $0x48] sm:$0xff] %v339
    %356 = vst [vmem:[%s3 + $0x50] sm:$0xff] %v340
    %357 = vst [vmem:[%s3 + $0x58] sm:$0xff] %v341
    %358 = vst [vmem:[%s3 + $0x60] sm:$0xff] %v342
    %359 = vst [vmem:[%s3 + $0x68] sm:$0xff] %v343
    %360 = vst [vmem:[%s3 + $0x70] sm:$0xff] %v344
    %361 = vst [vmem:[%s3 + $0x78] sm:$0xff] %v345
  $region21: #{resnet_generator_forward.26} parent=0 // pred_fallthru
    _
  // Predicated region
  $region22: #{resnet_generator_forward.26} parent=0 // pred_check
    _
  $region23: #{resnet_generator_forward.26} parent=0 // pred_check_branch
    %363 = sbr.rel (0) target = $region25
  $region24: #{resnet_generator_forward.26} parent=0 // pred_region
    _
  $region25: #{resnet_generator_forward.26} parent=0 // pred_fallthru
    _
  // Predicated region
  $region26: #{resnet_generator_forward.26} parent=0 // pred_check
    _
  $region27: #{resnet_generator_forward.26} parent=0 // pred_check_branch
    %365 = sbr.rel (0) target = $region29
  $region28: #{resnet_generator_forward.26} parent=0 // pred_region
    _
  $region29: #{resnet_generator_forward.26} parent=0 // pred_fallthru
    _

// kernel: resnet_generator_forward.25
$region0: #{resnet_generator_forward.25}
  #allocation0 [shape = 'u32[]', space=smem, size = 0x4, offset = 0x4, fixed_abs, tag = 'smem constant byte address 0x4 - core index']
  #allocation1 [shape = 'u32[72,128]{1,0:T(1,128)}', space=vmem, size = 0x9000, scoped, tag = 'internal scratch']
  #allocation2 [shape = 'f32[512,128]{1,0:T(8,128)}', space=vmem, size = 0x40000, scoped, tag = 'scratch operand']
  %s0 = inlined_call_operand.vmem [shape: bf16[512,256], index: 0, kind: input, shape index: {}]
  %s1 = inlined_call_operand.vmem [shape: bf16[256,128], index: 1, kind: input, shape index: {}]
  %s2 = inlined_call_operand.vmem [shape: f32[1,128], index: 2, kind: input, shape index: {}]
  %s3 = inlined_call_operand.vmem [shape: f32[512,128], index: 3, kind: output, shape index: {}]
  %s4 = sld [smem:[#allocation0]]
  $region30: #{resnet_generator_forward.25} parent=0
    _
  %s6 = ssub.s32 1, %s4
  %s7 = scalar_select 0, %s6, %s4
  // Predicated region
  $region2: #{resnet_generator_forward.25} parent=0 // pred_check
    _
  $region3: #{resnet_generator_forward.25} parent=0 // pred_check_branch
    %9 = sbr.rel (0) target = $region5
  $region4: #{resnet_generator_forward.25} parent=0 // pred_region
    _
  $region5: #{resnet_generator_forward.25} parent=0 // pred_fallthru
    _
  // Predicated region
  $region6: #{resnet_generator_forward.25} parent=0 // pred_check
    _
  $region7: #{resnet_generator_forward.25} parent=0 // pred_check_branch
    %11 = sbr.rel (0) target = $region9
  $region8: #{resnet_generator_forward.25} parent=0 // pred_region
    _
  $region9: #{resnet_generator_forward.25} parent=0 // pred_fallthru
    _
  // Predicated region
  $region10: #{resnet_generator_forward.25} parent=0 // pred_check
    _
  $region11: #{resnet_generator_forward.25} parent=0 // pred_check_branch
    %13 = sbr.rel (0) target = $region13
  $region12: #{resnet_generator_forward.25} parent=0 // pred_region
    _
  $region13: #{resnet_generator_forward.25} parent=0 // pred_fallthru
    _
  %p14 = scmp.eq.s32.totalorder 0, 0
  // Predicated region
  $region14: #{resnet_generator_forward.25} parent=0 // pred_check
    %p15 = pneg %p14
  $region15: #{resnet_generator_forward.25} parent=0 // pred_check_branch
    %17 = sbr.rel (%p15) target = $region17
  $region16: #{resnet_generator_forward.25} parent=0 // pred_region
    %18 = vst [vmem:[#allocation2] sm:$0xff] 0.0
    %19 = vst [vmem:[#allocation2 + $0x8] sm:$0xff] 0.0
    %20 = vst [vmem:[#allocation2 + $0x10] sm:$0xff] 0.0
    %21 = vst [vmem:[#allocation2 + $0x18] sm:$0xff] 0.0
    %22 = vst [vmem:[#allocation2 + $0x20] sm:$0xff] 0.0
    %23 = vst [vmem:[#allocation2 + $0x28] sm:$0xff] 0.0
    %24 = vst [vmem:[#allocation2 + $0x30] sm:$0xff] 0.0
    %25 = vst [vmem:[#allocation2 + $0x38] sm:$0xff] 0.0
    %26 = vst [vmem:[#allocation2 + $0x40] sm:$0xff] 0.0
    %27 = vst [vmem:[#allocation2 + $0x48] sm:$0xff] 0.0
    %28 = vst [vmem:[#allocation2 + $0x50] sm:$0xff] 0.0
    %29 = vst [vmem:[#allocation2 + $0x58] sm:$0xff] 0.0
    %30 = vst [vmem:[#allocation2 + $0x60] sm:$0xff] 0.0
    %31 = vst [vmem:[#allocation2 + $0x68] sm:$0xff] 0.0
    %32 = vst [vmem:[#allocation2 + $0x70] sm:$0xff] 0.0
    %33 = vst [vmem:[#allocation2 + $0x78] sm:$0xff] 0.0
    %34 = vst [vmem:[#allocation2 + $0x80] sm:$0xff] 0.0
    %35 = vst [vmem:[#allocation2 + $0x88] sm:$0xff] 0.0
    %36 = vst [vmem:[#allocation2 + $0x90] sm:$0xff] 0.0
    %37 = vst [vmem:[#allocation2 + $0x98] sm:$0xff] 0.0
    %38 = vst [vmem:[#allocation2 + $0xa0] sm:$0xff] 0.0
    %39 = vst [vmem:[#allocation2 + $0xa8] sm:$0xff] 0.0
    %40 = vst [vmem:[#allocation2 + $0xb0] sm:$0xff] 0.0
    %41 = vst [vmem:[#allocation2 + $0xb8] sm:$0xff] 0.0
    %42 = vst [vmem:[#allocation2 + $0xc0] sm:$0xff] 0.0
    %43 = vst [vmem:[#allocation2 + $0xc8] sm:$0xff] 0.0
    %44 = vst [vmem:[#allocation2 + $0xd0] sm:$0xff] 0.0
    %45 = vst [vmem:[#allocation2 + $0xd8] sm:$0xff] 0.0
    %46 = vst [vmem:[#allocation2 + $0xe0] sm:$0xff] 0.0
    %47 = vst [vmem:[#allocation2 + $0xe8] sm:$0xff] 0.0
    %48 = vst [vmem:[#allocation2 + $0xf0] sm:$0xff] 0.0
    %49 = vst [vmem:[#allocation2 + $0xf8] sm:$0xff] 0.0
    %50 = vst [vmem:[#allocation2 + $0x100] sm:$0xff] 0.0
    %51 = vst [vmem:[#allocation2 + $0x108] sm:$0xff] 0.0
    %52 = vst [vmem:[#allocation2 + $0x110] sm:$0xff] 0.0
    %53 = vst [vmem:[#allocation2 + $0x118] sm:$0xff] 0.0
    %54 = vst [vmem:[#allocation2 + $0x120] sm:$0xff] 0.0
    %55 = vst [vmem:[#allocation2 + $0x128] sm:$0xff] 0.0
    %56 = vst [vmem:[#allocation2 + $0x130] sm:$0xff] 0.0
    %57 = vst [vmem:[#allocation2 + $0x138] sm:$0xff] 0.0
    %58 = vst [vmem:[#allocation2 + $0x140] sm:$0xff] 0.0
    %59 = vst [vmem:[#allocation2 + $0x148] sm:$0xff] 0.0
    %60 = vst [vmem:[#allocation2 + $0x150] sm:$0xff] 0.0
    %61 = vst [vmem:[#allocation2 + $0x158] sm:$0xff] 0.0
    %62 = vst [vmem:[#allocation2 + $0x160] sm:$0xff] 0.0
    %63 = vst [vmem:[#allocation2 + $0x168] sm:$0xff] 0.0
    %64 = vst [vmem:[#allocation2 + $0x170] sm:$0xff] 0.0
    %65 = vst [vmem:[#allocation2 + $0x178] sm:$0xff] 0.0
    %66 = vst [vmem:[#allocation2 + $0x180] sm:$0xff] 0.0
    %67 = vst [vmem:[#allocation2 + $0x188] sm:$0xff] 0.0
    %68 = vst [vmem:[#allocation2 + $0x190] sm:$0xff] 0.0
    %69 = vst [vmem:[#allocation2 + $0x198] sm:$0xff] 0.0
    %70 = vst [vmem:[#allocation2 + $0x1a0] sm:$0xff] 0.0
    %71 = vst [vmem:[#allocation2 + $0x1a8] sm:$0xff] 0.0
    %72 = vst [vmem:[#allocation2 + $0x1b0] sm:$0xff] 0.0
    %73 = vst [vmem:[#allocation2 + $0x1b8] sm:$0xff] 0.0
    %74 = vst [vmem:[#allocation2 + $0x1c0] sm:$0xff] 0.0
    %75 = vst [vmem:[#allocation2 + $0x1c8] sm:$0xff] 0.0
    %76 = vst [vmem:[#allocation2 + $0x1d0] sm:$0xff] 0.0
    %77 = vst [vmem:[#allocation2 + $0x1d8] sm:$0xff] 0.0
    %78 = vst [vmem:[#allocation2 + $0x1e0] sm:$0xff] 0.0
    %79 = vst [vmem:[#allocation2 + $0x1e8] sm:$0xff] 0.0
    %80 = vst [vmem:[#allocation2 + $0x1f0] sm:$0xff] 0.0
    %81 = vst [vmem:[#allocation2 + $0x1f8] sm:$0xff] 0.0
  $region17: #{resnet_generator_forward.25} parent=0 // pred_fallthru
    _
  %v82 = vld [vmem:[%s1] sm:$0xf]
  %v83 = vld [vmem:[%s1 + $0x4] sm:$0xf]
  %v84 = vld [vmem:[%s1 + $0x8] sm:$0xf]
  %v85 = vld [vmem:[%s1 + $0xc] sm:$0xf]
  %v86 = vld [vmem:[%s1 + $0x10] sm:$0xf]
  %v87 = vld [vmem:[%s1 + $0x14] sm:$0xf]
  %v88 = vld [vmem:[%s1 + $0x18] sm:$0xf]
  %v89 = vld [vmem:[%s1 + $0x1c] sm:$0xf]
  %v90 = vld [vmem:[%s1 + $0x20] sm:$0xf]
  %v91 = vld [vmem:[%s1 + $0x24] sm:$0xf]
  %v92 = vld [vmem:[%s1 + $0x28] sm:$0xf]
  %v93 = vld [vmem:[%s1 + $0x2c] sm:$0xf]
  %v94 = vld [vmem:[%s1 + $0x30] sm:$0xf]
  %v95 = vld [vmem:[%s1 + $0x34] sm:$0xf]
  %v96 = vld [vmem:[%s1 + $0x38] sm:$0xf]
  %v97 = vld [vmem:[%s1 + $0x3c] sm:$0xf]
  %v98 = vld [vmem:[%s1 + $0x40] sm:$0xf]
  %v99 = vld [vmem:[%s1 + $0x44] sm:$0xf]
  %v100 = vld [vmem:[%s1 + $0x48] sm:$0xf]
  %v101 = vld [vmem:[%s1 + $0x4c] sm:$0xf]
  %v102 = vld [vmem:[%s1 + $0x50] sm:$0xf]
  %v103 = vld [vmem:[%s1 + $0x54] sm:$0xf]
  %v104 = vld [vmem:[%s1 + $0x58] sm:$0xf]
  %v105 = vld [vmem:[%s1 + $0x5c] sm:$0xf]
  %v106 = vld [vmem:[%s1 + $0x60] sm:$0xf]
  %v107 = vld [vmem:[%s1 + $0x64] sm:$0xf]
  %v108 = vld [vmem:[%s1 + $0x68] sm:$0xf]
  %v109 = vld [vmem:[%s1 + $0x6c] sm:$0xf]
  %v110 = vld [vmem:[%s1 + $0x70] sm:$0xf]
  %v111 = vld [vmem:[%s1 + $0x74] sm:$0xf]
  %v112 = vld [vmem:[%s1 + $0x78] sm:$0xf]
  %v113 = vld [vmem:[%s1 + $0x7c] sm:$0xf]
  %v114 = vld [vmem:[#allocation2] sm:$0xff]
  %v115 = vld [vmem:[#allocation2 + $0x8] sm:$0xff]
  %v116 = vld [vmem:[#allocation2 + $0x10] sm:$0xff]
  %v117 = vld [vmem:[#allocation2 + $0x18] sm:$0xff]
  %v118 = vld [vmem:[#allocation2 + $0x20] sm:$0xff]
  %v119 = vld [vmem:[#allocation2 + $0x28] sm:$0xff]
  %v120 = vld [vmem:[#allocation2 + $0x30] sm:$0xff]
  %v121 = vld [vmem:[#allocation2 + $0x38] sm:$0xff]
  %v122 = vld [vmem:[#allocation2 + $0x40] sm:$0xff]
  %v123 = vld [vmem:[#allocation2 + $0x48] sm:$0xff]
  %v124 = vld [vmem:[#allocation2 + $0x50] sm:$0xff]
  %v125 = vld [vmem:[#allocation2 + $0x58] sm:$0xff]
  %v126 = vld [vmem:[#allocation2 + $0x60] sm:$0xff]
  %v127 = vld [vmem:[#allocation2 + $0x68] sm:$0xff]
  %v128 = vld [vmem:[#allocation2 + $0x70] sm:$0xff]
  %v129 = vld [vmem:[#allocation2 + $0x78] sm:$0xff]
  %v130 = vld [vmem:[#allocation2 + $0x80] sm:$0xff]
  %v131 = vld [vmem:[#allocation2 + $0x88] sm:$0xff]
  %v132 = vld [vmem:[#allocation2 + $0x90] sm:$0xff]
  %v133 = vld [vmem:[#allocation2 + $0x98] sm:$0xff]
  %v134 = vld [vmem:[#allocation2 + $0xa0] sm:$0xff]
  %v135 = vld [vmem:[#allocation2 + $0xa8] sm:$0xff]
  %v136 = vld [vmem:[#allocation2 + $0xb0] sm:$0xff]
  %v137 = vld [vmem:[#allocation2 + $0xb8] sm:$0xff]
  %v138 = vld [vmem:[#allocation2 + $0xc0] sm:$0xff]
  %v139 = vld [vmem:[#allocation2 + $0xc8] sm:$0xff]
  %v140 = vld [vmem:[#allocation2 + $0xd0] sm:$0xff]
  %v141 = vld [vmem:[#allocation2 + $0xd8] sm:$0xff]
  %v142 = vld [vmem:[#allocation2 + $0xe0] sm:$0xff]
  %v143 = vld [vmem:[#allocation2 + $0xe8] sm:$0xff]
  %v144 = vld [vmem:[#allocation2 + $0xf0] sm:$0xff]
  %v145 = vld [vmem:[#allocation2 + $0xf8] sm:$0xff]
  %v146 = vld [vmem:[#allocation2 + $0x100] sm:$0xff]
  %v147 = vld [vmem:[#allocation2 + $0x108] sm:$0xff]
  %v148 = vld [vmem:[#allocation2 + $0x110] sm:$0xff]
  %v149 = vld [vmem:[#allocation2 + $0x118] sm:$0xff]
  %v150 = vld [vmem:[#allocation2 + $0x120] sm:$0xff]
  %v151 = vld [vmem:[#allocation2 + $0x128] sm:$0xff]
  %v152 = vld [vmem:[#allocation2 + $0x130] sm:$0xff]
  %v153 = vld [vmem:[#allocation2 + $0x138] sm:$0xff]
  %v154 = vld [vmem:[#allocation2 + $0x140] sm:$0xff]
  %v155 = vld [vmem:[#allocation2 + $0x148] sm:$0xff]
  %v156 = vld [vmem:[#allocation2 + $0x150] sm:$0xff]
  %v157 = vld [vmem:[#allocation2 + $0x158] sm:$0xff]
  %v158 = vld [vmem:[#allocation2 + $0x160] sm:$0xff]
  %v159 = vld [vmem:[#allocation2 + $0x168] sm:$0xff]
  %v160 = vld [vmem:[#allocation2 + $0x170] sm:$0xff]
  %v161 = vld [vmem:[#allocation2 + $0x178] sm:$0xff]
  %v162 = vld [vmem:[#allocation2 + $0x180] sm:$0xff]
  %v163 = vld [vmem:[#allocation2 + $0x188] sm:$0xff]
  %v164 = vld [vmem:[#allocation2 + $0x190] sm:$0xff]
  %v165 = vld [vmem:[#allocation2 + $0x198] sm:$0xff]
  %v166 = vld [vmem:[#allocation2 + $0x1a0] sm:$0xff]
  %v167 = vld [vmem:[#allocation2 + $0x1a8] sm:$0xff]
  %v168 = vld [vmem:[#allocation2 + $0x1b0] sm:$0xff]
  %v169 = vld [vmem:[#allocation2 + $0x1b8] sm:$0xff]
  %v170 = vld [vmem:[#allocation2 + $0x1c0] sm:$0xff]
  %v171 = vld [vmem:[#allocation2 + $0x1c8] sm:$0xff]
  %v172 = vld [vmem:[#allocation2 + $0x1d0] sm:$0xff]
  %v173 = vld [vmem:[#allocation2 + $0x1d8] sm:$0xff]
  %v174 = vld [vmem:[#allocation2 + $0x1e0] sm:$0xff]
  %v175 = vld [vmem:[#allocation2 + $0x1e8] sm:$0xff]
  %v176 = vld [vmem:[#allocation2 + $0x1f0] sm:$0xff]
  %v177 = vld [vmem:[#allocation2 + $0x1f8] sm:$0xff]
  %v178 = vld [vmem:[%s0] sm:$0xff]
  %v179 = vld [vmem:[%s0 + $0x8] sm:$0xff]
  %v180 = vld [vmem:[%s0 + $0x10] sm:$0xff]
  %v181 = vld [vmem:[%s0 + $0x18] sm:$0xff]
  %v182 = vld [vmem:[%s0 + $0x20] sm:$0xff]
  %v183 = vld [vmem:[%s0 + $0x28] sm:$0xff]
  %v184 = vld [vmem:[%s0 + $0x30] sm:$0xff]
  %v185 = vld [vmem:[%s0 + $0x38] sm:$0xff]
  %v186 = vld [vmem:[%s0 + $0x40] sm:$0xff]
  %v187 = vld [vmem:[%s0 + $0x48] sm:$0xff]
  %v188 = vld [vmem:[%s0 + $0x50] sm:$0xff]
  %v189 = vld [vmem:[%s0 + $0x58] sm:$0xff]
  %v190 = vld [vmem:[%s0 + $0x60] sm:$0xff]
  %v191 = vld [vmem:[%s0 + $0x68] sm:$0xff]
  %v192 = vld [vmem:[%s0 + $0x70] sm:$0xff]
  %v193 = vld [vmem:[%s0 + $0x78] sm:$0xff]
  %v194 = vld [vmem:[%s0 + $0x80] sm:$0xff]
  %v195 = vld [vmem:[%s0 + $0x88] sm:$0xff]
  %v196 = vld [vmem:[%s0 + $0x90] sm:$0xff]
  %v197 = vld [vmem:[%s0 + $0x98] sm:$0xff]
  %v198 = vld [vmem:[%s0 + $0xa0] sm:$0xff]
  %v199 = vld [vmem:[%s0 + $0xa8] sm:$0xff]
  %v200 = vld [vmem:[%s0 + $0xb0] sm:$0xff]
  %v201 = vld [vmem:[%s0 + $0xb8] sm:$0xff]
  %v202 = vld [vmem:[%s0 + $0xc0] sm:$0xff]
  %v203 = vld [vmem:[%s0 + $0xc8] sm:$0xff]
  %v204 = vld [vmem:[%s0 + $0xd0] sm:$0xff]
  %v205 = vld [vmem:[%s0 + $0xd8] sm:$0xff]
  %v206 = vld [vmem:[%s0 + $0xe0] sm:$0xff]
  %v207 = vld [vmem:[%s0 + $0xe8] sm:$0xff]
  %v208 = vld [vmem:[%s0 + $0xf0] sm:$0xff]
  %v209 = vld [vmem:[%s0 + $0xf8] sm:$0xff]
  %v210 = vld [vmem:[%s0 + $0x100] sm:$0xff]
  %v211 = vld [vmem:[%s0 + $0x108] sm:$0xff]
  %v212 = vld [vmem:[%s0 + $0x110] sm:$0xff]
  %v213 = vld [vmem:[%s0 + $0x118] sm:$0xff]
  %v214 = vld [vmem:[%s0 + $0x120] sm:$0xff]
  %v215 = vld [vmem:[%s0 + $0x128] sm:$0xff]
  %v216 = vld [vmem:[%s0 + $0x130] sm:$0xff]
  %v217 = vld [vmem:[%s0 + $0x138] sm:$0xff]
  %v218 = vld [vmem:[%s0 + $0x140] sm:$0xff]
  %v219 = vld [vmem:[%s0 + $0x148] sm:$0xff]
  %v220 = vld [vmem:[%s0 + $0x150] sm:$0xff]
  %v221 = vld [vmem:[%s0 + $0x158] sm:$0xff]
  %v222 = vld [vmem:[%s0 + $0x160] sm:$0xff]
  %v223 = vld [vmem:[%s0 + $0x168] sm:$0xff]
  %v224 = vld [vmem:[%s0 + $0x170] sm:$0xff]
  %v225 = vld [vmem:[%s0 + $0x178] sm:$0xff]
  %v226 = vld [vmem:[%s0 + $0x180] sm:$0xff]
  %v227 = vld [vmem:[%s0 + $0x188] sm:$0xff]
  %v228 = vld [vmem:[%s0 + $0x190] sm:$0xff]
  %v229 = vld [vmem:[%s0 + $0x198] sm:$0xff]
  %v230 = vld [vmem:[%s0 + $0x1a0] sm:$0xff]
  %v231 = vld [vmem:[%s0 + $0x1a8] sm:$0xff]
  %v232 = vld [vmem:[%s0 + $0x1b0] sm:$0xff]
  %v233 = vld [vmem:[%s0 + $0x1b8] sm:$0xff]
  %v234 = vld [vmem:[%s0 + $0x1c0] sm:$0xff]
  %v235 = vld [vmem:[%s0 + $0x1c8] sm:$0xff]
  %v236 = vld [vmem:[%s0 + $0x1d0] sm:$0xff]
  %v237 = vld [vmem:[%s0 + $0x1d8] sm:$0xff]
  %v238 = vld [vmem:[%s0 + $0x1e0] sm:$0xff]
  %v239 = vld [vmem:[%s0 + $0x1e8] sm:$0xff]
  %v240 = vld [vmem:[%s0 + $0x1f0] sm:$0xff]
  %v241 = vld [vmem:[%s0 + $0x1f8] sm:$0xff]
  %v306 = vunpack.c.l.b16 %v178
  %v307 = vunpack.c.h.b16 %v178
  %v308 = vunpack.c.l.b16 %v179
  %v309 = vunpack.c.h.b16 %v179
  %v310 = vunpack.c.l.b16 %v180
  %v311 = vunpack.c.h.b16 %v180
  %v312 = vunpack.c.l.b16 %v181
  %v313 = vunpack.c.h.b16 %v181
  %v314 = vunpack.c.l.b16 %v182
  %v315 = vunpack.c.h.b16 %v182
  %v316 = vunpack.c.l.b16 %v183
  %v317 = vunpack.c.h.b16 %v183
  %v318 = vunpack.c.l.b16 %v184
  %v319 = vunpack.c.h.b16 %v184
  %v320 = vunpack.c.l.b16 %v185
  %v321 = vunpack.c.h.b16 %v185
  %v322 = vunpack.c.l.b16 %v186
  %v323 = vunpack.c.h.b16 %v186
  %v324 = vunpack.c.l.b16 %v187
  %v325 = vunpack.c.h.b16 %v187
  %v326 = vunpack.c.l.b16 %v188
  %v327 = vunpack.c.h.b16 %v188
  %v328 = vunpack.c.l.b16 %v189
  %v329 = vunpack.c.h.b16 %v189
  %v330 = vunpack.c.l.b16 %v190
  %v331 = vunpack.c.h.b16 %v190
  %v332 = vunpack.c.l.b16 %v191
  %v333 = vunpack.c.h.b16 %v191
  %v334 = vunpack.c.l.b16 %v192
  %v335 = vunpack.c.h.b16 %v192
  %v336 = vunpack.c.l.b16 %v193
  %v337 = vunpack.c.h.b16 %v193
  %v338 = vunpack.c.l.b16 %v194
  %v339 = vunpack.c.h.b16 %v194
  %v340 = vunpack.c.l.b16 %v195
  %v341 = vunpack.c.h.b16 %v195
  %v342 = vunpack.c.l.b16 %v196
  %v343 = vunpack.c.h.b16 %v196
  %v344 = vunpack.c.l.b16 %v197
  %v345 = vunpack.c.h.b16 %v197
  %v346 = vunpack.c.l.b16 %v198
  %v347 = vunpack.c.h.b16 %v198
  %v348 = vunpack.c.l.b16 %v199
  %v349 = vunpack.c.h.b16 %v199
  %v350 = vunpack.c.l.b16 %v200
  %v351 = vunpack.c.h.b16 %v200
  %v352 = vunpack.c.l.b16 %v201
  %v353 = vunpack.c.h.b16 %v201
  %v354 = vunpack.c.l.b16 %v202
  %v355 = vunpack.c.h.b16 %v202
  %v356 = vunpack.c.l.b16 %v203
  %v357 = vunpack.c.h.b16 %v203
  %v358 = vunpack.c.l.b16 %v204
  %v359 = vunpack.c.h.b16 %v204
  %v360 = vunpack.c.l.b16 %v205
  %v361 = vunpack.c.h.b16 %v205
  %v362 = vunpack.c.l.b16 %v206
  %v363 = vunpack.c.h.b16 %v206
  %v364 = vunpack.c.l.b16 %v207
  %v365 = vunpack.c.h.b16 %v207
  %v366 = vunpack.c.l.b16 %v208
  %v367 = vunpack.c.h.b16 %v208
  %v368 = vunpack.c.l.b16 %v209
  %v369 = vunpack.c.h.b16 %v209
  %v370 = vunpack.c.l.b16 %v210
  %v371 = vunpack.c.h.b16 %v210
  %v372 = vunpack.c.l.b16 %v211
  %v373 = vunpack.c.h.b16 %v211
  %v374 = vunpack.c.l.b16 %v212
  %v375 = vunpack.c.h.b16 %v212
  %v376 = vunpack.c.l.b16 %v213
  %v377 = vunpack.c.h.b16 %v213
  %v378 = vunpack.c.l.b16 %v214
  %v379 = vunpack.c.h.b16 %v214
  %v380 = vunpack.c.l.b16 %v215
  %v381 = vunpack.c.h.b16 %v215
  %v382 = vunpack.c.l.b16 %v216
  %v383 = vunpack.c.h.b16 %v216
  %v384 = vunpack.c.l.b16 %v217
  %v385 = vunpack.c.h.b16 %v217
  %v386 = vunpack.c.l.b16 %v218
  %v387 = vunpack.c.h.b16 %v218
  %v388 = vunpack.c.l.b16 %v219
  %v389 = vunpack.c.h.b16 %v219
  %v390 = vunpack.c.l.b16 %v220
  %v391 = vunpack.c.h.b16 %v220
  %v392 = vunpack.c.l.b16 %v221
  %v393 = vunpack.c.h.b16 %v221
  %v394 = vunpack.c.l.b16 %v222
  %v395 = vunpack.c.h.b16 %v222
  %v396 = vunpack.c.l.b16 %v223
  %v397 = vunpack.c.h.b16 %v223
  %v398 = vunpack.c.l.b16 %v224
  %v399 = vunpack.c.h.b16 %v224
  %v400 = vunpack.c.l.b16 %v225
  %v401 = vunpack.c.h.b16 %v225
  %v402 = vunpack.c.l.b16 %v226
  %v403 = vunpack.c.h.b16 %v226
  %v404 = vunpack.c.l.b16 %v227
  %v405 = vunpack.c.h.b16 %v227
  %v406 = vunpack.c.l.b16 %v228
  %v407 = vunpack.c.h.b16 %v228
  %v408 = vunpack.c.l.b16 %v229
  %v409 = vunpack.c.h.b16 %v229
  %v410 = vunpack.c.l.b16 %v230
  %v411 = vunpack.c.h.b16 %v230
  %v412 = vunpack.c.l.b16 %v231
  %v413 = vunpack.c.h.b16 %v231
  %v414 = vunpack.c.l.b16 %v232
  %v415 = vunpack.c.h.b16 %v232
  %v416 = vunpack.c.l.b16 %v233
  %v417 = vunpack.c.h.b16 %v233
  %v418 = vunpack.c.l.b16 %v234
  %v419 = vunpack.c.h.b16 %v234
  %v420 = vunpack.c.l.b16 %v235
  %v421 = vunpack.c.h.b16 %v235
  %v422 = vunpack.c.l.b16 %v236
  %v423 = vunpack.c.h.b16 %v236
  %v424 = vunpack.c.l.b16 %v237
  %v425 = vunpack.c.h.b16 %v237
  %v426 = vunpack.c.l.b16 %v238
  %v427 = vunpack.c.h.b16 %v238
  %v428 = vunpack.c.l.b16 %v239
  %v429 = vunpack.c.h.b16 %v239
  %v430 = vunpack.c.l.b16 %v240
  %v431 = vunpack.c.h.b16 %v240
  %v432 = vunpack.c.l.b16 %v241
  %v433 = vunpack.c.h.b16 %v241
  %v434 = vpack.c.b16 %v308, %v306
  %v435 = vpack.c.b16 %v309, %v307
  %v436 = vpack.c.b16 %v312, %v310
  %v437 = vpack.c.b16 %v313, %v311
  %v438 = vpack.c.b16 %v316, %v314
  %v439 = vpack.c.b16 %v317, %v315
  %v440 = vpack.c.b16 %v320, %v318
  %v441 = vpack.c.b16 %v321, %v319
  %v442 = vpack.c.b16 %v324, %v322
  %v443 = vpack.c.b16 %v325, %v323
  %v444 = vpack.c.b16 %v328, %v326
  %v445 = vpack.c.b16 %v329, %v327
  %v446 = vpack.c.b16 %v332, %v330
  %v447 = vpack.c.b16 %v333, %v331
  %v448 = vpack.c.b16 %v336, %v334
  %v449 = vpack.c.b16 %v337, %v335
  %v450 = vpack.c.b16 %v340, %v338
  %v451 = vpack.c.b16 %v341, %v339
  %v452 = vpack.c.b16 %v344, %v342
  %v453 = vpack.c.b16 %v345, %v343
  %v454 = vpack.c.b16 %v348, %v346
  %v455 = vpack.c.b16 %v349, %v347
  %v456 = vpack.c.b16 %v352, %v350
  %v457 = vpack.c.b16 %v353, %v351
  %v458 = vpack.c.b16 %v356, %v354
  %v459 = vpack.c.b16 %v357, %v355
  %v460 = vpack.c.b16 %v360, %v358
  %v461 = vpack.c.b16 %v361, %v359
  %v462 = vpack.c.b16 %v364, %v362
  %v463 = vpack.c.b16 %v365, %v363
  %v464 = vpack.c.b16 %v368, %v366
  %v465 = vpack.c.b16 %v369, %v367
  %v466 = vpack.c.b16 %v372, %v370
  %v467 = vpack.c.b16 %v373, %v371
  %v468 = vpack.c.b16 %v376, %v374
  %v469 = vpack.c.b16 %v377, %v375
  %v470 = vpack.c.b16 %v380, %v378
  %v471 = vpack.c.b16 %v381, %v379
  %v472 = vpack.c.b16 %v384, %v382
  %v473 = vpack.c.b16 %v385, %v383
  %v474 = vpack.c.b16 %v388, %v386
  %v475 = vpack.c.b16 %v389, %v387
  %v476 = vpack.c.b16 %v392, %v390
  %v477 = vpack.c.b16 %v393, %v391
  %v478 = vpack.c.b16 %v396, %v394
  %v479 = vpack.c.b16 %v397, %v395
  %v480 = vpack.c.b16 %v400, %v398
  %v481 = vpack.c.b16 %v401, %v399
  %v482 = vpack.c.b16 %v404, %v402
  %v483 = vpack.c.b16 %v405, %v403
  %v484 = vpack.c.b16 %v408, %v406
  %v485 = vpack.c.b16 %v409, %v407
  %v486 = vpack.c.b16 %v412, %v410
  %v487 = vpack.c.b16 %v413, %v411
  %v488 = vpack.c.b16 %v416, %v414
  %v489 = vpack.c.b16 %v417, %v415
  %v490 = vpack.c.b16 %v420, %v418
  %v491 = vpack.c.b16 %v421, %v419
  %v492 = vpack.c.b16 %v424, %v422
  %v493 = vpack.c.b16 %v425, %v423
  %v494 = vpack.c.b16 %v428, %v426
  %v495 = vpack.c.b16 %v429, %v427
  %v496 = vpack.c.b16 %v432, %v430
  %v497 = vpack.c.b16 %v433, %v431
  %v594 = vunpack.c.l.b16 %v82
  %v595 = vunpack.c.l.b16 %v83
  %v596 = vunpack.c.l.b16 %v84
  %v597 = vunpack.c.l.b16 %v85
  %v598 = vunpack.c.l.b16 %v86
  %v599 = vunpack.c.l.b16 %v87
  %v600 = vunpack.c.l.b16 %v88
  %v601 = vunpack.c.l.b16 %v89
  %v602 = vunpack.c.l.b16 %v90
  %v603 = vunpack.c.l.b16 %v91
  %v604 = vunpack.c.l.b16 %v92
  %v605 = vunpack.c.l.b16 %v93
  %v606 = vunpack.c.l.b16 %v94
  %v607 = vunpack.c.l.b16 %v95
  %v608 = vunpack.c.l.b16 %v96
  %v609 = vunpack.c.l.b16 %v97
  %v610 = vunpack.c.l.b16 %v98
  %v611 = vunpack.c.l.b16 %v99
  %v612 = vunpack.c.l.b16 %v100
  %v613 = vunpack.c.l.b16 %v101
  %v614 = vunpack.c.l.b16 %v102
  %v615 = vunpack.c.l.b16 %v103
  %v616 = vunpack.c.l.b16 %v104
  %v617 = vunpack.c.l.b16 %v105
  %v618 = vunpack.c.l.b16 %v106
  %v619 = vunpack.c.l.b16 %v107
  %v620 = vunpack.c.l.b16 %v108
  %v621 = vunpack.c.l.b16 %v109
  %v622 = vunpack.c.l.b16 %v110
  %v623 = vunpack.c.l.b16 %v111
  %v624 = vunpack.c.l.b16 %v112
  %v625 = vunpack.c.l.b16 %v113
  %v626 = vpack.c.b16 %v595, %v594
  %v627 = vpack.c.b16 %v597, %v596
  %v628 = vpack.c.b16 %v599, %v598
  %v629 = vpack.c.b16 %v601, %v600
  %v630 = vpack.c.b16 %v603, %v602
  %v631 = vpack.c.b16 %v605, %v604
  %v632 = vpack.c.b16 %v607, %v606
  %v633 = vpack.c.b16 %v609, %v608
  %v634 = vpack.c.b16 %v611, %v610
  %v635 = vpack.c.b16 %v613, %v612
  %v636 = vpack.c.b16 %v615, %v614
  %v637 = vpack.c.b16 %v617, %v616
  %v638 = vpack.c.b16 %v619, %v618
  %v639 = vpack.c.b16 %v621, %v620
  %v640 = vpack.c.b16 %v623, %v622
  %v641 = vpack.c.b16 %v625, %v624
  %658 = vmatpush.bf16.msra.mxu0 %v633
  %659 = vmatpush.bf16.msra.mxu0 %v632
  %660 = vmatpush.bf16.msra.mxu0 %v631
  %661 = vmatpush.bf16.msra.mxu0 %v630
  %662 = vmatpush.bf16.msra.mxu0 %v629
  %663 = vmatpush.bf16.msra.mxu0 %v628
  %664 = vmatpush.bf16.msra.mxu0 %v627
  %665 = vmatpush.bf16.msra.mxu0 %v626
  %666 = vmatmul.bf16.gmra.mxu0 %v434
  %v667 = vpop.f32.mrf.mxu0
  %v668 = vadd.f32 0.0, %v667
  %v669 = vpop.f32.mrf.mxu0
  %v670 = vadd.f32 0.0, %v669
  %671 = vmatmul.bf16.gmra.mxu0 %v436
  %v672 = vpop.f32.mrf.mxu0
  %v673 = vadd.f32 0.0, %v672
  %v674 = vpop.f32.mrf.mxu0
  %v675 = vadd.f32 0.0, %v674
  %676 = vmatmul.bf16.gmra.mxu0 %v438
  %v677 = vpop.f32.mrf.mxu0
  %v678 = vadd.f32 0.0, %v677
  %v679 = vpop.f32.mrf.mxu0
  %v680 = vadd.f32 0.0, %v679
  %681 = vmatmul.bf16.gmra.mxu0 %v440
  %v682 = vpop.f32.mrf.mxu0
  %v683 = vadd.f32 0.0, %v682
  %v684 = vpop.f32.mrf.mxu0
  %v685 = vadd.f32 0.0, %v684
  %686 = vmatmul.bf16.gmra.mxu0 %v442
  %v687 = vpop.f32.mrf.mxu0
  %v688 = vadd.f32 0.0, %v687
  %v689 = vpop.f32.mrf.mxu0
  %v690 = vadd.f32 0.0, %v689
  %691 = vmatmul.bf16.gmra.mxu0 %v444
  %v692 = vpop.f32.mrf.mxu0
  %v693 = vadd.f32 0.0, %v692
  %v694 = vpop.f32.mrf.mxu0
  %v695 = vadd.f32 0.0, %v694
  %696 = vmatmul.bf16.gmra.mxu0 %v446
  %v697 = vpop.f32.mrf.mxu0
  %v698 = vadd.f32 0.0, %v697
  %v699 = vpop.f32.mrf.mxu0
  %v700 = vadd.f32 0.0, %v699
  %701 = vmatmul.bf16.gmra.mxu0 %v448
  %v702 = vpop.f32.mrf.mxu0
  %v703 = vadd.f32 0.0, %v702
  %v704 = vpop.f32.mrf.mxu0
  %v705 = vadd.f32 0.0, %v704
  %706 = vmatmul.bf16.gmra.mxu0 %v450
  %v707 = vpop.f32.mrf.mxu0
  %v708 = vadd.f32 0.0, %v707
  %v709 = vpop.f32.mrf.mxu0
  %v710 = vadd.f32 0.0, %v709
  %711 = vmatmul.bf16.gmra.mxu0 %v452
  %v712 = vpop.f32.mrf.mxu0
  %v713 = vadd.f32 0.0, %v712
  %v714 = vpop.f32.mrf.mxu0
  %v715 = vadd.f32 0.0, %v714
  %716 = vmatmul.bf16.gmra.mxu0 %v454
  %v717 = vpop.f32.mrf.mxu0
  %v718 = vadd.f32 0.0, %v717
  %v719 = vpop.f32.mrf.mxu0
  %v720 = vadd.f32 0.0, %v719
  %721 = vmatmul.bf16.gmra.mxu0 %v456
  %v722 = vpop.f32.mrf.mxu0
  %v723 = vadd.f32 0.0, %v722
  %v724 = vpop.f32.mrf.mxu0
  %v725 = vadd.f32 0.0, %v724
  %726 = vmatmul.bf16.gmra.mxu0 %v458
  %v727 = vpop.f32.mrf.mxu0
  %v728 = vadd.f32 0.0, %v727
  %v729 = vpop.f32.mrf.mxu0
  %v730 = vadd.f32 0.0, %v729
  %731 = vmatmul.bf16.gmra.mxu0 %v460
  %v732 = vpop.f32.mrf.mxu0
  %v733 = vadd.f32 0.0, %v732
  %v734 = vpop.f32.mrf.mxu0
  %v735 = vadd.f32 0.0, %v734
  %736 = vmatmul.bf16.gmra.mxu0 %v462
  %v737 = vpop.f32.mrf.mxu0
  %v738 = vadd.f32 0.0, %v737
  %v739 = vpop.f32.mrf.mxu0
  %v740 = vadd.f32 0.0, %v739
  %741 = vmatmul.bf16.gmra.mxu0 %v464
  %v742 = vpop.f32.mrf.mxu0
  %v743 = vadd.f32 0.0, %v742
  %v744 = vpop.f32.mrf.mxu0
  %v745 = vadd.f32 0.0, %v744
  %746 = vmatmul.bf16.gmra.mxu0 %v466
  %v747 = vpop.f32.mrf.mxu0
  %v748 = vadd.f32 0.0, %v747
  %v749 = vpop.f32.mrf.mxu0
  %v750 = vadd.f32 0.0, %v749
  %751 = vmatmul.bf16.gmra.mxu0 %v468
  %v752 = vpop.f32.mrf.mxu0
  %v753 = vadd.f32 0.0, %v752
  %v754 = vpop.f32.mrf.mxu0
  %v755 = vadd.f32 0.0, %v754
  %756 = vmatmul.bf16.gmra.mxu0 %v470
  %v757 = vpop.f32.mrf.mxu0
  %v758 = vadd.f32 0.0, %v757
  %v759 = vpop.f32.mrf.mxu0
  %v760 = vadd.f32 0.0, %v759
  %761 = vmatmul.bf16.gmra.mxu0 %v472
  %v762 = vpop.f32.mrf.mxu0
  %v763 = vadd.f32 0.0, %v762
  %v764 = vpop.f32.mrf.mxu0
  %v765 = vadd.f32 0.0, %v764
  %766 = vmatmul.bf16.gmra.mxu0 %v474
  %v767 = vpop.f32.mrf.mxu0
  %v768 = vadd.f32 0.0, %v767
  %v769 = vpop.f32.mrf.mxu0
  %v770 = vadd.f32 0.0, %v769
  %771 = vmatmul.bf16.gmra.mxu0 %v476
  %v772 = vpop.f32.mrf.mxu0
  %v773 = vadd.f32 0.0, %v772
  %v774 = vpop.f32.mrf.mxu0
  %v775 = vadd.f32 0.0, %v774
  %776 = vmatmul.bf16.gmra.mxu0 %v478
  %v777 = vpop.f32.mrf.mxu0
  %v778 = vadd.f32 0.0, %v777
  %v779 = vpop.f32.mrf.mxu0
  %v780 = vadd.f32 0.0, %v779
  %781 = vmatmul.bf16.gmra.mxu0 %v480
  %v782 = vpop.f32.mrf.mxu0
  %v783 = vadd.f32 0.0, %v782
  %v784 = vpop.f32.mrf.mxu0
  %v785 = vadd.f32 0.0, %v784
  %786 = vmatmul.bf16.gmra.mxu0 %v482
  %v787 = vpop.f32.mrf.mxu0
  %v788 = vadd.f32 0.0, %v787
  %v789 = vpop.f32.mrf.mxu0
  %v790 = vadd.f32 0.0, %v789
  %791 = vmatmul.bf16.gmra.mxu0 %v484
  %v792 = vpop.f32.mrf.mxu0
  %v793 = vadd.f32 0.0, %v792
  %v794 = vpop.f32.mrf.mxu0
  %v795 = vadd.f32 0.0, %v794
  %796 = vmatmul.bf16.gmra.mxu0 %v486
  %v797 = vpop.f32.mrf.mxu0
  %v798 = vadd.f32 0.0, %v797
  %v799 = vpop.f32.mrf.mxu0
  %v800 = vadd.f32 0.0, %v799
  %801 = vmatmul.bf16.gmra.mxu0 %v488
  %v802 = vpop.f32.mrf.mxu0
  %v803 = vadd.f32 0.0, %v802
  %v804 = vpop.f32.mrf.mxu0
  %v805 = vadd.f32 0.0, %v804
  %806 = vmatmul.bf16.gmra.mxu0 %v490
  %v807 = vpop.f32.mrf.mxu0
  %v808 = vadd.f32 0.0, %v807
  %v809 = vpop.f32.mrf.mxu0
  %v810 = vadd.f32 0.0, %v809
  %811 = vmatmul.bf16.gmra.mxu0 %v492
  %v812 = vpop.f32.mrf.mxu0
  %v813 = vadd.f32 0.0, %v812
  %v814 = vpop.f32.mrf.mxu0
  %v815 = vadd.f32 0.0, %v814
  %816 = vmatmul.bf16.gmra.mxu0 %v494
  %v817 = vpop.f32.mrf.mxu0
  %v818 = vadd.f32 0.0, %v817
  %v819 = vpop.f32.mrf.mxu0
  %v820 = vadd.f32 0.0, %v819
  %821 = vmatmul.bf16.gmra.mxu0 %v496
  %v822 = vpop.f32.mrf.mxu0
  %v823 = vadd.f32 0.0, %v822
  %v824 = vpop.f32.mrf.mxu0
  %v825 = vadd.f32 0.0, %v824
  %826 = vdwg.mxu0
  %827 = vmatpush.bf16.msra.mxu0 %v641
  %828 = vmatpush.bf16.msra.mxu0 %v640
  %829 = vmatpush.bf16.msra.mxu0 %v639
  %830 = vmatpush.bf16.msra.mxu0 %v638
  %831 = vmatpush.bf16.msra.mxu0 %v637
  %832 = vmatpush.bf16.msra.mxu0 %v636
  %833 = vmatpush.bf16.msra.mxu0 %v635
  %834 = vmatpush.bf16.msra.mxu0 %v634
  %835 = vmatmul.bf16.gmra.mxu0 %v435
  %v836 = vpop.f32.mrf.mxu0
  %v837 = vadd.f32 %v668, %v836
  %v838 = vpop.f32.mrf.mxu0
  %v839 = vadd.f32 %v670, %v838
  %840 = vmatmul.bf16.gmra.mxu0 %v437
  %v841 = vpop.f32.mrf.mxu0
  %v842 = vadd.f32 %v673, %v841
  %v843 = vpop.f32.mrf.mxu0
  %v844 = vadd.f32 %v675, %v843
  %845 = vmatmul.bf16.gmra.mxu0 %v439
  %v846 = vpop.f32.mrf.mxu0
  %v847 = vadd.f32 %v678, %v846
  %v848 = vpop.f32.mrf.mxu0
  %v849 = vadd.f32 %v680, %v848
  %850 = vmatmul.bf16.gmra.mxu0 %v441
  %v851 = vpop.f32.mrf.mxu0
  %v852 = vadd.f32 %v683, %v851
  %v853 = vpop.f32.mrf.mxu0
  %v854 = vadd.f32 %v685, %v853
  %855 = vmatmul.bf16.gmra.mxu0 %v443
  %v856 = vpop.f32.mrf.mxu0
  %v857 = vadd.f32 %v688, %v856
  %v858 = vpop.f32.mrf.mxu0
  %v859 = vadd.f32 %v690, %v858
  %860 = vmatmul.bf16.gmra.mxu0 %v445
  %v861 = vpop.f32.mrf.mxu0
  %v862 = vadd.f32 %v693, %v861
  %v863 = vpop.f32.mrf.mxu0
  %v864 = vadd.f32 %v695, %v863
  %865 = vmatmul.bf16.gmra.mxu0 %v447
  %v866 = vpop.f32.mrf.mxu0
  %v867 = vadd.f32 %v698, %v866
  %v868 = vpop.f32.mrf.mxu0
  %v869 = vadd.f32 %v700, %v868
  %870 = vmatmul.bf16.gmra.mxu0 %v449
  %v871 = vpop.f32.mrf.mxu0
  %v872 = vadd.f32 %v703, %v871
  %v873 = vpop.f32.mrf.mxu0
  %v874 = vadd.f32 %v705, %v873
  %875 = vmatmul.bf16.gmra.mxu0 %v451
  %v876 = vpop.f32.mrf.mxu0
  %v877 = vadd.f32 %v708, %v876
  %v878 = vpop.f32.mrf.mxu0
  %v879 = vadd.f32 %v710, %v878
  %880 = vmatmul.bf16.gmra.mxu0 %v453
  %v881 = vpop.f32.mrf.mxu0
  %v882 = vadd.f32 %v713, %v881
  %v883 = vpop.f32.mrf.mxu0
  %v884 = vadd.f32 %v715, %v883
  %885 = vmatmul.bf16.gmra.mxu0 %v455
  %v886 = vpop.f32.mrf.mxu0
  %v887 = vadd.f32 %v718, %v886
  %v888 = vpop.f32.mrf.mxu0
  %v889 = vadd.f32 %v720, %v888
  %890 = vmatmul.bf16.gmra.mxu0 %v457
  %v891 = vpop.f32.mrf.mxu0
  %v892 = vadd.f32 %v723, %v891
  %v893 = vpop.f32.mrf.mxu0
  %v894 = vadd.f32 %v725, %v893
  %895 = vmatmul.bf16.gmra.mxu0 %v459
  %v896 = vpop.f32.mrf.mxu0
  %v897 = vadd.f32 %v728, %v896
  %v898 = vpop.f32.mrf.mxu0
  %v899 = vadd.f32 %v730, %v898
  %900 = vmatmul.bf16.gmra.mxu0 %v461
  %v901 = vpop.f32.mrf.mxu0
  %v902 = vadd.f32 %v733, %v901
  %v903 = vpop.f32.mrf.mxu0
  %v904 = vadd.f32 %v735, %v903
  %905 = vmatmul.bf16.gmra.mxu0 %v463
  %v906 = vpop.f32.mrf.mxu0
  %v907 = vadd.f32 %v738, %v906
  %v908 = vpop.f32.mrf.mxu0
  %v909 = vadd.f32 %v740, %v908
  %910 = vmatmul.bf16.gmra.mxu0 %v465
  %v911 = vpop.f32.mrf.mxu0
  %v912 = vadd.f32 %v743, %v911
  %v913 = vpop.f32.mrf.mxu0
  %v914 = vadd.f32 %v745, %v913
  %915 = vmatmul.bf16.gmra.mxu0 %v467
  %v916 = vpop.f32.mrf.mxu0
  %v917 = vadd.f32 %v748, %v916
  %v918 = vpop.f32.mrf.mxu0
  %v919 = vadd.f32 %v750, %v918
  %920 = vmatmul.bf16.gmra.mxu0 %v469
  %v921 = vpop.f32.mrf.mxu0
  %v922 = vadd.f32 %v753, %v921
  %v923 = vpop.f32.mrf.mxu0
  %v924 = vadd.f32 %v755, %v923
  %925 = vmatmul.bf16.gmra.mxu0 %v471
  %v926 = vpop.f32.mrf.mxu0
  %v927 = vadd.f32 %v758, %v926
  %v928 = vpop.f32.mrf.mxu0
  %v929 = vadd.f32 %v760, %v928
  %930 = vmatmul.bf16.gmra.mxu0 %v473
  %v931 = vpop.f32.mrf.mxu0
  %v932 = vadd.f32 %v763, %v931
  %v933 = vpop.f32.mrf.mxu0
  %v934 = vadd.f32 %v765, %v933
  %935 = vmatmul.bf16.gmra.mxu0 %v475
  %v936 = vpop.f32.mrf.mxu0
  %v937 = vadd.f32 %v768, %v936
  %v938 = vpop.f32.mrf.mxu0
  %v939 = vadd.f32 %v770, %v938
  %940 = vmatmul.bf16.gmra.mxu0 %v477
  %v941 = vpop.f32.mrf.mxu0
  %v942 = vadd.f32 %v773, %v941
  %v943 = vpop.f32.mrf.mxu0
  %v944 = vadd.f32 %v775, %v943
  %945 = vmatmul.bf16.gmra.mxu0 %v479
  %v946 = vpop.f32.mrf.mxu0
  %v947 = vadd.f32 %v778, %v946
  %v948 = vpop.f32.mrf.mxu0
  %v949 = vadd.f32 %v780, %v948
  %950 = vmatmul.bf16.gmra.mxu0 %v481
  %v951 = vpop.f32.mrf.mxu0
  %v952 = vadd.f32 %v783, %v951
  %v953 = vpop.f32.mrf.mxu0
  %v954 = vadd.f32 %v785, %v953
  %955 = vmatmul.bf16.gmra.mxu0 %v483
  %v956 = vpop.f32.mrf.mxu0
  %v957 = vadd.f32 %v788, %v956
  %v958 = vpop.f32.mrf.mxu0
  %v959 = vadd.f32 %v790, %v958
  %960 = vmatmul.bf16.gmra.mxu0 %v485
  %v961 = vpop.f32.mrf.mxu0
  %v962 = vadd.f32 %v793, %v961
  %v963 = vpop.f32.mrf.mxu0
  %v964 = vadd.f32 %v795, %v963
  %965 = vmatmul.bf16.gmra.mxu0 %v487
  %v966 = vpop.f32.mrf.mxu0
  %v967 = vadd.f32 %v798, %v966
  %v968 = vpop.f32.mrf.mxu0
  %v969 = vadd.f32 %v800, %v968
  %970 = vmatmul.bf16.gmra.mxu0 %v489
  %v971 = vpop.f32.mrf.mxu0
  %v972 = vadd.f32 %v803, %v971
  %v973 = vpop.f32.mrf.mxu0
  %v974 = vadd.f32 %v805, %v973
  %975 = vmatmul.bf16.gmra.mxu0 %v491
  %v976 = vpop.f32.mrf.mxu0
  %v977 = vadd.f32 %v808, %v976
  %v978 = vpop.f32.mrf.mxu0
  %v979 = vadd.f32 %v810, %v978
  %980 = vmatmul.bf16.gmra.mxu0 %v493
  %v981 = vpop.f32.mrf.mxu0
  %v982 = vadd.f32 %v813, %v981
  %v983 = vpop.f32.mrf.mxu0
  %v984 = vadd.f32 %v815, %v983
  %985 = vmatmul.bf16.gmra.mxu0 %v495
  %v986 = vpop.f32.mrf.mxu0
  %v987 = vadd.f32 %v818, %v986
  %v988 = vpop.f32.mrf.mxu0
  %v989 = vadd.f32 %v820, %v988
  %990 = vmatmul.bf16.gmra.mxu0 %v497
  %v991 = vpop.f32.mrf.mxu0
  %v992 = vadd.f32 %v823, %v991
  %v993 = vpop.f32.mrf.mxu0
  %v994 = vadd.f32 %v825, %v993
  %995 = vdwg.mxu0
  %v996 = vadd.f32 %v114, %v837
  %v997 = vadd.f32 %v115, %v839
  %v998 = vadd.f32 %v116, %v842
  %v999 = vadd.f32 %v117, %v844
  %v1000 = vadd.f32 %v118, %v847
  %v1001 = vadd.f32 %v119, %v849
  %v1002 = vadd.f32 %v120, %v852
  %v1003 = vadd.f32 %v121, %v854
  %v1004 = vadd.f32 %v122, %v857
  %v1005 = vadd.f32 %v123, %v859
  %v1006 = vadd.f32 %v124, %v862
  %v1007 = vadd.f32 %v125, %v864
  %v1008 = vadd.f32 %v126, %v867
  %v1009 = vadd.f32 %v127, %v869
  %v1010 = vadd.f32 %v128, %v872
  %v1011 = vadd.f32 %v129, %v874
  %v1012 = vadd.f32 %v130, %v877
  %v1013 = vadd.f32 %v131, %v879
  %v1014 = vadd.f32 %v132, %v882
  %v1015 = vadd.f32 %v133, %v884
  %v1016 = vadd.f32 %v134, %v887
  %v1017 = vadd.f32 %v135, %v889
  %v1018 = vadd.f32 %v136, %v892
  %v1019 = vadd.f32 %v137, %v894
  %v1020 = vadd.f32 %v138, %v897
  %v1021 = vadd.f32 %v139, %v899
  %v1022 = vadd.f32 %v140, %v902
  %v1023 = vadd.f32 %v141, %v904
  %v1024 = vadd.f32 %v142, %v907
  %v1025 = vadd.f32 %v143, %v909
  %v1026 = vadd.f32 %v144, %v912
  %v1027 = vadd.f32 %v145, %v914
  %v1028 = vadd.f32 %v146, %v917
  %v1029 = vadd.f32 %v147, %v919
  %v1030 = vadd.f32 %v148, %v922
  %v1031 = vadd.f32 %v149, %v924
  %v1032 = vadd.f32 %v150, %v927
  %v1033 = vadd.f32 %v151, %v929
  %v1034 = vadd.f32 %v152, %v932
  %v1035 = vadd.f32 %v153, %v934
  %v1036 = vadd.f32 %v154, %v937
  %v1037 = vadd.f32 %v155, %v939
  %v1038 = vadd.f32 %v156, %v942
  %v1039 = vadd.f32 %v157, %v944
  %v1040 = vadd.f32 %v158, %v947
  %v1041 = vadd.f32 %v159, %v949
  %v1042 = vadd.f32 %v160, %v952
  %v1043 = vadd.f32 %v161, %v954
  %v1044 = vadd.f32 %v162, %v957
  %v1045 = vadd.f32 %v163, %v959
  %v1046 = vadd.f32 %v164, %v962
  %v1047 = vadd.f32 %v165, %v964
  %v1048 = vadd.f32 %v166, %v967
  %v1049 = vadd.f32 %v167, %v969
  %v1050 = vadd.f32 %v168, %v972
  %v1051 = vadd.f32 %v169, %v974
  %v1052 = vadd.f32 %v170, %v977
  %v1053 = vadd.f32 %v171, %v979
  %v1054 = vadd.f32 %v172, %v982
  %v1055 = vadd.f32 %v173, %v984
  %v1056 = vadd.f32 %v174, %v987
  %v1057 = vadd.f32 %v175, %v989
  %v1058 = vadd.f32 %v176, %v992
  %v1059 = vadd.f32 %v177, %v994
  %1060 = vst [vmem:[#allocation2] sm:$0xff] %v996
  %1061 = vst [vmem:[#allocation2 + $0x8] sm:$0xff] %v997
  %1062 = vst [vmem:[#allocation2 + $0x10] sm:$0xff] %v998
  %1063 = vst [vmem:[#allocation2 + $0x18] sm:$0xff] %v999
  %1064 = vst [vmem:[#allocation2 + $0x20] sm:$0xff] %v1000
  %1065 = vst [vmem:[#allocation2 + $0x28] sm:$0xff] %v1001
  %1066 = vst [vmem:[#allocation2 + $0x30] sm:$0xff] %v1002
  %1067 = vst [vmem:[#allocation2 + $0x38] sm:$0xff] %v1003
  %1068 = vst [vmem:[#allocation2 + $0x40] sm:$0xff] %v1004
  %1069 = vst [vmem:[#allocation2 + $0x48] sm:$0xff] %v1005
  %1070 = vst [vmem:[#allocation2 + $0x50] sm:$0xff] %v1006
  %1071 = vst [vmem:[#allocation2 + $0x58] sm:$0xff] %v1007
  %1072 = vst [vmem:[#allocation2 + $0x60] sm:$0xff] %v1008
  %1073 = vst [vmem:[#allocation2 + $0x68] sm:$0xff] %v1009
  %1074 = vst [vmem:[#allocation2 + $0x70] sm:$0xff] %v1010
  %1075 = vst [vmem:[#allocation2 + $0x78] sm:$0xff] %v1011
  %1076 = vst [vmem:[#allocation2 + $0x80] sm:$0xff] %v1012
  %1077 = vst [vmem:[#allocation2 + $0x88] sm:$0xff] %v1013
  %1078 = vst [vmem:[#allocation2 + $0x90] sm:$0xff] %v1014
  %1079 = vst [vmem:[#allocation2 + $0x98] sm:$0xff] %v1015
  %1080 = vst [vmem:[#allocation2 + $0xa0] sm:$0xff] %v1016
  %1081 = vst [vmem:[#allocation2 + $0xa8] sm:$0xff] %v1017
  %1082 = vst [vmem:[#allocation2 + $0xb0] sm:$0xff] %v1018
  %1083 = vst [vmem:[#allocation2 + $0xb8] sm:$0xff] %v1019
  %1084 = vst [vmem:[#allocation2 + $0xc0] sm:$0xff] %v1020
  %1085 = vst [vmem:[#allocation2 + $0xc8] sm:$0xff] %v1021
  %1086 = vst [vmem:[#allocation2 + $0xd0] sm:$0xff] %v1022
  %1087 = vst [vmem:[#allocation2 + $0xd8] sm:$0xff] %v1023
  %1088 = vst [vmem:[#allocation2 + $0xe0] sm:$0xff] %v1024
  %1089 = vst [vmem:[#allocation2 + $0xe8] sm:$0xff] %v1025
  %1090 = vst [vmem:[#allocation2 + $0xf0] sm:$0xff] %v1026
  %1091 = vst [vmem:[#allocation2 + $0xf8] sm:$0xff] %v1027
  %1092 = vst [vmem:[#allocation2 + $0x100] sm:$0xff] %v1028
  %1093 = vst [vmem:[#allocation2 + $0x108] sm:$0xff] %v1029
  %1094 = vst [vmem:[#allocation2 + $0x110] sm:$0xff] %v1030
  %1095 = vst [vmem:[#allocation2 + $0x118] sm:$0xff] %v1031
  %1096 = vst [vmem:[#allocation2 + $0x120] sm:$0xff] %v1032
  %1097 = vst [vmem:[#allocation2 + $0x128] sm:$0xff] %v1033
  %1098 = vst [vmem:[#allocation2 + $0x130] sm:$0xff] %v1034
  %1099 = vst [vmem:[#allocation2 + $0x138] sm:$0xff] %v1035
  %1100 = vst [vmem:[#allocation2 + $0x140] sm:$0xff] %v1036
  %1101 = vst [vmem:[#allocation2 + $0x148] sm:$0xff] %v1037
  %1102 = vst [vmem:[#allocation2 + $0x150] sm:$0xff] %v1038
  %1103 = vst [vmem:[#allocation2 + $0x158] sm:$0xff] %v1039
  %1104 = vst [vmem:[#allocation2 + $0x160] sm:$0xff] %v1040
  %1105 = vst [vmem:[#allocation2 + $0x168] sm:$0xff] %v1041
  %1106 = vst [vmem:[#allocation2 + $0x170] sm:$0xff] %v1042
  %1107 = vst [vmem:[#allocation2 + $0x178] sm:$0xff] %v1043
  %1108 = vst [vmem:[#allocation2 + $0x180] sm:$0xff] %v1044
  %1109 = vst [vmem:[#allocation2 + $0x188] sm:$0xff] %v1045
  %1110 = vst [vmem:[#allocation2 + $0x190] sm:$0xff] %v1046
  %1111 = vst [vmem:[#allocation2 + $0x198] sm:$0xff] %v1047
  %1112 = vst [vmem:[#allocation2 + $0x1a0] sm:$0xff] %v1048
  %1113 = vst [vmem:[#allocation2 + $0x1a8] sm:$0xff] %v1049
  %1114 = vst [vmem:[#allocation2 + $0x1b0] sm:$0xff] %v1050
  %1115 = vst [vmem:[#allocation2 + $0x1b8] sm:$0xff] %v1051
  %1116 = vst [vmem:[#allocation2 + $0x1c0] sm:$0xff] %v1052
  %1117 = vst [vmem:[#allocation2 + $0x1c8] sm:$0xff] %v1053
  %1118 = vst [vmem:[#allocation2 + $0x1d0] sm:$0xff] %v1054
  %1119 = vst [vmem:[#allocation2 + $0x1d8] sm:$0xff] %v1055
  %1120 = vst [vmem:[#allocation2 + $0x1e0] sm:$0xff] %v1056
  %1121 = vst [vmem:[#allocation2 + $0x1e8] sm:$0xff] %v1057
  %1122 = vst [vmem:[#allocation2 + $0x1f0] sm:$0xff] %v1058
  %1123 = vst [vmem:[#allocation2 + $0x1f8] sm:$0xff] %v1059
  // Predicated region
  $region18: #{resnet_generator_forward.25} parent=0 // pred_check
    %p1124 = pneg %p14
  $region19: #{resnet_generator_forward.25} parent=0 // pred_check_branch
    %1126 = sbr.rel (%p1124) target = $region21
  $region20: #{resnet_generator_forward.25} parent=0 // pred_region
    %v1127 = vld [vmem:[#allocation2] sm:$0xff]
    %v1128 = vld [vmem:[#allocation2 + $0x8] sm:$0xff]
    %v1129 = vld [vmem:[#allocation2 + $0x10] sm:$0xff]
    %v1130 = vld [vmem:[#allocation2 + $0x18] sm:$0xff]
    %v1131 = vld [vmem:[#allocation2 + $0x20] sm:$0xff]
    %v1132 = vld [vmem:[#allocation2 + $0x28] sm:$0xff]
    %v1133 = vld [vmem:[#allocation2 + $0x30] sm:$0xff]
    %v1134 = vld [vmem:[#allocation2 + $0x38] sm:$0xff]
    %v1135 = vld [vmem:[#allocation2 + $0x40] sm:$0xff]
    %v1136 = vld [vmem:[#allocation2 + $0x48] sm:$0xff]
    %v1137 = vld [vmem:[#allocation2 + $0x50] sm:$0xff]
    %v1138 = vld [vmem:[#allocation2 + $0x58] sm:$0xff]
    %v1139 = vld [vmem:[#allocation2 + $0x60] sm:$0xff]
    %v1140 = vld [vmem:[#allocation2 + $0x68] sm:$0xff]
    %v1141 = vld [vmem:[#allocation2 + $0x70] sm:$0xff]
    %v1142 = vld [vmem:[#allocation2 + $0x78] sm:$0xff]
    %v1143 = vld [vmem:[#allocation2 + $0x80] sm:$0xff]
    %v1144 = vld [vmem:[#allocation2 + $0x88] sm:$0xff]
    %v1145 = vld [vmem:[#allocation2 + $0x90] sm:$0xff]
    %v1146 = vld [vmem:[#allocation2 + $0x98] sm:$0xff]
    %v1147 = vld [vmem:[#allocation2 + $0xa0] sm:$0xff]
    %v1148 = vld [vmem:[#allocation2 + $0xa8] sm:$0xff]
    %v1149 = vld [vmem:[#allocation2 + $0xb0] sm:$0xff]
    %v1150 = vld [vmem:[#allocation2 + $0xb8] sm:$0xff]
    %v1151 = vld [vmem:[#allocation2 + $0xc0] sm:$0xff]
    %v1152 = vld [vmem:[#allocation2 + $0xc8] sm:$0xff]
    %v1153 = vld [vmem:[#allocation2 + $0xd0] sm:$0xff]
    %v1154 = vld [vmem:[#allocation2 + $0xd8] sm:$0xff]
    %v1155 = vld [vmem:[#allocation2 + $0xe0] sm:$0xff]
    %v1156 = vld [vmem:[#allocation2 + $0xe8] sm:$0xff]
    %v1157 = vld [vmem:[#allocation2 + $0xf0] sm:$0xff]
    %v1158 = vld [vmem:[#allocation2 + $0xf8] sm:$0xff]
    %v1159 = vld [vmem:[#allocation2 + $0x100] sm:$0xff]
    %v1160 = vld [vmem:[#allocation2 + $0x108] sm:$0xff]
    %v1161 = vld [vmem:[#allocation2 + $0x110] sm:$0xff]
    %v1162 = vld [vmem:[#allocation2 + $0x118] sm:$0xff]
    %v1163 = vld [vmem:[#allocation2 + $0x120] sm:$0xff]
    %v1164 = vld [vmem:[#allocation2 + $0x128] sm:$0xff]
    %v1165 = vld [vmem:[#allocation2 + $0x130] sm:$0xff]
    %v1166 = vld [vmem:[#allocation2 + $0x138] sm:$0xff]
    %v1167 = vld [vmem:[#allocation2 + $0x140] sm:$0xff]
    %v1168 = vld [vmem:[#allocation2 + $0x148] sm:$0xff]
    %v1169 = vld [vmem:[#allocation2 + $0x150] sm:$0xff]
    %v1170 = vld [vmem:[#allocation2 + $0x158] sm:$0xff]
    %v1171 = vld [vmem:[#allocation2 + $0x160] sm:$0xff]
    %v1172 = vld [vmem:[#allocation2 + $0x168] sm:$0xff]
    %v1173 = vld [vmem:[#allocation2 + $0x170] sm:$0xff]
    %v1174 = vld [vmem:[#allocation2 + $0x178] sm:$0xff]
    %v1175 = vld [vmem:[#allocation2 + $0x180] sm:$0xff]
    %v1176 = vld [vmem:[#allocation2 + $0x188] sm:$0xff]
    %v1177 = vld [vmem:[#allocation2 + $0x190] sm:$0xff]
    %v1178 = vld [vmem:[#allocation2 + $0x198] sm:$0xff]
    %v1179 = vld [vmem:[#allocation2 + $0x1a0] sm:$0xff]
    %v1180 = vld [vmem:[#allocation2 + $0x1a8] sm:$0xff]
    %v1181 = vld [vmem:[#allocation2 + $0x1b0] sm:$0xff]
    %v1182 = vld [vmem:[#allocation2 + $0x1b8] sm:$0xff]
    %v1183 = vld [vmem:[#allocation2 + $0x1c0] sm:$0xff]
    %v1184 = vld [vmem:[#allocation2 + $0x1c8] sm:$0xff]
    %v1185 = vld [vmem:[#allocation2 + $0x1d0] sm:$0xff]
    %v1186 = vld [vmem:[#allocation2 + $0x1d8] sm:$0xff]
    %v1187 = vld [vmem:[#allocation2 + $0x1e0] sm:$0xff]
    %v1188 = vld [vmem:[#allocation2 + $0x1e8] sm:$0xff]
    %v1189 = vld [vmem:[#allocation2 + $0x1f0] sm:$0xff]
    %v1190 = vld [vmem:[#allocation2 + $0x1f8] sm:$0xff]
    %v1191 = vld [vmem:[%s2] sm:$0x1]
    %v1193 = vperm.slane %v1191, 0
    %v1195 = vadd.f32 %v1127, %v1193
    %v1196 = vadd.f32 %v1128, %v1193
    %v1197 = vadd.f32 %v1129, %v1193
    %v1198 = vadd.f32 %v1130, %v1193
    %v1199 = vadd.f32 %v1131, %v1193
    %v1200 = vadd.f32 %v1132, %v1193
    %v1201 = vadd.f32 %v1133, %v1193
    %v1202 = vadd.f32 %v1134, %v1193
    %v1203 = vadd.f32 %v1135, %v1193
    %v1204 = vadd.f32 %v1136, %v1193
    %v1205 = vadd.f32 %v1137, %v1193
    %v1206 = vadd.f32 %v1138, %v1193
    %v1207 = vadd.f32 %v1139, %v1193
    %v1208 = vadd.f32 %v1140, %v1193
    %v1209 = vadd.f32 %v1141, %v1193
    %v1210 = vadd.f32 %v1142, %v1193
    %v1211 = vadd.f32 %v1143, %v1193
    %v1212 = vadd.f32 %v1144, %v1193
    %v1213 = vadd.f32 %v1145, %v1193
    %v1214 = vadd.f32 %v1146, %v1193
    %v1215 = vadd.f32 %v1147, %v1193
    %v1216 = vadd.f32 %v1148, %v1193
    %v1217 = vadd.f32 %v1149, %v1193
    %v1218 = vadd.f32 %v1150, %v1193
    %v1219 = vadd.f32 %v1151, %v1193
    %v1220 = vadd.f32 %v1152, %v1193
    %v1221 = vadd.f32 %v1153, %v1193
    %v1222 = vadd.f32 %v1154, %v1193
    %v1223 = vadd.f32 %v1155, %v1193
    %v1224 = vadd.f32 %v1156, %v1193
    %v1225 = vadd.f32 %v1157, %v1193
    %v1226 = vadd.f32 %v1158, %v1193
    %v1227 = vadd.f32 %v1159, %v1193
    %v1228 = vadd.f32 %v1160, %v1193
    %v1229 = vadd.f32 %v1161, %v1193
    %v1230 = vadd.f32 %v1162, %v1193
    %v1231 = vadd.f32 %v1163, %v1193
    %v1232 = vadd.f32 %v1164, %v1193
    %v1233 = vadd.f32 %v1165, %v1193
    %v1234 = vadd.f32 %v1166, %v1193
    %v1235 = vadd.f32 %v1167, %v1193
    %v1236 = vadd.f32 %v1168, %v1193
    %v1237 = vadd.f32 %v1169, %v1193
    %v1238 = vadd.f32 %v1170, %v1193
    %v1239 = vadd.f32 %v1171, %v1193
    %v1240 = vadd.f32 %v1172, %v1193
    %v1241 = vadd.f32 %v1173, %v1193
    %v1242 = vadd.f32 %v1174, %v1193
    %v1243 = vadd.f32 %v1175, %v1193
    %v1244 = vadd.f32 %v1176, %v1193
    %v1245 = vadd.f32 %v1177, %v1193
    %v1246 = vadd.f32 %v1178, %v1193
    %v1247 = vadd.f32 %v1179, %v1193
    %v1248 = vadd.f32 %v1180, %v1193
    %v1249 = vadd.f32 %v1181, %v1193
    %v1250 = vadd.f32 %v1182, %v1193
    %v1251 = vadd.f32 %v1183, %v1193
    %v1252 = vadd.f32 %v1184, %v1193
    %v1253 = vadd.f32 %v1185, %v1193
    %v1254 = vadd.f32 %v1186, %v1193
    %v1255 = vadd.f32 %v1187, %v1193
    %v1256 = vadd.f32 %v1188, %v1193
    %v1257 = vadd.f32 %v1189, %v1193
    %v1258 = vadd.f32 %v1190, %v1193
    %vm1259 = vcmp.ge.f32.partialorder %v1195, 0.0
    %vm1260 = vcmp.ge.f32.partialorder %v1196, 0.0
    %vm1261 = vcmp.ge.f32.partialorder %v1197, 0.0
    %vm1262 = vcmp.ge.f32.partialorder %v1198, 0.0
    %vm1263 = vcmp.ge.f32.partialorder %v1199, 0.0
    %vm1264 = vcmp.ge.f32.partialorder %v1200, 0.0
    %vm1265 = vcmp.ge.f32.partialorder %v1201, 0.0
    %vm1266 = vcmp.ge.f32.partialorder %v1202, 0.0
    %vm1267 = vcmp.ge.f32.partialorder %v1203, 0.0
    %vm1268 = vcmp.ge.f32.partialorder %v1204, 0.0
    %vm1269 = vcmp.ge.f32.partialorder %v1205, 0.0
    %vm1270 = vcmp.ge.f32.partialorder %v1206, 0.0
    %vm1271 = vcmp.ge.f32.partialorder %v1207, 0.0
    %vm1272 = vcmp.ge.f32.partialorder %v1208, 0.0
    %vm1273 = vcmp.ge.f32.partialorder %v1209, 0.0
    %vm1274 = vcmp.ge.f32.partialorder %v1210, 0.0
    %vm1275 = vcmp.ge.f32.partialorder %v1211, 0.0
    %vm1276 = vcmp.ge.f32.partialorder %v1212, 0.0
    %vm1277 = vcmp.ge.f32.partialorder %v1213, 0.0
    %vm1278 = vcmp.ge.f32.partialorder %v1214, 0.0
    %vm1279 = vcmp.ge.f32.partialorder %v1215, 0.0
    %vm1280 = vcmp.ge.f32.partialorder %v1216, 0.0
    %vm1281 = vcmp.ge.f32.partialorder %v1217, 0.0
    %vm1282 = vcmp.ge.f32.partialorder %v1218, 0.0
    %vm1283 = vcmp.ge.f32.partialorder %v1219, 0.0
    %vm1284 = vcmp.ge.f32.partialorder %v1220, 0.0
    %vm1285 = vcmp.ge.f32.partialorder %v1221, 0.0
    %vm1286 = vcmp.ge.f32.partialorder %v1222, 0.0
    %vm1287 = vcmp.ge.f32.partialorder %v1223, 0.0
    %vm1288 = vcmp.ge.f32.partialorder %v1224, 0.0
    %vm1289 = vcmp.ge.f32.partialorder %v1225, 0.0
    %vm1290 = vcmp.ge.f32.partialorder %v1226, 0.0
    %vm1291 = vcmp.ge.f32.partialorder %v1227, 0.0
    %vm1292 = vcmp.ge.f32.partialorder %v1228, 0.0
    %vm1293 = vcmp.ge.f32.partialorder %v1229, 0.0
    %vm1294 = vcmp.ge.f32.partialorder %v1230, 0.0
    %vm1295 = vcmp.ge.f32.partialorder %v1231, 0.0
    %vm1296 = vcmp.ge.f32.partialorder %v1232, 0.0
    %vm1297 = vcmp.ge.f32.partialorder %v1233, 0.0
    %vm1298 = vcmp.ge.f32.partialorder %v1234, 0.0
    %vm1299 = vcmp.ge.f32.partialorder %v1235, 0.0
    %vm1300 = vcmp.ge.f32.partialorder %v1236, 0.0
    %vm1301 = vcmp.ge.f32.partialorder %v1237, 0.0
    %vm1302 = vcmp.ge.f32.partialorder %v1238, 0.0
    %vm1303 = vcmp.ge.f32.partialorder %v1239, 0.0
    %vm1304 = vcmp.ge.f32.partialorder %v1240, 0.0
    %vm1305 = vcmp.ge.f32.partialorder %v1241, 0.0
    %vm1306 = vcmp.ge.f32.partialorder %v1242, 0.0
    %vm1307 = vcmp.ge.f32.partialorder %v1243, 0.0
    %vm1308 = vcmp.ge.f32.partialorder %v1244, 0.0
    %vm1309 = vcmp.ge.f32.partialorder %v1245, 0.0
    %vm1310 = vcmp.ge.f32.partialorder %v1246, 0.0
    %vm1311 = vcmp.ge.f32.partialorder %v1247, 0.0
    %vm1312 = vcmp.ge.f32.partialorder %v1248, 0.0
    %vm1313 = vcmp.ge.f32.partialorder %v1249, 0.0
    %vm1314 = vcmp.ge.f32.partialorder %v1250, 0.0
    %vm1315 = vcmp.ge.f32.partialorder %v1251, 0.0
    %vm1316 = vcmp.ge.f32.partialorder %v1252, 0.0
    %vm1317 = vcmp.ge.f32.partialorder %v1253, 0.0
    %vm1318 = vcmp.ge.f32.partialorder %v1254, 0.0
    %vm1319 = vcmp.ge.f32.partialorder %v1255, 0.0
    %vm1320 = vcmp.ge.f32.partialorder %v1256, 0.0
    %vm1321 = vcmp.ge.f32.partialorder %v1257, 0.0
    %vm1322 = vcmp.ge.f32.partialorder %v1258, 0.0
    %v1323 = vmul.f32 %v1195, 0.02
    %v1324 = vmul.f32 %v1196, 0.02
    %v1325 = vmul.f32 %v1197, 0.02
    %v1326 = vmul.f32 %v1198, 0.02
    %v1327 = vmul.f32 %v1199, 0.02
    %v1328 = vmul.f32 %v1200, 0.02
    %v1329 = vmul.f32 %v1201, 0.02
    %v1330 = vmul.f32 %v1202, 0.02
    %v1331 = vmul.f32 %v1203, 0.02
    %v1332 = vmul.f32 %v1204, 0.02
    %v1333 = vmul.f32 %v1205, 0.02
    %v1334 = vmul.f32 %v1206, 0.02
    %v1335 = vmul.f32 %v1207, 0.02
    %v1336 = vmul.f32 %v1208, 0.02
    %v1337 = vmul.f32 %v1209, 0.02
    %v1338 = vmul.f32 %v1210, 0.02
    %v1339 = vmul.f32 %v1211, 0.02
    %v1340 = vmul.f32 %v1212, 0.02
    %v1341 = vmul.f32 %v1213, 0.02
    %v1342 = vmul.f32 %v1214, 0.02
    %v1343 = vmul.f32 %v1215, 0.02
    %v1344 = vmul.f32 %v1216, 0.02
    %v1345 = vmul.f32 %v1217, 0.02
    %v1346 = vmul.f32 %v1218, 0.02
    %v1347 = vmul.f32 %v1219, 0.02
    %v1348 = vmul.f32 %v1220, 0.02
    %v1349 = vmul.f32 %v1221, 0.02
    %v1350 = vmul.f32 %v1222, 0.02
    %v1351 = vmul.f32 %v1223, 0.02
    %v1352 = vmul.f32 %v1224, 0.02
    %v1353 = vmul.f32 %v1225, 0.02
    %v1354 = vmul.f32 %v1226, 0.02
    %v1355 = vmul.f32 %v1227, 0.02
    %v1356 = vmul.f32 %v1228, 0.02
    %v1357 = vmul.f32 %v1229, 0.02
    %v1358 = vmul.f32 %v1230, 0.02
    %v1359 = vmul.f32 %v1231, 0.02
    %v1360 = vmul.f32 %v1232, 0.02
    %v1361 = vmul.f32 %v1233, 0.02
    %v1362 = vmul.f32 %v1234, 0.02
    %v1363 = vmul.f32 %v1235, 0.02
    %v1364 = vmul.f32 %v1236, 0.02
    %v1365 = vmul.f32 %v1237, 0.02
    %v1366 = vmul.f32 %v1238, 0.02
    %v1367 = vmul.f32 %v1239, 0.02
    %v1368 = vmul.f32 %v1240, 0.02
    %v1369 = vmul.f32 %v1241, 0.02
    %v1370 = vmul.f32 %v1242, 0.02
    %v1371 = vmul.f32 %v1243, 0.02
    %v1372 = vmul.f32 %v1244, 0.02
    %v1373 = vmul.f32 %v1245, 0.02
    %v1374 = vmul.f32 %v1246, 0.02
    %v1375 = vmul.f32 %v1247, 0.02
    %v1376 = vmul.f32 %v1248, 0.02
    %v1377 = vmul.f32 %v1249, 0.02
    %v1378 = vmul.f32 %v1250, 0.02
    %v1379 = vmul.f32 %v1251, 0.02
    %v1380 = vmul.f32 %v1252, 0.02
    %v1381 = vmul.f32 %v1253, 0.02
    %v1382 = vmul.f32 %v1254, 0.02
    %v1383 = vmul.f32 %v1255, 0.02
    %v1384 = vmul.f32 %v1256, 0.02
    %v1385 = vmul.f32 %v1257, 0.02
    %v1386 = vmul.f32 %v1258, 0.02
    %v1387 = vsel %vm1259, %v1195, %v1323
    %v1388 = vsel %vm1260, %v1196, %v1324
    %v1389 = vsel %vm1261, %v1197, %v1325
    %v1390 = vsel %vm1262, %v1198, %v1326
    %v1391 = vsel %vm1263, %v1199, %v1327
    %v1392 = vsel %vm1264, %v1200, %v1328
    %v1393 = vsel %vm1265, %v1201, %v1329
    %v1394 = vsel %vm1266, %v1202, %v1330
    %v1395 = vsel %vm1267, %v1203, %v1331
    %v1396 = vsel %vm1268, %v1204, %v1332
    %v1397 = vsel %vm1269, %v1205, %v1333
    %v1398 = vsel %vm1270, %v1206, %v1334
    %v1399 = vsel %vm1271, %v1207, %v1335
    %v1400 = vsel %vm1272, %v1208, %v1336
    %v1401 = vsel %vm1273, %v1209, %v1337
    %v1402 = vsel %vm1274, %v1210, %v1338
    %v1403 = vsel %vm1275, %v1211, %v1339
    %v1404 = vsel %vm1276, %v1212, %v1340
    %v1405 = vsel %vm1277, %v1213, %v1341
    %v1406 = vsel %vm1278, %v1214, %v1342
    %v1407 = vsel %vm1279, %v1215, %v1343
    %v1408 = vsel %vm1280, %v1216, %v1344
    %v1409 = vsel %vm1281, %v1217, %v1345
    %v1410 = vsel %vm1282, %v1218, %v1346
    %v1411 = vsel %vm1283, %v1219, %v1347
    %v1412 = vsel %vm1284, %v1220, %v1348
    %v1413 = vsel %vm1285, %v1221, %v1349
    %v1414 = vsel %vm1286, %v1222, %v1350
    %v1415 = vsel %vm1287, %v1223, %v1351
    %v1416 = vsel %vm1288, %v1224, %v1352
    %v1417 = vsel %vm1289, %v1225, %v1353
    %v1418 = vsel %vm1290, %v1226, %v1354
    %v1419 = vsel %vm1291, %v1227, %v1355
    %v1420 = vsel %vm1292, %v1228, %v1356
    %v1421 = vsel %vm1293, %v1229, %v1357
    %v1422 = vsel %vm1294, %v1230, %v1358
    %v1423 = vsel %vm1295, %v1231, %v1359
    %v1424 = vsel %vm1296, %v1232, %v1360
    %v1425 = vsel %vm1297, %v1233, %v1361
    %v1426 = vsel %vm1298, %v1234, %v1362
    %v1427 = vsel %vm1299, %v1235, %v1363
    %v1428 = vsel %vm1300, %v1236, %v1364
    %v1429 = vsel %vm1301, %v1237, %v1365
    %v1430 = vsel %vm1302, %v1238, %v1366
    %v1431 = vsel %vm1303, %v1239, %v1367
    %v1432 = vsel %vm1304, %v1240, %v1368
    %v1433 = vsel %vm1305, %v1241, %v1369
    %v1434 = vsel %vm1306, %v1242, %v1370
    %v1435 = vsel %vm1307, %v1243, %v1371
    %v1436 = vsel %vm1308, %v1244, %v1372
    %v1437 = vsel %vm1309, %v1245, %v1373
    %v1438 = vsel %vm1310, %v1246, %v1374
    %v1439 = vsel %vm1311, %v1247, %v1375
    %v1440 = vsel %vm1312, %v1248, %v1376
    %v1441 = vsel %vm1313, %v1249, %v1377
    %v1442 = vsel %vm1314, %v1250, %v1378
    %v1443 = vsel %vm1315, %v1251, %v1379
    %v1444 = vsel %vm1316, %v1252, %v1380
    %v1445 = vsel %vm1317, %v1253, %v1381
    %v1446 = vsel %vm1318, %v1254, %v1382
    %v1447 = vsel %vm1319, %v1255, %v1383
    %v1448 = vsel %vm1320, %v1256, %v1384
    %v1449 = vsel %vm1321, %v1257, %v1385
    %v1450 = vsel %vm1322, %v1258, %v1386
    %1451 = vst [vmem:[%s3] sm:$0xff] %v1387
    %1452 = vst [vmem:[%s3 + $0x8] sm:$0xff] %v1388
    %1453 = vst [vmem:[%s3 + $0x10] sm:$0xff] %v1389
    %1454 = vst [vmem:[%s3 + $0x18] sm:$0xff] %v1390
    %1455 = vst [vmem:[%s3 + $0x20] sm:$0xff] %v1391
    %1456 = vst [vmem:[%s3 + $0x28] sm:$0xff] %v1392
    %1457 = vst [vmem:[%s3 + $0x30] sm:$0xff] %v1393
    %1458 = vst [vmem:[%s3 + $0x38] sm:$0xff] %v1394
    %1459 = vst [vmem:[%s3 + $0x40] sm:$0xff] %v1395
    %1460 = vst [vmem:[%s3 + $0x48] sm:$0xff] %v1396
    %1461 = vst [vmem:[%s3 + $0x50] sm:$0xff] %v1397
    %1462 = vst [vmem:[%s3 + $0x58] sm:$0xff] %v1398
    %1463 = vst [vmem:[%s3 + $0x60] sm:$0xff] %v1399
    %1464 = vst [vmem:[%s3 + $0x68] sm:$0xff] %v1400
    %1465 = vst [vmem:[%s3 + $0x70] sm:$0xff] %v1401
    %1466 = vst [vmem:[%s3 + $0x78] sm:$0xff] %v1402
    %1467 = vst [vmem:[%s3 + $0x80] sm:$0xff] %v1403
    %1468 = vst [vmem:[%s3 + $0x88] sm:$0xff] %v1404
    %1469 = vst [vmem:[%s3 + $0x90] sm:$0xff] %v1405
    %1470 = vst [vmem:[%s3 + $0x98] sm:$0xff] %v1406
    %1471 = vst [vmem:[%s3 + $0xa0] sm:$0xff] %v1407
    %1472 = vst [vmem:[%s3 + $0xa8] sm:$0xff] %v1408
    %1473 = vst [vmem:[%s3 + $0xb0] sm:$0xff] %v1409
    %1474 = vst [vmem:[%s3 + $0xb8] sm:$0xff] %v1410
    %1475 = vst [vmem:[%s3 + $0xc0] sm:$0xff] %v1411
    %1476 = vst [vmem:[%s3 + $0xc8] sm:$0xff] %v1412
    %1477 = vst [vmem:[%s3 + $0xd0] sm:$0xff] %v1413
    %1478 = vst [vmem:[%s3 + $0xd8] sm:$0xff] %v1414
    %1479 = vst [vmem:[%s3 + $0xe0] sm:$0xff] %v1415
    %1480 = vst [vmem:[%s3 + $0xe8] sm:$0xff] %v1416
    %1481 = vst [vmem:[%s3 + $0xf0] sm:$0xff] %v1417
    %1482 = vst [vmem:[%s3 + $0xf8] sm:$0xff] %v1418
    %1483 = vst [vmem:[%s3 + $0x100] sm:$0xff] %v1419
    %1484 = vst [vmem:[%s3 + $0x108] sm:$0xff] %v1420
    %1485 = vst [vmem:[%s3 + $0x110] sm:$0xff] %v1421
    %1486 = vst [vmem:[%s3 + $0x118] sm:$0xff] %v1422
    %1487 = vst [vmem:[%s3 + $0x120] sm:$0xff] %v1423
    %1488 = vst [vmem:[%s3 + $0x128] sm:$0xff] %v1424
    %1489 = vst [vmem:[%s3 + $0x130] sm:$0xff] %v1425
    %1490 = vst [vmem:[%s3 + $0x138] sm:$0xff] %v1426
    %1491 = vst [vmem:[%s3 + $0x140] sm:$0xff] %v1427
    %1492 = vst [vmem:[%s3 + $0x148] sm:$0xff] %v1428
    %1493 = vst [vmem:[%s3 + $0x150] sm:$0xff] %v1429
    %1494 = vst [vmem:[%s3 + $0x158] sm:$0xff] %v1430
    %1495 = vst [vmem:[%s3 + $0x160] sm:$0xff] %v1431
    %1496 = vst [vmem:[%s3 + $0x168] sm:$0xff] %v1432
    %1497 = vst [vmem:[%s3 + $0x170] sm:$0xff] %v1433
    %1498 = vst [vmem:[%s3 + $0x178] sm:$0xff] %v1434
    %1499 = vst [vmem:[%s3 + $0x180] sm:$0xff] %v1435
    %1500 = vst [vmem:[%s3 + $0x188] sm:$0xff] %v1436
    %1501 = vst [vmem:[%s3 + $0x190] sm:$0xff] %v1437
    %1502 = vst [vmem:[%s3 + $0x198] sm:$0xff] %v1438
    %1503 = vst [vmem:[%s3 + $0x1a0] sm:$0xff] %v1439
    %1504 = vst [vmem:[%s3 + $0x1a8] sm:$0xff] %v1440
    %1505 = vst [vmem:[%s3 + $0x1b0] sm:$0xff] %v1441
    %1506 = vst [vmem:[%s3 + $0x1b8] sm:$0xff] %v1442
    %1507 = vst [vmem:[%s3 + $0x1c0] sm:$0xff] %v1443
    %1508 = vst [vmem:[%s3 + $0x1c8] sm:$0xff] %v1444
    %1509 = vst [vmem:[%s3 + $0x1d0] sm:$0xff] %v1445
    %1510 = vst [vmem:[%s3 + $0x1d8] sm:$0xff] %v1446
    %1511 = vst [vmem:[%s3 + $0x1e0] sm:$0xff] %v1447
    %1512 = vst [vmem:[%s3 + $0x1e8] sm:$0xff] %v1448
    %1513 = vst [vmem:[%s3 + $0x1f0] sm:$0xff] %v1449
    %1514 = vst [vmem:[%s3 + $0x1f8] sm:$0xff] %v1450
  $region21: #{resnet_generator_forward.25} parent=0 // pred_fallthru
    _
  // Predicated region
  $region22: #{resnet_generator_forward.25} parent=0 // pred_check
    _
  $region23: #{resnet_generator_forward.25} parent=0 // pred_check_branch
    %1516 = sbr.rel (0) target = $region25
  $region24: #{resnet_generator_forward.25} parent=0 // pred_region
    _
  $region25: #{resnet_generator_forward.25} parent=0 // pred_fallthru
    _
  // Predicated region
  $region26: #{resnet_generator_forward.25} parent=0 // pred_check
    _
  $region27: #{resnet_generator_forward.25} parent=0 // pred_check_branch
    %1518 = sbr.rel (0) target = $region29
  $region28: #{resnet_generator_forward.25} parent=0 // pred_region
    _
  $region29: #{resnet_generator_forward.25} parent=0 // pred_fallthru
    _

// kernel: resnet_generator_forward.27
$region0: #{resnet_generator_forward.27}
  #allocation0 [shape = 'u32[]', space=smem, size = 0x4, offset = 0x4, fixed_abs, tag = 'smem constant byte address 0x4 - core index']
  #allocation1 [shape = 'u32[72,128]{1,0:T(1,128)}', space=vmem, size = 0x9000, scoped, tag = 'internal scratch']
  #allocation2 [shape = 'f32[32,128]{1,0:T(8,128)}', space=vmem, size = 0x4000, scoped, tag = 'scratch operand']
  %s0 = inlined_call_operand.vmem [shape: bf16[32,256], index: 0, kind: input, shape index: {}]
  %s1 = inlined_call_operand.vmem [shape: bf16[256,128], index: 1, kind: input, shape index: {}]
  %s2 = inlined_call_operand.vmem [shape: f32[1,128], index: 2, kind: input, shape index: {}]
  %s3 = inlined_call_operand.vmem [shape: f32[32,128], index: 3, kind: output, shape index: {}]
  %s4 = sld [smem:[#allocation0]]
  $region30: #{resnet_generator_forward.27} parent=0
    _
  %s6 = ssub.s32 1, %s4
  %s7 = scalar_select 0, %s6, %s4
  // Predicated region
  $region2: #{resnet_generator_forward.27} parent=0 // pred_check
    _
  $region3: #{resnet_generator_forward.27} parent=0 // pred_check_branch
    %9 = sbr.rel (0) target = $region5
  $region4: #{resnet_generator_forward.27} parent=0 // pred_region
    _
  $region5: #{resnet_generator_forward.27} parent=0 // pred_fallthru
    _
  // Predicated region
  $region6: #{resnet_generator_forward.27} parent=0 // pred_check
    _
  $region7: #{resnet_generator_forward.27} parent=0 // pred_check_branch
    %11 = sbr.rel (0) target = $region9
  $region8: #{resnet_generator_forward.27} parent=0 // pred_region
    _
  $region9: #{resnet_generator_forward.27} parent=0 // pred_fallthru
    _
  // Predicated region
  $region10: #{resnet_generator_forward.27} parent=0 // pred_check
    _
  $region11: #{resnet_generator_forward.27} parent=0 // pred_check_branch
    %13 = sbr.rel (0) target = $region13
  $region12: #{resnet_generator_forward.27} parent=0 // pred_region
    _
  $region13: #{resnet_generator_forward.27} parent=0 // pred_fallthru
    _
  %p14 = scmp.eq.s32.totalorder 0, 0
  // Predicated region
  $region14: #{resnet_generator_forward.27} parent=0 // pred_check
    %p15 = pneg %p14
  $region15: #{resnet_generator_forward.27} parent=0 // pred_check_branch
    %17 = sbr.rel (%p15) target = $region17
  $region16: #{resnet_generator_forward.27} parent=0 // pred_region
    %18 = vst [vmem:[#allocation2] sm:$0xff] 0.0
    %19 = vst [vmem:[#allocation2 + $0x8] sm:$0xff] 0.0
    %20 = vst [vmem:[#allocation2 + $0x10] sm:$0xff] 0.0
    %21 = vst [vmem:[#allocation2 + $0x18] sm:$0xff] 0.0
  $region17: #{resnet_generator_forward.27} parent=0 // pred_fallthru
    _
  %v22 = vld [vmem:[%s1] sm:$0xf]
  %v23 = vld [vmem:[%s1 + $0x4] sm:$0xf]
  %v24 = vld [vmem:[%s1 + $0x8] sm:$0xf]
  %v25 = vld [vmem:[%s1 + $0xc] sm:$0xf]
  %v26 = vld [vmem:[%s1 + $0x10] sm:$0xf]
  %v27 = vld [vmem:[%s1 + $0x14] sm:$0xf]
  %v28 = vld [vmem:[%s1 + $0x18] sm:$0xf]
  %v29 = vld [vmem:[%s1 + $0x1c] sm:$0xf]
  %v30 = vld [vmem:[%s1 + $0x20] sm:$0xf]
  %v31 = vld [vmem:[%s1 + $0x24] sm:$0xf]
  %v32 = vld [vmem:[%s1 + $0x28] sm:$0xf]
  %v33 = vld [vmem:[%s1 + $0x2c] sm:$0xf]
  %v34 = vld [vmem:[%s1 + $0x30] sm:$0xf]
  %v35 = vld [vmem:[%s1 + $0x34] sm:$0xf]
  %v36 = vld [vmem:[%s1 + $0x38] sm:$0xf]
  %v37 = vld [vmem:[%s1 + $0x3c] sm:$0xf]
  %v38 = vld [vmem:[%s1 + $0x40] sm:$0xf]
  %v39 = vld [vmem:[%s1 + $0x44] sm:$0xf]
  %v40 = vld [vmem:[%s1 + $0x48] sm:$0xf]
  %v41 = vld [vmem:[%s1 + $0x4c] sm:$0xf]
  %v42 = vld [vmem:[%s1 + $0x50] sm:$0xf]
  %v43 = vld [vmem:[%s1 + $0x54] sm:$0xf]
  %v44 = vld [vmem:[%s1 + $0x58] sm:$0xf]
  %v45 = vld [vmem:[%s1 + $0x5c] sm:$0xf]
  %v46 = vld [vmem:[%s1 + $0x60] sm:$0xf]
  %v47 = vld [vmem:[%s1 + $0x64] sm:$0xf]
  %v48 = vld [vmem:[%s1 + $0x68] sm:$0xf]
  %v49 = vld [vmem:[%s1 + $0x6c] sm:$0xf]
  %v50 = vld [vmem:[%s1 + $0x70] sm:$0xf]
  %v51 = vld [vmem:[%s1 + $0x74] sm:$0xf]
  %v52 = vld [vmem:[%s1 + $0x78] sm:$0xf]
  %v53 = vld [vmem:[%s1 + $0x7c] sm:$0xf]
  %v54 = vld [vmem:[#allocation2] sm:$0xff]
  %v55 = vld [vmem:[#allocation2 + $0x8] sm:$0xff]
  %v56 = vld [vmem:[#allocation2 + $0x10] sm:$0xff]
  %v57 = vld [vmem:[#allocation2 + $0x18] sm:$0xff]
  %v58 = vld [vmem:[%s0] sm:$0xff]
  %v59 = vld [vmem:[%s0 + $0x8] sm:$0xff]
  %v60 = vld [vmem:[%s0 + $0x10] sm:$0xff]
  %v61 = vld [vmem:[%s0 + $0x18] sm:$0xff]
  %v66 = vunpack.c.l.b16 %v58
  %v67 = vunpack.c.h.b16 %v58
  %v68 = vunpack.c.l.b16 %v59
  %v69 = vunpack.c.h.b16 %v59
  %v70 = vunpack.c.l.b16 %v60
  %v71 = vunpack.c.h.b16 %v60
  %v72 = vunpack.c.l.b16 %v61
  %v73 = vunpack.c.h.b16 %v61
  %v74 = vpack.c.b16 %v68, %v66
  %v75 = vpack.c.b16 %v69, %v67
  %v76 = vpack.c.b16 %v72, %v70
  %v77 = vpack.c.b16 %v73, %v71
  %v114 = vunpack.c.l.b16 %v22
  %v115 = vunpack.c.l.b16 %v23
  %v116 = vunpack.c.l.b16 %v24
  %v117 = vunpack.c.l.b16 %v25
  %v118 = vunpack.c.l.b16 %v26
  %v119 = vunpack.c.l.b16 %v27
  %v120 = vunpack.c.l.b16 %v28
  %v121 = vunpack.c.l.b16 %v29
  %v122 = vunpack.c.l.b16 %v30
  %v123 = vunpack.c.l.b16 %v31
  %v124 = vunpack.c.l.b16 %v32
  %v125 = vunpack.c.l.b16 %v33
  %v126 = vunpack.c.l.b16 %v34
  %v127 = vunpack.c.l.b16 %v35
  %v128 = vunpack.c.l.b16 %v36
  %v129 = vunpack.c.l.b16 %v37
  %v130 = vunpack.c.l.b16 %v38
  %v131 = vunpack.c.l.b16 %v39
  %v132 = vunpack.c.l.b16 %v40
  %v133 = vunpack.c.l.b16 %v41
  %v134 = vunpack.c.l.b16 %v42
  %v135 = vunpack.c.l.b16 %v43
  %v136 = vunpack.c.l.b16 %v44
  %v137 = vunpack.c.l.b16 %v45
  %v138 = vunpack.c.l.b16 %v46
  %v139 = vunpack.c.l.b16 %v47
  %v140 = vunpack.c.l.b16 %v48
  %v141 = vunpack.c.l.b16 %v49
  %v142 = vunpack.c.l.b16 %v50
  %v143 = vunpack.c.l.b16 %v51
  %v144 = vunpack.c.l.b16 %v52
  %v145 = vunpack.c.l.b16 %v53
  %v146 = vpack.c.b16 %v115, %v114
  %v147 = vpack.c.b16 %v117, %v116
  %v148 = vpack.c.b16 %v119, %v118
  %v149 = vpack.c.b16 %v121, %v120
  %v150 = vpack.c.b16 %v123, %v122
  %v151 = vpack.c.b16 %v125, %v124
  %v152 = vpack.c.b16 %v127, %v126
  %v153 = vpack.c.b16 %v129, %v128
  %v154 = vpack.c.b16 %v131, %v130
  %v155 = vpack.c.b16 %v133, %v132
  %v156 = vpack.c.b16 %v135, %v134
  %v157 = vpack.c.b16 %v137, %v136
  %v158 = vpack.c.b16 %v139, %v138
  %v159 = vpack.c.b16 %v141, %v140
  %v160 = vpack.c.b16 %v143, %v142
  %v161 = vpack.c.b16 %v145, %v144
  %178 = vmatpush.bf16.msra.mxu0 %v153
  %179 = vmatpush.bf16.msra.mxu0 %v152
  %180 = vmatpush.bf16.msra.mxu0 %v151
  %181 = vmatpush.bf16.msra.mxu0 %v150
  %182 = vmatpush.bf16.msra.mxu0 %v149
  %183 = vmatpush.bf16.msra.mxu0 %v148
  %184 = vmatpush.bf16.msra.mxu0 %v147
  %185 = vmatpush.bf16.msra.mxu0 %v146
  %186 = vmatmul.bf16.gmra.mxu0 %v74
  %v187 = vpop.f32.mrf.mxu0
  %v188 = vadd.f32 0.0, %v187
  %v189 = vpop.f32.mrf.mxu0
  %v190 = vadd.f32 0.0, %v189
  %191 = vmatmul.bf16.gmra.mxu0 %v76
  %v192 = vpop.f32.mrf.mxu0
  %v193 = vadd.f32 0.0, %v192
  %v194 = vpop.f32.mrf.mxu0
  %v195 = vadd.f32 0.0, %v194
  %196 = vdwg.mxu0
  %197 = vmatpush.bf16.msra.mxu0 %v161
  %198 = vmatpush.bf16.msra.mxu0 %v160
  %199 = vmatpush.bf16.msra.mxu0 %v159
  %200 = vmatpush.bf16.msra.mxu0 %v158
  %201 = vmatpush.bf16.msra.mxu0 %v157
  %202 = vmatpush.bf16.msra.mxu0 %v156
  %203 = vmatpush.bf16.msra.mxu0 %v155
  %204 = vmatpush.bf16.msra.mxu0 %v154
  %205 = vmatmul.bf16.gmra.mxu0 %v75
  %v206 = vpop.f32.mrf.mxu0
  %v207 = vadd.f32 %v188, %v206
  %v208 = vpop.f32.mrf.mxu0
  %v209 = vadd.f32 %v190, %v208
  %210 = vmatmul.bf16.gmra.mxu0 %v77
  %v211 = vpop.f32.mrf.mxu0
  %v212 = vadd.f32 %v193, %v211
  %v213 = vpop.f32.mrf.mxu0
  %v214 = vadd.f32 %v195, %v213
  %215 = vdwg.mxu0
  %v216 = vadd.f32 %v54, %v207
  %v217 = vadd.f32 %v55, %v209
  %v218 = vadd.f32 %v56, %v212
  %v219 = vadd.f32 %v57, %v214
  %220 = vst [vmem:[#allocation2] sm:$0xff] %v216
  %221 = vst [vmem:[#allocation2 + $0x8] sm:$0xff] %v217
  %222 = vst [vmem:[#allocation2 + $0x10] sm:$0xff] %v218
  %223 = vst [vmem:[#allocation2 + $0x18] sm:$0xff] %v219
  // Predicated region
  $region18: #{resnet_generator_forward.27} parent=0 // pred_check
    %p224 = pneg %p14
  $region19: #{resnet_generator_forward.27} parent=0 // pred_check_branch
    %226 = sbr.rel (%p224) target = $region21
  $region20: #{resnet_generator_forward.27} parent=0 // pred_region
    %v227 = vld [vmem:[#allocation2] sm:$0xff]
    %v228 = vld [vmem:[#allocation2 + $0x8] sm:$0xff]
    %v229 = vld [vmem:[#allocation2 + $0x10] sm:$0xff]
    %v230 = vld [vmem:[#allocation2 + $0x18] sm:$0xff]
    %v231 = vld [vmem:[%s2] sm:$0x1]
    %v233 = vperm.slane %v231, 0
    %v235 = vadd.f32 %v227, %v233
    %v236 = vadd.f32 %v228, %v233
    %v237 = vadd.f32 %v229, %v233
    %v238 = vadd.f32 %v230, %v233
    %vm239 = vcmp.ge.f32.partialorder %v235, 0.0
    %vm240 = vcmp.ge.f32.partialorder %v236, 0.0
    %vm241 = vcmp.ge.f32.partialorder %v237, 0.0
    %vm242 = vcmp.ge.f32.partialorder %v238, 0.0
    %v243 = vmul.f32 %v235, 0.02
    %v244 = vmul.f32 %v236, 0.02
    %v245 = vmul.f32 %v237, 0.02
    %v246 = vmul.f32 %v238, 0.02
    %v247 = vsel %vm239, %v235, %v243
    %v248 = vsel %vm240, %v236, %v244
    %v249 = vsel %vm241, %v237, %v245
    %v250 = vsel %vm242, %v238, %v246
    %251 = vst [vmem:[%s3] sm:$0xff] %v247
    %252 = vst [vmem:[%s3 + $0x8] sm:$0xff] %v248
    %253 = vst [vmem:[%s3 + $0x10] sm:$0xff] %v249
    %254 = vst [vmem:[%s3 + $0x18] sm:$0xff] %v250
  $region21: #{resnet_generator_forward.27} parent=0 // pred_fallthru
    _
  // Predicated region
  $region22: #{resnet_generator_forward.27} parent=0 // pred_check
    _
  $region23: #{resnet_generator_forward.27} parent=0 // pred_check_branch
    %256 = sbr.rel (0) target = $region25
  $region24: #{resnet_generator_forward.27} parent=0 // pred_region
    _
  $region25: #{resnet_generator_forward.27} parent=0 // pred_fallthru
    _
  // Predicated region
  $region26: #{resnet_generator_forward.27} parent=0 // pred_check
    _
  $region27: #{resnet_generator_forward.27} parent=0 // pred_check_branch
    %258 = sbr.rel (0) target = $region29
  $region28: #{resnet_generator_forward.27} parent=0 // pred_region
    _
  $region29: #{resnet_generator_forward.27} parent=0 // pred_fallthru
    _

// kernel: resnet_generator_forward.28
$region0: #{resnet_generator_forward.28}
  #allocation0 [shape = 'u32[]', space=smem, size = 0x4, offset = 0x4, fixed_abs, tag = 'smem constant byte address 0x4 - core index']
  #allocation1 [shape = 'u32[72,128]{1,0:T(1,128)}', space=vmem, size = 0x9000, scoped, tag = 'internal scratch']
  #allocation2 [shape = 'f32[8,128]{1,0:T(8,128)}', space=vmem, size = 0x1000, scoped, tag = 'scratch operand']
  %s0 = inlined_call_operand.vmem [shape: bf16[8,384], index: 0, kind: input, shape index: {}]
  %s1 = inlined_call_operand.vmem [shape: bf16[384,128], index: 1, kind: input, shape index: {}]
  %s2 = inlined_call_operand.vmem [shape: f32[1,128], index: 2, kind: input, shape index: {}]
  %s3 = inlined_call_operand.vmem [shape: f32[8,128], index: 3, kind: output, shape index: {}]
  %s4 = sld [smem:[#allocation0]]
  $region30: #{resnet_generator_forward.28} parent=0
    _
  %s6 = ssub.s32 1, %s4
  %s7 = scalar_select 0, %s6, %s4
  // Predicated region
  $region2: #{resnet_generator_forward.28} parent=0 // pred_check
    _
  $region3: #{resnet_generator_forward.28} parent=0 // pred_check_branch
    %9 = sbr.rel (0) target = $region5
  $region4: #{resnet_generator_forward.28} parent=0 // pred_region
    _
  $region5: #{resnet_generator_forward.28} parent=0 // pred_fallthru
    _
  // Predicated region
  $region6: #{resnet_generator_forward.28} parent=0 // pred_check
    _
  $region7: #{resnet_generator_forward.28} parent=0 // pred_check_branch
    %11 = sbr.rel (0) target = $region9
  $region8: #{resnet_generator_forward.28} parent=0 // pred_region
    _
  $region9: #{resnet_generator_forward.28} parent=0 // pred_fallthru
    _
  // Predicated region
  $region10: #{resnet_generator_forward.28} parent=0 // pred_check
    _
  $region11: #{resnet_generator_forward.28} parent=0 // pred_check_branch
    %13 = sbr.rel (0) target = $region13
  $region12: #{resnet_generator_forward.28} parent=0 // pred_region
    _
  $region13: #{resnet_generator_forward.28} parent=0 // pred_fallthru
    _
  %p14 = scmp.eq.s32.totalorder 0, 0
  // Predicated region
  $region14: #{resnet_generator_forward.28} parent=0 // pred_check
    %p15 = pneg %p14
  $region15: #{resnet_generator_forward.28} parent=0 // pred_check_branch
    %17 = sbr.rel (%p15) target = $region17
  $region16: #{resnet_generator_forward.28} parent=0 // pred_region
    %18 = vst [vmem:[#allocation2] sm:$0xff] 0.0
  $region17: #{resnet_generator_forward.28} parent=0 // pred_fallthru
    _
  %v19 = vld [vmem:[%s1] sm:$0xf]
  %v20 = vld [vmem:[%s1 + $0x4] sm:$0xf]
  %v21 = vld [vmem:[%s1 + $0x8] sm:$0xf]
  %v22 = vld [vmem:[%s1 + $0xc] sm:$0xf]
  %v23 = vld [vmem:[%s1 + $0x10] sm:$0xf]
  %v24 = vld [vmem:[%s1 + $0x14] sm:$0xf]
  %v25 = vld [vmem:[%s1 + $0x18] sm:$0xf]
  %v26 = vld [vmem:[%s1 + $0x1c] sm:$0xf]
  %v27 = vld [vmem:[%s1 + $0x20] sm:$0xf]
  %v28 = vld [vmem:[%s1 + $0x24] sm:$0xf]
  %v29 = vld [vmem:[%s1 + $0x28] sm:$0xf]
  %v30 = vld [vmem:[%s1 + $0x2c] sm:$0xf]
  %v31 = vld [vmem:[%s1 + $0x30] sm:$0xf]
  %v32 = vld [vmem:[%s1 + $0x34] sm:$0xf]
  %v33 = vld [vmem:[%s1 + $0x38] sm:$0xf]
  %v34 = vld [vmem:[%s1 + $0x3c] sm:$0xf]
  %v35 = vld [vmem:[%s1 + $0x40] sm:$0xf]
  %v36 = vld [vmem:[%s1 + $0x44] sm:$0xf]
  %v37 = vld [vmem:[%s1 + $0x48] sm:$0xf]
  %v38 = vld [vmem:[%s1 + $0x4c] sm:$0xf]
  %v39 = vld [vmem:[%s1 + $0x50] sm:$0xf]
  %v40 = vld [vmem:[%s1 + $0x54] sm:$0xf]
  %v41 = vld [vmem:[%s1 + $0x58] sm:$0xf]
  %v42 = vld [vmem:[%s1 + $0x5c] sm:$0xf]
  %v43 = vld [vmem:[%s1 + $0x60] sm:$0xf]
  %v44 = vld [vmem:[%s1 + $0x64] sm:$0xf]
  %v45 = vld [vmem:[%s1 + $0x68] sm:$0xf]
  %v46 = vld [vmem:[%s1 + $0x6c] sm:$0xf]
  %v47 = vld [vmem:[%s1 + $0x70] sm:$0xf]
  %v48 = vld [vmem:[%s1 + $0x74] sm:$0xf]
  %v49 = vld [vmem:[%s1 + $0x78] sm:$0xf]
  %v50 = vld [vmem:[%s1 + $0x7c] sm:$0xf]
  %v51 = vld [vmem:[%s1 + $0x80] sm:$0xf]
  %v52 = vld [vmem:[%s1 + $0x84] sm:$0xf]
  %v53 = vld [vmem:[%s1 + $0x88] sm:$0xf]
  %v54 = vld [vmem:[%s1 + $0x8c] sm:$0xf]
  %v55 = vld [vmem:[%s1 + $0x90] sm:$0xf]
  %v56 = vld [vmem:[%s1 + $0x94] sm:$0xf]
  %v57 = vld [vmem:[%s1 + $0x98] sm:$0xf]
  %v58 = vld [vmem:[%s1 + $0x9c] sm:$0xf]
  %v59 = vld [vmem:[%s1 + $0xa0] sm:$0xf]
  %v60 = vld [vmem:[%s1 + $0xa4] sm:$0xf]
  %v61 = vld [vmem:[%s1 + $0xa8] sm:$0xf]
  %v62 = vld [vmem:[%s1 + $0xac] sm:$0xf]
  %v63 = vld [vmem:[%s1 + $0xb0] sm:$0xf]
  %v64 = vld [vmem:[%s1 + $0xb4] sm:$0xf]
  %v65 = vld [vmem:[%s1 + $0xb8] sm:$0xf]
  %v66 = vld [vmem:[%s1 + $0xbc] sm:$0xf]
  %v67 = vld [vmem:[#allocation2] sm:$0xff]
  %v68 = vld [vmem:[%s0] sm:$0xff]
  %v69 = vld [vmem:[%s0 + $0x8] sm:$0xf]
  %v72 = vunpack.c.l.b16 %v68
  %v73 = vunpack.c.h.b16 %v68
  %v74 = vunpack.c.l.b16 %v69
  %v75 = vpack.c.b16 %v72, %v72
  %v76 = vpack.c.b16 %v73, %v73
  %v77 = vpack.c.b16 %v74, %v74
  %v129 = vunpack.c.l.b16 %v19
  %v130 = vunpack.c.l.b16 %v20
  %v131 = vunpack.c.l.b16 %v21
  %v132 = vunpack.c.l.b16 %v22
  %v133 = vunpack.c.l.b16 %v23
  %v134 = vunpack.c.l.b16 %v24
  %v135 = vunpack.c.l.b16 %v25
  %v136 = vunpack.c.l.b16 %v26
  %v137 = vunpack.c.l.b16 %v27
  %v138 = vunpack.c.l.b16 %v28
  %v139 = vunpack.c.l.b16 %v29
  %v140 = vunpack.c.l.b16 %v30
  %v141 = vunpack.c.l.b16 %v31
  %v142 = vunpack.c.l.b16 %v32
  %v143 = vunpack.c.l.b16 %v33
  %v144 = vunpack.c.l.b16 %v34
  %v145 = vunpack.c.l.b16 %v35
  %v146 = vunpack.c.l.b16 %v36
  %v147 = vunpack.c.l.b16 %v37
  %v148 = vunpack.c.l.b16 %v38
  %v149 = vunpack.c.l.b16 %v39
  %v150 = vunpack.c.l.b16 %v40
  %v151 = vunpack.c.l.b16 %v41
  %v152 = vunpack.c.l.b16 %v42
  %v153 = vunpack.c.l.b16 %v43
  %v154 = vunpack.c.l.b16 %v44
  %v155 = vunpack.c.l.b16 %v45
  %v156 = vunpack.c.l.b16 %v46
  %v157 = vunpack.c.l.b16 %v47
  %v158 = vunpack.c.l.b16 %v48
  %v159 = vunpack.c.l.b16 %v49
  %v160 = vunpack.c.l.b16 %v50
  %v161 = vunpack.c.l.b16 %v51
  %v162 = vunpack.c.l.b16 %v52
  %v163 = vunpack.c.l.b16 %v53
  %v164 = vunpack.c.l.b16 %v54
  %v165 = vunpack.c.l.b16 %v55
  %v166 = vunpack.c.l.b16 %v56
  %v167 = vunpack.c.l.b16 %v57
  %v168 = vunpack.c.l.b16 %v58
  %v169 = vunpack.c.l.b16 %v59
  %v170 = vunpack.c.l.b16 %v60
  %v171 = vunpack.c.l.b16 %v61
  %v172 = vunpack.c.l.b16 %v62
  %v173 = vunpack.c.l.b16 %v63
  %v174 = vunpack.c.l.b16 %v64
  %v175 = vunpack.c.l.b16 %v65
  %v176 = vunpack.c.l.b16 %v66
  %v177 = vpack.c.b16 %v130, %v129
  %v178 = vpack.c.b16 %v132, %v131
  %v179 = vpack.c.b16 %v134, %v133
  %v180 = vpack.c.b16 %v136, %v135
  %v181 = vpack.c.b16 %v138, %v137
  %v182 = vpack.c.b16 %v140, %v139
  %v183 = vpack.c.b16 %v142, %v141
  %v184 = vpack.c.b16 %v144, %v143
  %v185 = vpack.c.b16 %v146, %v145
  %v186 = vpack.c.b16 %v148, %v147
  %v187 = vpack.c.b16 %v150, %v149
  %v188 = vpack.c.b16 %v152, %v151
  %v189 = vpack.c.b16 %v154, %v153
  %v190 = vpack.c.b16 %v156, %v155
  %v191 = vpack.c.b16 %v158, %v157
  %v192 = vpack.c.b16 %v160, %v159
  %v193 = vpack.c.b16 %v162, %v161
  %v194 = vpack.c.b16 %v164, %v163
  %v195 = vpack.c.b16 %v166, %v165
  %v196 = vpack.c.b16 %v168, %v167
  %v197 = vpack.c.b16 %v170, %v169
  %v198 = vpack.c.b16 %v172, %v171
  %v199 = vpack.c.b16 %v174, %v173
  %v200 = vpack.c.b16 %v176, %v175
  %225 = vmatpush.bf16.msra.mxu0 %v184
  %226 = vmatpush.bf16.msra.mxu0 %v183
  %227 = vmatpush.bf16.msra.mxu0 %v182
  %228 = vmatpush.bf16.msra.mxu0 %v181
  %229 = vmatpush.bf16.msra.mxu0 %v180
  %230 = vmatpush.bf16.msra.mxu0 %v179
  %231 = vmatpush.bf16.msra.mxu0 %v178
  %232 = vmatpush.bf16.msra.mxu0 %v177
  %233 = vmatmul.bf16.gmra.mxu0 %v75
  %v234 = vpop.f32.mrf.mxu0
  %v235 = vadd.f32 0.0, %v234
  %v236 = vpop.f32.mrf.mxu0
  %237 = vdwg.mxu0
  %238 = vmatpush.bf16.msra.mxu0 %v192
  %239 = vmatpush.bf16.msra.mxu0 %v191
  %240 = vmatpush.bf16.msra.mxu0 %v190
  %241 = vmatpush.bf16.msra.mxu0 %v189
  %242 = vmatpush.bf16.msra.mxu0 %v188
  %243 = vmatpush.bf16.msra.mxu0 %v187
  %244 = vmatpush.bf16.msra.mxu0 %v186
  %245 = vmatpush.bf16.msra.mxu0 %v185
  %246 = vmatmul.bf16.gmra.mxu0 %v76
  %v247 = vpop.f32.mrf.mxu0
  %v248 = vadd.f32 %v235, %v247
  %v249 = vpop.f32.mrf.mxu0
  %250 = vdwg.mxu0
  %251 = vmatpush.bf16.msra.mxu0 %v200
  %252 = vmatpush.bf16.msra.mxu0 %v199
  %253 = vmatpush.bf16.msra.mxu0 %v198
  %254 = vmatpush.bf16.msra.mxu0 %v197
  %255 = vmatpush.bf16.msra.mxu0 %v196
  %256 = vmatpush.bf16.msra.mxu0 %v195
  %257 = vmatpush.bf16.msra.mxu0 %v194
  %258 = vmatpush.bf16.msra.mxu0 %v193
  %259 = vmatmul.bf16.gmra.mxu0 %v77
  %v260 = vpop.f32.mrf.mxu0
  %v261 = vadd.f32 %v248, %v260
  %v262 = vpop.f32.mrf.mxu0
  %263 = vdwg.mxu0
  %v264 = vadd.f32 %v67, %v261
  %265 = vst [vmem:[#allocation2] sm:$0xff] %v264
  // Predicated region
  $region18: #{resnet_generator_forward.28} parent=0 // pred_check
    %p266 = pneg %p14
  $region19: #{resnet_generator_forward.28} parent=0 // pred_check_branch
    %268 = sbr.rel (%p266) target = $region21
  $region20: #{resnet_generator_forward.28} parent=0 // pred_region
    %v269 = vld [vmem:[#allocation2] sm:$0xff]
    %v270 = vld [vmem:[%s2] sm:$0x1]
    %v272 = vperm.slane %v270, 0
    %v274 = vadd.f32 %v269, %v272
    %vm275 = vcmp.ge.f32.partialorder %v274, 0.0
    %v276 = vmul.f32 %v274, 0.02
    %v277 = vsel %vm275, %v274, %v276
    %278 = vst [vmem:[%s3] sm:$0xff] %v277
  $region21: #{resnet_generator_forward.28} parent=0 // pred_fallthru
    _
  // Predicated region
  $region22: #{resnet_generator_forward.28} parent=0 // pred_check
    _
  $region23: #{resnet_generator_forward.28} parent=0 // pred_check_branch
    %280 = sbr.rel (0) target = $region25
  $region24: #{resnet_generator_forward.28} parent=0 // pred_region
    _
  $region25: #{resnet_generator_forward.28} parent=0 // pred_fallthru
    _
  // Predicated region
  $region26: #{resnet_generator_forward.28} parent=0 // pred_check
    _
  $region27: #{resnet_generator_forward.28} parent=0 // pred_check_branch
    %282 = sbr.rel (0) target = $region29
  $region28: #{resnet_generator_forward.28} parent=0 // pred_region
    _
  $region29: #{resnet_generator_forward.28} parent=0 // pred_fallthru
    _

// kernel: resnet_generator_forward.29
$region0: #{resnet_generator_forward.29}
  #allocation0 [shape = 'u32[]', space=smem, size = 0x4, offset = 0x4, fixed_abs, tag = 'smem constant byte address 0x4 - core index']
  #allocation1 [shape = 'u32[72,128]{1,0:T(1,128)}', space=vmem, size = 0x9000, scoped, tag = 'internal scratch']
  #allocation2 [shape = 'f32[8,128]{1,0:T(8,128)}', space=vmem, size = 0x1000, scoped, tag = 'scratch operand']
  %s0 = inlined_call_operand.vmem [shape: bf16[8,640], index: 0, kind: input, shape index: {}]
  %s1 = inlined_call_operand.vmem [shape: bf16[640,128], index: 1, kind: input, shape index: {}]
  %s2 = inlined_call_operand.vmem [shape: f32[1,128], index: 2, kind: input, shape index: {}]
  %s3 = inlined_call_operand.vmem [shape: f32[8,128], index: 3, kind: output, shape index: {}]
  %s4 = sld [smem:[#allocation0]]
  $region30: #{resnet_generator_forward.29} parent=0
    _
  %s6 = ssub.s32 1, %s4
  %s7 = scalar_select 0, %s6, %s4
  // Predicated region
  $region2: #{resnet_generator_forward.29} parent=0 // pred_check
    _
  $region3: #{resnet_generator_forward.29} parent=0 // pred_check_branch
    %9 = sbr.rel (0) target = $region5
  $region4: #{resnet_generator_forward.29} parent=0 // pred_region
    _
  $region5: #{resnet_generator_forward.29} parent=0 // pred_fallthru
    _
  // Predicated region
  $region6: #{resnet_generator_forward.29} parent=0 // pred_check
    _
  $region7: #{resnet_generator_forward.29} parent=0 // pred_check_branch
    %11 = sbr.rel (0) target = $region9
  $region8: #{resnet_generator_forward.29} parent=0 // pred_region
    _
  $region9: #{resnet_generator_forward.29} parent=0 // pred_fallthru
    _
  // Predicated region
  $region10: #{resnet_generator_forward.29} parent=0 // pred_check
    _
  $region11: #{resnet_generator_forward.29} parent=0 // pred_check_branch
    %13 = sbr.rel (0) target = $region13
  $region12: #{resnet_generator_forward.29} parent=0 // pred_region
    _
  $region13: #{resnet_generator_forward.29} parent=0 // pred_fallthru
    _
  %p14 = scmp.eq.s32.totalorder 0, 0
  // Predicated region
  $region14: #{resnet_generator_forward.29} parent=0 // pred_check
    %p15 = pneg %p14
  $region15: #{resnet_generator_forward.29} parent=0 // pred_check_branch
    %17 = sbr.rel (%p15) target = $region17
  $region16: #{resnet_generator_forward.29} parent=0 // pred_region
    %18 = vst [vmem:[#allocation2] sm:$0xff] 0.0
  $region17: #{resnet_generator_forward.29} parent=0 // pred_fallthru
    _
  %v19 = vld [vmem:[%s1] sm:$0xf]
  %v20 = vld [vmem:[%s1 + $0x4] sm:$0xf]
  %v21 = vld [vmem:[%s1 + $0x8] sm:$0xf]
  %v22 = vld [vmem:[%s1 + $0xc] sm:$0xf]
  %v23 = vld [vmem:[%s1 + $0x10] sm:$0xf]
  %v24 = vld [vmem:[%s1 + $0x14] sm:$0xf]
  %v25 = vld [vmem:[%s1 + $0x18] sm:$0xf]
  %v26 = vld [vmem:[%s1 + $0x1c] sm:$0xf]
  %v27 = vld [vmem:[%s1 + $0x20] sm:$0xf]
  %v28 = vld [vmem:[%s1 + $0x24] sm:$0xf]
  %v29 = vld [vmem:[%s1 + $0x28] sm:$0xf]
  %v30 = vld [vmem:[%s1 + $0x2c] sm:$0xf]
  %v31 = vld [vmem:[%s1 + $0x30] sm:$0xf]
  %v32 = vld [vmem:[%s1 + $0x34] sm:$0xf]
  %v33 = vld [vmem:[%s1 + $0x38] sm:$0xf]
  %v34 = vld [vmem:[%s1 + $0x3c] sm:$0xf]
  %v35 = vld [vmem:[%s1 + $0x40] sm:$0xf]
  %v36 = vld [vmem:[%s1 + $0x44] sm:$0xf]
  %v37 = vld [vmem:[%s1 + $0x48] sm:$0xf]
  %v38 = vld [vmem:[%s1 + $0x4c] sm:$0xf]
  %v39 = vld [vmem:[%s1 + $0x50] sm:$0xf]
  %v40 = vld [vmem:[%s1 + $0x54] sm:$0xf]
  %v41 = vld [vmem:[%s1 + $0x58] sm:$0xf]
  %v42 = vld [vmem:[%s1 + $0x5c] sm:$0xf]
  %v43 = vld [vmem:[%s1 + $0x60] sm:$0xf]
  %v44 = vld [vmem:[%s1 + $0x64] sm:$0xf]
  %v45 = vld [vmem:[%s1 + $0x68] sm:$0xf]
  %v46 = vld [vmem:[%s1 + $0x6c] sm:$0xf]
  %v47 = vld [vmem:[%s1 + $0x70] sm:$0xf]
  %v48 = vld [vmem:[%s1 + $0x74] sm:$0xf]
  %v49 = vld [vmem:[%s1 + $0x78] sm:$0xf]
  %v50 = vld [vmem:[%s1 + $0x7c] sm:$0xf]
  %v51 = vld [vmem:[%s1 + $0x80] sm:$0xf]
  %v52 = vld [vmem:[%s1 + $0x84] sm:$0xf]
  %v53 = vld [vmem:[%s1 + $0x88] sm:$0xf]
  %v54 = vld [vmem:[%s1 + $0x8c] sm:$0xf]
  %v55 = vld [vmem:[%s1 + $0x90] sm:$0xf]
  %v56 = vld [vmem:[%s1 + $0x94] sm:$0xf]
  %v57 = vld [vmem:[%s1 + $0x98] sm:$0xf]
  %v58 = vld [vmem:[%s1 + $0x9c] sm:$0xf]
  %v59 = vld [vmem:[%s1 + $0xa0] sm:$0xf]
  %v60 = vld [vmem:[%s1 + $0xa4] sm:$0xf]
  %v61 = vld [vmem:[%s1 + $0xa8] sm:$0xf]
  %v62 = vld [vmem:[%s1 + $0xac] sm:$0xf]
  %v63 = vld [vmem:[%s1 + $0xb0] sm:$0xf]
  %v64 = vld [vmem:[%s1 + $0xb4] sm:$0xf]
  %v65 = vld [vmem:[%s1 + $0xb8] sm:$0xf]
  %v66 = vld [vmem:[%s1 + $0xbc] sm:$0xf]
  %v67 = vld [vmem:[%s1 + $0xc0] sm:$0xf]
  %v68 = vld [vmem:[%s1 + $0xc4] sm:$0xf]
  %v69 = vld [vmem:[%s1 + $0xc8] sm:$0xf]
  %v70 = vld [vmem:[%s1 + $0xcc] sm:$0xf]
  %v71 = vld [vmem:[%s1 + $0xd0] sm:$0xf]
  %v72 = vld [vmem:[%s1 + $0xd4] sm:$0xf]
  %v73 = vld [vmem:[%s1 + $0xd8] sm:$0xf]
  %v74 = vld [vmem:[%s1 + $0xdc] sm:$0xf]
  %v75 = vld [vmem:[%s1 + $0xe0] sm:$0xf]
  %v76 = vld [vmem:[%s1 + $0xe4] sm:$0xf]
  %v77 = vld [vmem:[%s1 + $0xe8] sm:$0xf]
  %v78 = vld [vmem:[%s1 + $0xec] sm:$0xf]
  %v79 = vld [vmem:[%s1 + $0xf0] sm:$0xf]
  %v80 = vld [vmem:[%s1 + $0xf4] sm:$0xf]
  %v81 = vld [vmem:[%s1 + $0xf8] sm:$0xf]
  %v82 = vld [vmem:[%s1 + $0xfc] sm:$0xf]
  %v83 = vld [vmem:[%s1 + $0x100] sm:$0xf]
  %v84 = vld [vmem:[%s1 + $0x104] sm:$0xf]
  %v85 = vld [vmem:[%s1 + $0x108] sm:$0xf]
  %v86 = vld [vmem:[%s1 + $0x10c] sm:$0xf]
  %v87 = vld [vmem:[%s1 + $0x110] sm:$0xf]
  %v88 = vld [vmem:[%s1 + $0x114] sm:$0xf]
  %v89 = vld [vmem:[%s1 + $0x118] sm:$0xf]
  %v90 = vld [vmem:[%s1 + $0x11c] sm:$0xf]
  %v91 = vld [vmem:[%s1 + $0x120] sm:$0xf]
  %v92 = vld [vmem:[%s1 + $0x124] sm:$0xf]
  %v93 = vld [vmem:[%s1 + $0x128] sm:$0xf]
  %v94 = vld [vmem:[%s1 + $0x12c] sm:$0xf]
  %v95 = vld [vmem:[%s1 + $0x130] sm:$0xf]
  %v96 = vld [vmem:[%s1 + $0x134] sm:$0xf]
  %v97 = vld [vmem:[%s1 + $0x138] sm:$0xf]
  %v98 = vld [vmem:[%s1 + $0x13c] sm:$0xf]
  %v99 = vld [vmem:[#allocation2] sm:$0xff]
  %v100 = vld [vmem:[%s0] sm:$0xff]
  %v101 = vld [vmem:[%s0 + $0x8] sm:$0xff]
  %v102 = vld [vmem:[%s0 + $0x10] sm:$0xf]
  %v106 = vunpack.c.l.b16 %v100
  %v107 = vunpack.c.h.b16 %v100
  %v108 = vunpack.c.l.b16 %v101
  %v109 = vunpack.c.h.b16 %v101
  %v110 = vunpack.c.l.b16 %v102
  %v111 = vpack.c.b16 %v106, %v106
  %v112 = vpack.c.b16 %v107, %v107
  %v113 = vpack.c.b16 %v108, %v108
  %v114 = vpack.c.b16 %v109, %v109
  %v115 = vpack.c.b16 %v110, %v110
  %v201 = vunpack.c.l.b16 %v19
  %v202 = vunpack.c.l.b16 %v20
  %v203 = vunpack.c.l.b16 %v21
  %v204 = vunpack.c.l.b16 %v22
  %v205 = vunpack.c.l.b16 %v23
  %v206 = vunpack.c.l.b16 %v24
  %v207 = vunpack.c.l.b16 %v25
  %v208 = vunpack.c.l.b16 %v26
  %v209 = vunpack.c.l.b16 %v27
  %v210 = vunpack.c.l.b16 %v28
  %v211 = vunpack.c.l.b16 %v29
  %v212 = vunpack.c.l.b16 %v30
  %v213 = vunpack.c.l.b16 %v31
  %v214 = vunpack.c.l.b16 %v32
  %v215 = vunpack.c.l.b16 %v33
  %v216 = vunpack.c.l.b16 %v34
  %v217 = vunpack.c.l.b16 %v35
  %v218 = vunpack.c.l.b16 %v36
  %v219 = vunpack.c.l.b16 %v37
  %v220 = vunpack.c.l.b16 %v38
  %v221 = vunpack.c.l.b16 %v39
  %v222 = vunpack.c.l.b16 %v40
  %v223 = vunpack.c.l.b16 %v41
  %v224 = vunpack.c.l.b16 %v42
  %v225 = vunpack.c.l.b16 %v43
  %v226 = vunpack.c.l.b16 %v44
  %v227 = vunpack.c.l.b16 %v45
  %v228 = vunpack.c.l.b16 %v46
  %v229 = vunpack.c.l.b16 %v47
  %v230 = vunpack.c.l.b16 %v48
  %v231 = vunpack.c.l.b16 %v49
  %v232 = vunpack.c.l.b16 %v50
  %v233 = vunpack.c.l.b16 %v51
  %v234 = vunpack.c.l.b16 %v52
  %v235 = vunpack.c.l.b16 %v53
  %v236 = vunpack.c.l.b16 %v54
  %v237 = vunpack.c.l.b16 %v55
  %v238 = vunpack.c.l.b16 %v56
  %v239 = vunpack.c.l.b16 %v57
  %v240 = vunpack.c.l.b16 %v58
  %v241 = vunpack.c.l.b16 %v59
  %v242 = vunpack.c.l.b16 %v60
  %v243 = vunpack.c.l.b16 %v61
  %v244 = vunpack.c.l.b16 %v62
  %v245 = vunpack.c.l.b16 %v63
  %v246 = vunpack.c.l.b16 %v64
  %v247 = vunpack.c.l.b16 %v65
  %v248 = vunpack.c.l.b16 %v66
  %v249 = vunpack.c.l.b16 %v67
  %v250 = vunpack.c.l.b16 %v68
  %v251 = vunpack.c.l.b16 %v69
  %v252 = vunpack.c.l.b16 %v70
  %v253 = vunpack.c.l.b16 %v71
  %v254 = vunpack.c.l.b16 %v72
  %v255 = vunpack.c.l.b16 %v73
  %v256 = vunpack.c.l.b16 %v74
  %v257 = vunpack.c.l.b16 %v75
  %v258 = vunpack.c.l.b16 %v76
  %v259 = vunpack.c.l.b16 %v77
  %v260 = vunpack.c.l.b16 %v78
  %v261 = vunpack.c.l.b16 %v79
  %v262 = vunpack.c.l.b16 %v80
  %v263 = vunpack.c.l.b16 %v81
  %v264 = vunpack.c.l.b16 %v82
  %v265 = vunpack.c.l.b16 %v83
  %v266 = vunpack.c.l.b16 %v84
  %v267 = vunpack.c.l.b16 %v85
  %v268 = vunpack.c.l.b16 %v86
  %v269 = vunpack.c.l.b16 %v87
  %v270 = vunpack.c.l.b16 %v88
  %v271 = vunpack.c.l.b16 %v89
  %v272 = vunpack.c.l.b16 %v90
  %v273 = vunpack.c.l.b16 %v91
  %v274 = vunpack.c.l.b16 %v92
  %v275 = vunpack.c.l.b16 %v93
  %v276 = vunpack.c.l.b16 %v94
  %v277 = vunpack.c.l.b16 %v95
  %v278 = vunpack.c.l.b16 %v96
  %v279 = vunpack.c.l.b16 %v97
  %v280 = vunpack.c.l.b16 %v98
  %v281 = vpack.c.b16 %v202, %v201
  %v282 = vpack.c.b16 %v204, %v203
  %v283 = vpack.c.b16 %v206, %v205
  %v284 = vpack.c.b16 %v208, %v207
  %v285 = vpack.c.b16 %v210, %v209
  %v286 = vpack.c.b16 %v212, %v211
  %v287 = vpack.c.b16 %v214, %v213
  %v288 = vpack.c.b16 %v216, %v215
  %v289 = vpack.c.b16 %v218, %v217
  %v290 = vpack.c.b16 %v220, %v219
  %v291 = vpack.c.b16 %v222, %v221
  %v292 = vpack.c.b16 %v224, %v223
  %v293 = vpack.c.b16 %v226, %v225
  %v294 = vpack.c.b16 %v228, %v227
  %v295 = vpack.c.b16 %v230, %v229
  %v296 = vpack.c.b16 %v232, %v231
  %v297 = vpack.c.b16 %v234, %v233
  %v298 = vpack.c.b16 %v236, %v235
  %v299 = vpack.c.b16 %v238, %v237
  %v300 = vpack.c.b16 %v240, %v239
  %v301 = vpack.c.b16 %v242, %v241
  %v302 = vpack.c.b16 %v244, %v243
  %v303 = vpack.c.b16 %v246, %v245
  %v304 = vpack.c.b16 %v248, %v247
  %v305 = vpack.c.b16 %v250, %v249
  %v306 = vpack.c.b16 %v252, %v251
  %v307 = vpack.c.b16 %v254, %v253
  %v308 = vpack.c.b16 %v256, %v255
  %v309 = vpack.c.b16 %v258, %v257
  %v310 = vpack.c.b16 %v260, %v259
  %v311 = vpack.c.b16 %v262, %v261
  %v312 = vpack.c.b16 %v264, %v263
  %v313 = vpack.c.b16 %v266, %v265
  %v314 = vpack.c.b16 %v268, %v267
  %v315 = vpack.c.b16 %v270, %v269
  %v316 = vpack.c.b16 %v272, %v271
  %v317 = vpack.c.b16 %v274, %v273
  %v318 = vpack.c.b16 %v276, %v275
  %v319 = vpack.c.b16 %v278, %v277
  %v320 = vpack.c.b16 %v280, %v279
  %361 = vmatpush.bf16.msra.mxu0 %v288
  %362 = vmatpush.bf16.msra.mxu0 %v287
  %363 = vmatpush.bf16.msra.mxu0 %v286
  %364 = vmatpush.bf16.msra.mxu0 %v285
  %365 = vmatpush.bf16.msra.mxu0 %v284
  %366 = vmatpush.bf16.msra.mxu0 %v283
  %367 = vmatpush.bf16.msra.mxu0 %v282
  %368 = vmatpush.bf16.msra.mxu0 %v281
  %369 = vmatmul.bf16.gmra.mxu0 %v111
  %v370 = vpop.f32.mrf.mxu0
  %v371 = vadd.f32 0.0, %v370
  %v372 = vpop.f32.mrf.mxu0
  %373 = vdwg.mxu0
  %374 = vmatpush.bf16.msra.mxu0 %v296
  %375 = vmatpush.bf16.msra.mxu0 %v295
  %376 = vmatpush.bf16.msra.mxu0 %v294
  %377 = vmatpush.bf16.msra.mxu0 %v293
  %378 = vmatpush.bf16.msra.mxu0 %v292
  %379 = vmatpush.bf16.msra.mxu0 %v291
  %380 = vmatpush.bf16.msra.mxu0 %v290
  %381 = vmatpush.bf16.msra.mxu0 %v289
  %382 = vmatmul.bf16.gmra.mxu0 %v112
  %v383 = vpop.f32.mrf.mxu0
  %v384 = vadd.f32 %v371, %v383
  %v385 = vpop.f32.mrf.mxu0
  %386 = vdwg.mxu0
  %387 = vmatpush.bf16.msra.mxu0 %v304
  %388 = vmatpush.bf16.msra.mxu0 %v303
  %389 = vmatpush.bf16.msra.mxu0 %v302
  %390 = vmatpush.bf16.msra.mxu0 %v301
  %391 = vmatpush.bf16.msra.mxu0 %v300
  %392 = vmatpush.bf16.msra.mxu0 %v299
  %393 = vmatpush.bf16.msra.mxu0 %v298
  %394 = vmatpush.bf16.msra.mxu0 %v297
  %395 = vmatmul.bf16.gmra.mxu0 %v113
  %v396 = vpop.f32.mrf.mxu0
  %v397 = vadd.f32 %v384, %v396
  %v398 = vpop.f32.mrf.mxu0
  %399 = vdwg.mxu0
  %400 = vmatpush.bf16.msra.mxu0 %v312
  %401 = vmatpush.bf16.msra.mxu0 %v311
  %402 = vmatpush.bf16.msra.mxu0 %v310
  %403 = vmatpush.bf16.msra.mxu0 %v309
  %404 = vmatpush.bf16.msra.mxu0 %v308
  %405 = vmatpush.bf16.msra.mxu0 %v307
  %406 = vmatpush.bf16.msra.mxu0 %v306
  %407 = vmatpush.bf16.msra.mxu0 %v305
  %408 = vmatmul.bf16.gmra.mxu0 %v114
  %v409 = vpop.f32.mrf.mxu0
  %v410 = vadd.f32 %v397, %v409
  %v411 = vpop.f32.mrf.mxu0
  %412 = vdwg.mxu0
  %413 = vmatpush.bf16.msra.mxu0 %v320
  %414 = vmatpush.bf16.msra.mxu0 %v319
  %415 = vmatpush.bf16.msra.mxu0 %v318
  %416 = vmatpush.bf16.msra.mxu0 %v317
  %417 = vmatpush.bf16.msra.mxu0 %v316
  %418 = vmatpush.bf16.msra.mxu0 %v315
  %419 = vmatpush.bf16.msra.mxu0 %v314
  %420 = vmatpush.bf16.msra.mxu0 %v313
  %421 = vmatmul.bf16.gmra.mxu0 %v115
  %v422 = vpop.f32.mrf.mxu0
  %v423 = vadd.f32 %v410, %v422
  %v424 = vpop.f32.mrf.mxu0
  %425 = vdwg.mxu0
  %v426 = vadd.f32 %v99, %v423
  %427 = vst [vmem:[#allocation2] sm:$0xff] %v426
  // Predicated region
  $region18: #{resnet_generator_forward.29} parent=0 // pred_check
    %p428 = pneg %p14
  $region19: #{resnet_generator_forward.29} parent=0 // pred_check_branch
    %430 = sbr.rel (%p428) target = $region21
  $region20: #{resnet_generator_forward.29} parent=0 // pred_region
    %v431 = vld [vmem:[#allocation2] sm:$0xff]
    %v432 = vld [vmem:[%s2] sm:$0x1]
    %v434 = vperm.slane %v432, 0
    %v436 = vadd.f32 %v431, %v434
    %vm437 = vcmp.ge.f32.partialorder %v436, 0.0
    %v438 = vmul.f32 %v436, 0.02
    %v439 = vsel %vm437, %v436, %v438
    %440 = vst [vmem:[%s3] sm:$0xff] %v439
  $region21: #{resnet_generator_forward.29} parent=0 // pred_fallthru
    _
  // Predicated region
  $region22: #{resnet_generator_forward.29} parent=0 // pred_check
    _
  $region23: #{resnet_generator_forward.29} parent=0 // pred_check_branch
    %442 = sbr.rel (0) target = $region25
  $region24: #{resnet_generator_forward.29} parent=0 // pred_region
    _
  $region25: #{resnet_generator_forward.29} parent=0 // pred_fallthru
    _
  // Predicated region
  $region26: #{resnet_generator_forward.29} parent=0 // pred_check
    _
  $region27: #{resnet_generator_forward.29} parent=0 // pred_check_branch
    %444 = sbr.rel (0) target = $region29
  $region28: #{resnet_generator_forward.29} parent=0 // pred_region
    _
  $region29: #{resnet_generator_forward.29} parent=0 // pred_fallthru
    _

// kernel: resnet_generator_forward.30
$region0: #{resnet_generator_forward.30}
  #allocation0 [shape = 'u32[]', space=smem, size = 0x4, offset = 0x4, fixed_abs, tag = 'smem constant byte address 0x4 - core index']
  #allocation1 [shape = 'u32[72,128]{1,0:T(1,128)}', space=vmem, size = 0x9000, scoped, tag = 'internal scratch']
  #allocation2 [shape = 'f32[8,128]{1,0:T(8,128)}', space=vmem, size = 0x1000, scoped, tag = 'scratch operand']
  %s0 = inlined_call_operand.vmem [shape: bf16[8,640], index: 0, kind: input, shape index: {}]
  %s1 = inlined_call_operand.vmem [shape: bf16[640,128], index: 1, kind: input, shape index: {}]
  %s2 = inlined_call_operand.vmem [shape: f32[1,128], index: 2, kind: input, shape index: {}]
  %s3 = inlined_call_operand.vmem [shape: f32[8,128], index: 3, kind: input, shape index: {}]
  %s4 = inlined_call_operand.vmem [shape: f32[8,128], index: 4, kind: output, shape index: {}]
  %s5 = sld [smem:[#allocation0]]
  $region34: #{resnet_generator_forward.30} parent=0
    _
  %s7 = ssub.s32 1, %s5
  %s8 = scalar_select 0, %s7, %s5
  // Predicated region
  $region2: #{resnet_generator_forward.30} parent=0 // pred_check
    _
  $region3: #{resnet_generator_forward.30} parent=0 // pred_check_branch
    %10 = sbr.rel (0) target = $region5
  $region4: #{resnet_generator_forward.30} parent=0 // pred_region
    _
  $region5: #{resnet_generator_forward.30} parent=0 // pred_fallthru
    _
  // Predicated region
  $region6: #{resnet_generator_forward.30} parent=0 // pred_check
    _
  $region7: #{resnet_generator_forward.30} parent=0 // pred_check_branch
    %12 = sbr.rel (0) target = $region9
  $region8: #{resnet_generator_forward.30} parent=0 // pred_region
    _
  $region9: #{resnet_generator_forward.30} parent=0 // pred_fallthru
    _
  // Predicated region
  $region10: #{resnet_generator_forward.30} parent=0 // pred_check
    _
  $region11: #{resnet_generator_forward.30} parent=0 // pred_check_branch
    %14 = sbr.rel (0) target = $region13
  $region12: #{resnet_generator_forward.30} parent=0 // pred_region
    _
  $region13: #{resnet_generator_forward.30} parent=0 // pred_fallthru
    _
  // Predicated region
  $region14: #{resnet_generator_forward.30} parent=0 // pred_check
    _
  $region15: #{resnet_generator_forward.30} parent=0 // pred_check_branch
    %16 = sbr.rel (0) target = $region17
  $region16: #{resnet_generator_forward.30} parent=0 // pred_region
    _
  $region17: #{resnet_generator_forward.30} parent=0 // pred_fallthru
    _
  %p17 = scmp.eq.s32.totalorder 0, 0
  // Predicated region
  $region18: #{resnet_generator_forward.30} parent=0 // pred_check
    %p18 = pneg %p17
  $region19: #{resnet_generator_forward.30} parent=0 // pred_check_branch
    %20 = sbr.rel (%p18) target = $region21
  $region20: #{resnet_generator_forward.30} parent=0 // pred_region
    %21 = vst [vmem:[#allocation2] sm:$0xff] 0.0
  $region21: #{resnet_generator_forward.30} parent=0 // pred_fallthru
    _
  %v22 = vld [vmem:[%s1] sm:$0xf]
  %v23 = vld [vmem:[%s1 + $0x4] sm:$0xf]
  %v24 = vld [vmem:[%s1 + $0x8] sm:$0xf]
  %v25 = vld [vmem:[%s1 + $0xc] sm:$0xf]
  %v26 = vld [vmem:[%s1 + $0x10] sm:$0xf]
  %v27 = vld [vmem:[%s1 + $0x14] sm:$0xf]
  %v28 = vld [vmem:[%s1 + $0x18] sm:$0xf]
  %v29 = vld [vmem:[%s1 + $0x1c] sm:$0xf]
  %v30 = vld [vmem:[%s1 + $0x20] sm:$0xf]
  %v31 = vld [vmem:[%s1 + $0x24] sm:$0xf]
  %v32 = vld [vmem:[%s1 + $0x28] sm:$0xf]
  %v33 = vld [vmem:[%s1 + $0x2c] sm:$0xf]
  %v34 = vld [vmem:[%s1 + $0x30] sm:$0xf]
  %v35 = vld [vmem:[%s1 + $0x34] sm:$0xf]
  %v36 = vld [vmem:[%s1 + $0x38] sm:$0xf]
  %v37 = vld [vmem:[%s1 + $0x3c] sm:$0xf]
  %v38 = vld [vmem:[%s1 + $0x40] sm:$0xf]
  %v39 = vld [vmem:[%s1 + $0x44] sm:$0xf]
  %v40 = vld [vmem:[%s1 + $0x48] sm:$0xf]
  %v41 = vld [vmem:[%s1 + $0x4c] sm:$0xf]
  %v42 = vld [vmem:[%s1 + $0x50] sm:$0xf]
  %v43 = vld [vmem:[%s1 + $0x54] sm:$0xf]
  %v44 = vld [vmem:[%s1 + $0x58] sm:$0xf]
  %v45 = vld [vmem:[%s1 + $0x5c] sm:$0xf]
  %v46 = vld [vmem:[%s1 + $0x60] sm:$0xf]
  %v47 = vld [vmem:[%s1 + $0x64] sm:$0xf]
  %v48 = vld [vmem:[%s1 + $0x68] sm:$0xf]
  %v49 = vld [vmem:[%s1 + $0x6c] sm:$0xf]
  %v50 = vld [vmem:[%s1 + $0x70] sm:$0xf]
  %v51 = vld [vmem:[%s1 + $0x74] sm:$0xf]
  %v52 = vld [vmem:[%s1 + $0x78] sm:$0xf]
  %v53 = vld [vmem:[%s1 + $0x7c] sm:$0xf]
  %v54 = vld [vmem:[%s1 + $0x80] sm:$0xf]
  %v55 = vld [vmem:[%s1 + $0x84] sm:$0xf]
  %v56 = vld [vmem:[%s1 + $0x88] sm:$0xf]
  %v57 = vld [vmem:[%s1 + $0x8c] sm:$0xf]
  %v58 = vld [vmem:[%s1 + $0x90] sm:$0xf]
  %v59 = vld [vmem:[%s1 + $0x94] sm:$0xf]
  %v60 = vld [vmem:[%s1 + $0x98] sm:$0xf]
  %v61 = vld [vmem:[%s1 + $0x9c] sm:$0xf]
  %v62 = vld [vmem:[%s1 + $0xa0] sm:$0xf]
  %v63 = vld [vmem:[%s1 + $0xa4] sm:$0xf]
  %v64 = vld [vmem:[%s1 + $0xa8] sm:$0xf]
  %v65 = vld [vmem:[%s1 + $0xac] sm:$0xf]
  %v66 = vld [vmem:[%s1 + $0xb0] sm:$0xf]
  %v67 = vld [vmem:[%s1 + $0xb4] sm:$0xf]
  %v68 = vld [vmem:[%s1 + $0xb8] sm:$0xf]
  %v69 = vld [vmem:[%s1 + $0xbc] sm:$0xf]
  %v70 = vld [vmem:[%s1 + $0xc0] sm:$0xf]
  %v71 = vld [vmem:[%s1 + $0xc4] sm:$0xf]
  %v72 = vld [vmem:[%s1 + $0xc8] sm:$0xf]
  %v73 = vld [vmem:[%s1 + $0xcc] sm:$0xf]
  %v74 = vld [vmem:[%s1 + $0xd0] sm:$0xf]
  %v75 = vld [vmem:[%s1 + $0xd4] sm:$0xf]
  %v76 = vld [vmem:[%s1 + $0xd8] sm:$0xf]
  %v77 = vld [vmem:[%s1 + $0xdc] sm:$0xf]
  %v78 = vld [vmem:[%s1 + $0xe0] sm:$0xf]
  %v79 = vld [vmem:[%s1 + $0xe4] sm:$0xf]
  %v80 = vld [vmem:[%s1 + $0xe8] sm:$0xf]
  %v81 = vld [vmem:[%s1 + $0xec] sm:$0xf]
  %v82 = vld [vmem:[%s1 + $0xf0] sm:$0xf]
  %v83 = vld [vmem:[%s1 + $0xf4] sm:$0xf]
  %v84 = vld [vmem:[%s1 + $0xf8] sm:$0xf]
  %v85 = vld [vmem:[%s1 + $0xfc] sm:$0xf]
  %v86 = vld [vmem:[%s1 + $0x100] sm:$0xf]
  %v87 = vld [vmem:[%s1 + $0x104] sm:$0xf]
  %v88 = vld [vmem:[%s1 + $0x108] sm:$0xf]
  %v89 = vld [vmem:[%s1 + $0x10c] sm:$0xf]
  %v90 = vld [vmem:[%s1 + $0x110] sm:$0xf]
  %v91 = vld [vmem:[%s1 + $0x114] sm:$0xf]
  %v92 = vld [vmem:[%s1 + $0x118] sm:$0xf]
  %v93 = vld [vmem:[%s1 + $0x11c] sm:$0xf]
  %v94 = vld [vmem:[%s1 + $0x120] sm:$0xf]
  %v95 = vld [vmem:[%s1 + $0x124] sm:$0xf]
  %v96 = vld [vmem:[%s1 + $0x128] sm:$0xf]
  %v97 = vld [vmem:[%s1 + $0x12c] sm:$0xf]
  %v98 = vld [vmem:[%s1 + $0x130] sm:$0xf]
  %v99 = vld [vmem:[%s1 + $0x134] sm:$0xf]
  %v100 = vld [vmem:[%s1 + $0x138] sm:$0xf]
  %v101 = vld [vmem:[%s1 + $0x13c] sm:$0xf]
  %v102 = vld [vmem:[#allocation2] sm:$0xff]
  %v103 = vld [vmem:[%s0] sm:$0xff]
  %v104 = vld [vmem:[%s0 + $0x8] sm:$0xff]
  %v105 = vld [vmem:[%s0 + $0x10] sm:$0xf]
  %v109 = vunpack.c.l.b16 %v103
  %v110 = vunpack.c.h.b16 %v103
  %v111 = vunpack.c.l.b16 %v104
  %v112 = vunpack.c.h.b16 %v104
  %v113 = vunpack.c.l.b16 %v105
  %v114 = vpack.c.b16 %v109, %v109
  %v115 = vpack.c.b16 %v110, %v110
  %v116 = vpack.c.b16 %v111, %v111
  %v117 = vpack.c.b16 %v112, %v112
  %v118 = vpack.c.b16 %v113, %v113
  %v204 = vunpack.c.l.b16 %v22
  %v205 = vunpack.c.l.b16 %v23
  %v206 = vunpack.c.l.b16 %v24
  %v207 = vunpack.c.l.b16 %v25
  %v208 = vunpack.c.l.b16 %v26
  %v209 = vunpack.c.l.b16 %v27
  %v210 = vunpack.c.l.b16 %v28
  %v211 = vunpack.c.l.b16 %v29
  %v212 = vunpack.c.l.b16 %v30
  %v213 = vunpack.c.l.b16 %v31
  %v214 = vunpack.c.l.b16 %v32
  %v215 = vunpack.c.l.b16 %v33
  %v216 = vunpack.c.l.b16 %v34
  %v217 = vunpack.c.l.b16 %v35
  %v218 = vunpack.c.l.b16 %v36
  %v219 = vunpack.c.l.b16 %v37
  %v220 = vunpack.c.l.b16 %v38
  %v221 = vunpack.c.l.b16 %v39
  %v222 = vunpack.c.l.b16 %v40
  %v223 = vunpack.c.l.b16 %v41
  %v224 = vunpack.c.l.b16 %v42
  %v225 = vunpack.c.l.b16 %v43
  %v226 = vunpack.c.l.b16 %v44
  %v227 = vunpack.c.l.b16 %v45
  %v228 = vunpack.c.l.b16 %v46
  %v229 = vunpack.c.l.b16 %v47
  %v230 = vunpack.c.l.b16 %v48
  %v231 = vunpack.c.l.b16 %v49
  %v232 = vunpack.c.l.b16 %v50
  %v233 = vunpack.c.l.b16 %v51
  %v234 = vunpack.c.l.b16 %v52
  %v235 = vunpack.c.l.b16 %v53
  %v236 = vunpack.c.l.b16 %v54
  %v237 = vunpack.c.l.b16 %v55
  %v238 = vunpack.c.l.b16 %v56
  %v239 = vunpack.c.l.b16 %v57
  %v240 = vunpack.c.l.b16 %v58
  %v241 = vunpack.c.l.b16 %v59
  %v242 = vunpack.c.l.b16 %v60
  %v243 = vunpack.c.l.b16 %v61
  %v244 = vunpack.c.l.b16 %v62
  %v245 = vunpack.c.l.b16 %v63
  %v246 = vunpack.c.l.b16 %v64
  %v247 = vunpack.c.l.b16 %v65
  %v248 = vunpack.c.l.b16 %v66
  %v249 = vunpack.c.l.b16 %v67
  %v250 = vunpack.c.l.b16 %v68
  %v251 = vunpack.c.l.b16 %v69
  %v252 = vunpack.c.l.b16 %v70
  %v253 = vunpack.c.l.b16 %v71
  %v254 = vunpack.c.l.b16 %v72
  %v255 = vunpack.c.l.b16 %v73
  %v256 = vunpack.c.l.b16 %v74
  %v257 = vunpack.c.l.b16 %v75
  %v258 = vunpack.c.l.b16 %v76
  %v259 = vunpack.c.l.b16 %v77
  %v260 = vunpack.c.l.b16 %v78
  %v261 = vunpack.c.l.b16 %v79
  %v262 = vunpack.c.l.b16 %v80
  %v263 = vunpack.c.l.b16 %v81
  %v264 = vunpack.c.l.b16 %v82
  %v265 = vunpack.c.l.b16 %v83
  %v266 = vunpack.c.l.b16 %v84
  %v267 = vunpack.c.l.b16 %v85
  %v268 = vunpack.c.l.b16 %v86
  %v269 = vunpack.c.l.b16 %v87
  %v270 = vunpack.c.l.b16 %v88
  %v271 = vunpack.c.l.b16 %v89
  %v272 = vunpack.c.l.b16 %v90
  %v273 = vunpack.c.l.b16 %v91
  %v274 = vunpack.c.l.b16 %v92
  %v275 = vunpack.c.l.b16 %v93
  %v276 = vunpack.c.l.b16 %v94
  %v277 = vunpack.c.l.b16 %v95
  %v278 = vunpack.c.l.b16 %v96
  %v279 = vunpack.c.l.b16 %v97
  %v280 = vunpack.c.l.b16 %v98
  %v281 = vunpack.c.l.b16 %v99
  %v282 = vunpack.c.l.b16 %v100
  %v283 = vunpack.c.l.b16 %v101
  %v284 = vpack.c.b16 %v205, %v204
  %v285 = vpack.c.b16 %v207, %v206
  %v286 = vpack.c.b16 %v209, %v208
  %v287 = vpack.c.b16 %v211, %v210
  %v288 = vpack.c.b16 %v213, %v212
  %v289 = vpack.c.b16 %v215, %v214
  %v290 = vpack.c.b16 %v217, %v216
  %v291 = vpack.c.b16 %v219, %v218
  %v292 = vpack.c.b16 %v221, %v220
  %v293 = vpack.c.b16 %v223, %v222
  %v294 = vpack.c.b16 %v225, %v224
  %v295 = vpack.c.b16 %v227, %v226
  %v296 = vpack.c.b16 %v229, %v228
  %v297 = vpack.c.b16 %v231, %v230
  %v298 = vpack.c.b16 %v233, %v232
  %v299 = vpack.c.b16 %v235, %v234
  %v300 = vpack.c.b16 %v237, %v236
  %v301 = vpack.c.b16 %v239, %v238
  %v302 = vpack.c.b16 %v241, %v240
  %v303 = vpack.c.b16 %v243, %v242
  %v304 = vpack.c.b16 %v245, %v244
  %v305 = vpack.c.b16 %v247, %v246
  %v306 = vpack.c.b16 %v249, %v248
  %v307 = vpack.c.b16 %v251, %v250
  %v308 = vpack.c.b16 %v253, %v252
  %v309 = vpack.c.b16 %v255, %v254
  %v310 = vpack.c.b16 %v257, %v256
  %v311 = vpack.c.b16 %v259, %v258
  %v312 = vpack.c.b16 %v261, %v260
  %v313 = vpack.c.b16 %v263, %v262
  %v314 = vpack.c.b16 %v265, %v264
  %v315 = vpack.c.b16 %v267, %v266
  %v316 = vpack.c.b16 %v269, %v268
  %v317 = vpack.c.b16 %v271, %v270
  %v318 = vpack.c.b16 %v273, %v272
  %v319 = vpack.c.b16 %v275, %v274
  %v320 = vpack.c.b16 %v277, %v276
  %v321 = vpack.c.b16 %v279, %v278
  %v322 = vpack.c.b16 %v281, %v280
  %v323 = vpack.c.b16 %v283, %v282
  %364 = vmatpush.bf16.msra.mxu0 %v291
  %365 = vmatpush.bf16.msra.mxu0 %v290
  %366 = vmatpush.bf16.msra.mxu0 %v289
  %367 = vmatpush.bf16.msra.mxu0 %v288
  %368 = vmatpush.bf16.msra.mxu0 %v287
  %369 = vmatpush.bf16.msra.mxu0 %v286
  %370 = vmatpush.bf16.msra.mxu0 %v285
  %371 = vmatpush.bf16.msra.mxu0 %v284
  %372 = vmatmul.bf16.gmra.mxu0 %v114
  %v373 = vpop.f32.mrf.mxu0
  %v374 = vadd.f32 0.0, %v373
  %v375 = vpop.f32.mrf.mxu0
  %376 = vdwg.mxu0
  %377 = vmatpush.bf16.msra.mxu0 %v299
  %378 = vmatpush.bf16.msra.mxu0 %v298
  %379 = vmatpush.bf16.msra.mxu0 %v297
  %380 = vmatpush.bf16.msra.mxu0 %v296
  %381 = vmatpush.bf16.msra.mxu0 %v295
  %382 = vmatpush.bf16.msra.mxu0 %v294
  %383 = vmatpush.bf16.msra.mxu0 %v293
  %384 = vmatpush.bf16.msra.mxu0 %v292
  %385 = vmatmul.bf16.gmra.mxu0 %v115
  %v386 = vpop.f32.mrf.mxu0
  %v387 = vadd.f32 %v374, %v386
  %v388 = vpop.f32.mrf.mxu0
  %389 = vdwg.mxu0
  %390 = vmatpush.bf16.msra.mxu0 %v307
  %391 = vmatpush.bf16.msra.mxu0 %v306
  %392 = vmatpush.bf16.msra.mxu0 %v305
  %393 = vmatpush.bf16.msra.mxu0 %v304
  %394 = vmatpush.bf16.msra.mxu0 %v303
  %395 = vmatpush.bf16.msra.mxu0 %v302
  %396 = vmatpush.bf16.msra.mxu0 %v301
  %397 = vmatpush.bf16.msra.mxu0 %v300
  %398 = vmatmul.bf16.gmra.mxu0 %v116
  %v399 = vpop.f32.mrf.mxu0
  %v400 = vadd.f32 %v387, %v399
  %v401 = vpop.f32.mrf.mxu0
  %402 = vdwg.mxu0
  %403 = vmatpush.bf16.msra.mxu0 %v315
  %404 = vmatpush.bf16.msra.mxu0 %v314
  %405 = vmatpush.bf16.msra.mxu0 %v313
  %406 = vmatpush.bf16.msra.mxu0 %v312
  %407 = vmatpush.bf16.msra.mxu0 %v311
  %408 = vmatpush.bf16.msra.mxu0 %v310
  %409 = vmatpush.bf16.msra.mxu0 %v309
  %410 = vmatpush.bf16.msra.mxu0 %v308
  %411 = vmatmul.bf16.gmra.mxu0 %v117
  %v412 = vpop.f32.mrf.mxu0
  %v413 = vadd.f32 %v400, %v412
  %v414 = vpop.f32.mrf.mxu0
  %415 = vdwg.mxu0
  %416 = vmatpush.bf16.msra.mxu0 %v323
  %417 = vmatpush.bf16.msra.mxu0 %v322
  %418 = vmatpush.bf16.msra.mxu0 %v321
  %419 = vmatpush.bf16.msra.mxu0 %v320
  %420 = vmatpush.bf16.msra.mxu0 %v319
  %421 = vmatpush.bf16.msra.mxu0 %v318
  %422 = vmatpush.bf16.msra.mxu0 %v317
  %423 = vmatpush.bf16.msra.mxu0 %v316
  %424 = vmatmul.bf16.gmra.mxu0 %v118
  %v425 = vpop.f32.mrf.mxu0
  %v426 = vadd.f32 %v413, %v425
  %v427 = vpop.f32.mrf.mxu0
  %428 = vdwg.mxu0
  %v429 = vadd.f32 %v102, %v426
  %430 = vst [vmem:[#allocation2] sm:$0xff] %v429
  // Predicated region
  $region22: #{resnet_generator_forward.30} parent=0 // pred_check
    %p431 = pneg %p17
  $region23: #{resnet_generator_forward.30} parent=0 // pred_check_branch
    %433 = sbr.rel (%p431) target = $region25
  $region24: #{resnet_generator_forward.30} parent=0 // pred_region
    %v434 = vld [vmem:[#allocation2] sm:$0xff]
    %v435 = vld [vmem:[%s2] sm:$0x1]
    %v437 = vperm.slane %v435, 0
    %v439 = vadd.f32 %v434, %v437
    %v440 = vld [vmem:[%s3] sm:$0xff]
    %v441 = vadd.f32 %v439, %v440
    %442 = vst [vmem:[%s4] sm:$0xff] %v441
  $region25: #{resnet_generator_forward.30} parent=0 // pred_fallthru
    _
  // Predicated region
  $region26: #{resnet_generator_forward.30} parent=0 // pred_check
    _
  $region27: #{resnet_generator_forward.30} parent=0 // pred_check_branch
    %444 = sbr.rel (0) target = $region29
  $region28: #{resnet_generator_forward.30} parent=0 // pred_region
    _
  $region29: #{resnet_generator_forward.30} parent=0 // pred_fallthru
    _
  // Predicated region
  $region30: #{resnet_generator_forward.30} parent=0 // pred_check
    _
  $region31: #{resnet_generator_forward.30} parent=0 // pred_check_branch
    %446 = sbr.rel (0) target = $region33
  $region32: #{resnet_generator_forward.30} parent=0 // pred_region
    _
  $region33: #{resnet_generator_forward.30} parent=0 // pred_fallthru
    _

// kernel: resnet_generator_forward.37
$region0: #{resnet_generator_forward.37}
  #allocation0 [shape = 'u32[]', space=smem, size = 0x4, offset = 0x4, fixed_abs, tag = 'smem constant byte address 0x4 - core index']
  #allocation1 [shape = 'u32[72,128]{1,0:T(1,128)}', space=vmem, size = 0x9000, scoped, tag = 'internal scratch']
  #allocation2 [shape = 'f32[8,128]{1,0:T(8,128)}', space=vmem, size = 0x1000, scoped, tag = 'scratch operand']
  %s0 = inlined_call_operand.vmem [shape: bf16[8,128], index: 0, kind: input, shape index: {}]
  %s1 = inlined_call_operand.vmem [shape: bf16[128,128], index: 1, kind: input, shape index: {}]
  %s2 = inlined_call_operand.vmem [shape: f32[1,128], index: 2, kind: input, shape index: {}]
  %s3 = inlined_call_operand.vmem [shape: f32[8,128], index: 3, kind: output, shape index: {}]
  %s4 = sld [smem:[#allocation0]]
  $region30: #{resnet_generator_forward.37} parent=0
    _
  %s6 = ssub.s32 1, %s4
  %s7 = scalar_select 0, %s6, %s4
  // Predicated region
  $region2: #{resnet_generator_forward.37} parent=0 // pred_check
    _
  $region3: #{resnet_generator_forward.37} parent=0 // pred_check_branch
    %9 = sbr.rel (0) target = $region5
  $region4: #{resnet_generator_forward.37} parent=0 // pred_region
    _
  $region5: #{resnet_generator_forward.37} parent=0 // pred_fallthru
    _
  // Predicated region
  $region6: #{resnet_generator_forward.37} parent=0 // pred_check
    _
  $region7: #{resnet_generator_forward.37} parent=0 // pred_check_branch
    %11 = sbr.rel (0) target = $region9
  $region8: #{resnet_generator_forward.37} parent=0 // pred_region
    _
  $region9: #{resnet_generator_forward.37} parent=0 // pred_fallthru
    _
  // Predicated region
  $region10: #{resnet_generator_forward.37} parent=0 // pred_check
    _
  $region11: #{resnet_generator_forward.37} parent=0 // pred_check_branch
    %13 = sbr.rel (0) target = $region13
  $region12: #{resnet_generator_forward.37} parent=0 // pred_region
    _
  $region13: #{resnet_generator_forward.37} parent=0 // pred_fallthru
    _
  %p14 = scmp.eq.s32.totalorder 0, 0
  // Predicated region
  $region14: #{resnet_generator_forward.37} parent=0 // pred_check
    %p15 = pneg %p14
  $region15: #{resnet_generator_forward.37} parent=0 // pred_check_branch
    %17 = sbr.rel (%p15) target = $region17
  $region16: #{resnet_generator_forward.37} parent=0 // pred_region
    %18 = vst [vmem:[#allocation2] sm:$0xff] 0.0
  $region17: #{resnet_generator_forward.37} parent=0 // pred_fallthru
    _
  %v19 = vld [vmem:[%s1] sm:$0xf]
  %v20 = vld [vmem:[%s1 + $0x4] sm:$0xf]
  %v21 = vld [vmem:[%s1 + $0x8] sm:$0xf]
  %v22 = vld [vmem:[%s1 + $0xc] sm:$0xf]
  %v23 = vld [vmem:[%s1 + $0x10] sm:$0xf]
  %v24 = vld [vmem:[%s1 + $0x14] sm:$0xf]
  %v25 = vld [vmem:[%s1 + $0x18] sm:$0xf]
  %v26 = vld [vmem:[%s1 + $0x1c] sm:$0xf]
  %v27 = vld [vmem:[%s1 + $0x20] sm:$0xf]
  %v28 = vld [vmem:[%s1 + $0x24] sm:$0xf]
  %v29 = vld [vmem:[%s1 + $0x28] sm:$0xf]
  %v30 = vld [vmem:[%s1 + $0x2c] sm:$0xf]
  %v31 = vld [vmem:[%s1 + $0x30] sm:$0xf]
  %v32 = vld [vmem:[%s1 + $0x34] sm:$0xf]
  %v33 = vld [vmem:[%s1 + $0x38] sm:$0xf]
  %v34 = vld [vmem:[%s1 + $0x3c] sm:$0xf]
  %v35 = vld [vmem:[#allocation2] sm:$0xff]
  %v36 = vld [vmem:[%s0] sm:$0xf]
  %v53 = vunpack.c.l.b16 %v19
  %v54 = vunpack.c.l.b16 %v20
  %v55 = vunpack.c.l.b16 %v21
  %v56 = vunpack.c.l.b16 %v22
  %v57 = vunpack.c.l.b16 %v23
  %v58 = vunpack.c.l.b16 %v24
  %v59 = vunpack.c.l.b16 %v25
  %v60 = vunpack.c.l.b16 %v26
  %v61 = vunpack.c.l.b16 %v27
  %v62 = vunpack.c.l.b16 %v28
  %v63 = vunpack.c.l.b16 %v29
  %v64 = vunpack.c.l.b16 %v30
  %v65 = vunpack.c.l.b16 %v31
  %v66 = vunpack.c.l.b16 %v32
  %v67 = vunpack.c.l.b16 %v33
  %v68 = vunpack.c.l.b16 %v34
  %v69 = vpack.c.b16 %v54, %v53
  %v70 = vpack.c.b16 %v56, %v55
  %v71 = vpack.c.b16 %v58, %v57
  %v72 = vpack.c.b16 %v60, %v59
  %v73 = vpack.c.b16 %v62, %v61
  %v74 = vpack.c.b16 %v64, %v63
  %v75 = vpack.c.b16 %v66, %v65
  %v76 = vpack.c.b16 %v68, %v67
  %85 = vmatpush.bf16.msra.mxu0 %v76
  %86 = vmatpush.bf16.msra.mxu0 %v75
  %87 = vmatpush.bf16.msra.mxu0 %v74
  %88 = vmatpush.bf16.msra.mxu0 %v73
  %89 = vmatpush.bf16.msra.mxu0 %v72
  %90 = vmatpush.bf16.msra.mxu0 %v71
  %91 = vmatpush.bf16.msra.mxu0 %v70
  %92 = vmatpush.bf16.msra.mxu0 %v69
  %93 = vmatmul.bf16.gmra.mxu0 %v36
  %v94 = vpop.f32.mrf.mxu0
  %v95 = vadd.f32 0.0, %v94
  %v96 = vpop.f32.mrf.mxu0
  %97 = vdwg.mxu0
  %v98 = vadd.f32 %v35, %v95
  %99 = vst [vmem:[#allocation2] sm:$0xff] %v98
  // Predicated region
  $region18: #{resnet_generator_forward.37} parent=0 // pred_check
    %p100 = pneg %p14
  $region19: #{resnet_generator_forward.37} parent=0 // pred_check_branch
    %102 = sbr.rel (%p100) target = $region21
  $region20: #{resnet_generator_forward.37} parent=0 // pred_region
    %v103 = vld [vmem:[#allocation2] sm:$0xff]
    %v104 = vld [vmem:[%s2] sm:$0x1]
    %v106 = vperm.slane %v104, 0
    %v108 = vadd.f32 %v103, %v106
    %vm109 = vcmp.ge.f32.partialorder %v108, 0.0
    %v110 = vmul.f32 %v108, 0.02
    %v111 = vsel %vm109, %v108, %v110
    %112 = vst [vmem:[%s3] sm:$0xff] %v111
  $region21: #{resnet_generator_forward.37} parent=0 // pred_fallthru
    _
  // Predicated region
  $region22: #{resnet_generator_forward.37} parent=0 // pred_check
    _
  $region23: #{resnet_generator_forward.37} parent=0 // pred_check_branch
    %114 = sbr.rel (0) target = $region25
  $region24: #{resnet_generator_forward.37} parent=0 // pred_region
    _
  $region25: #{resnet_generator_forward.37} parent=0 // pred_fallthru
    _
  // Predicated region
  $region26: #{resnet_generator_forward.37} parent=0 // pred_check
    _
  $region27: #{resnet_generator_forward.37} parent=0 // pred_check_branch
    %116 = sbr.rel (0) target = $region29
  $region28: #{resnet_generator_forward.37} parent=0 // pred_region
    _
  $region29: #{resnet_generator_forward.37} parent=0 // pred_fallthru
    _

// kernel: resnet_generator_forward.40
$region0: #{resnet_generator_forward.40}
  #allocation0 [shape = 'u32[]', space=smem, size = 0x4, offset = 0x4, fixed_abs, tag = 'smem constant byte address 0x4 - core index']
  #allocation1 [shape = 'u32[72,128]{1,0:T(1,128)}', space=vmem, size = 0x9000, scoped, tag = 'internal scratch']
  #allocation2 [shape = 'f32[8,128]{1,0:T(8,128)}', space=vmem, size = 0x1000, scoped, tag = 'scratch operand']
  %s0 = inlined_call_operand.vmem [shape: bf16[8,256], index: 0, kind: input, shape index: {}]
  %s1 = inlined_call_operand.vmem [shape: bf16[256,128], index: 1, kind: input, shape index: {}]
  %s2 = inlined_call_operand.vmem [shape: f32[1,128], index: 2, kind: input, shape index: {}]
  %s3 = inlined_call_operand.vmem [shape: f32[8,128], index: 3, kind: output, shape index: {}]
  %s4 = sld [smem:[#allocation0]]
  $region30: #{resnet_generator_forward.40} parent=0
    _
  %s6 = ssub.s32 1, %s4
  %s7 = scalar_select 0, %s6, %s4
  // Predicated region
  $region2: #{resnet_generator_forward.40} parent=0 // pred_check
    _
  $region3: #{resnet_generator_forward.40} parent=0 // pred_check_branch
    %9 = sbr.rel (0) target = $region5
  $region4: #{resnet_generator_forward.40} parent=0 // pred_region
    _
  $region5: #{resnet_generator_forward.40} parent=0 // pred_fallthru
    _
  // Predicated region
  $region6: #{resnet_generator_forward.40} parent=0 // pred_check
    _
  $region7: #{resnet_generator_forward.40} parent=0 // pred_check_branch
    %11 = sbr.rel (0) target = $region9
  $region8: #{resnet_generator_forward.40} parent=0 // pred_region
    _
  $region9: #{resnet_generator_forward.40} parent=0 // pred_fallthru
    _
  // Predicated region
  $region10: #{resnet_generator_forward.40} parent=0 // pred_check
    _
  $region11: #{resnet_generator_forward.40} parent=0 // pred_check_branch
    %13 = sbr.rel (0) target = $region13
  $region12: #{resnet_generator_forward.40} parent=0 // pred_region
    _
  $region13: #{resnet_generator_forward.40} parent=0 // pred_fallthru
    _
  %p14 = scmp.eq.s32.totalorder 0, 0
  // Predicated region
  $region14: #{resnet_generator_forward.40} parent=0 // pred_check
    %p15 = pneg %p14
  $region15: #{resnet_generator_forward.40} parent=0 // pred_check_branch
    %17 = sbr.rel (%p15) target = $region17
  $region16: #{resnet_generator_forward.40} parent=0 // pred_region
    %18 = vst [vmem:[#allocation2] sm:$0xff] 0.0
  $region17: #{resnet_generator_forward.40} parent=0 // pred_fallthru
    _
  %v19 = vld [vmem:[%s1] sm:$0xf]
  %v20 = vld [vmem:[%s1 + $0x4] sm:$0xf]
  %v21 = vld [vmem:[%s1 + $0x8] sm:$0xf]
  %v22 = vld [vmem:[%s1 + $0xc] sm:$0xf]
  %v23 = vld [vmem:[%s1 + $0x10] sm:$0xf]
  %v24 = vld [vmem:[%s1 + $0x14] sm:$0xf]
  %v25 = vld [vmem:[%s1 + $0x18] sm:$0xf]
  %v26 = vld [vmem:[%s1 + $0x1c] sm:$0xf]
  %v27 = vld [vmem:[%s1 + $0x20] sm:$0xf]
  %v28 = vld [vmem:[%s1 + $0x24] sm:$0xf]
  %v29 = vld [vmem:[%s1 + $0x28] sm:$0xf]
  %v30 = vld [vmem:[%s1 + $0x2c] sm:$0xf]
  %v31 = vld [vmem:[%s1 + $0x30] sm:$0xf]
  %v32 = vld [vmem:[%s1 + $0x34] sm:$0xf]
  %v33 = vld [vmem:[%s1 + $0x38] sm:$0xf]
  %v34 = vld [vmem:[%s1 + $0x3c] sm:$0xf]
  %v35 = vld [vmem:[%s1 + $0x40] sm:$0xf]
  %v36 = vld [vmem:[%s1 + $0x44] sm:$0xf]
  %v37 = vld [vmem:[%s1 + $0x48] sm:$0xf]
  %v38 = vld [vmem:[%s1 + $0x4c] sm:$0xf]
  %v39 = vld [vmem:[%s1 + $0x50] sm:$0xf]
  %v40 = vld [vmem:[%s1 + $0x54] sm:$0xf]
  %v41 = vld [vmem:[%s1 + $0x58] sm:$0xf]
  %v42 = vld [vmem:[%s1 + $0x5c] sm:$0xf]
  %v43 = vld [vmem:[%s1 + $0x60] sm:$0xf]
  %v44 = vld [vmem:[%s1 + $0x64] sm:$0xf]
  %v45 = vld [vmem:[%s1 + $0x68] sm:$0xf]
  %v46 = vld [vmem:[%s1 + $0x6c] sm:$0xf]
  %v47 = vld [vmem:[%s1 + $0x70] sm:$0xf]
  %v48 = vld [vmem:[%s1 + $0x74] sm:$0xf]
  %v49 = vld [vmem:[%s1 + $0x78] sm:$0xf]
  %v50 = vld [vmem:[%s1 + $0x7c] sm:$0xf]
  %v51 = vld [vmem:[#allocation2] sm:$0xff]
  %v52 = vld [vmem:[%s0] sm:$0xff]
  %v54 = vunpack.c.l.b16 %v52
  %v55 = vunpack.c.h.b16 %v52
  %v56 = vpack.c.b16 %v54, %v54
  %v57 = vpack.c.b16 %v55, %v55
  %v92 = vunpack.c.l.b16 %v19
  %v93 = vunpack.c.l.b16 %v20
  %v94 = vunpack.c.l.b16 %v21
  %v95 = vunpack.c.l.b16 %v22
  %v96 = vunpack.c.l.b16 %v23
  %v97 = vunpack.c.l.b16 %v24
  %v98 = vunpack.c.l.b16 %v25
  %v99 = vunpack.c.l.b16 %v26
  %v100 = vunpack.c.l.b16 %v27
  %v101 = vunpack.c.l.b16 %v28
  %v102 = vunpack.c.l.b16 %v29
  %v103 = vunpack.c.l.b16 %v30
  %v104 = vunpack.c.l.b16 %v31
  %v105 = vunpack.c.l.b16 %v32
  %v106 = vunpack.c.l.b16 %v33
  %v107 = vunpack.c.l.b16 %v34
  %v108 = vunpack.c.l.b16 %v35
  %v109 = vunpack.c.l.b16 %v36
  %v110 = vunpack.c.l.b16 %v37
  %v111 = vunpack.c.l.b16 %v38
  %v112 = vunpack.c.l.b16 %v39
  %v113 = vunpack.c.l.b16 %v40
  %v114 = vunpack.c.l.b16 %v41
  %v115 = vunpack.c.l.b16 %v42
  %v116 = vunpack.c.l.b16 %v43
  %v117 = vunpack.c.l.b16 %v44
  %v118 = vunpack.c.l.b16 %v45
  %v119 = vunpack.c.l.b16 %v46
  %v120 = vunpack.c.l.b16 %v47
  %v121 = vunpack.c.l.b16 %v48
  %v122 = vunpack.c.l.b16 %v49
  %v123 = vunpack.c.l.b16 %v50
  %v124 = vpack.c.b16 %v93, %v92
  %v125 = vpack.c.b16 %v95, %v94
  %v126 = vpack.c.b16 %v97, %v96
  %v127 = vpack.c.b16 %v99, %v98
  %v128 = vpack.c.b16 %v101, %v100
  %v129 = vpack.c.b16 %v103, %v102
  %v130 = vpack.c.b16 %v105, %v104
  %v131 = vpack.c.b16 %v107, %v106
  %v132 = vpack.c.b16 %v109, %v108
  %v133 = vpack.c.b16 %v111, %v110
  %v134 = vpack.c.b16 %v113, %v112
  %v135 = vpack.c.b16 %v115, %v114
  %v136 = vpack.c.b16 %v117, %v116
  %v137 = vpack.c.b16 %v119, %v118
  %v138 = vpack.c.b16 %v121, %v120
  %v139 = vpack.c.b16 %v123, %v122
  %156 = vmatpush.bf16.msra.mxu0 %v131
  %157 = vmatpush.bf16.msra.mxu0 %v130
  %158 = vmatpush.bf16.msra.mxu0 %v129
  %159 = vmatpush.bf16.msra.mxu0 %v128
  %160 = vmatpush.bf16.msra.mxu0 %v127
  %161 = vmatpush.bf16.msra.mxu0 %v126
  %162 = vmatpush.bf16.msra.mxu0 %v125
  %163 = vmatpush.bf16.msra.mxu0 %v124
  %164 = vmatmul.bf16.gmra.mxu0 %v56
  %v165 = vpop.f32.mrf.mxu0
  %v166 = vadd.f32 0.0, %v165
  %v167 = vpop.f32.mrf.mxu0
  %168 = vdwg.mxu0
  %169 = vmatpush.bf16.msra.mxu0 %v139
  %170 = vmatpush.bf16.msra.mxu0 %v138
  %171 = vmatpush.bf16.msra.mxu0 %v137
  %172 = vmatpush.bf16.msra.mxu0 %v136
  %173 = vmatpush.bf16.msra.mxu0 %v135
  %174 = vmatpush.bf16.msra.mxu0 %v134
  %175 = vmatpush.bf16.msra.mxu0 %v133
  %176 = vmatpush.bf16.msra.mxu0 %v132
  %177 = vmatmul.bf16.gmra.mxu0 %v57
  %v178 = vpop.f32.mrf.mxu0
  %v179 = vadd.f32 %v166, %v178
  %v180 = vpop.f32.mrf.mxu0
  %181 = vdwg.mxu0
  %v182 = vadd.f32 %v51, %v179
  %183 = vst [vmem:[#allocation2] sm:$0xff] %v182
  // Predicated region
  $region18: #{resnet_generator_forward.40} parent=0 // pred_check
    %p184 = pneg %p14
  $region19: #{resnet_generator_forward.40} parent=0 // pred_check_branch
    %186 = sbr.rel (%p184) target = $region21
  $region20: #{resnet_generator_forward.40} parent=0 // pred_region
    %v187 = vld [vmem:[#allocation2] sm:$0xff]
    %v188 = vld [vmem:[%s2] sm:$0x1]
    %v190 = vperm.slane %v188, 0
    %v192 = vadd.f32 %v187, %v190
    %vm193 = vcmp.ge.f32.partialorder %v192, 0.0
    %v194 = vmul.f32 %v192, 0.02
    %v195 = vsel %vm193, %v192, %v194
    %196 = vst [vmem:[%s3] sm:$0xff] %v195
  $region21: #{resnet_generator_forward.40} parent=0 // pred_fallthru
    _
  // Predicated region
  $region22: #{resnet_generator_forward.40} parent=0 // pred_check
    _
  $region23: #{resnet_generator_forward.40} parent=0 // pred_check_branch
    %198 = sbr.rel (0) target = $region25
  $region24: #{resnet_generator_forward.40} parent=0 // pred_region
    _
  $region25: #{resnet_generator_forward.40} parent=0 // pred_fallthru
    _
  // Predicated region
  $region26: #{resnet_generator_forward.40} parent=0 // pred_check
    _
  $region27: #{resnet_generator_forward.40} parent=0 // pred_check_branch
    %200 = sbr.rel (0) target = $region29
  $region28: #{resnet_generator_forward.40} parent=0 // pred_region
    _
  $region29: #{resnet_generator_forward.40} parent=0 // pred_fallthru
    _

// kernel: resnet_generator_forward.42
$region0: #{resnet_generator_forward.42}
  #allocation0 [shape = 'u32[]', space=smem, size = 0x4, offset = 0x4, fixed_abs, tag = 'smem constant byte address 0x4 - core index']
  #allocation1 [shape = 'u32[72,128]{1,0:T(1,128)}', space=vmem, size = 0x9000, scoped, tag = 'internal scratch']
  #allocation2 [shape = 'f32[32,128]{1,0:T(8,128)}', space=vmem, size = 0x4000, scoped, tag = 'scratch operand']
  %s0 = inlined_call_operand.vmem [shape: bf16[32,128], index: 0, kind: input, shape index: {}]
  %s1 = inlined_call_operand.vmem [shape: bf16[128,128], index: 1, kind: input, shape index: {}]
  %s2 = inlined_call_operand.vmem [shape: f32[1,128], index: 2, kind: input, shape index: {}]
  %s3 = inlined_call_operand.vmem [shape: f32[32,128], index: 3, kind: output, shape index: {}]
  %s4 = sld [smem:[#allocation0]]
  $region30: #{resnet_generator_forward.42} parent=0
    _
  %s6 = ssub.s32 1, %s4
  %s7 = scalar_select 0, %s6, %s4
  // Predicated region
  $region2: #{resnet_generator_forward.42} parent=0 // pred_check
    _
  $region3: #{resnet_generator_forward.42} parent=0 // pred_check_branch
    %9 = sbr.rel (0) target = $region5
  $region4: #{resnet_generator_forward.42} parent=0 // pred_region
    _
  $region5: #{resnet_generator_forward.42} parent=0 // pred_fallthru
    _
  // Predicated region
  $region6: #{resnet_generator_forward.42} parent=0 // pred_check
    _
  $region7: #{resnet_generator_forward.42} parent=0 // pred_check_branch
    %11 = sbr.rel (0) target = $region9
  $region8: #{resnet_generator_forward.42} parent=0 // pred_region
    _
  $region9: #{resnet_generator_forward.42} parent=0 // pred_fallthru
    _
  // Predicated region
  $region10: #{resnet_generator_forward.42} parent=0 // pred_check
    _
  $region11: #{resnet_generator_forward.42} parent=0 // pred_check_branch
    %13 = sbr.rel (0) target = $region13
  $region12: #{resnet_generator_forward.42} parent=0 // pred_region
    _
  $region13: #{resnet_generator_forward.42} parent=0 // pred_fallthru
    _
  %p14 = scmp.eq.s32.totalorder 0, 0
  // Predicated region
  $region14: #{resnet_generator_forward.42} parent=0 // pred_check
    %p15 = pneg %p14
  $region15: #{resnet_generator_forward.42} parent=0 // pred_check_branch
    %17 = sbr.rel (%p15) target = $region17
  $region16: #{resnet_generator_forward.42} parent=0 // pred_region
    %18 = vst [vmem:[#allocation2] sm:$0xff] 0.0
    %19 = vst [vmem:[#allocation2 + $0x8] sm:$0xff] 0.0
    %20 = vst [vmem:[#allocation2 + $0x10] sm:$0xff] 0.0
    %21 = vst [vmem:[#allocation2 + $0x18] sm:$0xff] 0.0
  $region17: #{resnet_generator_forward.42} parent=0 // pred_fallthru
    _
  %v22 = vld [vmem:[%s1] sm:$0xf]
  %v23 = vld [vmem:[%s1 + $0x4] sm:$0xf]
  %v24 = vld [vmem:[%s1 + $0x8] sm:$0xf]
  %v25 = vld [vmem:[%s1 + $0xc] sm:$0xf]
  %v26 = vld [vmem:[%s1 + $0x10] sm:$0xf]
  %v27 = vld [vmem:[%s1 + $0x14] sm:$0xf]
  %v28 = vld [vmem:[%s1 + $0x18] sm:$0xf]
  %v29 = vld [vmem:[%s1 + $0x1c] sm:$0xf]
  %v30 = vld [vmem:[%s1 + $0x20] sm:$0xf]
  %v31 = vld [vmem:[%s1 + $0x24] sm:$0xf]
  %v32 = vld [vmem:[%s1 + $0x28] sm:$0xf]
  %v33 = vld [vmem:[%s1 + $0x2c] sm:$0xf]
  %v34 = vld [vmem:[%s1 + $0x30] sm:$0xf]
  %v35 = vld [vmem:[%s1 + $0x34] sm:$0xf]
  %v36 = vld [vmem:[%s1 + $0x38] sm:$0xf]
  %v37 = vld [vmem:[%s1 + $0x3c] sm:$0xf]
  %v38 = vld [vmem:[#allocation2] sm:$0xff]
  %v39 = vld [vmem:[#allocation2 + $0x8] sm:$0xff]
  %v40 = vld [vmem:[#allocation2 + $0x10] sm:$0xff]
  %v41 = vld [vmem:[#allocation2 + $0x18] sm:$0xff]
  %v42 = vld [vmem:[%s0] sm:$0xf]
  %v43 = vld [vmem:[%s0 + $0x4] sm:$0xf]
  %v44 = vld [vmem:[%s0 + $0x8] sm:$0xf]
  %v45 = vld [vmem:[%s0 + $0xc] sm:$0xf]
  %v50 = vunpack.c.l.b16 %v42
  %v51 = vunpack.c.l.b16 %v43
  %v52 = vunpack.c.l.b16 %v44
  %v53 = vunpack.c.l.b16 %v45
  %v54 = vpack.c.b16 %v51, %v50
  %v55 = vpack.c.b16 %v53, %v52
  %v74 = vunpack.c.l.b16 %v22
  %v75 = vunpack.c.l.b16 %v23
  %v76 = vunpack.c.l.b16 %v24
  %v77 = vunpack.c.l.b16 %v25
  %v78 = vunpack.c.l.b16 %v26
  %v79 = vunpack.c.l.b16 %v27
  %v80 = vunpack.c.l.b16 %v28
  %v81 = vunpack.c.l.b16 %v29
  %v82 = vunpack.c.l.b16 %v30
  %v83 = vunpack.c.l.b16 %v31
  %v84 = vunpack.c.l.b16 %v32
  %v85 = vunpack.c.l.b16 %v33
  %v86 = vunpack.c.l.b16 %v34
  %v87 = vunpack.c.l.b16 %v35
  %v88 = vunpack.c.l.b16 %v36
  %v89 = vunpack.c.l.b16 %v37
  %v90 = vpack.c.b16 %v75, %v74
  %v91 = vpack.c.b16 %v77, %v76
  %v92 = vpack.c.b16 %v79, %v78
  %v93 = vpack.c.b16 %v81, %v80
  %v94 = vpack.c.b16 %v83, %v82
  %v95 = vpack.c.b16 %v85, %v84
  %v96 = vpack.c.b16 %v87, %v86
  %v97 = vpack.c.b16 %v89, %v88
  %106 = vmatpush.bf16.msra.mxu0 %v97
  %107 = vmatpush.bf16.msra.mxu0 %v96
  %108 = vmatpush.bf16.msra.mxu0 %v95
  %109 = vmatpush.bf16.msra.mxu0 %v94
  %110 = vmatpush.bf16.msra.mxu0 %v93
  %111 = vmatpush.bf16.msra.mxu0 %v92
  %112 = vmatpush.bf16.msra.mxu0 %v91
  %113 = vmatpush.bf16.msra.mxu0 %v90
  %114 = vmatmul.bf16.gmra.mxu0 %v54
  %v115 = vpop.f32.mrf.mxu0
  %v116 = vadd.f32 0.0, %v115
  %v117 = vpop.f32.mrf.mxu0
  %v118 = vadd.f32 0.0, %v117
  %119 = vmatmul.bf16.gmra.mxu0 %v55
  %v120 = vpop.f32.mrf.mxu0
  %v121 = vadd.f32 0.0, %v120
  %v122 = vpop.f32.mrf.mxu0
  %v123 = vadd.f32 0.0, %v122
  %124 = vdwg.mxu0
  %v125 = vadd.f32 %v38, %v116
  %v126 = vadd.f32 %v39, %v118
  %v127 = vadd.f32 %v40, %v121
  %v128 = vadd.f32 %v41, %v123
  %129 = vst [vmem:[#allocation2] sm:$0xff] %v125
  %130 = vst [vmem:[#allocation2 + $0x8] sm:$0xff] %v126
  %131 = vst [vmem:[#allocation2 + $0x10] sm:$0xff] %v127
  %132 = vst [vmem:[#allocation2 + $0x18] sm:$0xff] %v128
  // Predicated region
  $region18: #{resnet_generator_forward.42} parent=0 // pred_check
    %p133 = pneg %p14
  $region19: #{resnet_generator_forward.42} parent=0 // pred_check_branch
    %135 = sbr.rel (%p133) target = $region21
  $region20: #{resnet_generator_forward.42} parent=0 // pred_region
    %v136 = vld [vmem:[#allocation2] sm:$0xff]
    %v137 = vld [vmem:[#allocation2 + $0x8] sm:$0xff]
    %v138 = vld [vmem:[#allocation2 + $0x10] sm:$0xff]
    %v139 = vld [vmem:[#allocation2 + $0x18] sm:$0xff]
    %v140 = vld [vmem:[%s2] sm:$0x1]
    %v142 = vperm.slane %v140, 0
    %v144 = vadd.f32 %v136, %v142
    %v145 = vadd.f32 %v137, %v142
    %v146 = vadd.f32 %v138, %v142
    %v147 = vadd.f32 %v139, %v142
    %vm148 = vcmp.ge.f32.partialorder %v144, 0.0
    %vm149 = vcmp.ge.f32.partialorder %v145, 0.0
    %vm150 = vcmp.ge.f32.partialorder %v146, 0.0
    %vm151 = vcmp.ge.f32.partialorder %v147, 0.0
    %v152 = vmul.f32 %v144, 0.02
    %v153 = vmul.f32 %v145, 0.02
    %v154 = vmul.f32 %v146, 0.02
    %v155 = vmul.f32 %v147, 0.02
    %v156 = vsel %vm148, %v144, %v152
    %v157 = vsel %vm149, %v145, %v153
    %v158 = vsel %vm150, %v146, %v154
    %v159 = vsel %vm151, %v147, %v155
    %160 = vst [vmem:[%s3] sm:$0xff] %v156
    %161 = vst [vmem:[%s3 + $0x8] sm:$0xff] %v157
    %162 = vst [vmem:[%s3 + $0x10] sm:$0xff] %v158
    %163 = vst [vmem:[%s3 + $0x18] sm:$0xff] %v159
  $region21: #{resnet_generator_forward.42} parent=0 // pred_fallthru
    _
  // Predicated region
  $region22: #{resnet_generator_forward.42} parent=0 // pred_check
    _
  $region23: #{resnet_generator_forward.42} parent=0 // pred_check_branch
    %165 = sbr.rel (0) target = $region25
  $region24: #{resnet_generator_forward.42} parent=0 // pred_region
    _
  $region25: #{resnet_generator_forward.42} parent=0 // pred_fallthru
    _
  // Predicated region
  $region26: #{resnet_generator_forward.42} parent=0 // pred_check
    _
  $region27: #{resnet_generator_forward.42} parent=0 // pred_check_branch
    %167 = sbr.rel (0) target = $region29
  $region28: #{resnet_generator_forward.42} parent=0 // pred_region
    _
  $region29: #{resnet_generator_forward.42} parent=0 // pred_fallthru
    _

// kernel: resnet_generator_forward.49
$region0: #{resnet_generator_forward.49}
  #allocation0 [shape = 'u32[]', space=smem, size = 0x4, offset = 0x4, fixed_abs, tag = 'smem constant byte address 0x4 - core index']
  #allocation1 [shape = 'u32[72,128]{1,0:T(1,128)}', space=vmem, size = 0x9000, scoped, tag = 'internal scratch']
  #allocation2 [shape = 'f32[512,128]{1,0:T(8,128)}', space=vmem, size = 0x40000, scoped, tag = 'scratch operand']
  %s0 = inlined_call_operand.vmem [shape: bf16[512,512], index: 0, kind: input, shape index: {}]
  %s1 = inlined_call_operand.vmem [shape: bf16[512,128], index: 1, kind: input, shape index: {}]
  %s2 = inlined_call_operand.vmem [shape: f32[1,128], index: 2, kind: input, shape index: {}]
  %s3 = inlined_call_operand.vmem [shape: f32[512,128], index: 3, kind: output, shape index: {}]
  %s4 = sld [smem:[#allocation0]]
  $region30: #{resnet_generator_forward.49} parent=0
    _
  %s6 = ssub.s32 1, %s4
  %s7 = scalar_select 0, %s6, %s4
  // Predicated region
  $region2: #{resnet_generator_forward.49} parent=0 // pred_check
    _
  $region3: #{resnet_generator_forward.49} parent=0 // pred_check_branch
    %9 = sbr.rel (0) target = $region5
  $region4: #{resnet_generator_forward.49} parent=0 // pred_region
    _
  $region5: #{resnet_generator_forward.49} parent=0 // pred_fallthru
    _
  // Predicated region
  $region6: #{resnet_generator_forward.49} parent=0 // pred_check
    _
  $region7: #{resnet_generator_forward.49} parent=0 // pred_check_branch
    %11 = sbr.rel (0) target = $region9
  $region8: #{resnet_generator_forward.49} parent=0 // pred_region
    _
  $region9: #{resnet_generator_forward.49} parent=0 // pred_fallthru
    _
  // Predicated region
  $region10: #{resnet_generator_forward.49} parent=0 // pred_check
    _
  $region11: #{resnet_generator_forward.49} parent=0 // pred_check_branch
    %13 = sbr.rel (0) target = $region13
  $region12: #{resnet_generator_forward.49} parent=0 // pred_region
    _
  $region13: #{resnet_generator_forward.49} parent=0 // pred_fallthru
    _
  %p14 = scmp.eq.s32.totalorder 0, 0
  // Predicated region
  $region14: #{resnet_generator_forward.49} parent=0 // pred_check
    %p15 = pneg %p14
  $region15: #{resnet_generator_forward.49} parent=0 // pred_check_branch
    %17 = sbr.rel (%p15) target = $region17
  $region16: #{resnet_generator_forward.49} parent=0 // pred_region
    %18 = vst [vmem:[#allocation2] sm:$0xff] 0.0
    %19 = vst [vmem:[#allocation2 + $0x8] sm:$0xff] 0.0
    %20 = vst [vmem:[#allocation2 + $0x10] sm:$0xff] 0.0
    %21 = vst [vmem:[#allocation2 + $0x18] sm:$0xff] 0.0
    %22 = vst [vmem:[#allocation2 + $0x20] sm:$0xff] 0.0
    %23 = vst [vmem:[#allocation2 + $0x28] sm:$0xff] 0.0
    %24 = vst [vmem:[#allocation2 + $0x30] sm:$0xff] 0.0
    %25 = vst [vmem:[#allocation2 + $0x38] sm:$0xff] 0.0
    %26 = vst [vmem:[#allocation2 + $0x40] sm:$0xff] 0.0
    %27 = vst [vmem:[#allocation2 + $0x48] sm:$0xff] 0.0
    %28 = vst [vmem:[#allocation2 + $0x50] sm:$0xff] 0.0
    %29 = vst [vmem:[#allocation2 + $0x58] sm:$0xff] 0.0
    %30 = vst [vmem:[#allocation2 + $0x60] sm:$0xff] 0.0
    %31 = vst [vmem:[#allocation2 + $0x68] sm:$0xff] 0.0
    %32 = vst [vmem:[#allocation2 + $0x70] sm:$0xff] 0.0
    %33 = vst [vmem:[#allocation2 + $0x78] sm:$0xff] 0.0
    %34 = vst [vmem:[#allocation2 + $0x80] sm:$0xff] 0.0
    %35 = vst [vmem:[#allocation2 + $0x88] sm:$0xff] 0.0
    %36 = vst [vmem:[#allocation2 + $0x90] sm:$0xff] 0.0
    %37 = vst [vmem:[#allocation2 + $0x98] sm:$0xff] 0.0
    %38 = vst [vmem:[#allocation2 + $0xa0] sm:$0xff] 0.0
    %39 = vst [vmem:[#allocation2 + $0xa8] sm:$0xff] 0.0
    %40 = vst [vmem:[#allocation2 + $0xb0] sm:$0xff] 0.0
    %41 = vst [vmem:[#allocation2 + $0xb8] sm:$0xff] 0.0
    %42 = vst [vmem:[#allocation2 + $0xc0] sm:$0xff] 0.0
    %43 = vst [vmem:[#allocation2 + $0xc8] sm:$0xff] 0.0
    %44 = vst [vmem:[#allocation2 + $0xd0] sm:$0xff] 0.0
    %45 = vst [vmem:[#allocation2 + $0xd8] sm:$0xff] 0.0
    %46 = vst [vmem:[#allocation2 + $0xe0] sm:$0xff] 0.0
    %47 = vst [vmem:[#allocation2 + $0xe8] sm:$0xff] 0.0
    %48 = vst [vmem:[#allocation2 + $0xf0] sm:$0xff] 0.0
    %49 = vst [vmem:[#allocation2 + $0xf8] sm:$0xff] 0.0
    %50 = vst [vmem:[#allocation2 + $0x100] sm:$0xff] 0.0
    %51 = vst [vmem:[#allocation2 + $0x108] sm:$0xff] 0.0
    %52 = vst [vmem:[#allocation2 + $0x110] sm:$0xff] 0.0
    %53 = vst [vmem:[#allocation2 + $0x118] sm:$0xff] 0.0
    %54 = vst [vmem:[#allocation2 + $0x120] sm:$0xff] 0.0
    %55 = vst [vmem:[#allocation2 + $0x128] sm:$0xff] 0.0
    %56 = vst [vmem:[#allocation2 + $0x130] sm:$0xff] 0.0
    %57 = vst [vmem:[#allocation2 + $0x138] sm:$0xff] 0.0
    %58 = vst [vmem:[#allocation2 + $0x140] sm:$0xff] 0.0
    %59 = vst [vmem:[#allocation2 + $0x148] sm:$0xff] 0.0
    %60 = vst [vmem:[#allocation2 + $0x150] sm:$0xff] 0.0
    %61 = vst [vmem:[#allocation2 + $0x158] sm:$0xff] 0.0
    %62 = vst [vmem:[#allocation2 + $0x160] sm:$0xff] 0.0
    %63 = vst [vmem:[#allocation2 + $0x168] sm:$0xff] 0.0
    %64 = vst [vmem:[#allocation2 + $0x170] sm:$0xff] 0.0
    %65 = vst [vmem:[#allocation2 + $0x178] sm:$0xff] 0.0
    %66 = vst [vmem:[#allocation2 + $0x180] sm:$0xff] 0.0
    %67 = vst [vmem:[#allocation2 + $0x188] sm:$0xff] 0.0
    %68 = vst [vmem:[#allocation2 + $0x190] sm:$0xff] 0.0
    %69 = vst [vmem:[#allocation2 + $0x198] sm:$0xff] 0.0
    %70 = vst [vmem:[#allocation2 + $0x1a0] sm:$0xff] 0.0
    %71 = vst [vmem:[#allocation2 + $0x1a8] sm:$0xff] 0.0
    %72 = vst [vmem:[#allocation2 + $0x1b0] sm:$0xff] 0.0
    %73 = vst [vmem:[#allocation2 + $0x1b8] sm:$0xff] 0.0
    %74 = vst [vmem:[#allocation2 + $0x1c0] sm:$0xff] 0.0
    %75 = vst [vmem:[#allocation2 + $0x1c8] sm:$0xff] 0.0
    %76 = vst [vmem:[#allocation2 + $0x1d0] sm:$0xff] 0.0
    %77 = vst [vmem:[#allocation2 + $0x1d8] sm:$0xff] 0.0
    %78 = vst [vmem:[#allocation2 + $0x1e0] sm:$0xff] 0.0
    %79 = vst [vmem:[#allocation2 + $0x1e8] sm:$0xff] 0.0
    %80 = vst [vmem:[#allocation2 + $0x1f0] sm:$0xff] 0.0
    %81 = vst [vmem:[#allocation2 + $0x1f8] sm:$0xff] 0.0
  $region17: #{resnet_generator_forward.49} parent=0 // pred_fallthru
    _
  %v82 = vld [vmem:[%s1] sm:$0xf]
  %v83 = vld [vmem:[%s1 + $0x4] sm:$0xf]
  %v84 = vld [vmem:[%s1 + $0x8] sm:$0xf]
  %v85 = vld [vmem:[%s1 + $0xc] sm:$0xf]
  %v86 = vld [vmem:[%s1 + $0x10] sm:$0xf]
  %v87 = vld [vmem:[%s1 + $0x14] sm:$0xf]
  %v88 = vld [vmem:[%s1 + $0x18] sm:$0xf]
  %v89 = vld [vmem:[%s1 + $0x1c] sm:$0xf]
  %v90 = vld [vmem:[%s1 + $0x20] sm:$0xf]
  %v91 = vld [vmem:[%s1 + $0x24] sm:$0xf]
  %v92 = vld [vmem:[%s1 + $0x28] sm:$0xf]
  %v93 = vld [vmem:[%s1 + $0x2c] sm:$0xf]
  %v94 = vld [vmem:[%s1 + $0x30] sm:$0xf]
  %v95 = vld [vmem:[%s1 + $0x34] sm:$0xf]
  %v96 = vld [vmem:[%s1 + $0x38] sm:$0xf]
  %v97 = vld [vmem:[%s1 + $0x3c] sm:$0xf]
  %v98 = vld [vmem:[%s1 + $0x40] sm:$0xf]
  %v99 = vld [vmem:[%s1 + $0x44] sm:$0xf]
  %v100 = vld [vmem:[%s1 + $0x48] sm:$0xf]
  %v101 = vld [vmem:[%s1 + $0x4c] sm:$0xf]
  %v102 = vld [vmem:[%s1 + $0x50] sm:$0xf]
  %v103 = vld [vmem:[%s1 + $0x54] sm:$0xf]
  %v104 = vld [vmem:[%s1 + $0x58] sm:$0xf]
  %v105 = vld [vmem:[%s1 + $0x5c] sm:$0xf]
  %v106 = vld [vmem:[%s1 + $0x60] sm:$0xf]
  %v107 = vld [vmem:[%s1 + $0x64] sm:$0xf]
  %v108 = vld [vmem:[%s1 + $0x68] sm:$0xf]
  %v109 = vld [vmem:[%s1 + $0x6c] sm:$0xf]
  %v110 = vld [vmem:[%s1 + $0x70] sm:$0xf]
  %v111 = vld [vmem:[%s1 + $0x74] sm:$0xf]
  %v112 = vld [vmem:[%s1 + $0x78] sm:$0xf]
  %v113 = vld [vmem:[%s1 + $0x7c] sm:$0xf]
  %v114 = vld [vmem:[%s1 + $0x80] sm:$0xf]
  %v115 = vld [vmem:[%s1 + $0x84] sm:$0xf]
  %v116 = vld [vmem:[%s1 + $0x88] sm:$0xf]
  %v117 = vld [vmem:[%s1 + $0x8c] sm:$0xf]
  %v118 = vld [vmem:[%s1 + $0x90] sm:$0xf]
  %v119 = vld [vmem:[%s1 + $0x94] sm:$0xf]
  %v120 = vld [vmem:[%s1 + $0x98] sm:$0xf]
  %v121 = vld [vmem:[%s1 + $0x9c] sm:$0xf]
  %v122 = vld [vmem:[%s1 + $0xa0] sm:$0xf]
  %v123 = vld [vmem:[%s1 + $0xa4] sm:$0xf]
  %v124 = vld [vmem:[%s1 + $0xa8] sm:$0xf]
  %v125 = vld [vmem:[%s1 + $0xac] sm:$0xf]
  %v126 = vld [vmem:[%s1 + $0xb0] sm:$0xf]
  %v127 = vld [vmem:[%s1 + $0xb4] sm:$0xf]
  %v128 = vld [vmem:[%s1 + $0xb8] sm:$0xf]
  %v129 = vld [vmem:[%s1 + $0xbc] sm:$0xf]
  %v130 = vld [vmem:[%s1 + $0xc0] sm:$0xf]
  %v131 = vld [vmem:[%s1 + $0xc4] sm:$0xf]
  %v132 = vld [vmem:[%s1 + $0xc8] sm:$0xf]
  %v133 = vld [vmem:[%s1 + $0xcc] sm:$0xf]
  %v134 = vld [vmem:[%s1 + $0xd0] sm:$0xf]
  %v135 = vld [vmem:[%s1 + $0xd4] sm:$0xf]
  %v136 = vld [vmem:[%s1 + $0xd8] sm:$0xf]
  %v137 = vld [vmem:[%s1 + $0xdc] sm:$0xf]
  %v138 = vld [vmem:[%s1 + $0xe0] sm:$0xf]
  %v139 = vld [vmem:[%s1 + $0xe4] sm:$0xf]
  %v140 = vld [vmem:[%s1 + $0xe8] sm:$0xf]
  %v141 = vld [vmem:[%s1 + $0xec] sm:$0xf]
  %v142 = vld [vmem:[%s1 + $0xf0] sm:$0xf]
  %v143 = vld [vmem:[%s1 + $0xf4] sm:$0xf]
  %v144 = vld [vmem:[%s1 + $0xf8] sm:$0xf]
  %v145 = vld [vmem:[%s1 + $0xfc] sm:$0xf]
  %v146 = vld [vmem:[#allocation2] sm:$0xff]
  %v147 = vld [vmem:[#allocation2 + $0x8] sm:$0xff]
  %v148 = vld [vmem:[#allocation2 + $0x10] sm:$0xff]
  %v149 = vld [vmem:[#allocation2 + $0x18] sm:$0xff]
  %v150 = vld [vmem:[#allocation2 + $0x20] sm:$0xff]
  %v151 = vld [vmem:[#allocation2 + $0x28] sm:$0xff]
  %v152 = vld [vmem:[#allocation2 + $0x30] sm:$0xff]
  %v153 = vld [vmem:[#allocation2 + $0x38] sm:$0xff]
  %v154 = vld [vmem:[#allocation2 + $0x40] sm:$0xff]
  %v155 = vld [vmem:[#allocation2 + $0x48] sm:$0xff]
  %v156 = vld [vmem:[#allocation2 + $0x50] sm:$0xff]
  %v157 = vld [vmem:[#allocation2 + $0x58] sm:$0xff]
  %v158 = vld [vmem:[#allocation2 + $0x60] sm:$0xff]
  %v159 = vld [vmem:[#allocation2 + $0x68] sm:$0xff]
  %v160 = vld [vmem:[#allocation2 + $0x70] sm:$0xff]
  %v161 = vld [vmem:[#allocation2 + $0x78] sm:$0xff]
  %v162 = vld [vmem:[#allocation2 + $0x80] sm:$0xff]
  %v163 = vld [vmem:[#allocation2 + $0x88] sm:$0xff]
  %v164 = vld [vmem:[#allocation2 + $0x90] sm:$0xff]
  %v165 = vld [vmem:[#allocation2 + $0x98] sm:$0xff]
  %v166 = vld [vmem:[#allocation2 + $0xa0] sm:$0xff]
  %v167 = vld [vmem:[#allocation2 + $0xa8] sm:$0xff]
  %v168 = vld [vmem:[#allocation2 + $0xb0] sm:$0xff]
  %v169 = vld [vmem:[#allocation2 + $0xb8] sm:$0xff]
  %v170 = vld [vmem:[#allocation2 + $0xc0] sm:$0xff]
  %v171 = vld [vmem:[#allocation2 + $0xc8] sm:$0xff]
  %v172 = vld [vmem:[#allocation2 + $0xd0] sm:$0xff]
  %v173 = vld [vmem:[#allocation2 + $0xd8] sm:$0xff]
  %v174 = vld [vmem:[#allocation2 + $0xe0] sm:$0xff]
  %v175 = vld [vmem:[#allocation2 + $0xe8] sm:$0xff]
  %v176 = vld [vmem:[#allocation2 + $0xf0] sm:$0xff]
  %v177 = vld [vmem:[#allocation2 + $0xf8] sm:$0xff]
  %v178 = vld [vmem:[#allocation2 + $0x100] sm:$0xff]
  %v179 = vld [vmem:[#allocation2 + $0x108] sm:$0xff]
  %v180 = vld [vmem:[#allocation2 + $0x110] sm:$0xff]
  %v181 = vld [vmem:[#allocation2 + $0x118] sm:$0xff]
  %v182 = vld [vmem:[#allocation2 + $0x120] sm:$0xff]
  %v183 = vld [vmem:[#allocation2 + $0x128] sm:$0xff]
  %v184 = vld [vmem:[#allocation2 + $0x130] sm:$0xff]
  %v185 = vld [vmem:[#allocation2 + $0x138] sm:$0xff]
  %v186 = vld [vmem:[#allocation2 + $0x140] sm:$0xff]
  %v187 = vld [vmem:[#allocation2 + $0x148] sm:$0xff]
  %v188 = vld [vmem:[#allocation2 + $0x150] sm:$0xff]
  %v189 = vld [vmem:[#allocation2 + $0x158] sm:$0xff]
  %v190 = vld [vmem:[#allocation2 + $0x160] sm:$0xff]
  %v191 = vld [vmem:[#allocation2 + $0x168] sm:$0xff]
  %v192 = vld [vmem:[#allocation2 + $0x170] sm:$0xff]
  %v193 = vld [vmem:[#allocation2 + $0x178] sm:$0xff]
  %v194 = vld [vmem:[#allocation2 + $0x180] sm:$0xff]
  %v195 = vld [vmem:[#allocation2 + $0x188] sm:$0xff]
  %v196 = vld [vmem:[#allocation2 + $0x190] sm:$0xff]
  %v197 = vld [vmem:[#allocation2 + $0x198] sm:$0xff]
  %v198 = vld [vmem:[#allocation2 + $0x1a0] sm:$0xff]
  %v199 = vld [vmem:[#allocation2 + $0x1a8] sm:$0xff]
  %v200 = vld [vmem:[#allocation2 + $0x1b0] sm:$0xff]
  %v201 = vld [vmem:[#allocation2 + $0x1b8] sm:$0xff]
  %v202 = vld [vmem:[#allocation2 + $0x1c0] sm:$0xff]
  %v203 = vld [vmem:[#allocation2 + $0x1c8] sm:$0xff]
  %v204 = vld [vmem:[#allocation2 + $0x1d0] sm:$0xff]
  %v205 = vld [vmem:[#allocation2 + $0x1d8] sm:$0xff]
  %v206 = vld [vmem:[#allocation2 + $0x1e0] sm:$0xff]
  %v207 = vld [vmem:[#allocation2 + $0x1e8] sm:$0xff]
  %v208 = vld [vmem:[#allocation2 + $0x1f0] sm:$0xff]
  %v209 = vld [vmem:[#allocation2 + $0x1f8] sm:$0xff]
  %v210 = vld [vmem:[%s0] sm:$0xff]
  %v211 = vld [vmem:[%s0 + $0x8] sm:$0xff]
  %v212 = vld [vmem:[%s0 + $0x10] sm:$0xff]
  %v213 = vld [vmem:[%s0 + $0x18] sm:$0xff]
  %v214 = vld [vmem:[%s0 + $0x20] sm:$0xff]
  %v215 = vld [vmem:[%s0 + $0x28] sm:$0xff]
  %v216 = vld [vmem:[%s0 + $0x30] sm:$0xff]
  %v217 = vld [vmem:[%s0 + $0x38] sm:$0xff]
  %v218 = vld [vmem:[%s0 + $0x40] sm:$0xff]
  %v219 = vld [vmem:[%s0 + $0x48] sm:$0xff]
  %v220 = vld [vmem:[%s0 + $0x50] sm:$0xff]
  %v221 = vld [vmem:[%s0 + $0x58] sm:$0xff]
  %v222 = vld [vmem:[%s0 + $0x60] sm:$0xff]
  %v223 = vld [vmem:[%s0 + $0x68] sm:$0xff]
  %v224 = vld [vmem:[%s0 + $0x70] sm:$0xff]
  %v225 = vld [vmem:[%s0 + $0x78] sm:$0xff]
  %v226 = vld [vmem:[%s0 + $0x80] sm:$0xff]
  %v227 = vld [vmem:[%s0 + $0x88] sm:$0xff]
  %v228 = vld [vmem:[%s0 + $0x90] sm:$0xff]
  %v229 = vld [vmem:[%s0 + $0x98] sm:$0xff]
  %v230 = vld [vmem:[%s0 + $0xa0] sm:$0xff]
  %v231 = vld [vmem:[%s0 + $0xa8] sm:$0xff]
  %v232 = vld [vmem:[%s0 + $0xb0] sm:$0xff]
  %v233 = vld [vmem:[%s0 + $0xb8] sm:$0xff]
  %v234 = vld [vmem:[%s0 + $0xc0] sm:$0xff]
  %v235 = vld [vmem:[%s0 + $0xc8] sm:$0xff]
  %v236 = vld [vmem:[%s0 + $0xd0] sm:$0xff]
  %v237 = vld [vmem:[%s0 + $0xd8] sm:$0xff]
  %v238 = vld [vmem:[%s0 + $0xe0] sm:$0xff]
  %v239 = vld [vmem:[%s0 + $0xe8] sm:$0xff]
  %v240 = vld [vmem:[%s0 + $0xf0] sm:$0xff]
  %v241 = vld [vmem:[%s0 + $0xf8] sm:$0xff]
  %v242 = vld [vmem:[%s0 + $0x100] sm:$0xff]
  %v243 = vld [vmem:[%s0 + $0x108] sm:$0xff]
  %v244 = vld [vmem:[%s0 + $0x110] sm:$0xff]
  %v245 = vld [vmem:[%s0 + $0x118] sm:$0xff]
  %v246 = vld [vmem:[%s0 + $0x120] sm:$0xff]
  %v247 = vld [vmem:[%s0 + $0x128] sm:$0xff]
  %v248 = vld [vmem:[%s0 + $0x130] sm:$0xff]
  %v249 = vld [vmem:[%s0 + $0x138] sm:$0xff]
  %v250 = vld [vmem:[%s0 + $0x140] sm:$0xff]
  %v251 = vld [vmem:[%s0 + $0x148] sm:$0xff]
  %v252 = vld [vmem:[%s0 + $0x150] sm:$0xff]
  %v253 = vld [vmem:[%s0 + $0x158] sm:$0xff]
  %v254 = vld [vmem:[%s0 + $0x160] sm:$0xff]
  %v255 = vld [vmem:[%s0 + $0x168] sm:$0xff]
  %v256 = vld [vmem:[%s0 + $0x170] sm:$0xff]
  %v257 = vld [vmem:[%s0 + $0x178] sm:$0xff]
  %v258 = vld [vmem:[%s0 + $0x180] sm:$0xff]
  %v259 = vld [vmem:[%s0 + $0x188] sm:$0xff]
  %v260 = vld [vmem:[%s0 + $0x190] sm:$0xff]
  %v261 = vld [vmem:[%s0 + $0x198] sm:$0xff]
  %v262 = vld [vmem:[%s0 + $0x1a0] sm:$0xff]
  %v263 = vld [vmem:[%s0 + $0x1a8] sm:$0xff]
  %v264 = vld [vmem:[%s0 + $0x1b0] sm:$0xff]
  %v265 = vld [vmem:[%s0 + $0x1b8] sm:$0xff]
  %v266 = vld [vmem:[%s0 + $0x1c0] sm:$0xff]
  %v267 = vld [vmem:[%s0 + $0x1c8] sm:$0xff]
  %v268 = vld [vmem:[%s0 + $0x1d0] sm:$0xff]
  %v269 = vld [vmem:[%s0 + $0x1d8] sm:$0xff]
  %v270 = vld [vmem:[%s0 + $0x1e0] sm:$0xff]
  %v271 = vld [vmem:[%s0 + $0x1e8] sm:$0xff]
  %v272 = vld [vmem:[%s0 + $0x1f0] sm:$0xff]
  %v273 = vld [vmem:[%s0 + $0x1f8] sm:$0xff]
  %v274 = vld [vmem:[%s0 + $0x200] sm:$0xff]
  %v275 = vld [vmem:[%s0 + $0x208] sm:$0xff]
  %v276 = vld [vmem:[%s0 + $0x210] sm:$0xff]
  %v277 = vld [vmem:[%s0 + $0x218] sm:$0xff]
  %v278 = vld [vmem:[%s0 + $0x220] sm:$0xff]
  %v279 = vld [vmem:[%s0 + $0x228] sm:$0xff]
  %v280 = vld [vmem:[%s0 + $0x230] sm:$0xff]
  %v281 = vld [vmem:[%s0 + $0x238] sm:$0xff]
  %v282 = vld [vmem:[%s0 + $0x240] sm:$0xff]
  %v283 = vld [vmem:[%s0 + $0x248] sm:$0xff]
  %v284 = vld [vmem:[%s0 + $0x250] sm:$0xff]
  %v285 = vld [vmem:[%s0 + $0x258] sm:$0xff]
  %v286 = vld [vmem:[%s0 + $0x260] sm:$0xff]
  %v287 = vld [vmem:[%s0 + $0x268] sm:$0xff]
  %v288 = vld [vmem:[%s0 + $0x270] sm:$0xff]
  %v289 = vld [vmem:[%s0 + $0x278] sm:$0xff]
  %v290 = vld [vmem:[%s0 + $0x280] sm:$0xff]
  %v291 = vld [vmem:[%s0 + $0x288] sm:$0xff]
  %v292 = vld [vmem:[%s0 + $0x290] sm:$0xff]
  %v293 = vld [vmem:[%s0 + $0x298] sm:$0xff]
  %v294 = vld [vmem:[%s0 + $0x2a0] sm:$0xff]
  %v295 = vld [vmem:[%s0 + $0x2a8] sm:$0xff]
  %v296 = vld [vmem:[%s0 + $0x2b0] sm:$0xff]
  %v297 = vld [vmem:[%s0 + $0x2b8] sm:$0xff]
  %v298 = vld [vmem:[%s0 + $0x2c0] sm:$0xff]
  %v299 = vld [vmem:[%s0 + $0x2c8] sm:$0xff]
  %v300 = vld [vmem:[%s0 + $0x2d0] sm:$0xff]
  %v301 = vld [vmem:[%s0 + $0x2d8] sm:$0xff]
  %v302 = vld [vmem:[%s0 + $0x2e0] sm:$0xff]
  %v303 = vld [vmem:[%s0 + $0x2e8] sm:$0xff]
  %v304 = vld [vmem:[%s0 + $0x2f0] sm:$0xff]
  %v305 = vld [vmem:[%s0 + $0x2f8] sm:$0xff]
  %v306 = vld [vmem:[%s0 + $0x300] sm:$0xff]
  %v307 = vld [vmem:[%s0 + $0x308] sm:$0xff]
  %v308 = vld [vmem:[%s0 + $0x310] sm:$0xff]
  %v309 = vld [vmem:[%s0 + $0x318] sm:$0xff]
  %v310 = vld [vmem:[%s0 + $0x320] sm:$0xff]
  %v311 = vld [vmem:[%s0 + $0x328] sm:$0xff]
  %v312 = vld [vmem:[%s0 + $0x330] sm:$0xff]
  %v313 = vld [vmem:[%s0 + $0x338] sm:$0xff]
  %v314 = vld [vmem:[%s0 + $0x340] sm:$0xff]
  %v315 = vld [vmem:[%s0 + $0x348] sm:$0xff]
  %v316 = vld [vmem:[%s0 + $0x350] sm:$0xff]
  %v317 = vld [vmem:[%s0 + $0x358] sm:$0xff]
  %v318 = vld [vmem:[%s0 + $0x360] sm:$0xff]
  %v319 = vld [vmem:[%s0 + $0x368] sm:$0xff]
  %v320 = vld [vmem:[%s0 + $0x370] sm:$0xff]
  %v321 = vld [vmem:[%s0 + $0x378] sm:$0xff]
  %v322 = vld [vmem:[%s0 + $0x380] sm:$0xff]
  %v323 = vld [vmem:[%s0 + $0x388] sm:$0xff]
  %v324 = vld [vmem:[%s0 + $0x390] sm:$0xff]
  %v325 = vld [vmem:[%s0 + $0x398] sm:$0xff]
  %v326 = vld [vmem:[%s0 + $0x3a0] sm:$0xff]
  %v327 = vld [vmem:[%s0 + $0x3a8] sm:$0xff]
  %v328 = vld [vmem:[%s0 + $0x3b0] sm:$0xff]
  %v329 = vld [vmem:[%s0 + $0x3b8] sm:$0xff]
  %v330 = vld [vmem:[%s0 + $0x3c0] sm:$0xff]
  %v331 = vld [vmem:[%s0 + $0x3c8] sm:$0xff]
  %v332 = vld [vmem:[%s0 + $0x3d0] sm:$0xff]
  %v333 = vld [vmem:[%s0 + $0x3d8] sm:$0xff]
  %v334 = vld [vmem:[%s0 + $0x3e0] sm:$0xff]
  %v335 = vld [vmem:[%s0 + $0x3e8] sm:$0xff]
  %v336 = vld [vmem:[%s0 + $0x3f0] sm:$0xff]
  %v337 = vld [vmem:[%s0 + $0x3f8] sm:$0xff]
  %v466 = vunpack.c.l.b16 %v210
  %v467 = vunpack.c.h.b16 %v210
  %v468 = vunpack.c.l.b16 %v211
  %v469 = vunpack.c.h.b16 %v211
  %v470 = vunpack.c.l.b16 %v212
  %v471 = vunpack.c.h.b16 %v212
  %v472 = vunpack.c.l.b16 %v213
  %v473 = vunpack.c.h.b16 %v213
  %v474 = vunpack.c.l.b16 %v214
  %v475 = vunpack.c.h.b16 %v214
  %v476 = vunpack.c.l.b16 %v215
  %v477 = vunpack.c.h.b16 %v215
  %v478 = vunpack.c.l.b16 %v216
  %v479 = vunpack.c.h.b16 %v216
  %v480 = vunpack.c.l.b16 %v217
  %v481 = vunpack.c.h.b16 %v217
  %v482 = vunpack.c.l.b16 %v218
  %v483 = vunpack.c.h.b16 %v218
  %v484 = vunpack.c.l.b16 %v219
  %v485 = vunpack.c.h.b16 %v219
  %v486 = vunpack.c.l.b16 %v220
  %v487 = vunpack.c.h.b16 %v220
  %v488 = vunpack.c.l.b16 %v221
  %v489 = vunpack.c.h.b16 %v221
  %v490 = vunpack.c.l.b16 %v222
  %v491 = vunpack.c.h.b16 %v222
  %v492 = vunpack.c.l.b16 %v223
  %v493 = vunpack.c.h.b16 %v223
  %v494 = vunpack.c.l.b16 %v224
  %v495 = vunpack.c.h.b16 %v224
  %v496 = vunpack.c.l.b16 %v225
  %v497 = vunpack.c.h.b16 %v225
  %v498 = vunpack.c.l.b16 %v226
  %v499 = vunpack.c.h.b16 %v226
  %v500 = vunpack.c.l.b16 %v227
  %v501 = vunpack.c.h.b16 %v227
  %v502 = vunpack.c.l.b16 %v228
  %v503 = vunpack.c.h.b16 %v228
  %v504 = vunpack.c.l.b16 %v229
  %v505 = vunpack.c.h.b16 %v229
  %v506 = vunpack.c.l.b16 %v230
  %v507 = vunpack.c.h.b16 %v230
  %v508 = vunpack.c.l.b16 %v231
  %v509 = vunpack.c.h.b16 %v231
  %v510 = vunpack.c.l.b16 %v232
  %v511 = vunpack.c.h.b16 %v232
  %v512 = vunpack.c.l.b16 %v233
  %v513 = vunpack.c.h.b16 %v233
  %v514 = vunpack.c.l.b16 %v234
  %v515 = vunpack.c.h.b16 %v234
  %v516 = vunpack.c.l.b16 %v235
  %v517 = vunpack.c.h.b16 %v235
  %v518 = vunpack.c.l.b16 %v236
  %v519 = vunpack.c.h.b16 %v236
  %v520 = vunpack.c.l.b16 %v237
  %v521 = vunpack.c.h.b16 %v237
  %v522 = vunpack.c.l.b16 %v238
  %v523 = vunpack.c.h.b16 %v238
  %v524 = vunpack.c.l.b16 %v239
  %v525 = vunpack.c.h.b16 %v239
  %v526 = vunpack.c.l.b16 %v240
  %v527 = vunpack.c.h.b16 %v240
  %v528 = vunpack.c.l.b16 %v241
  %v529 = vunpack.c.h.b16 %v241
  %v530 = vunpack.c.l.b16 %v242
  %v531 = vunpack.c.h.b16 %v242
  %v532 = vunpack.c.l.b16 %v243
  %v533 = vunpack.c.h.b16 %v243
  %v534 = vunpack.c.l.b16 %v244
  %v535 = vunpack.c.h.b16 %v244
  %v536 = vunpack.c.l.b16 %v245
  %v537 = vunpack.c.h.b16 %v245
  %v538 = vunpack.c.l.b16 %v246
  %v539 = vunpack.c.h.b16 %v246
  %v540 = vunpack.c.l.b16 %v247
  %v541 = vunpack.c.h.b16 %v247
  %v542 = vunpack.c.l.b16 %v248
  %v543 = vunpack.c.h.b16 %v248
  %v544 = vunpack.c.l.b16 %v249
  %v545 = vunpack.c.h.b16 %v249
  %v546 = vunpack.c.l.b16 %v250
  %v547 = vunpack.c.h.b16 %v250
  %v548 = vunpack.c.l.b16 %v251
  %v549 = vunpack.c.h.b16 %v251
  %v550 = vunpack.c.l.b16 %v252
  %v551 = vunpack.c.h.b16 %v252
  %v552 = vunpack.c.l.b16 %v253
  %v553 = vunpack.c.h.b16 %v253
  %v554 = vunpack.c.l.b16 %v254
  %v555 = vunpack.c.h.b16 %v254
  %v556 = vunpack.c.l.b16 %v255
  %v557 = vunpack.c.h.b16 %v255
  %v558 = vunpack.c.l.b16 %v256
  %v559 = vunpack.c.h.b16 %v256
  %v560 = vunpack.c.l.b16 %v257
  %v561 = vunpack.c.h.b16 %v257
  %v562 = vunpack.c.l.b16 %v258
  %v563 = vunpack.c.h.b16 %v258
  %v564 = vunpack.c.l.b16 %v259
  %v565 = vunpack.c.h.b16 %v259
  %v566 = vunpack.c.l.b16 %v260
  %v567 = vunpack.c.h.b16 %v260
  %v568 = vunpack.c.l.b16 %v261
  %v569 = vunpack.c.h.b16 %v261
  %v570 = vunpack.c.l.b16 %v262
  %v571 = vunpack.c.h.b16 %v262
  %v572 = vunpack.c.l.b16 %v263
  %v573 = vunpack.c.h.b16 %v263
  %v574 = vunpack.c.l.b16 %v264
  %v575 = vunpack.c.h.b16 %v264
  %v576 = vunpack.c.l.b16 %v265
  %v577 = vunpack.c.h.b16 %v265
  %v578 = vunpack.c.l.b16 %v266
  %v579 = vunpack.c.h.b16 %v266
  %v580 = vunpack.c.l.b16 %v267
  %v581 = vunpack.c.h.b16 %v267
  %v582 = vunpack.c.l.b16 %v268
  %v583 = vunpack.c.h.b16 %v268
  %v584 = vunpack.c.l.b16 %v269
  %v585 = vunpack.c.h.b16 %v269
  %v586 = vunpack.c.l.b16 %v270
  %v587 = vunpack.c.h.b16 %v270
  %v588 = vunpack.c.l.b16 %v271
  %v589 = vunpack.c.h.b16 %v271
  %v590 = vunpack.c.l.b16 %v272
  %v591 = vunpack.c.h.b16 %v272
  %v592 = vunpack.c.l.b16 %v273
  %v593 = vunpack.c.h.b16 %v273
  %v594 = vunpack.c.l.b16 %v274
  %v595 = vunpack.c.h.b16 %v274
  %v596 = vunpack.c.l.b16 %v275
  %v597 = vunpack.c.h.b16 %v275
  %v598 = vunpack.c.l.b16 %v276
  %v599 = vunpack.c.h.b16 %v276
  %v600 = vunpack.c.l.b16 %v277
  %v601 = vunpack.c.h.b16 %v277
  %v602 = vunpack.c.l.b16 %v278
  %v603 = vunpack.c.h.b16 %v278
  %v604 = vunpack.c.l.b16 %v279
  %v605 = vunpack.c.h.b16 %v279
  %v606 = vunpack.c.l.b16 %v280
  %v607 = vunpack.c.h.b16 %v280
  %v608 = vunpack.c.l.b16 %v281
  %v609 = vunpack.c.h.b16 %v281
  %v610 = vunpack.c.l.b16 %v282
  %v611 = vunpack.c.h.b16 %v282
  %v612 = vunpack.c.l.b16 %v283
  %v613 = vunpack.c.h.b16 %v283
  %v614 = vunpack.c.l.b16 %v284
  %v615 = vunpack.c.h.b16 %v284
  %v616 = vunpack.c.l.b16 %v285
  %v617 = vunpack.c.h.b16 %v285
  %v618 = vunpack.c.l.b16 %v286
  %v619 = vunpack.c.h.b16 %v286
  %v620 = vunpack.c.l.b16 %v287
  %v621 = vunpack.c.h.b16 %v287
  %v622 = vunpack.c.l.b16 %v288
  %v623 = vunpack.c.h.b16 %v288
  %v624 = vunpack.c.l.b16 %v289
  %v625 = vunpack.c.h.b16 %v289
  %v626 = vunpack.c.l.b16 %v290
  %v627 = vunpack.c.h.b16 %v290
  %v628 = vunpack.c.l.b16 %v291
  %v629 = vunpack.c.h.b16 %v291
  %v630 = vunpack.c.l.b16 %v292
  %v631 = vunpack.c.h.b16 %v292
  %v632 = vunpack.c.l.b16 %v293
  %v633 = vunpack.c.h.b16 %v293
  %v634 = vunpack.c.l.b16 %v294
  %v635 = vunpack.c.h.b16 %v294
  %v636 = vunpack.c.l.b16 %v295
  %v637 = vunpack.c.h.b16 %v295
  %v638 = vunpack.c.l.b16 %v296
  %v639 = vunpack.c.h.b16 %v296
  %v640 = vunpack.c.l.b16 %v297
  %v641 = vunpack.c.h.b16 %v297
  %v642 = vunpack.c.l.b16 %v298
  %v643 = vunpack.c.h.b16 %v298
  %v644 = vunpack.c.l.b16 %v299
  %v645 = vunpack.c.h.b16 %v299
  %v646 = vunpack.c.l.b16 %v300
  %v647 = vunpack.c.h.b16 %v300
  %v648 = vunpack.c.l.b16 %v301
  %v649 = vunpack.c.h.b16 %v301
  %v650 = vunpack.c.l.b16 %v302
  %v651 = vunpack.c.h.b16 %v302
  %v652 = vunpack.c.l.b16 %v303
  %v653 = vunpack.c.h.b16 %v303
  %v654 = vunpack.c.l.b16 %v304
  %v655 = vunpack.c.h.b16 %v304
  %v656 = vunpack.c.l.b16 %v305
  %v657 = vunpack.c.h.b16 %v305
  %v658 = vunpack.c.l.b16 %v306
  %v659 = vunpack.c.h.b16 %v306
  %v660 = vunpack.c.l.b16 %v307
  %v661 = vunpack.c.h.b16 %v307
  %v662 = vunpack.c.l.b16 %v308
  %v663 = vunpack.c.h.b16 %v308
  %v664 = vunpack.c.l.b16 %v309
  %v665 = vunpack.c.h.b16 %v309
  %v666 = vunpack.c.l.b16 %v310
  %v667 = vunpack.c.h.b16 %v310
  %v668 = vunpack.c.l.b16 %v311
  %v669 = vunpack.c.h.b16 %v311
  %v670 = vunpack.c.l.b16 %v312
  %v671 = vunpack.c.h.b16 %v312
  %v672 = vunpack.c.l.b16 %v313
  %v673 = vunpack.c.h.b16 %v313
  %v674 = vunpack.c.l.b16 %v314
  %v675 = vunpack.c.h.b16 %v314
  %v676 = vunpack.c.l.b16 %v315
  %v677 = vunpack.c.h.b16 %v315
  %v678 = vunpack.c.l.b16 %v316
  %v679 = vunpack.c.h.b16 %v316
  %v680 = vunpack.c.l.b16 %v317
  %v681 = vunpack.c.h.b16 %v317
  %v682 = vunpack.c.l.b16 %v318
  %v683 = vunpack.c.h.b16 %v318
  %v684 = vunpack.c.l.b16 %v319
  %v685 = vunpack.c.h.b16 %v319
  %v686 = vunpack.c.l.b16 %v320
  %v687 = vunpack.c.h.b16 %v320
  %v688 = vunpack.c.l.b16 %v321
  %v689 = vunpack.c.h.b16 %v321
  %v690 = vunpack.c.l.b16 %v322
  %v691 = vunpack.c.h.b16 %v322
  %v692 = vunpack.c.l.b16 %v323
  %v693 = vunpack.c.h.b16 %v323
  %v694 = vunpack.c.l.b16 %v324
  %v695 = vunpack.c.h.b16 %v324
  %v696 = vunpack.c.l.b16 %v325
  %v697 = vunpack.c.h.b16 %v325
  %v698 = vunpack.c.l.b16 %v326
  %v699 = vunpack.c.h.b16 %v326
  %v700 = vunpack.c.l.b16 %v327
  %v701 = vunpack.c.h.b16 %v327
  %v702 = vunpack.c.l.b16 %v328
  %v703 = vunpack.c.h.b16 %v328
  %v704 = vunpack.c.l.b16 %v329
  %v705 = vunpack.c.h.b16 %v329
  %v706 = vunpack.c.l.b16 %v330
  %v707 = vunpack.c.h.b16 %v330
  %v708 = vunpack.c.l.b16 %v331
  %v709 = vunpack.c.h.b16 %v331
  %v710 = vunpack.c.l.b16 %v332
  %v711 = vunpack.c.h.b16 %v332
  %v712 = vunpack.c.l.b16 %v333
  %v713 = vunpack.c.h.b16 %v333
  %v714 = vunpack.c.l.b16 %v334
  %v715 = vunpack.c.h.b16 %v334
  %v716 = vunpack.c.l.b16 %v335
  %v717 = vunpack.c.h.b16 %v335
  %v718 = vunpack.c.l.b16 %v336
  %v719 = vunpack.c.h.b16 %v336
  %v720 = vunpack.c.l.b16 %v337
  %v721 = vunpack.c.h.b16 %v337
  %v722 = vpack.c.b16 %v470, %v466
  %v723 = vpack.c.b16 %v471, %v467
  %v724 = vpack.c.b16 %v472, %v468
  %v725 = vpack.c.b16 %v473, %v469
  %v726 = vpack.c.b16 %v478, %v474
  %v727 = vpack.c.b16 %v479, %v475
  %v728 = vpack.c.b16 %v480, %v476
  %v729 = vpack.c.b16 %v481, %v477
  %v730 = vpack.c.b16 %v486, %v482
  %v731 = vpack.c.b16 %v487, %v483
  %v732 = vpack.c.b16 %v488, %v484
  %v733 = vpack.c.b16 %v489, %v485
  %v734 = vpack.c.b16 %v494, %v490
  %v735 = vpack.c.b16 %v495, %v491
  %v736 = vpack.c.b16 %v496, %v492
  %v737 = vpack.c.b16 %v497, %v493
  %v738 = vpack.c.b16 %v502, %v498
  %v739 = vpack.c.b16 %v503, %v499
  %v740 = vpack.c.b16 %v504, %v500
  %v741 = vpack.c.b16 %v505, %v501
  %v742 = vpack.c.b16 %v510, %v506
  %v743 = vpack.c.b16 %v511, %v507
  %v744 = vpack.c.b16 %v512, %v508
  %v745 = vpack.c.b16 %v513, %v509
  %v746 = vpack.c.b16 %v518, %v514
  %v747 = vpack.c.b16 %v519, %v515
  %v748 = vpack.c.b16 %v520, %v516
  %v749 = vpack.c.b16 %v521, %v517
  %v750 = vpack.c.b16 %v526, %v522
  %v751 = vpack.c.b16 %v527, %v523
  %v752 = vpack.c.b16 %v528, %v524
  %v753 = vpack.c.b16 %v529, %v525
  %v754 = vpack.c.b16 %v534, %v530
  %v755 = vpack.c.b16 %v535, %v531
  %v756 = vpack.c.b16 %v536, %v532
  %v757 = vpack.c.b16 %v537, %v533
  %v758 = vpack.c.b16 %v542, %v538
  %v759 = vpack.c.b16 %v543, %v539
  %v760 = vpack.c.b16 %v544, %v540
  %v761 = vpack.c.b16 %v545, %v541
  %v762 = vpack.c.b16 %v550, %v546
  %v763 = vpack.c.b16 %v551, %v547
  %v764 = vpack.c.b16 %v552, %v548
  %v765 = vpack.c.b16 %v553, %v549
  %v766 = vpack.c.b16 %v558, %v554
  %v767 = vpack.c.b16 %v559, %v555
  %v768 = vpack.c.b16 %v560, %v556
  %v769 = vpack.c.b16 %v561, %v557
  %v770 = vpack.c.b16 %v566, %v562
  %v771 = vpack.c.b16 %v567, %v563
  %v772 = vpack.c.b16 %v568, %v564
  %v773 = vpack.c.b16 %v569, %v565
  %v774 = vpack.c.b16 %v574, %v570
  %v775 = vpack.c.b16 %v575, %v571
  %v776 = vpack.c.b16 %v576, %v572
  %v777 = vpack.c.b16 %v577, %v573
  %v778 = vpack.c.b16 %v582, %v578
  %v779 = vpack.c.b16 %v583, %v579
  %v780 = vpack.c.b16 %v584, %v580
  %v781 = vpack.c.b16 %v585, %v581
  %v782 = vpack.c.b16 %v590, %v586
  %v783 = vpack.c.b16 %v591, %v587
  %v784 = vpack.c.b16 %v592, %v588
  %v785 = vpack.c.b16 %v593, %v589
  %v786 = vpack.c.b16 %v598, %v594
  %v787 = vpack.c.b16 %v599, %v595
  %v788 = vpack.c.b16 %v600, %v596
  %v789 = vpack.c.b16 %v601, %v597
  %v790 = vpack.c.b16 %v606, %v602
  %v791 = vpack.c.b16 %v607, %v603
  %v792 = vpack.c.b16 %v608, %v604
  %v793 = vpack.c.b16 %v609, %v605
  %v794 = vpack.c.b16 %v614, %v610
  %v795 = vpack.c.b16 %v615, %v611
  %v796 = vpack.c.b16 %v616, %v612
  %v797 = vpack.c.b16 %v617, %v613
  %v798 = vpack.c.b16 %v622, %v618
  %v799 = vpack.c.b16 %v623, %v619
  %v800 = vpack.c.b16 %v624, %v620
  %v801 = vpack.c.b16 %v625, %v621
  %v802 = vpack.c.b16 %v630, %v626
  %v803 = vpack.c.b16 %v631, %v627
  %v804 = vpack.c.b16 %v632, %v628
  %v805 = vpack.c.b16 %v633, %v629
  %v806 = vpack.c.b16 %v638, %v634
  %v807 = vpack.c.b16 %v639, %v635
  %v808 = vpack.c.b16 %v640, %v636
  %v809 = vpack.c.b16 %v641, %v637
  %v810 = vpack.c.b16 %v646, %v642
  %v811 = vpack.c.b16 %v647, %v643
  %v812 = vpack.c.b16 %v648, %v644
  %v813 = vpack.c.b16 %v649, %v645
  %v814 = vpack.c.b16 %v654, %v650
  %v815 = vpack.c.b16 %v655, %v651
  %v816 = vpack.c.b16 %v656, %v652
  %v817 = vpack.c.b16 %v657, %v653
  %v818 = vpack.c.b16 %v662, %v658
  %v819 = vpack.c.b16 %v663, %v659
  %v820 = vpack.c.b16 %v664, %v660
  %v821 = vpack.c.b16 %v665, %v661
  %v822 = vpack.c.b16 %v670, %v666
  %v823 = vpack.c.b16 %v671, %v667
  %v824 = vpack.c.b16 %v672, %v668
  %v825 = vpack.c.b16 %v673, %v669
  %v826 = vpack.c.b16 %v678, %v674
  %v827 = vpack.c.b16 %v679, %v675
  %v828 = vpack.c.b16 %v680, %v676
  %v829 = vpack.c.b16 %v681, %v677
  %v830 = vpack.c.b16 %v686, %v682
  %v831 = vpack.c.b16 %v687, %v683
  %v832 = vpack.c.b16 %v688, %v684
  %v833 = vpack.c.b16 %v689, %v685
  %v834 = vpack.c.b16 %v694, %v690
  %v835 = vpack.c.b16 %v695, %v691
  %v836 = vpack.c.b16 %v696, %v692
  %v837 = vpack.c.b16 %v697, %v693
  %v838 = vpack.c.b16 %v702, %v698
  %v839 = vpack.c.b16 %v703, %v699
  %v840 = vpack.c.b16 %v704, %v700
  %v841 = vpack.c.b16 %v705, %v701
  %v842 = vpack.c.b16 %v710, %v706
  %v843 = vpack.c.b16 %v711, %v707
  %v844 = vpack.c.b16 %v712, %v708
  %v845 = vpack.c.b16 %v713, %v709
  %v846 = vpack.c.b16 %v718, %v714
  %v847 = vpack.c.b16 %v719, %v715
  %v848 = vpack.c.b16 %v720, %v716
  %v849 = vpack.c.b16 %v721, %v717
  %v1042 = vunpack.c.l.b16 %v82
  %v1043 = vunpack.c.l.b16 %v83
  %v1044 = vunpack.c.l.b16 %v84
  %v1045 = vunpack.c.l.b16 %v85
  %v1046 = vunpack.c.l.b16 %v86
  %v1047 = vunpack.c.l.b16 %v87
  %v1048 = vunpack.c.l.b16 %v88
  %v1049 = vunpack.c.l.b16 %v89
  %v1050 = vunpack.c.l.b16 %v90
  %v1051 = vunpack.c.l.b16 %v91
  %v1052 = vunpack.c.l.b16 %v92
  %v1053 = vunpack.c.l.b16 %v93
  %v1054 = vunpack.c.l.b16 %v94
  %v1055 = vunpack.c.l.b16 %v95
  %v1056 = vunpack.c.l.b16 %v96
  %v1057 = vunpack.c.l.b16 %v97
  %v1058 = vunpack.c.l.b16 %v98
  %v1059 = vunpack.c.l.b16 %v99
  %v1060 = vunpack.c.l.b16 %v100
  %v1061 = vunpack.c.l.b16 %v101
  %v1062 = vunpack.c.l.b16 %v102
  %v1063 = vunpack.c.l.b16 %v103
  %v1064 = vunpack.c.l.b16 %v104
  %v1065 = vunpack.c.l.b16 %v105
  %v1066 = vunpack.c.l.b16 %v106
  %v1067 = vunpack.c.l.b16 %v107
  %v1068 = vunpack.c.l.b16 %v108
  %v1069 = vunpack.c.l.b16 %v109
  %v1070 = vunpack.c.l.b16 %v110
  %v1071 = vunpack.c.l.b16 %v111
  %v1072 = vunpack.c.l.b16 %v112
  %v1073 = vunpack.c.l.b16 %v113
  %v1074 = vunpack.c.l.b16 %v114
  %v1075 = vunpack.c.l.b16 %v115
  %v1076 = vunpack.c.l.b16 %v116
  %v1077 = vunpack.c.l.b16 %v117
  %v1078 = vunpack.c.l.b16 %v118
  %v1079 = vunpack.c.l.b16 %v119
  %v1080 = vunpack.c.l.b16 %v120
  %v1081 = vunpack.c.l.b16 %v121
  %v1082 = vunpack.c.l.b16 %v122
  %v1083 = vunpack.c.l.b16 %v123
  %v1084 = vunpack.c.l.b16 %v124
  %v1085 = vunpack.c.l.b16 %v125
  %v1086 = vunpack.c.l.b16 %v126
  %v1087 = vunpack.c.l.b16 %v127
  %v1088 = vunpack.c.l.b16 %v128
  %v1089 = vunpack.c.l.b16 %v129
  %v1090 = vunpack.c.l.b16 %v130
  %v1091 = vunpack.c.l.b16 %v131
  %v1092 = vunpack.c.l.b16 %v132
  %v1093 = vunpack.c.l.b16 %v133
  %v1094 = vunpack.c.l.b16 %v134
  %v1095 = vunpack.c.l.b16 %v135
  %v1096 = vunpack.c.l.b16 %v136
  %v1097 = vunpack.c.l.b16 %v137
  %v1098 = vunpack.c.l.b16 %v138
  %v1099 = vunpack.c.l.b16 %v139
  %v1100 = vunpack.c.l.b16 %v140
  %v1101 = vunpack.c.l.b16 %v141
  %v1102 = vunpack.c.l.b16 %v142
  %v1103 = vunpack.c.l.b16 %v143
  %v1104 = vunpack.c.l.b16 %v144
  %v1105 = vunpack.c.l.b16 %v145
  %v1106 = vpack.c.b16 %v1043, %v1042
  %v1107 = vpack.c.b16 %v1045, %v1044
  %v1108 = vpack.c.b16 %v1047, %v1046
  %v1109 = vpack.c.b16 %v1049, %v1048
  %v1110 = vpack.c.b16 %v1051, %v1050
  %v1111 = vpack.c.b16 %v1053, %v1052
  %v1112 = vpack.c.b16 %v1055, %v1054
  %v1113 = vpack.c.b16 %v1057, %v1056
  %v1114 = vpack.c.b16 %v1059, %v1058
  %v1115 = vpack.c.b16 %v1061, %v1060
  %v1116 = vpack.c.b16 %v1063, %v1062
  %v1117 = vpack.c.b16 %v1065, %v1064
  %v1118 = vpack.c.b16 %v1067, %v1066
  %v1119 = vpack.c.b16 %v1069, %v1068
  %v1120 = vpack.c.b16 %v1071, %v1070
  %v1121 = vpack.c.b16 %v1073, %v1072
  %v1122 = vpack.c.b16 %v1075, %v1074
  %v1123 = vpack.c.b16 %v1077, %v1076
  %v1124 = vpack.c.b16 %v1079, %v1078
  %v1125 = vpack.c.b16 %v1081, %v1080
  %v1126 = vpack.c.b16 %v1083, %v1082
  %v1127 = vpack.c.b16 %v1085, %v1084
  %v1128 = vpack.c.b16 %v1087, %v1086
  %v1129 = vpack.c.b16 %v1089, %v1088
  %v1130 = vpack.c.b16 %v1091, %v1090
  %v1131 = vpack.c.b16 %v1093, %v1092
  %v1132 = vpack.c.b16 %v1095, %v1094
  %v1133 = vpack.c.b16 %v1097, %v1096
  %v1134 = vpack.c.b16 %v1099, %v1098
  %v1135 = vpack.c.b16 %v1101, %v1100
  %v1136 = vpack.c.b16 %v1103, %v1102
  %v1137 = vpack.c.b16 %v1105, %v1104
  %1170 = vmatpush.bf16.msra.mxu0 %v1113
  %1171 = vmatpush.bf16.msra.mxu0 %v1112
  %1172 = vmatpush.bf16.msra.mxu0 %v1111
  %1173 = vmatpush.bf16.msra.mxu0 %v1110
  %1174 = vmatpush.bf16.msra.mxu0 %v1109
  %1175 = vmatpush.bf16.msra.mxu0 %v1108
  %1176 = vmatpush.bf16.msra.mxu0 %v1107
  %1177 = vmatpush.bf16.msra.mxu0 %v1106
  %1178 = vmatmul.bf16.gmra.mxu0 %v722
  %v1179 = vpop.f32.mrf.mxu0
  %v1180 = vadd.f32 0.0, %v1179
  %v1181 = vpop.f32.mrf.mxu0
  %v1182 = vadd.f32 0.0, %v1181
  %1183 = vmatmul.bf16.gmra.mxu0 %v726
  %v1184 = vpop.f32.mrf.mxu0
  %v1185 = vadd.f32 0.0, %v1184
  %v1186 = vpop.f32.mrf.mxu0
  %v1187 = vadd.f32 0.0, %v1186
  %1188 = vmatmul.bf16.gmra.mxu0 %v730
  %v1189 = vpop.f32.mrf.mxu0
  %v1190 = vadd.f32 0.0, %v1189
  %v1191 = vpop.f32.mrf.mxu0
  %v1192 = vadd.f32 0.0, %v1191
  %1193 = vmatmul.bf16.gmra.mxu0 %v734
  %v1194 = vpop.f32.mrf.mxu0
  %v1195 = vadd.f32 0.0, %v1194
  %v1196 = vpop.f32.mrf.mxu0
  %v1197 = vadd.f32 0.0, %v1196
  %1198 = vmatmul.bf16.gmra.mxu0 %v738
  %v1199 = vpop.f32.mrf.mxu0
  %v1200 = vadd.f32 0.0, %v1199
  %v1201 = vpop.f32.mrf.mxu0
  %v1202 = vadd.f32 0.0, %v1201
  %1203 = vmatmul.bf16.gmra.mxu0 %v742
  %v1204 = vpop.f32.mrf.mxu0
  %v1205 = vadd.f32 0.0, %v1204
  %v1206 = vpop.f32.mrf.mxu0
  %v1207 = vadd.f32 0.0, %v1206
  %1208 = vmatmul.bf16.gmra.mxu0 %v746
  %v1209 = vpop.f32.mrf.mxu0
  %v1210 = vadd.f32 0.0, %v1209
  %v1211 = vpop.f32.mrf.mxu0
  %v1212 = vadd.f32 0.0, %v1211
  %1213 = vmatmul.bf16.gmra.mxu0 %v750
  %v1214 = vpop.f32.mrf.mxu0
  %v1215 = vadd.f32 0.0, %v1214
  %v1216 = vpop.f32.mrf.mxu0
  %v1217 = vadd.f32 0.0, %v1216
  %1218 = vmatmul.bf16.gmra.mxu0 %v754
  %v1219 = vpop.f32.mrf.mxu0
  %v1220 = vadd.f32 0.0, %v1219
  %v1221 = vpop.f32.mrf.mxu0
  %v1222 = vadd.f32 0.0, %v1221
  %1223 = vmatmul.bf16.gmra.mxu0 %v758
  %v1224 = vpop.f32.mrf.mxu0
  %v1225 = vadd.f32 0.0, %v1224
  %v1226 = vpop.f32.mrf.mxu0
  %v1227 = vadd.f32 0.0, %v1226
  %1228 = vmatmul.bf16.gmra.mxu0 %v762
  %v1229 = vpop.f32.mrf.mxu0
  %v1230 = vadd.f32 0.0, %v1229
  %v1231 = vpop.f32.mrf.mxu0
  %v1232 = vadd.f32 0.0, %v1231
  %1233 = vmatmul.bf16.gmra.mxu0 %v766
  %v1234 = vpop.f32.mrf.mxu0
  %v1235 = vadd.f32 0.0, %v1234
  %v1236 = vpop.f32.mrf.mxu0
  %v1237 = vadd.f32 0.0, %v1236
  %1238 = vmatmul.bf16.gmra.mxu0 %v770
  %v1239 = vpop.f32.mrf.mxu0
  %v1240 = vadd.f32 0.0, %v1239
  %v1241 = vpop.f32.mrf.mxu0
  %v1242 = vadd.f32 0.0, %v1241
  %1243 = vmatmul.bf16.gmra.mxu0 %v774
  %v1244 = vpop.f32.mrf.mxu0
  %v1245 = vadd.f32 0.0, %v1244
  %v1246 = vpop.f32.mrf.mxu0
  %v1247 = vadd.f32 0.0, %v1246
  %1248 = vmatmul.bf16.gmra.mxu0 %v778
  %v1249 = vpop.f32.mrf.mxu0
  %v1250 = vadd.f32 0.0, %v1249
  %v1251 = vpop.f32.mrf.mxu0
  %v1252 = vadd.f32 0.0, %v1251
  %1253 = vmatmul.bf16.gmra.mxu0 %v782
  %v1254 = vpop.f32.mrf.mxu0
  %v1255 = vadd.f32 0.0, %v1254
  %v1256 = vpop.f32.mrf.mxu0
  %v1257 = vadd.f32 0.0, %v1256
  %1258 = vmatmul.bf16.gmra.mxu0 %v786
  %v1259 = vpop.f32.mrf.mxu0
  %v1260 = vadd.f32 0.0, %v1259
  %v1261 = vpop.f32.mrf.mxu0
  %v1262 = vadd.f32 0.0, %v1261
  %1263 = vmatmul.bf16.gmra.mxu0 %v790
  %v1264 = vpop.f32.mrf.mxu0
  %v1265 = vadd.f32 0.0, %v1264
  %v1266 = vpop.f32.mrf.mxu0
  %v1267 = vadd.f32 0.0, %v1266
  %1268 = vmatmul.bf16.gmra.mxu0 %v794
  %v1269 = vpop.f32.mrf.mxu0
  %v1270 = vadd.f32 0.0, %v1269
  %v1271 = vpop.f32.mrf.mxu0
  %v1272 = vadd.f32 0.0, %v1271
  %1273 = vmatmul.bf16.gmra.mxu0 %v798
  %v1274 = vpop.f32.mrf.mxu0
  %v1275 = vadd.f32 0.0, %v1274
  %v1276 = vpop.f32.mrf.mxu0
  %v1277 = vadd.f32 0.0, %v1276
  %1278 = vmatmul.bf16.gmra.mxu0 %v802
  %v1279 = vpop.f32.mrf.mxu0
  %v1280 = vadd.f32 0.0, %v1279
  %v1281 = vpop.f32.mrf.mxu0
  %v1282 = vadd.f32 0.0, %v1281
  %1283 = vmatmul.bf16.gmra.mxu0 %v806
  %v1284 = vpop.f32.mrf.mxu0
  %v1285 = vadd.f32 0.0, %v1284
  %v1286 = vpop.f32.mrf.mxu0
  %v1287 = vadd.f32 0.0, %v1286
  %1288 = vmatmul.bf16.gmra.mxu0 %v810
  %v1289 = vpop.f32.mrf.mxu0
  %v1290 = vadd.f32 0.0, %v1289
  %v1291 = vpop.f32.mrf.mxu0
  %v1292 = vadd.f32 0.0, %v1291
  %1293 = vmatmul.bf16.gmra.mxu0 %v814
  %v1294 = vpop.f32.mrf.mxu0
  %v1295 = vadd.f32 0.0, %v1294
  %v1296 = vpop.f32.mrf.mxu0
  %v1297 = vadd.f32 0.0, %v1296
  %1298 = vmatmul.bf16.gmra.mxu0 %v818
  %v1299 = vpop.f32.mrf.mxu0
  %v1300 = vadd.f32 0.0, %v1299
  %v1301 = vpop.f32.mrf.mxu0
  %v1302 = vadd.f32 0.0, %v1301
  %1303 = vmatmul.bf16.gmra.mxu0 %v822
  %v1304 = vpop.f32.mrf.mxu0
  %v1305 = vadd.f32 0.0, %v1304
  %v1306 = vpop.f32.mrf.mxu0
  %v1307 = vadd.f32 0.0, %v1306
  %1308 = vmatmul.bf16.gmra.mxu0 %v826
  %v1309 = vpop.f32.mrf.mxu0
  %v1310 = vadd.f32 0.0, %v1309
  %v1311 = vpop.f32.mrf.mxu0
  %v1312 = vadd.f32 0.0, %v1311
  %1313 = vmatmul.bf16.gmra.mxu0 %v830
  %v1314 = vpop.f32.mrf.mxu0
  %v1315 = vadd.f32 0.0, %v1314
  %v1316 = vpop.f32.mrf.mxu0
  %v1317 = vadd.f32 0.0, %v1316
  %1318 = vmatmul.bf16.gmra.mxu0 %v834
  %v1319 = vpop.f32.mrf.mxu0
  %v1320 = vadd.f32 0.0, %v1319
  %v1321 = vpop.f32.mrf.mxu0
  %v1322 = vadd.f32 0.0, %v1321
  %1323 = vmatmul.bf16.gmra.mxu0 %v838
  %v1324 = vpop.f32.mrf.mxu0
  %v1325 = vadd.f32 0.0, %v1324
  %v1326 = vpop.f32.mrf.mxu0
  %v1327 = vadd.f32 0.0, %v1326
  %1328 = vmatmul.bf16.gmra.mxu0 %v842
  %v1329 = vpop.f32.mrf.mxu0
  %v1330 = vadd.f32 0.0, %v1329
  %v1331 = vpop.f32.mrf.mxu0
  %v1332 = vadd.f32 0.0, %v1331
  %1333 = vmatmul.bf16.gmra.mxu0 %v846
  %v1334 = vpop.f32.mrf.mxu0
  %v1335 = vadd.f32 0.0, %v1334
  %v1336 = vpop.f32.mrf.mxu0
  %v1337 = vadd.f32 0.0, %v1336
  %1338 = vdwg.mxu0
  %1339 = vmatpush.bf16.msra.mxu0 %v1121
  %1340 = vmatpush.bf16.msra.mxu0 %v1120
  %1341 = vmatpush.bf16.msra.mxu0 %v1119
  %1342 = vmatpush.bf16.msra.mxu0 %v1118
  %1343 = vmatpush.bf16.msra.mxu0 %v1117
  %1344 = vmatpush.bf16.msra.mxu0 %v1116
  %1345 = vmatpush.bf16.msra.mxu0 %v1115
  %1346 = vmatpush.bf16.msra.mxu0 %v1114
  %1347 = vmatmul.bf16.gmra.mxu0 %v723
  %v1348 = vpop.f32.mrf.mxu0
  %v1349 = vadd.f32 %v1180, %v1348
  %v1350 = vpop.f32.mrf.mxu0
  %v1351 = vadd.f32 %v1182, %v1350
  %1352 = vmatmul.bf16.gmra.mxu0 %v727
  %v1353 = vpop.f32.mrf.mxu0
  %v1354 = vadd.f32 %v1185, %v1353
  %v1355 = vpop.f32.mrf.mxu0
  %v1356 = vadd.f32 %v1187, %v1355
  %1357 = vmatmul.bf16.gmra.mxu0 %v731
  %v1358 = vpop.f32.mrf.mxu0
  %v1359 = vadd.f32 %v1190, %v1358
  %v1360 = vpop.f32.mrf.mxu0
  %v1361 = vadd.f32 %v1192, %v1360
  %1362 = vmatmul.bf16.gmra.mxu0 %v735
  %v1363 = vpop.f32.mrf.mxu0
  %v1364 = vadd.f32 %v1195, %v1363
  %v1365 = vpop.f32.mrf.mxu0
  %v1366 = vadd.f32 %v1197, %v1365
  %1367 = vmatmul.bf16.gmra.mxu0 %v739
  %v1368 = vpop.f32.mrf.mxu0
  %v1369 = vadd.f32 %v1200, %v1368
  %v1370 = vpop.f32.mrf.mxu0
  %v1371 = vadd.f32 %v1202, %v1370
  %1372 = vmatmul.bf16.gmra.mxu0 %v743
  %v1373 = vpop.f32.mrf.mxu0
  %v1374 = vadd.f32 %v1205, %v1373
  %v1375 = vpop.f32.mrf.mxu0
  %v1376 = vadd.f32 %v1207, %v1375
  %1377 = vmatmul.bf16.gmra.mxu0 %v747
  %v1378 = vpop.f32.mrf.mxu0
  %v1379 = vadd.f32 %v1210, %v1378
  %v1380 = vpop.f32.mrf.mxu0
  %v1381 = vadd.f32 %v1212, %v1380
  %1382 = vmatmul.bf16.gmra.mxu0 %v751
  %v1383 = vpop.f32.mrf.mxu0
  %v1384 = vadd.f32 %v1215, %v1383
  %v1385 = vpop.f32.mrf.mxu0
  %v1386 = vadd.f32 %v1217, %v1385
  %1387 = vmatmul.bf16.gmra.mxu0 %v755
  %v1388 = vpop.f32.mrf.mxu0
  %v1389 = vadd.f32 %v1220, %v1388
  %v1390 = vpop.f32.mrf.mxu0
  %v1391 = vadd.f32 %v1222, %v1390
  %1392 = vmatmul.bf16.gmra.mxu0 %v759
  %v1393 = vpop.f32.mrf.mxu0
  %v1394 = vadd.f32 %v1225, %v1393
  %v1395 = vpop.f32.mrf.mxu0
  %v1396 = vadd.f32 %v1227, %v1395
  %1397 = vmatmul.bf16.gmra.mxu0 %v763
  %v1398 = vpop.f32.mrf.mxu0
  %v1399 = vadd.f32 %v1230, %v1398
  %v1400 = vpop.f32.mrf.mxu0
  %v1401 = vadd.f32 %v1232, %v1400
  %1402 = vmatmul.bf16.gmra.mxu0 %v767
  %v1403 = vpop.f32.mrf.mxu0
  %v1404 = vadd.f32 %v1235, %v1403
  %v1405 = vpop.f32.mrf.mxu0
  %v1406 = vadd.f32 %v1237, %v1405
  %1407 = vmatmul.bf16.gmra.mxu0 %v771
  %v1408 = vpop.f32.mrf.mxu0
  %v1409 = vadd.f32 %v1240, %v1408
  %v1410 = vpop.f32.mrf.mxu0
  %v1411 = vadd.f32 %v1242, %v1410
  %1412 = vmatmul.bf16.gmra.mxu0 %v775
  %v1413 = vpop.f32.mrf.mxu0
  %v1414 = vadd.f32 %v1245, %v1413
  %v1415 = vpop.f32.mrf.mxu0
  %v1416 = vadd.f32 %v1247, %v1415
  %1417 = vmatmul.bf16.gmra.mxu0 %v779
  %v1418 = vpop.f32.mrf.mxu0
  %v1419 = vadd.f32 %v1250, %v1418
  %v1420 = vpop.f32.mrf.mxu0
  %v1421 = vadd.f32 %v1252, %v1420
  %1422 = vmatmul.bf16.gmra.mxu0 %v783
  %v1423 = vpop.f32.mrf.mxu0
  %v1424 = vadd.f32 %v1255, %v1423
  %v1425 = vpop.f32.mrf.mxu0
  %v1426 = vadd.f32 %v1257, %v1425
  %1427 = vmatmul.bf16.gmra.mxu0 %v787
  %v1428 = vpop.f32.mrf.mxu0
  %v1429 = vadd.f32 %v1260, %v1428
  %v1430 = vpop.f32.mrf.mxu0
  %v1431 = vadd.f32 %v1262, %v1430
  %1432 = vmatmul.bf16.gmra.mxu0 %v791
  %v1433 = vpop.f32.mrf.mxu0
  %v1434 = vadd.f32 %v1265, %v1433
  %v1435 = vpop.f32.mrf.mxu0
  %v1436 = vadd.f32 %v1267, %v1435
  %1437 = vmatmul.bf16.gmra.mxu0 %v795
  %v1438 = vpop.f32.mrf.mxu0
  %v1439 = vadd.f32 %v1270, %v1438
  %v1440 = vpop.f32.mrf.mxu0
  %v1441 = vadd.f32 %v1272, %v1440
  %1442 = vmatmul.bf16.gmra.mxu0 %v799
  %v1443 = vpop.f32.mrf.mxu0
  %v1444 = vadd.f32 %v1275, %v1443
  %v1445 = vpop.f32.mrf.mxu0
  %v1446 = vadd.f32 %v1277, %v1445
  %1447 = vmatmul.bf16.gmra.mxu0 %v803
  %v1448 = vpop.f32.mrf.mxu0
  %v1449 = vadd.f32 %v1280, %v1448
  %v1450 = vpop.f32.mrf.mxu0
  %v1451 = vadd.f32 %v1282, %v1450
  %1452 = vmatmul.bf16.gmra.mxu0 %v807
  %v1453 = vpop.f32.mrf.mxu0
  %v1454 = vadd.f32 %v1285, %v1453
  %v1455 = vpop.f32.mrf.mxu0
  %v1456 = vadd.f32 %v1287, %v1455
  %1457 = vmatmul.bf16.gmra.mxu0 %v811
  %v1458 = vpop.f32.mrf.mxu0
  %v1459 = vadd.f32 %v1290, %v1458
  %v1460 = vpop.f32.mrf.mxu0
  %v1461 = vadd.f32 %v1292, %v1460
  %1462 = vmatmul.bf16.gmra.mxu0 %v815
  %v1463 = vpop.f32.mrf.mxu0
  %v1464 = vadd.f32 %v1295, %v1463
  %v1465 = vpop.f32.mrf.mxu0
  %v1466 = vadd.f32 %v1297, %v1465
  %1467 = vmatmul.bf16.gmra.mxu0 %v819
  %v1468 = vpop.f32.mrf.mxu0
  %v1469 = vadd.f32 %v1300, %v1468
  %v1470 = vpop.f32.mrf.mxu0
  %v1471 = vadd.f32 %v1302, %v1470
  %1472 = vmatmul.bf16.gmra.mxu0 %v823
  %v1473 = vpop.f32.mrf.mxu0
  %v1474 = vadd.f32 %v1305, %v1473
  %v1475 = vpop.f32.mrf.mxu0
  %v1476 = vadd.f32 %v1307, %v1475
  %1477 = vmatmul.bf16.gmra.mxu0 %v827
  %v1478 = vpop.f32.mrf.mxu0
  %v1479 = vadd.f32 %v1310, %v1478
  %v1480 = vpop.f32.mrf.mxu0
  %v1481 = vadd.f32 %v1312, %v1480
  %1482 = vmatmul.bf16.gmra.mxu0 %v831
  %v1483 = vpop.f32.mrf.mxu0
  %v1484 = vadd.f32 %v1315, %v1483
  %v1485 = vpop.f32.mrf.mxu0
  %v1486 = vadd.f32 %v1317, %v1485
  %1487 = vmatmul.bf16.gmra.mxu0 %v835
  %v1488 = vpop.f32.mrf.mxu0
  %v1489 = vadd.f32 %v1320, %v1488
  %v1490 = vpop.f32.mrf.mxu0
  %v1491 = vadd.f32 %v1322, %v1490
  %1492 = vmatmul.bf16.gmra.mxu0 %v839
  %v1493 = vpop.f32.mrf.mxu0
  %v1494 = vadd.f32 %v1325, %v1493
  %v1495 = vpop.f32.mrf.mxu0
  %v1496 = vadd.f32 %v1327, %v1495
  %1497 = vmatmul.bf16.gmra.mxu0 %v843
  %v1498 = vpop.f32.mrf.mxu0
  %v1499 = vadd.f32 %v1330, %v1498
  %v1500 = vpop.f32.mrf.mxu0
  %v1501 = vadd.f32 %v1332, %v1500
  %1502 = vmatmul.bf16.gmra.mxu0 %v847
  %v1503 = vpop.f32.mrf.mxu0
  %v1504 = vadd.f32 %v1335, %v1503
  %v1505 = vpop.f32.mrf.mxu0
  %v1506 = vadd.f32 %v1337, %v1505
  %1507 = vdwg.mxu0
  %1508 = vmatpush.bf16.msra.mxu0 %v1129
  %1509 = vmatpush.bf16.msra.mxu0 %v1128
  %1510 = vmatpush.bf16.msra.mxu0 %v1127
  %1511 = vmatpush.bf16.msra.mxu0 %v1126
  %1512 = vmatpush.bf16.msra.mxu0 %v1125
  %1513 = vmatpush.bf16.msra.mxu0 %v1124
  %1514 = vmatpush.bf16.msra.mxu0 %v1123
  %1515 = vmatpush.bf16.msra.mxu0 %v1122
  %1516 = vmatmul.bf16.gmra.mxu0 %v724
  %v1517 = vpop.f32.mrf.mxu0
  %v1518 = vadd.f32 %v1349, %v1517
  %v1519 = vpop.f32.mrf.mxu0
  %v1520 = vadd.f32 %v1351, %v1519
  %1521 = vmatmul.bf16.gmra.mxu0 %v728
  %v1522 = vpop.f32.mrf.mxu0
  %v1523 = vadd.f32 %v1354, %v1522
  %v1524 = vpop.f32.mrf.mxu0
  %v1525 = vadd.f32 %v1356, %v1524
  %1526 = vmatmul.bf16.gmra.mxu0 %v732
  %v1527 = vpop.f32.mrf.mxu0
  %v1528 = vadd.f32 %v1359, %v1527
  %v1529 = vpop.f32.mrf.mxu0
  %v1530 = vadd.f32 %v1361, %v1529
  %1531 = vmatmul.bf16.gmra.mxu0 %v736
  %v1532 = vpop.f32.mrf.mxu0
  %v1533 = vadd.f32 %v1364, %v1532
  %v1534 = vpop.f32.mrf.mxu0
  %v1535 = vadd.f32 %v1366, %v1534
  %1536 = vmatmul.bf16.gmra.mxu0 %v740
  %v1537 = vpop.f32.mrf.mxu0
  %v1538 = vadd.f32 %v1369, %v1537
  %v1539 = vpop.f32.mrf.mxu0
  %v1540 = vadd.f32 %v1371, %v1539
  %1541 = vmatmul.bf16.gmra.mxu0 %v744
  %v1542 = vpop.f32.mrf.mxu0
  %v1543 = vadd.f32 %v1374, %v1542
  %v1544 = vpop.f32.mrf.mxu0
  %v1545 = vadd.f32 %v1376, %v1544
  %1546 = vmatmul.bf16.gmra.mxu0 %v748
  %v1547 = vpop.f32.mrf.mxu0
  %v1548 = vadd.f32 %v1379, %v1547
  %v1549 = vpop.f32.mrf.mxu0
  %v1550 = vadd.f32 %v1381, %v1549
  %1551 = vmatmul.bf16.gmra.mxu0 %v752
  %v1552 = vpop.f32.mrf.mxu0
  %v1553 = vadd.f32 %v1384, %v1552
  %v1554 = vpop.f32.mrf.mxu0
  %v1555 = vadd.f32 %v1386, %v1554
  %1556 = vmatmul.bf16.gmra.mxu0 %v756
  %v1557 = vpop.f32.mrf.mxu0
  %v1558 = vadd.f32 %v1389, %v1557
  %v1559 = vpop.f32.mrf.mxu0
  %v1560 = vadd.f32 %v1391, %v1559
  %1561 = vmatmul.bf16.gmra.mxu0 %v760
  %v1562 = vpop.f32.mrf.mxu0
  %v1563 = vadd.f32 %v1394, %v1562
  %v1564 = vpop.f32.mrf.mxu0
  %v1565 = vadd.f32 %v1396, %v1564
  %1566 = vmatmul.bf16.gmra.mxu0 %v764
  %v1567 = vpop.f32.mrf.mxu0
  %v1568 = vadd.f32 %v1399, %v1567
  %v1569 = vpop.f32.mrf.mxu0
  %v1570 = vadd.f32 %v1401, %v1569
  %1571 = vmatmul.bf16.gmra.mxu0 %v768
  %v1572 = vpop.f32.mrf.mxu0
  %v1573 = vadd.f32 %v1404, %v1572
  %v1574 = vpop.f32.mrf.mxu0
  %v1575 = vadd.f32 %v1406, %v1574
  %1576 = vmatmul.bf16.gmra.mxu0 %v772
  %v1577 = vpop.f32.mrf.mxu0
  %v1578 = vadd.f32 %v1409, %v1577
  %v1579 = vpop.f32.mrf.mxu0
  %v1580 = vadd.f32 %v1411, %v1579
  %1581 = vmatmul.bf16.gmra.mxu0 %v776
  %v1582 = vpop.f32.mrf.mxu0
  %v1583 = vadd.f32 %v1414, %v1582
  %v1584 = vpop.f32.mrf.mxu0
  %v1585 = vadd.f32 %v1416, %v1584
  %1586 = vmatmul.bf16.gmra.mxu0 %v780
  %v1587 = vpop.f32.mrf.mxu0
  %v1588 = vadd.f32 %v1419, %v1587
  %v1589 = vpop.f32.mrf.mxu0
  %v1590 = vadd.f32 %v1421, %v1589
  %1591 = vmatmul.bf16.gmra.mxu0 %v784
  %v1592 = vpop.f32.mrf.mxu0
  %v1593 = vadd.f32 %v1424, %v1592
  %v1594 = vpop.f32.mrf.mxu0
  %v1595 = vadd.f32 %v1426, %v1594
  %1596 = vmatmul.bf16.gmra.mxu0 %v788
  %v1597 = vpop.f32.mrf.mxu0
  %v1598 = vadd.f32 %v1429, %v1597
  %v1599 = vpop.f32.mrf.mxu0
  %v1600 = vadd.f32 %v1431, %v1599
  %1601 = vmatmul.bf16.gmra.mxu0 %v792
  %v1602 = vpop.f32.mrf.mxu0
  %v1603 = vadd.f32 %v1434, %v1602
  %v1604 = vpop.f32.mrf.mxu0
  %v1605 = vadd.f32 %v1436, %v1604
  %1606 = vmatmul.bf16.gmra.mxu0 %v796
  %v1607 = vpop.f32.mrf.mxu0
  %v1608 = vadd.f32 %v1439, %v1607
  %v1609 = vpop.f32.mrf.mxu0
  %v1610 = vadd.f32 %v1441, %v1609
  %1611 = vmatmul.bf16.gmra.mxu0 %v800
  %v1612 = vpop.f32.mrf.mxu0
  %v1613 = vadd.f32 %v1444, %v1612
  %v1614 = vpop.f32.mrf.mxu0
  %v1615 = vadd.f32 %v1446, %v1614
  %1616 = vmatmul.bf16.gmra.mxu0 %v804
  %v1617 = vpop.f32.mrf.mxu0
  %v1618 = vadd.f32 %v1449, %v1617
  %v1619 = vpop.f32.mrf.mxu0
  %v1620 = vadd.f32 %v1451, %v1619
  %1621 = vmatmul.bf16.gmra.mxu0 %v808
  %v1622 = vpop.f32.mrf.mxu0
  %v1623 = vadd.f32 %v1454, %v1622
  %v1624 = vpop.f32.mrf.mxu0
  %v1625 = vadd.f32 %v1456, %v1624
  %1626 = vmatmul.bf16.gmra.mxu0 %v812
  %v1627 = vpop.f32.mrf.mxu0
  %v1628 = vadd.f32 %v1459, %v1627
  %v1629 = vpop.f32.mrf.mxu0
  %v1630 = vadd.f32 %v1461, %v1629
  %1631 = vmatmul.bf16.gmra.mxu0 %v816
  %v1632 = vpop.f32.mrf.mxu0
  %v1633 = vadd.f32 %v1464, %v1632
  %v1634 = vpop.f32.mrf.mxu0
  %v1635 = vadd.f32 %v1466, %v1634
  %1636 = vmatmul.bf16.gmra.mxu0 %v820
  %v1637 = vpop.f32.mrf.mxu0
  %v1638 = vadd.f32 %v1469, %v1637
  %v1639 = vpop.f32.mrf.mxu0
  %v1640 = vadd.f32 %v1471, %v1639
  %1641 = vmatmul.bf16.gmra.mxu0 %v824
  %v1642 = vpop.f32.mrf.mxu0
  %v1643 = vadd.f32 %v1474, %v1642
  %v1644 = vpop.f32.mrf.mxu0
  %v1645 = vadd.f32 %v1476, %v1644
  %1646 = vmatmul.bf16.gmra.mxu0 %v828
  %v1647 = vpop.f32.mrf.mxu0
  %v1648 = vadd.f32 %v1479, %v1647
  %v1649 = vpop.f32.mrf.mxu0
  %v1650 = vadd.f32 %v1481, %v1649
  %1651 = vmatmul.bf16.gmra.mxu0 %v832
  %v1652 = vpop.f32.mrf.mxu0
  %v1653 = vadd.f32 %v1484, %v1652
  %v1654 = vpop.f32.mrf.mxu0
  %v1655 = vadd.f32 %v1486, %v1654
  %1656 = vmatmul.bf16.gmra.mxu0 %v836
  %v1657 = vpop.f32.mrf.mxu0
  %v1658 = vadd.f32 %v1489, %v1657
  %v1659 = vpop.f32.mrf.mxu0
  %v1660 = vadd.f32 %v1491, %v1659
  %1661 = vmatmul.bf16.gmra.mxu0 %v840
  %v1662 = vpop.f32.mrf.mxu0
  %v1663 = vadd.f32 %v1494, %v1662
  %v1664 = vpop.f32.mrf.mxu0
  %v1665 = vadd.f32 %v1496, %v1664
  %1666 = vmatmul.bf16.gmra.mxu0 %v844
  %v1667 = vpop.f32.mrf.mxu0
  %v1668 = vadd.f32 %v1499, %v1667
  %v1669 = vpop.f32.mrf.mxu0
  %v1670 = vadd.f32 %v1501, %v1669
  %1671 = vmatmul.bf16.gmra.mxu0 %v848
  %v1672 = vpop.f32.mrf.mxu0
  %v1673 = vadd.f32 %v1504, %v1672
  %v1674 = vpop.f32.mrf.mxu0
  %v1675 = vadd.f32 %v1506, %v1674
  %1676 = vdwg.mxu0
  %1677 = vmatpush.bf16.msra.mxu0 %v1137
  %1678 = vmatpush.bf16.msra.mxu0 %v1136
  %1679 = vmatpush.bf16.msra.mxu0 %v1135
  %1680 = vmatpush.bf16.msra.mxu0 %v1134
  %1681 = vmatpush.bf16.msra.mxu0 %v1133
  %1682 = vmatpush.bf16.msra.mxu0 %v1132
  %1683 = vmatpush.bf16.msra.mxu0 %v1131
  %1684 = vmatpush.bf16.msra.mxu0 %v1130
  %1685 = vmatmul.bf16.gmra.mxu0 %v725
  %v1686 = vpop.f32.mrf.mxu0
  %v1687 = vadd.f32 %v1518, %v1686
  %v1688 = vpop.f32.mrf.mxu0
  %v1689 = vadd.f32 %v1520, %v1688
  %1690 = vmatmul.bf16.gmra.mxu0 %v729
  %v1691 = vpop.f32.mrf.mxu0
  %v1692 = vadd.f32 %v1523, %v1691
  %v1693 = vpop.f32.mrf.mxu0
  %v1694 = vadd.f32 %v1525, %v1693
  %1695 = vmatmul.bf16.gmra.mxu0 %v733
  %v1696 = vpop.f32.mrf.mxu0
  %v1697 = vadd.f32 %v1528, %v1696
  %v1698 = vpop.f32.mrf.mxu0
  %v1699 = vadd.f32 %v1530, %v1698
  %1700 = vmatmul.bf16.gmra.mxu0 %v737
  %v1701 = vpop.f32.mrf.mxu0
  %v1702 = vadd.f32 %v1533, %v1701
  %v1703 = vpop.f32.mrf.mxu0
  %v1704 = vadd.f32 %v1535, %v1703
  %1705 = vmatmul.bf16.gmra.mxu0 %v741
  %v1706 = vpop.f32.mrf.mxu0
  %v1707 = vadd.f32 %v1538, %v1706
  %v1708 = vpop.f32.mrf.mxu0
  %v1709 = vadd.f32 %v1540, %v1708
  %1710 = vmatmul.bf16.gmra.mxu0 %v745
  %v1711 = vpop.f32.mrf.mxu0
  %v1712 = vadd.f32 %v1543, %v1711
  %v1713 = vpop.f32.mrf.mxu0
  %v1714 = vadd.f32 %v1545, %v1713
  %1715 = vmatmul.bf16.gmra.mxu0 %v749
  %v1716 = vpop.f32.mrf.mxu0
  %v1717 = vadd.f32 %v1548, %v1716
  %v1718 = vpop.f32.mrf.mxu0
  %v1719 = vadd.f32 %v1550, %v1718
  %1720 = vmatmul.bf16.gmra.mxu0 %v753
  %v1721 = vpop.f32.mrf.mxu0
  %v1722 = vadd.f32 %v1553, %v1721
  %v1723 = vpop.f32.mrf.mxu0
  %v1724 = vadd.f32 %v1555, %v1723
  %1725 = vmatmul.bf16.gmra.mxu0 %v757
  %v1726 = vpop.f32.mrf.mxu0
  %v1727 = vadd.f32 %v1558, %v1726
  %v1728 = vpop.f32.mrf.mxu0
  %v1729 = vadd.f32 %v1560, %v1728
  %1730 = vmatmul.bf16.gmra.mxu0 %v761
  %v1731 = vpop.f32.mrf.mxu0
  %v1732 = vadd.f32 %v1563, %v1731
  %v1733 = vpop.f32.mrf.mxu0
  %v1734 = vadd.f32 %v1565, %v1733
  %1735 = vmatmul.bf16.gmra.mxu0 %v765
  %v1736 = vpop.f32.mrf.mxu0
  %v1737 = vadd.f32 %v1568, %v1736
  %v1738 = vpop.f32.mrf.mxu0
  %v1739 = vadd.f32 %v1570, %v1738
  %1740 = vmatmul.bf16.gmra.mxu0 %v769
  %v1741 = vpop.f32.mrf.mxu0
  %v1742 = vadd.f32 %v1573, %v1741
  %v1743 = vpop.f32.mrf.mxu0
  %v1744 = vadd.f32 %v1575, %v1743
  %1745 = vmatmul.bf16.gmra.mxu0 %v773
  %v1746 = vpop.f32.mrf.mxu0
  %v1747 = vadd.f32 %v1578, %v1746
  %v1748 = vpop.f32.mrf.mxu0
  %v1749 = vadd.f32 %v1580, %v1748
  %1750 = vmatmul.bf16.gmra.mxu0 %v777
  %v1751 = vpop.f32.mrf.mxu0
  %v1752 = vadd.f32 %v1583, %v1751
  %v1753 = vpop.f32.mrf.mxu0
  %v1754 = vadd.f32 %v1585, %v1753
  %1755 = vmatmul.bf16.gmra.mxu0 %v781
  %v1756 = vpop.f32.mrf.mxu0
  %v1757 = vadd.f32 %v1588, %v1756
  %v1758 = vpop.f32.mrf.mxu0
  %v1759 = vadd.f32 %v1590, %v1758
  %1760 = vmatmul.bf16.gmra.mxu0 %v785
  %v1761 = vpop.f32.mrf.mxu0
  %v1762 = vadd.f32 %v1593, %v1761
  %v1763 = vpop.f32.mrf.mxu0
  %v1764 = vadd.f32 %v1595, %v1763
  %1765 = vmatmul.bf16.gmra.mxu0 %v789
  %v1766 = vpop.f32.mrf.mxu0
  %v1767 = vadd.f32 %v1598, %v1766
  %v1768 = vpop.f32.mrf.mxu0
  %v1769 = vadd.f32 %v1600, %v1768
  %1770 = vmatmul.bf16.gmra.mxu0 %v793
  %v1771 = vpop.f32.mrf.mxu0
  %v1772 = vadd.f32 %v1603, %v1771
  %v1773 = vpop.f32.mrf.mxu0
  %v1774 = vadd.f32 %v1605, %v1773
  %1775 = vmatmul.bf16.gmra.mxu0 %v797
  %v1776 = vpop.f32.mrf.mxu0
  %v1777 = vadd.f32 %v1608, %v1776
  %v1778 = vpop.f32.mrf.mxu0
  %v1779 = vadd.f32 %v1610, %v1778
  %1780 = vmatmul.bf16.gmra.mxu0 %v801
  %v1781 = vpop.f32.mrf.mxu0
  %v1782 = vadd.f32 %v1613, %v1781
  %v1783 = vpop.f32.mrf.mxu0
  %v1784 = vadd.f32 %v1615, %v1783
  %1785 = vmatmul.bf16.gmra.mxu0 %v805
  %v1786 = vpop.f32.mrf.mxu0
  %v1787 = vadd.f32 %v1618, %v1786
  %v1788 = vpop.f32.mrf.mxu0
  %v1789 = vadd.f32 %v1620, %v1788
  %1790 = vmatmul.bf16.gmra.mxu0 %v809
  %v1791 = vpop.f32.mrf.mxu0
  %v1792 = vadd.f32 %v1623, %v1791
  %v1793 = vpop.f32.mrf.mxu0
  %v1794 = vadd.f32 %v1625, %v1793
  %1795 = vmatmul.bf16.gmra.mxu0 %v813
  %v1796 = vpop.f32.mrf.mxu0
  %v1797 = vadd.f32 %v1628, %v1796
  %v1798 = vpop.f32.mrf.mxu0
  %v1799 = vadd.f32 %v1630, %v1798
  %1800 = vmatmul.bf16.gmra.mxu0 %v817
  %v1801 = vpop.f32.mrf.mxu0
  %v1802 = vadd.f32 %v1633, %v1801
  %v1803 = vpop.f32.mrf.mxu0
  %v1804 = vadd.f32 %v1635, %v1803
  %1805 = vmatmul.bf16.gmra.mxu0 %v821
  %v1806 = vpop.f32.mrf.mxu0
  %v1807 = vadd.f32 %v1638, %v1806
  %v1808 = vpop.f32.mrf.mxu0
  %v1809 = vadd.f32 %v1640, %v1808
  %1810 = vmatmul.bf16.gmra.mxu0 %v825
  %v1811 = vpop.f32.mrf.mxu0
  %v1812 = vadd.f32 %v1643, %v1811
  %v1813 = vpop.f32.mrf.mxu0
  %v1814 = vadd.f32 %v1645, %v1813
  %1815 = vmatmul.bf16.gmra.mxu0 %v829
  %v1816 = vpop.f32.mrf.mxu0
  %v1817 = vadd.f32 %v1648, %v1816
  %v1818 = vpop.f32.mrf.mxu0
  %v1819 = vadd.f32 %v1650, %v1818
  %1820 = vmatmul.bf16.gmra.mxu0 %v833
  %v1821 = vpop.f32.mrf.mxu0
  %v1822 = vadd.f32 %v1653, %v1821
  %v1823 = vpop.f32.mrf.mxu0
  %v1824 = vadd.f32 %v1655, %v1823
  %1825 = vmatmul.bf16.gmra.mxu0 %v837
  %v1826 = vpop.f32.mrf.mxu0
  %v1827 = vadd.f32 %v1658, %v1826
  %v1828 = vpop.f32.mrf.mxu0
  %v1829 = vadd.f32 %v1660, %v1828
  %1830 = vmatmul.bf16.gmra.mxu0 %v841
  %v1831 = vpop.f32.mrf.mxu0
  %v1832 = vadd.f32 %v1663, %v1831
  %v1833 = vpop.f32.mrf.mxu0
  %v1834 = vadd.f32 %v1665, %v1833
  %1835 = vmatmul.bf16.gmra.mxu0 %v845
  %v1836 = vpop.f32.mrf.mxu0
  %v1837 = vadd.f32 %v1668, %v1836
  %v1838 = vpop.f32.mrf.mxu0
  %v1839 = vadd.f32 %v1670, %v1838
  %1840 = vmatmul.bf16.gmra.mxu0 %v849
  %v1841 = vpop.f32.mrf.mxu0
  %v1842 = vadd.f32 %v1673, %v1841
  %v1843 = vpop.f32.mrf.mxu0
  %v1844 = vadd.f32 %v1675, %v1843
  %1845 = vdwg.mxu0
  %v1846 = vadd.f32 %v146, %v1687
  %v1847 = vadd.f32 %v147, %v1689
  %v1848 = vadd.f32 %v148, %v1692
  %v1849 = vadd.f32 %v149, %v1694
  %v1850 = vadd.f32 %v150, %v1697
  %v1851 = vadd.f32 %v151, %v1699
  %v1852 = vadd.f32 %v152, %v1702
  %v1853 = vadd.f32 %v153, %v1704
  %v1854 = vadd.f32 %v154, %v1707
  %v1855 = vadd.f32 %v155, %v1709
  %v1856 = vadd.f32 %v156, %v1712
  %v1857 = vadd.f32 %v157, %v1714
  %v1858 = vadd.f32 %v158, %v1717
  %v1859 = vadd.f32 %v159, %v1719
  %v1860 = vadd.f32 %v160, %v1722
  %v1861 = vadd.f32 %v161, %v1724
  %v1862 = vadd.f32 %v162, %v1727
  %v1863 = vadd.f32 %v163, %v1729
  %v1864 = vadd.f32 %v164, %v1732
  %v1865 = vadd.f32 %v165, %v1734
  %v1866 = vadd.f32 %v166, %v1737
  %v1867 = vadd.f32 %v167, %v1739
  %v1868 = vadd.f32 %v168, %v1742
  %v1869 = vadd.f32 %v169, %v1744
  %v1870 = vadd.f32 %v170, %v1747
  %v1871 = vadd.f32 %v171, %v1749
  %v1872 = vadd.f32 %v172, %v1752
  %v1873 = vadd.f32 %v173, %v1754
  %v1874 = vadd.f32 %v174, %v1757
  %v1875 = vadd.f32 %v175, %v1759
  %v1876 = vadd.f32 %v176, %v1762
  %v1877 = vadd.f32 %v177, %v1764
  %v1878 = vadd.f32 %v178, %v1767
  %v1879 = vadd.f32 %v179, %v1769
  %v1880 = vadd.f32 %v180, %v1772
  %v1881 = vadd.f32 %v181, %v1774
  %v1882 = vadd.f32 %v182, %v1777
  %v1883 = vadd.f32 %v183, %v1779
  %v1884 = vadd.f32 %v184, %v1782
  %v1885 = vadd.f32 %v185, %v1784
  %v1886 = vadd.f32 %v186, %v1787
  %v1887 = vadd.f32 %v187, %v1789
  %v1888 = vadd.f32 %v188, %v1792
  %v1889 = vadd.f32 %v189, %v1794
  %v1890 = vadd.f32 %v190, %v1797
  %v1891 = vadd.f32 %v191, %v1799
  %v1892 = vadd.f32 %v192, %v1802
  %v1893 = vadd.f32 %v193, %v1804
  %v1894 = vadd.f32 %v194, %v1807
  %v1895 = vadd.f32 %v195, %v1809
  %v1896 = vadd.f32 %v196, %v1812
  %v1897 = vadd.f32 %v197, %v1814
  %v1898 = vadd.f32 %v198, %v1817
  %v1899 = vadd.f32 %v199, %v1819
  %v1900 = vadd.f32 %v200, %v1822
  %v1901 = vadd.f32 %v201, %v1824
  %v1902 = vadd.f32 %v202, %v1827
  %v1903 = vadd.f32 %v203, %v1829
  %v1904 = vadd.f32 %v204, %v1832
  %v1905 = vadd.f32 %v205, %v1834
  %v1906 = vadd.f32 %v206, %v1837
  %v1907 = vadd.f32 %v207, %v1839
  %v1908 = vadd.f32 %v208, %v1842
  %v1909 = vadd.f32 %v209, %v1844
  %1910 = vst [vmem:[#allocation2] sm:$0xff] %v1846
  %1911 = vst [vmem:[#allocation2 + $0x8] sm:$0xff] %v1847
  %1912 = vst [vmem:[#allocation2 + $0x10] sm:$0xff] %v1848
  %1913 = vst [vmem:[#allocation2 + $0x18] sm:$0xff] %v1849
  %1914 = vst [vmem:[#allocation2 + $0x20] sm:$0xff] %v1850
  %1915 = vst [vmem:[#allocation2 + $0x28] sm:$0xff] %v1851
  %1916 = vst [vmem:[#allocation2 + $0x30] sm:$0xff] %v1852
  %1917 = vst [vmem:[#allocation2 + $0x38] sm:$0xff] %v1853
  %1918 = vst [vmem:[#allocation2 + $0x40] sm:$0xff] %v1854
  %1919 = vst [vmem:[#allocation2 + $0x48] sm:$0xff] %v1855
  %1920 = vst [vmem:[#allocation2 + $0x50] sm:$0xff] %v1856
  %1921 = vst [vmem:[#allocation2 + $0x58] sm:$0xff] %v1857
  %1922 = vst [vmem:[#allocation2 + $0x60] sm:$0xff] %v1858
  %1923 = vst [vmem:[#allocation2 + $0x68] sm:$0xff] %v1859
  %1924 = vst [vmem:[#allocation2 + $0x70] sm:$0xff] %v1860
  %1925 = vst [vmem:[#allocation2 + $0x78] sm:$0xff] %v1861
  %1926 = vst [vmem:[#allocation2 + $0x80] sm:$0xff] %v1862
  %1927 = vst [vmem:[#allocation2 + $0x88] sm:$0xff] %v1863
  %1928 = vst [vmem:[#allocation2 + $0x90] sm:$0xff] %v1864
  %1929 = vst [vmem:[#allocation2 + $0x98] sm:$0xff] %v1865
  %1930 = vst [vmem:[#allocation2 + $0xa0] sm:$0xff] %v1866
  %1931 = vst [vmem:[#allocation2 + $0xa8] sm:$0xff] %v1867
  %1932 = vst [vmem:[#allocation2 + $0xb0] sm:$0xff] %v1868
  %1933 = vst [vmem:[#allocation2 + $0xb8] sm:$0xff] %v1869
  %1934 = vst [vmem:[#allocation2 + $0xc0] sm:$0xff] %v1870
  %1935 = vst [vmem:[#allocation2 + $0xc8] sm:$0xff] %v1871
  %1936 = vst [vmem:[#allocation2 + $0xd0] sm:$0xff] %v1872
  %1937 = vst [vmem:[#allocation2 + $0xd8] sm:$0xff] %v1873
  %1938 = vst [vmem:[#allocation2 + $0xe0] sm:$0xff] %v1874
  %1939 = vst [vmem:[#allocation2 + $0xe8] sm:$0xff] %v1875
  %1940 = vst [vmem:[#allocation2 + $0xf0] sm:$0xff] %v1876
  %1941 = vst [vmem:[#allocation2 + $0xf8] sm:$0xff] %v1877
  %1942 = vst [vmem:[#allocation2 + $0x100] sm:$0xff] %v1878
  %1943 = vst [vmem:[#allocation2 + $0x108] sm:$0xff] %v1879
  %1944 = vst [vmem:[#allocation2 + $0x110] sm:$0xff] %v1880
  %1945 = vst [vmem:[#allocation2 + $0x118] sm:$0xff] %v1881
  %1946 = vst [vmem:[#allocation2 + $0x120] sm:$0xff] %v1882
  %1947 = vst [vmem:[#allocation2 + $0x128] sm:$0xff] %v1883
  %1948 = vst [vmem:[#allocation2 + $0x130] sm:$0xff] %v1884
  %1949 = vst [vmem:[#allocation2 + $0x138] sm:$0xff] %v1885
  %1950 = vst [vmem:[#allocation2 + $0x140] sm:$0xff] %v1886
  %1951 = vst [vmem:[#allocation2 + $0x148] sm:$0xff] %v1887
  %1952 = vst [vmem:[#allocation2 + $0x150] sm:$0xff] %v1888
  %1953 = vst [vmem:[#allocation2 + $0x158] sm:$0xff] %v1889
  %1954 = vst [vmem:[#allocation2 + $0x160] sm:$0xff] %v1890
  %1955 = vst [vmem:[#allocation2 + $0x168] sm:$0xff] %v1891
  %1956 = vst [vmem:[#allocation2 + $0x170] sm:$0xff] %v1892
  %1957 = vst [vmem:[#allocation2 + $0x178] sm:$0xff] %v1893
  %1958 = vst [vmem:[#allocation2 + $0x180] sm:$0xff] %v1894
  %1959 = vst [vmem:[#allocation2 + $0x188] sm:$0xff] %v1895
  %1960 = vst [vmem:[#allocation2 + $0x190] sm:$0xff] %v1896
  %1961 = vst [vmem:[#allocation2 + $0x198] sm:$0xff] %v1897
  %1962 = vst [vmem:[#allocation2 + $0x1a0] sm:$0xff] %v1898
  %1963 = vst [vmem:[#allocation2 + $0x1a8] sm:$0xff] %v1899
  %1964 = vst [vmem:[#allocation2 + $0x1b0] sm:$0xff] %v1900
  %1965 = vst [vmem:[#allocation2 + $0x1b8] sm:$0xff] %v1901
  %1966 = vst [vmem:[#allocation2 + $0x1c0] sm:$0xff] %v1902
  %1967 = vst [vmem:[#allocation2 + $0x1c8] sm:$0xff] %v1903
  %1968 = vst [vmem:[#allocation2 + $0x1d0] sm:$0xff] %v1904
  %1969 = vst [vmem:[#allocation2 + $0x1d8] sm:$0xff] %v1905
  %1970 = vst [vmem:[#allocation2 + $0x1e0] sm:$0xff] %v1906
  %1971 = vst [vmem:[#allocation2 + $0x1e8] sm:$0xff] %v1907
  %1972 = vst [vmem:[#allocation2 + $0x1f0] sm:$0xff] %v1908
  %1973 = vst [vmem:[#allocation2 + $0x1f8] sm:$0xff] %v1909
  // Predicated region
  $region18: #{resnet_generator_forward.49} parent=0 // pred_check
    %p1974 = pneg %p14
  $region19: #{resnet_generator_forward.49} parent=0 // pred_check_branch
    %1976 = sbr.rel (%p1974) target = $region21
  $region20: #{resnet_generator_forward.49} parent=0 // pred_region
    %v1977 = vld [vmem:[#allocation2] sm:$0xff]
    %v1978 = vld [vmem:[#allocation2 + $0x8] sm:$0xff]
    %v1979 = vld [vmem:[#allocation2 + $0x10] sm:$0xff]
    %v1980 = vld [vmem:[#allocation2 + $0x18] sm:$0xff]
    %v1981 = vld [vmem:[#allocation2 + $0x20] sm:$0xff]
    %v1982 = vld [vmem:[#allocation2 + $0x28] sm:$0xff]
    %v1983 = vld [vmem:[#allocation2 + $0x30] sm:$0xff]
    %v1984 = vld [vmem:[#allocation2 + $0x38] sm:$0xff]
    %v1985 = vld [vmem:[#allocation2 + $0x40] sm:$0xff]
    %v1986 = vld [vmem:[#allocation2 + $0x48] sm:$0xff]
    %v1987 = vld [vmem:[#allocation2 + $0x50] sm:$0xff]
    %v1988 = vld [vmem:[#allocation2 + $0x58] sm:$0xff]
    %v1989 = vld [vmem:[#allocation2 + $0x60] sm:$0xff]
    %v1990 = vld [vmem:[#allocation2 + $0x68] sm:$0xff]
    %v1991 = vld [vmem:[#allocation2 + $0x70] sm:$0xff]
    %v1992 = vld [vmem:[#allocation2 + $0x78] sm:$0xff]
    %v1993 = vld [vmem:[#allocation2 + $0x80] sm:$0xff]
    %v1994 = vld [vmem:[#allocation2 + $0x88] sm:$0xff]
    %v1995 = vld [vmem:[#allocation2 + $0x90] sm:$0xff]
    %v1996 = vld [vmem:[#allocation2 + $0x98] sm:$0xff]
    %v1997 = vld [vmem:[#allocation2 + $0xa0] sm:$0xff]
    %v1998 = vld [vmem:[#allocation2 + $0xa8] sm:$0xff]
    %v1999 = vld [vmem:[#allocation2 + $0xb0] sm:$0xff]
    %v2000 = vld [vmem:[#allocation2 + $0xb8] sm:$0xff]
    %v2001 = vld [vmem:[#allocation2 + $0xc0] sm:$0xff]
    %v2002 = vld [vmem:[#allocation2 + $0xc8] sm:$0xff]
    %v2003 = vld [vmem:[#allocation2 + $0xd0] sm:$0xff]
    %v2004 = vld [vmem:[#allocation2 + $0xd8] sm:$0xff]
    %v2005 = vld [vmem:[#allocation2 + $0xe0] sm:$0xff]
    %v2006 = vld [vmem:[#allocation2 + $0xe8] sm:$0xff]
    %v2007 = vld [vmem:[#allocation2 + $0xf0] sm:$0xff]
    %v2008 = vld [vmem:[#allocation2 + $0xf8] sm:$0xff]
    %v2009 = vld [vmem:[#allocation2 + $0x100] sm:$0xff]
    %v2010 = vld [vmem:[#allocation2 + $0x108] sm:$0xff]
    %v2011 = vld [vmem:[#allocation2 + $0x110] sm:$0xff]
    %v2012 = vld [vmem:[#allocation2 + $0x118] sm:$0xff]
    %v2013 = vld [vmem:[#allocation2 + $0x120] sm:$0xff]
    %v2014 = vld [vmem:[#allocation2 + $0x128] sm:$0xff]
    %v2015 = vld [vmem:[#allocation2 + $0x130] sm:$0xff]
    %v2016 = vld [vmem:[#allocation2 + $0x138] sm:$0xff]
    %v2017 = vld [vmem:[#allocation2 + $0x140] sm:$0xff]
    %v2018 = vld [vmem:[#allocation2 + $0x148] sm:$0xff]
    %v2019 = vld [vmem:[#allocation2 + $0x150] sm:$0xff]
    %v2020 = vld [vmem:[#allocation2 + $0x158] sm:$0xff]
    %v2021 = vld [vmem:[#allocation2 + $0x160] sm:$0xff]
    %v2022 = vld [vmem:[#allocation2 + $0x168] sm:$0xff]
    %v2023 = vld [vmem:[#allocation2 + $0x170] sm:$0xff]
    %v2024 = vld [vmem:[#allocation2 + $0x178] sm:$0xff]
    %v2025 = vld [vmem:[#allocation2 + $0x180] sm:$0xff]
    %v2026 = vld [vmem:[#allocation2 + $0x188] sm:$0xff]
    %v2027 = vld [vmem:[#allocation2 + $0x190] sm:$0xff]
    %v2028 = vld [vmem:[#allocation2 + $0x198] sm:$0xff]
    %v2029 = vld [vmem:[#allocation2 + $0x1a0] sm:$0xff]
    %v2030 = vld [vmem:[#allocation2 + $0x1a8] sm:$0xff]
    %v2031 = vld [vmem:[#allocation2 + $0x1b0] sm:$0xff]
    %v2032 = vld [vmem:[#allocation2 + $0x1b8] sm:$0xff]
    %v2033 = vld [vmem:[#allocation2 + $0x1c0] sm:$0xff]
    %v2034 = vld [vmem:[#allocation2 + $0x1c8] sm:$0xff]
    %v2035 = vld [vmem:[#allocation2 + $0x1d0] sm:$0xff]
    %v2036 = vld [vmem:[#allocation2 + $0x1d8] sm:$0xff]
    %v2037 = vld [vmem:[#allocation2 + $0x1e0] sm:$0xff]
    %v2038 = vld [vmem:[#allocation2 + $0x1e8] sm:$0xff]
    %v2039 = vld [vmem:[#allocation2 + $0x1f0] sm:$0xff]
    %v2040 = vld [vmem:[#allocation2 + $0x1f8] sm:$0xff]
    %v2041 = vld [vmem:[%s2] sm:$0x1]
    %v2043 = vperm.slane %v2041, 0
    %v2045 = vadd.f32 %v1977, %v2043
    %v2046 = vadd.f32 %v1978, %v2043
    %v2047 = vadd.f32 %v1979, %v2043
    %v2048 = vadd.f32 %v1980, %v2043
    %v2049 = vadd.f32 %v1981, %v2043
    %v2050 = vadd.f32 %v1982, %v2043
    %v2051 = vadd.f32 %v1983, %v2043
    %v2052 = vadd.f32 %v1984, %v2043
    %v2053 = vadd.f32 %v1985, %v2043
    %v2054 = vadd.f32 %v1986, %v2043
    %v2055 = vadd.f32 %v1987, %v2043
    %v2056 = vadd.f32 %v1988, %v2043
    %v2057 = vadd.f32 %v1989, %v2043
    %v2058 = vadd.f32 %v1990, %v2043
    %v2059 = vadd.f32 %v1991, %v2043
    %v2060 = vadd.f32 %v1992, %v2043
    %v2061 = vadd.f32 %v1993, %v2043
    %v2062 = vadd.f32 %v1994, %v2043
    %v2063 = vadd.f32 %v1995, %v2043
    %v2064 = vadd.f32 %v1996, %v2043
    %v2065 = vadd.f32 %v1997, %v2043
    %v2066 = vadd.f32 %v1998, %v2043
    %v2067 = vadd.f32 %v1999, %v2043
    %v2068 = vadd.f32 %v2000, %v2043
    %v2069 = vadd.f32 %v2001, %v2043
    %v2070 = vadd.f32 %v2002, %v2043
    %v2071 = vadd.f32 %v2003, %v2043
    %v2072 = vadd.f32 %v2004, %v2043
    %v2073 = vadd.f32 %v2005, %v2043
    %v2074 = vadd.f32 %v2006, %v2043
    %v2075 = vadd.f32 %v2007, %v2043
    %v2076 = vadd.f32 %v2008, %v2043
    %v2077 = vadd.f32 %v2009, %v2043
    %v2078 = vadd.f32 %v2010, %v2043
    %v2079 = vadd.f32 %v2011, %v2043
    %v2080 = vadd.f32 %v2012, %v2043
    %v2081 = vadd.f32 %v2013, %v2043
    %v2082 = vadd.f32 %v2014, %v2043
    %v2083 = vadd.f32 %v2015, %v2043
    %v2084 = vadd.f32 %v2016, %v2043
    %v2085 = vadd.f32 %v2017, %v2043
    %v2086 = vadd.f32 %v2018, %v2043
    %v2087 = vadd.f32 %v2019, %v2043
    %v2088 = vadd.f32 %v2020, %v2043
    %v2089 = vadd.f32 %v2021, %v2043
    %v2090 = vadd.f32 %v2022, %v2043
    %v2091 = vadd.f32 %v2023, %v2043
    %v2092 = vadd.f32 %v2024, %v2043
    %v2093 = vadd.f32 %v2025, %v2043
    %v2094 = vadd.f32 %v2026, %v2043
    %v2095 = vadd.f32 %v2027, %v2043
    %v2096 = vadd.f32 %v2028, %v2043
    %v2097 = vadd.f32 %v2029, %v2043
    %v2098 = vadd.f32 %v2030, %v2043
    %v2099 = vadd.f32 %v2031, %v2043
    %v2100 = vadd.f32 %v2032, %v2043
    %v2101 = vadd.f32 %v2033, %v2043
    %v2102 = vadd.f32 %v2034, %v2043
    %v2103 = vadd.f32 %v2035, %v2043
    %v2104 = vadd.f32 %v2036, %v2043
    %v2105 = vadd.f32 %v2037, %v2043
    %v2106 = vadd.f32 %v2038, %v2043
    %v2107 = vadd.f32 %v2039, %v2043
    %v2108 = vadd.f32 %v2040, %v2043
    %v2109 = vtanh.pop %v2045
    %v2110 = vtanh.pop %v2046
    %v2111 = vtanh.pop %v2047
    %v2112 = vtanh.pop %v2048
    %v2113 = vtanh.pop %v2049
    %v2114 = vtanh.pop %v2050
    %v2115 = vtanh.pop %v2051
    %v2116 = vtanh.pop %v2052
    %v2117 = vtanh.pop %v2053
    %v2118 = vtanh.pop %v2054
    %v2119 = vtanh.pop %v2055
    %v2120 = vtanh.pop %v2056
    %v2121 = vtanh.pop %v2057
    %v2122 = vtanh.pop %v2058
    %v2123 = vtanh.pop %v2059
    %v2124 = vtanh.pop %v2060
    %v2125 = vtanh.pop %v2061
    %v2126 = vtanh.pop %v2062
    %v2127 = vtanh.pop %v2063
    %v2128 = vtanh.pop %v2064
    %v2129 = vtanh.pop %v2065
    %v2130 = vtanh.pop %v2066
    %v2131 = vtanh.pop %v2067
    %v2132 = vtanh.pop %v2068
    %v2133 = vtanh.pop %v2069
    %v2134 = vtanh.pop %v2070
    %v2135 = vtanh.pop %v2071
    %v2136 = vtanh.pop %v2072
    %v2137 = vtanh.pop %v2073
    %v2138 = vtanh.pop %v2074
    %v2139 = vtanh.pop %v2075
    %v2140 = vtanh.pop %v2076
    %v2141 = vtanh.pop %v2077
    %v2142 = vtanh.pop %v2078
    %v2143 = vtanh.pop %v2079
    %v2144 = vtanh.pop %v2080
    %v2145 = vtanh.pop %v2081
    %v2146 = vtanh.pop %v2082
    %v2147 = vtanh.pop %v2083
    %v2148 = vtanh.pop %v2084
    %v2149 = vtanh.pop %v2085
    %v2150 = vtanh.pop %v2086
    %v2151 = vtanh.pop %v2087
    %v2152 = vtanh.pop %v2088
    %v2153 = vtanh.pop %v2089
    %v2154 = vtanh.pop %v2090
    %v2155 = vtanh.pop %v2091
    %v2156 = vtanh.pop %v2092
    %v2157 = vtanh.pop %v2093
    %v2158 = vtanh.pop %v2094
    %v2159 = vtanh.pop %v2095
    %v2160 = vtanh.pop %v2096
    %v2161 = vtanh.pop %v2097
    %v2162 = vtanh.pop %v2098
    %v2163 = vtanh.pop %v2099
    %v2164 = vtanh.pop %v2100
    %v2165 = vtanh.pop %v2101
    %v2166 = vtanh.pop %v2102
    %v2167 = vtanh.pop %v2103
    %v2168 = vtanh.pop %v2104
    %v2169 = vtanh.pop %v2105
    %v2170 = vtanh.pop %v2106
    %v2171 = vtanh.pop %v2107
    %v2172 = vtanh.pop %v2108
    %2173 = vst [vmem:[%s3] sm:$0xff] %v2109
    %2174 = vst [vmem:[%s3 + $0x8] sm:$0xff] %v2110
    %2175 = vst [vmem:[%s3 + $0x10] sm:$0xff] %v2111
    %2176 = vst [vmem:[%s3 + $0x18] sm:$0xff] %v2112
    %2177 = vst [vmem:[%s3 + $0x20] sm:$0xff] %v2113
    %2178 = vst [vmem:[%s3 + $0x28] sm:$0xff] %v2114
    %2179 = vst [vmem:[%s3 + $0x30] sm:$0xff] %v2115
    %2180 = vst [vmem:[%s3 + $0x38] sm:$0xff] %v2116
    %2181 = vst [vmem:[%s3 + $0x40] sm:$0xff] %v2117
    %2182 = vst [vmem:[%s3 + $0x48] sm:$0xff] %v2118
    %2183 = vst [vmem:[%s3 + $0x50] sm:$0xff] %v2119
    %2184 = vst [vmem:[%s3 + $0x58] sm:$0xff] %v2120
    %2185 = vst [vmem:[%s3 + $0x60] sm:$0xff] %v2121
    %2186 = vst [vmem:[%s3 + $0x68] sm:$0xff] %v2122
    %2187 = vst [vmem:[%s3 + $0x70] sm:$0xff] %v2123
    %2188 = vst [vmem:[%s3 + $0x78] sm:$0xff] %v2124
    %2189 = vst [vmem:[%s3 + $0x80] sm:$0xff] %v2125
    %2190 = vst [vmem:[%s3 + $0x88] sm:$0xff] %v2126
    %2191 = vst [vmem:[%s3 + $0x90] sm:$0xff] %v2127
    %2192 = vst [vmem:[%s3 + $0x98] sm:$0xff] %v2128
    %2193 = vst [vmem:[%s3 + $0xa0] sm:$0xff] %v2129
    %2194 = vst [vmem:[%s3 + $0xa8] sm:$0xff] %v2130
    %2195 = vst [vmem:[%s3 + $0xb0] sm:$0xff] %v2131
    %2196 = vst [vmem:[%s3 + $0xb8] sm:$0xff] %v2132
    %2197 = vst [vmem:[%s3 + $0xc0] sm:$0xff] %v2133
    %2198 = vst [vmem:[%s3 + $0xc8] sm:$0xff] %v2134
    %2199 = vst [vmem:[%s3 + $0xd0] sm:$0xff] %v2135
    %2200 = vst [vmem:[%s3 + $0xd8] sm:$0xff] %v2136
    %2201 = vst [vmem:[%s3 + $0xe0] sm:$0xff] %v2137
    %2202 = vst [vmem:[%s3 + $0xe8] sm:$0xff] %v2138
    %2203 = vst [vmem:[%s3 + $0xf0] sm:$0xff] %v2139
    %2204 = vst [vmem:[%s3 + $0xf8] sm:$0xff] %v2140
    %2205 = vst [vmem:[%s3 + $0x100] sm:$0xff] %v2141
    %2206 = vst [vmem:[%s3 + $0x108] sm:$0xff] %v2142
    %2207 = vst [vmem:[%s3 + $0x110] sm:$0xff] %v2143
    %2208 = vst [vmem:[%s3 + $0x118] sm:$0xff] %v2144
    %2209 = vst [vmem:[%s3 + $0x120] sm:$0xff] %v2145
    %2210 = vst [vmem:[%s3 + $0x128] sm:$0xff] %v2146
    %2211 = vst [vmem:[%s3 + $0x130] sm:$0xff] %v2147
    %2212 = vst [vmem:[%s3 + $0x138] sm:$0xff] %v2148
    %2213 = vst [vmem:[%s3 + $0x140] sm:$0xff] %v2149
    %2214 = vst [vmem:[%s3 + $0x148] sm:$0xff] %v2150
    %2215 = vst [vmem:[%s3 + $0x150] sm:$0xff] %v2151
    %2216 = vst [vmem:[%s3 + $0x158] sm:$0xff] %v2152
    %2217 = vst [vmem:[%s3 + $0x160] sm:$0xff] %v2153
    %2218 = vst [vmem:[%s3 + $0x168] sm:$0xff] %v2154
    %2219 = vst [vmem:[%s3 + $0x170] sm:$0xff] %v2155
    %2220 = vst [vmem:[%s3 + $0x178] sm:$0xff] %v2156
    %2221 = vst [vmem:[%s3 + $0x180] sm:$0xff] %v2157
    %2222 = vst [vmem:[%s3 + $0x188] sm:$0xff] %v2158
    %2223 = vst [vmem:[%s3 + $0x190] sm:$0xff] %v2159
    %2224 = vst [vmem:[%s3 + $0x198] sm:$0xff] %v2160
    %2225 = vst [vmem:[%s3 + $0x1a0] sm:$0xff] %v2161
    %2226 = vst [vmem:[%s3 + $0x1a8] sm:$0xff] %v2162
    %2227 = vst [vmem:[%s3 + $0x1b0] sm:$0xff] %v2163
    %2228 = vst [vmem:[%s3 + $0x1b8] sm:$0xff] %v2164
    %2229 = vst [vmem:[%s3 + $0x1c0] sm:$0xff] %v2165
    %2230 = vst [vmem:[%s3 + $0x1c8] sm:$0xff] %v2166
    %2231 = vst [vmem:[%s3 + $0x1d0] sm:$0xff] %v2167
    %2232 = vst [vmem:[%s3 + $0x1d8] sm:$0xff] %v2168
    %2233 = vst [vmem:[%s3 + $0x1e0] sm:$0xff] %v2169
    %2234 = vst [vmem:[%s3 + $0x1e8] sm:$0xff] %v2170
    %2235 = vst [vmem:[%s3 + $0x1f0] sm:$0xff] %v2171
    %2236 = vst [vmem:[%s3 + $0x1f8] sm:$0xff] %v2172
  $region21: #{resnet_generator_forward.49} parent=0 // pred_fallthru
    _
  // Predicated region
  $region22: #{resnet_generator_forward.49} parent=0 // pred_check
    _
  $region23: #{resnet_generator_forward.49} parent=0 // pred_check_branch
    %2238 = sbr.rel (0) target = $region25
  $region24: #{resnet_generator_forward.49} parent=0 // pred_region
    _
  $region25: #{resnet_generator_forward.49} parent=0 // pred_fallthru
    _
  // Predicated region
  $region26: #{resnet_generator_forward.49} parent=0 // pred_check
    _
  $region27: #{resnet_generator_forward.49} parent=0 // pred_check_branch
    %2240 = sbr.rel (0) target = $region29
  $region28: #{resnet_generator_forward.49} parent=0 // pred_region
    _
  $region29: #{resnet_generator_forward.49} parent=0 // pred_fallthru
    _

</llo_original>
